<compile_context>
chip_gen: v6e
topology: v6e:2x2x1
jax: 0.10.0
libtpu: 0.0.40
codegen_flags: <defaults>
</compile_context>

<pallas_src>
import jax
import jax.numpy as jnp
from jax import lax
from jax.experimental import pallas as pl
from jax.experimental.pallas import tpu as pltpu

INPUT_SIZE = 220
HIDDEN = 64
NUM_TOKENS = 11
MAX_LEN = 30
GATES = 4 * HIDDEN          # 256
LANE_PAD = 128              # lane-dense logits width (wrapper slices back to NUM_TOKENS)


def net_kernel(x_ref, w1_ref, b1_ref, w2_ref, b2_ref, w3_ref, b3_ref,
               wih_e_ref, wstep_ref, bg_ref, wtok_ref, btok_ref, probs_ref):
    batch = x_ref.shape[0]

    # ---- embedder: Linear(220,64)+ReLU -> Linear(64,64)+ReLU -> Linear(64,64)+ReLU ----
    e = jnp.maximum(jnp.dot(x_ref[...], w1_ref[...],
                            preferred_element_type=jnp.float32) + b1_ref[...], 0.0)
    e = jnp.maximum(jnp.dot(e, w2_ref[...],
                            preferred_element_type=jnp.float32) + b2_ref[...], 0.0)
    e = jnp.maximum(jnp.dot(e, w3_ref[...],
                            preferred_element_type=jnp.float32) + b3_ref[...], 0.0)

    # Hoist weight loads and pre-broadcast biases once (outside the serial loop).
    wstep = wstep_ref[...]                                      # (128, 256)
    wtok = wtok_ref[...]                                        # (64, 128)
    bg = jnp.broadcast_to(bg_ref[...], (batch, GATES))          # (B, 256)
    btok = jnp.broadcast_to(btok_ref[...], (batch, LANE_PAD))   # (B, 128), pads = -1e30

    lane_tok = lax.broadcasted_iota(jnp.int32, (batch, LANE_PAD), 1)
    lane_h = lax.broadcasted_iota(jnp.int32, (batch, HIDDEN), 1)

    def cell(gates, c_prev):
        # Gate columns are pre-ordered [i, f, o, g]: one 192-lane sigmoid + one 64-lane tanh.
        sig = jax.nn.sigmoid(gates[:, :3 * HIDDEN])
        g_g = jnp.tanh(gates[:, 3 * HIDDEN:])
        c_new = sig[:, HIDDEN:2 * HIDDEN] * c_prev + sig[:, :HIDDEN] * g_g
        h_new = sig[:, 2 * HIDDEN:3 * HIDDEN] * jnp.tanh(c_new)
        return h_new, c_new

    def emit(step, h):
        # to_tokens projection (lane-padded to 128; pad logits = -1e30 via btok).
        token_dist = jnp.dot(h, wtok, preferred_element_type=jnp.float32) + btok
        probs_ref[step] = token_dist                            # unmasked 128-lane store
        # First-max argmax (matches torch.argmax tie-breaking); pad lanes can never win.
        is_max = token_dist == jnp.max(token_dist, axis=1, keepdims=True)
        top = jnp.min(jnp.where(is_max, lane_tok, LANE_PAD), axis=1, keepdims=True)
        onehot = (lane_h == top).astype(jnp.float32)            # (B, 64); top < 11 always
        # Fused LSTM input for the next step: lanes 0:64 = h, lanes 64:75 = one_hot(token).
        return jnp.concatenate([h, onehot], axis=1)             # (B, 128)

    # ---- step 0 (peeled): h = c = token = 0  =>  gates = emb @ Wih_emb + (b_ih + b_hh) ----
    gates = jnp.dot(e, wih_e_ref[...], preferred_element_type=jnp.float32) + bg
    sig = jax.nn.sigmoid(gates[:, :3 * HIDDEN])
    g_g = jnp.tanh(gates[:, 3 * HIDDEN:])
    c = sig[:, :HIDDEN] * g_g                                   # f * c_prev == 0
    h = sig[:, 2 * HIDDEN:3 * HIDDEN] * jnp.tanh(c)
    x_step = emit(0, h)

    # ---- steps 1..29: fully unrolled, single K=128 matmul per step, state in vregs ----
    for step in range(1, MAX_LEN):
        gates = jnp.dot(x_step, wstep, preferred_element_type=jnp.float32) + bg
        h, c = cell(gates, c)
        x_step = emit(step, h)


def net_forward(x, kparams):
    """x: (batch, 10, 22) one-hot encodings -> (probabilities list, program list)."""
    batch = x.shape[0]
    x_flat = x.reshape(batch, -1).astype(jnp.float32)           # (batch, 220)
    args = (x_flat,) + tuple(kparams)
    # TODO(synk): for large batch on v7x, add a leading grid axis over batch tiles with
    # dimension_semantics=("parallel",) to use the second TensorCore; unnecessary at batch=2.
    probs_padded = pl.pallas_call(
        net_kernel,
        out_shape=jax.ShapeDtypeStruct((MAX_LEN, batch, LANE_PAD), jnp.float32),
        in_specs=[pl.BlockSpec(memory_space=pltpu.MemorySpace.VMEM)] * len(args),
        out_specs=pl.BlockSpec(memory_space=pltpu.MemorySpace.VMEM),
    )(*args)
    probs = probs_padded[..., :NUM_TOKENS]                      # (30, batch, 11)
    program = jnp.argmax(probs, axis=-1)                        # (30, batch)
    return list(probs), list(program)


def init_raw_params(key):
    """PyTorch-layout parameters with PyTorch-style uniform(+-1/sqrt(fan)) init."""
    ks = jax.random.split(key, 12)

    def unif(k, shape, fan):
        bound = 1.0 / jnp.sqrt(jnp.float32(fan))
        return jax.random.uniform(k, shape, jnp.float32, -bound, bound)

    w1 = unif(ks[0], (HIDDEN, INPUT_SIZE), INPUT_SIZE)
    b1 = unif(ks[1], (HIDDEN,), INPUT_SIZE)
    w2 = unif(ks[2], (HIDDEN, HIDDEN), HIDDEN)
    b2 = unif(ks[3], (HIDDEN,), HIDDEN)
    w3 = unif(ks[4], (HIDDEN, HIDDEN), HIDDEN)
    b3 = unif(ks[5], (HIDDEN,), HIDDEN)
    w_ih = unif(ks[6], (GATES, HIDDEN + NUM_TOKENS), HIDDEN)    # torch LSTM: 1/sqrt(hidden)
    w_hh = unif(ks[7], (GATES, HIDDEN), HIDDEN)
    b_ih = unif(ks[8], (GATES,), HIDDEN)
    b_hh = unif(ks[9], (GATES,), HIDDEN)
    w_tok = unif(ks[10], (NUM_TOKENS, HIDDEN), HIDDEN)
    b_tok = unif(ks[11], (NUM_TOKENS,), HIDDEN)
    return (w1, b1, w2, b2, w3, b3, w_ih, w_hh, b_ih, b_hh, w_tok, b_tok)


def pack_params(raw):
    """Transpose / reorder / pad PyTorch-layout weights into kernel layouts."""
    (w1, b1, w2, b2, w3, b3, w_ih, w_hh, b_ih, b_hh, w_tok, b_tok) = raw

    def reorder(m):
        # last axis laid out as PyTorch gates [i, f, g, o] -> kernel order [i, f, o, g]
        i, f, g, o = jnp.split(m, 4, axis=-1)
        return jnp.concatenate([i, f, o, g], axis=-1)

    wih_all = reorder(w_ih.T)                        # (75, 256): rows = [emb(64), tok(11)]
    wih_e = wih_all[:HIDDEN]                         # (64, 256)  embedding slice
    wih_tok = wih_all[HIDDEN:]                       # (11, 256)  token slice
    whh = reorder(w_hh.T)                            # (64, 256)
    bg = reorder((b_ih + b_hh)[None, :])             # (1, 256)

    # Fused recurrence weight: rows 0:64 = W_hh, rows 64:75 = token slice of W_ih, rest 0.
    wstep = jnp.zeros((2 * HIDDEN, GATES), jnp.float32)
    wstep = wstep.at[:HIDDEN].set(whh)
    wstep = wstep.at[HIDDEN:HIDDEN + NUM_TOKENS].set(wih_tok)

    # Lane-padded token head: extra 117 lanes get bias -1e30 so argmax never selects them.
    wtok_pad = jnp.zeros((HIDDEN, LANE_PAD), jnp.float32).at[:, :NUM_TOKENS].set(w_tok.T)
    btok_pad = jnp.full((1, LANE_PAD), -1e30, jnp.float32).at[:, :NUM_TOKENS].set(b_tok[None, :])

    return (w1.T, b1[None, :], w2.T, b2[None, :], w3.T, b3[None, :],
            wih_e, wstep, bg, wtok_pad, btok_pad)


def reference_forward(x, raw):
    """Pure-JAX mirror of the PyTorch forward (gate order [i,f,g,o]) for correctness."""
    (w1, b1, w2, b2, w3, b3, w_ih, w_hh, b_ih, b_hh, w_tok, b_tok) = raw
    batch = x.shape[0]
    e = x.reshape(batch, -1).astype(jnp.float32)
    e = jnp.maximum(e @ w1.T + b1, 0.0)
    e = jnp.maximum(e @ w2.T + b2, 0.0)
    e = jnp.maximum(e @ w3.T + b3, 0.0)
    h = jnp.zeros((batch, HIDDEN), jnp.float32)
    c = jnp.zeros((batch, HIDDEN), jnp.float32)
    inp = jnp.concatenate([e, jnp.zeros((batch, NUM_TOKENS), jnp.float32)], axis=1)
    probs = []
    for _ in range(MAX_LEN):
        gates = inp @ w_ih.T + h @ w_hh.T + b_ih + b_hh
        i_g = jax.nn.sigmoid(gates[:, :HIDDEN])
        f_g = jax.nn.sigmoid(gates[:, HIDDEN:2 * HIDDEN])
        g_g = jnp.tanh(gates[:, 2 * HIDDEN:3 * HIDDEN])
        o_g = jax.nn.sigmoid(gates[:, 3 * HIDDEN:])
        c = f_g * c + i_g * g_g
        h = o_g * jnp.tanh(c)
        td = h @ w_tok.T + b_tok
        probs.append(td)
        top = jnp.argmax(td, axis=1)
        inp = jnp.concatenate([jnp.zeros((batch, HIDDEN), jnp.float32),
                               jax.nn.one_hot(top, NUM_TOKENS, dtype=jnp.float32)], axis=1)
    return jnp.stack(probs)


if __name__ == "__main__":
    key = jax.random.PRNGKey(0)
    kx, kp = jax.random.split(key)

    batch = 2
    # NOTE: the module docstring says (batch, 10, 18) but input_size=220 requires the
    # flattened per-example vector to have 220 elements, so we use (batch, 10, 22).
    token_ids = jax.random.randint(kx, (batch, 10), 0, 22)
    x = jax.nn.one_hot(token_ids, 22, dtype=jnp.float32)        # (2, 10, 22)

    raw_params = init_raw_params(kp)
    kernel_params = pack_params(raw_params)

    probabilities, program = net_forward(x, kernel_params)
    probs_stacked = jnp.stack(probabilities)                    # (30, batch, 11)
    program_stacked = jnp.stack(program)                        # (30, batch)
    jax.block_until_ready(probs_stacked)
    jax.block_until_ready(program_stacked)

    ref = reference_forward(x, raw_params)
    assert jnp.allclose(probs_stacked, ref, rtol=1e-4, atol=1e-4), "mismatch vs reference"
    assert jnp.array_equal(program_stacked, jnp.argmax(ref, axis=-1)), "token mismatch"

    print("KERNEL_OK")
</pallas_src>

<mosaic_0001>
module attributes {stable_mosaic.version = 11 : i64} {
  func.func @net_kernel(%arg0: memref<2x220xf32, #tpu.memory_space<vmem>>, %arg1: memref<220x64xf32, #tpu.memory_space<vmem>>, %arg2: memref<1x64xf32, #tpu.memory_space<vmem>>, %arg3: memref<64x64xf32, #tpu.memory_space<vmem>>, %arg4: memref<1x64xf32, #tpu.memory_space<vmem>>, %arg5: memref<64x64xf32, #tpu.memory_space<vmem>>, %arg6: memref<1x64xf32, #tpu.memory_space<vmem>>, %arg7: memref<64x256xf32, #tpu.memory_space<vmem>>, %arg8: memref<128x256xf32, #tpu.memory_space<vmem>>, %arg9: memref<1x256xf32, #tpu.memory_space<vmem>>, %arg10: memref<64x128xf32, #tpu.memory_space<vmem>>, %arg11: memref<1x128xf32, #tpu.memory_space<vmem>>, %arg12: memref<30x2x128xf32, #tpu.memory_space<vmem>>) attributes {dimension_semantics = [], scalar_prefetch = 0 : i64, scratch_operands = 0 : i64, tpu.core_type = #tpu.core_type<tc>} {
    %c0 = arith.constant 0 : index
    %c0_0 = arith.constant 0 : index
    %0 = vector.load %arg0[%c0, %c0_0] : memref<2x220xf32, #tpu.memory_space<vmem>>, vector<2x220xf32>
    %c0_1 = arith.constant 0 : index
    %c0_2 = arith.constant 0 : index
    %1 = vector.load %arg1[%c0_1, %c0_2] : memref<220x64xf32, #tpu.memory_space<vmem>>, vector<220x64xf32>
    %cst = arith.constant dense<0.000000e+00> : vector<2x64xf32>
    %2 = tpu.matmul %0, %1, %cst {dimension_numbers = #tpu.dot_dimension_numbers<[1], [0], [0], [1], [0, 0, 1, 1], [], []>} : vector<2x220xf32>, vector<220x64xf32>, vector<2x64xf32> -> vector<2x64xf32>
    %c0_3 = arith.constant 0 : index
    %c0_4 = arith.constant 0 : index
    %3 = vector.load %arg2[%c0_3, %c0_4] : memref<1x64xf32, #tpu.memory_space<vmem>>, vector<1x64xf32>
    %4 = vector.broadcast %3 : vector<1x64xf32> to vector<2x64xf32>
    %5 = arith.addf %2, %4 : vector<2x64xf32>
    %cst_5 = arith.constant 0.000000e+00 : f32
    %6 = vector.broadcast %cst_5 : f32 to vector<2x64xf32>
    %7 = arith.maximumf %5, %6 : vector<2x64xf32>
    %c0_6 = arith.constant 0 : index
    %c0_7 = arith.constant 0 : index
    %8 = vector.load %arg3[%c0_6, %c0_7] : memref<64x64xf32, #tpu.memory_space<vmem>>, vector<64x64xf32>
    %cst_8 = arith.constant dense<0.000000e+00> : vector<2x64xf32>
    %9 = tpu.matmul %7, %8, %cst_8 {dimension_numbers = #tpu.dot_dimension_numbers<[1], [0], [0], [1], [0, 0, 1, 1], [], []>} : vector<2x64xf32>, vector<64x64xf32>, vector<2x64xf32> -> vector<2x64xf32>
    %c0_9 = arith.constant 0 : index
    %c0_10 = arith.constant 0 : index
    %10 = vector.load %arg4[%c0_9, %c0_10] : memref<1x64xf32, #tpu.memory_space<vmem>>, vector<1x64xf32>
    %11 = vector.broadcast %10 : vector<1x64xf32> to vector<2x64xf32>
    %12 = arith.addf %9, %11 : vector<2x64xf32>
    %cst_11 = arith.constant 0.000000e+00 : f32
    %13 = vector.broadcast %cst_11 : f32 to vector<2x64xf32>
    %14 = arith.maximumf %12, %13 : vector<2x64xf32>
    %c0_12 = arith.constant 0 : index
    %c0_13 = arith.constant 0 : index
    %15 = vector.load %arg5[%c0_12, %c0_13] : memref<64x64xf32, #tpu.memory_space<vmem>>, vector<64x64xf32>
    %cst_14 = arith.constant dense<0.000000e+00> : vector<2x64xf32>
    %16 = tpu.matmul %14, %15, %cst_14 {dimension_numbers = #tpu.dot_dimension_numbers<[1], [0], [0], [1], [0, 0, 1, 1], [], []>} : vector<2x64xf32>, vector<64x64xf32>, vector<2x64xf32> -> vector<2x64xf32>
    %c0_15 = arith.constant 0 : index
    %c0_16 = arith.constant 0 : index
    %17 = vector.load %arg6[%c0_15, %c0_16] : memref<1x64xf32, #tpu.memory_space<vmem>>, vector<1x64xf32>
    %18 = vector.broadcast %17 : vector<1x64xf32> to vector<2x64xf32>
    %19 = arith.addf %16, %18 : vector<2x64xf32>
    %cst_17 = arith.constant 0.000000e+00 : f32
    %20 = vector.broadcast %cst_17 : f32 to vector<2x64xf32>
    %21 = arith.maximumf %19, %20 : vector<2x64xf32>
    %c0_18 = arith.constant 0 : index
    %c0_19 = arith.constant 0 : index
    %22 = vector.load %arg8[%c0_18, %c0_19] : memref<128x256xf32, #tpu.memory_space<vmem>>, vector<128x256xf32>
    %c0_20 = arith.constant 0 : index
    %c0_21 = arith.constant 0 : index
    %23 = vector.load %arg10[%c0_20, %c0_21] : memref<64x128xf32, #tpu.memory_space<vmem>>, vector<64x128xf32>
    %c0_22 = arith.constant 0 : index
    %c0_23 = arith.constant 0 : index
    %24 = vector.load %arg9[%c0_22, %c0_23] : memref<1x256xf32, #tpu.memory_space<vmem>>, vector<1x256xf32>
    %25 = vector.shape_cast %24 : vector<1x256xf32> to vector<1x256xf32>
    %26 = vector.broadcast %25 : vector<1x256xf32> to vector<2x256xf32>
    %c0_24 = arith.constant 0 : index
    %c0_25 = arith.constant 0 : index
    %27 = vector.load %arg11[%c0_24, %c0_25] : memref<1x128xf32, #tpu.memory_space<vmem>>, vector<1x128xf32>
    %28 = vector.shape_cast %27 : vector<1x128xf32> to vector<1x128xf32>
    %29 = vector.broadcast %28 : vector<1x128xf32> to vector<2x128xf32>
    %30 = tpu.iota {dimensions = array<i32: 1>} : vector<2x128xi32>
    %31 = tpu.iota {dimensions = array<i32: 1>} : vector<2x64xi32>
    %c0_26 = arith.constant 0 : index
    %c0_27 = arith.constant 0 : index
    %32 = vector.load %arg7[%c0_26, %c0_27] : memref<64x256xf32, #tpu.memory_space<vmem>>, vector<64x256xf32>
    %cst_28 = arith.constant dense<0.000000e+00> : vector<2x256xf32>
    %33 = tpu.matmul %21, %32, %cst_28 {dimension_numbers = #tpu.dot_dimension_numbers<[1], [0], [0], [1], [0, 0, 1, 1], [], []>} : vector<2x64xf32>, vector<64x256xf32>, vector<2x256xf32> -> vector<2x256xf32>
    %34 = arith.addf %33, %26 : vector<2x256xf32>
    %35 = vector.extract_strided_slice %34 {offsets = [0, 0], sizes = [2, 192], strides = [1, 1]} : vector<2x256xf32> to vector<2x192xf32>
    %36 = arith.negf %35 : vector<2x192xf32>
    %37 = math.exp %36 : vector<2x192xf32>
    %cst_29 = arith.constant 1.000000e+00 : f32
    %38 = vector.broadcast %cst_29 : f32 to vector<2x192xf32>
    %39 = arith.addf %38, %37 : vector<2x192xf32>
    %40 = arith.divf %38, %39 : vector<2x192xf32>
    %41 = vector.extract_strided_slice %34 {offsets = [0, 192], sizes = [2, 64], strides = [1, 1]} : vector<2x256xf32> to vector<2x64xf32>
    %42 = math.tanh %41 : vector<2x64xf32>
    %43 = vector.extract_strided_slice %40 {offsets = [0, 0], sizes = [2, 64], strides = [1, 1]} : vector<2x192xf32> to vector<2x64xf32>
    %44 = arith.mulf %43, %42 : vector<2x64xf32>
    %45 = vector.extract_strided_slice %40 {offsets = [0, 128], sizes = [2, 64], strides = [1, 1]} : vector<2x192xf32> to vector<2x64xf32>
    %46 = math.tanh %44 : vector<2x64xf32>
    %47 = arith.mulf %45, %46 : vector<2x64xf32>
    %cst_30 = arith.constant dense<0.000000e+00> : vector<2x128xf32>
    %48 = tpu.matmul %47, %23, %cst_30 {dimension_numbers = #tpu.dot_dimension_numbers<[1], [0], [0], [1], [0, 0, 1, 1], [], []>} : vector<2x64xf32>, vector<64x128xf32>, vector<2x128xf32> -> vector<2x128xf32>
    %49 = arith.addf %48, %29 : vector<2x128xf32>
    %c0_31 = arith.constant 0 : index
    %c0_32 = arith.constant 0 : index
    %c0_33 = arith.constant 0 : index
    %50 = vector.load %arg12[%c0_31, %c0_32, %c0_33] : memref<30x2x128xf32, #tpu.memory_space<vmem>>, vector<1x2x128xf32>
    %51 = vector.shape_cast %50 : vector<1x2x128xf32> to vector<2x128xf32>
    %52 = vector.shape_cast %49 : vector<2x128xf32> to vector<1x2x128xf32>
    tpu.vector_store %arg12[%c0_31, %c0_32, %c0_33], %52 {strides = array<i32>} : memref<30x2x128xf32, #tpu.memory_space<vmem>>, vector<1x2x128xf32>,
    %cst_34 = arith.constant dense<0xFF800000> : vector<2xf32>
    %53 = vector.multi_reduction <maximumf>, %49, %cst_34 [1] : vector<2x128xf32> to vector<2xf32>
    %54 = vector.shape_cast %53 : vector<2xf32> to vector<2x1xf32>
    %55 = vector.broadcast %54 : vector<2x1xf32> to vector<2x128xf32>
    %56 = arith.cmpf oeq, %49, %55 : vector<2x128xf32>
    %c128_i32 = arith.constant 128 : i32
    %57 = vector.broadcast %c128_i32 : i32 to vector<2x128xi32>
    %58 = arith.select %56, %30, %57 : vector<2x128xi1>, vector<2x128xi32>
    %cst_35 = arith.constant dense<2147483647> : vector<2xi32>
    %59 = vector.multi_reduction <minsi>, %58, %cst_35 [1] : vector<2x128xi32> to vector<2xi32>
    %60 = vector.shape_cast %59 : vector<2xi32> to vector<2x1xi32>
    %61 = vector.broadcast %60 : vector<2x1xi32> to vector<2x64xi32>
    %62 = arith.cmpi eq, %31, %61 : vector<2x64xi32>
    %63 = arith.extui %62 : vector<2x64xi1> to vector<2x64xi32>
    %64 = arith.sitofp %63 : vector<2x64xi32> to vector<2x64xf32>
    %65 = tpu.concatenate %47, %64 in 1 : vector<2x64xf32>, vector<2x64xf32> -> vector<2x128xf32>
    %cst_36 = arith.constant dense<0.000000e+00> : vector<2x256xf32>
    %66 = tpu.matmul %65, %22, %cst_36 {dimension_numbers = #tpu.dot_dimension_numbers<[1], [0], [0], [1], [0, 0, 1, 1], [], []>} : vector<2x128xf32>, vector<128x256xf32>, vector<2x256xf32> -> vector<2x256xf32>
    %67 = arith.addf %66, %26 : vector<2x256xf32>
    %68 = vector.extract_strided_slice %67 {offsets = [0, 0], sizes = [2, 192], strides = [1, 1]} : vector<2x256xf32> to vector<2x192xf32>
    %69 = arith.negf %68 : vector<2x192xf32>
    %70 = math.exp %69 : vector<2x192xf32>
    %cst_37 = arith.constant 1.000000e+00 : f32
    %71 = vector.broadcast %cst_37 : f32 to vector<2x192xf32>
    %72 = arith.addf %71, %70 : vector<2x192xf32>
    %73 = arith.divf %71, %72 : vector<2x192xf32>
    %74 = vector.extract_strided_slice %67 {offsets = [0, 192], sizes = [2, 64], strides = [1, 1]} : vector<2x256xf32> to vector<2x64xf32>
    %75 = math.tanh %74 : vector<2x64xf32>
    %76 = vector.extract_strided_slice %73 {offsets = [0, 64], sizes = [2, 64], strides = [1, 1]} : vector<2x192xf32> to vector<2x64xf32>
    %77 = arith.mulf %76, %44 : vector<2x64xf32>
    %78 = vector.extract_strided_slice %73 {offsets = [0, 0], sizes = [2, 64], strides = [1, 1]} : vector<2x192xf32> to vector<2x64xf32>
    %79 = arith.mulf %78, %75 : vector<2x64xf32>
    %80 = arith.addf %77, %79 : vector<2x64xf32>
    %81 = vector.extract_strided_slice %73 {offsets = [0, 128], sizes = [2, 64], strides = [1, 1]} : vector<2x192xf32> to vector<2x64xf32>
    %82 = math.tanh %80 : vector<2x64xf32>
    %83 = arith.mulf %81, %82 : vector<2x64xf32>
    %cst_38 = arith.constant dense<0.000000e+00> : vector<2x128xf32>
    %84 = tpu.matmul %83, %23, %cst_38 {dimension_numbers = #tpu.dot_dimension_numbers<[1], [0], [0], [1], [0, 0, 1, 1], [], []>} : vector<2x64xf32>, vector<64x128xf32>, vector<2x128xf32> -> vector<2x128xf32>
    %85 = arith.addf %84, %29 : vector<2x128xf32>
    %c1 = arith.constant 1 : index
    %c0_39 = arith.constant 0 : index
    %c0_40 = arith.constant 0 : index
    %86 = vector.load %arg12[%c1, %c0_39, %c0_40] : memref<30x2x128xf32, #tpu.memory_space<vmem>>, vector<1x2x128xf32>
    %87 = vector.shape_cast %86 : vector<1x2x128xf32> to vector<2x128xf32>
    %88 = vector.shape_cast %85 : vector<2x128xf32> to vector<1x2x128xf32>
    tpu.vector_store %arg12[%c1, %c0_39, %c0_40], %88 {strides = array<i32>} : memref<30x2x128xf32, #tpu.memory_space<vmem>>, vector<1x2x128xf32>,
    %cst_41 = arith.constant dense<0xFF800000> : vector<2xf32>
    %89 = vector.multi_reduction <maximumf>, %85, %cst_41 [1] : vector<2x128xf32> to vector<2xf32>
    %90 = vector.shape_cast %89 : vector<2xf32> to vector<2x1xf32>
    %91 = vector.broadcast %90 : vector<2x1xf32> to vector<2x128xf32>
    %92 = arith.cmpf oeq, %85, %91 : vector<2x128xf32>
    %c128_i32_42 = arith.constant 128 : i32
    %93 = vector.broadcast %c128_i32_42 : i32 to vector<2x128xi32>
    %94 = arith.select %92, %30, %93 : vector<2x128xi1>, vector<2x128xi32>
    %cst_43 = arith.constant dense<2147483647> : vector<2xi32>
    %95 = vector.multi_reduction <minsi>, %94, %cst_43 [1] : vector<2x128xi32> to vector<2xi32>
    %96 = vector.shape_cast %95 : vector<2xi32> to vector<2x1xi32>
    %97 = vector.broadcast %96 : vector<2x1xi32> to vector<2x64xi32>
    %98 = arith.cmpi eq, %31, %97 : vector<2x64xi32>
    %99 = arith.extui %98 : vector<2x64xi1> to vector<2x64xi32>
    %100 = arith.sitofp %99 : vector<2x64xi32> to vector<2x64xf32>
    %101 = tpu.concatenate %83, %100 in 1 : vector<2x64xf32>, vector<2x64xf32> -> vector<2x128xf32>
    %cst_44 = arith.constant dense<0.000000e+00> : vector<2x256xf32>
    %102 = tpu.matmul %101, %22, %cst_44 {dimension_numbers = #tpu.dot_dimension_numbers<[1], [0], [0], [1], [0, 0, 1, 1], [], []>} : vector<2x128xf32>, vector<128x256xf32>, vector<2x256xf32> -> vector<2x256xf32>
    %103 = arith.addf %102, %26 : vector<2x256xf32>
    %104 = vector.extract_strided_slice %103 {offsets = [0, 0], sizes = [2, 192], strides = [1, 1]} : vector<2x256xf32> to vector<2x192xf32>
    %105 = arith.negf %104 : vector<2x192xf32>
    %106 = math.exp %105 : vector<2x192xf32>
    %cst_45 = arith.constant 1.000000e+00 : f32
    %107 = vector.broadcast %cst_45 : f32 to vector<2x192xf32>
    %108 = arith.addf %107, %106 : vector<2x192xf32>
    %109 = arith.divf %107, %108 : vector<2x192xf32>
    %110 = vector.extract_strided_slice %103 {offsets = [0, 192], sizes = [2, 64], strides = [1, 1]} : vector<2x256xf32> to vector<2x64xf32>
    %111 = math.tanh %110 : vector<2x64xf32>
    %112 = vector.extract_strided_slice %109 {offsets = [0, 64], sizes = [2, 64], strides = [1, 1]} : vector<2x192xf32> to vector<2x64xf32>
    %113 = arith.mulf %112, %80 : vector<2x64xf32>
    %114 = vector.extract_strided_slice %109 {offsets = [0, 0], sizes = [2, 64], strides = [1, 1]} : vector<2x192xf32> to vector<2x64xf32>
    %115 = arith.mulf %114, %111 : vector<2x64xf32>
    %116 = arith.addf %113, %115 : vector<2x64xf32>
    %117 = vector.extract_strided_slice %109 {offsets = [0, 128], sizes = [2, 64], strides = [1, 1]} : vector<2x192xf32> to vector<2x64xf32>
    %118 = math.tanh %116 : vector<2x64xf32>
    %119 = arith.mulf %117, %118 : vector<2x64xf32>
    %cst_46 = arith.constant dense<0.000000e+00> : vector<2x128xf32>
    %120 = tpu.matmul %119, %23, %cst_46 {dimension_numbers = #tpu.dot_dimension_numbers<[1], [0], [0], [1], [0, 0, 1, 1], [], []>} : vector<2x64xf32>, vector<64x128xf32>, vector<2x128xf32> -> vector<2x128xf32>
    %121 = arith.addf %120, %29 : vector<2x128xf32>
    %c2 = arith.constant 2 : index
    %c0_47 = arith.constant 0 : index
    %c0_48 = arith.constant 0 : index
    %122 = vector.load %arg12[%c2, %c0_47, %c0_48] : memref<30x2x128xf32, #tpu.memory_space<vmem>>, vector<1x2x128xf32>
    %123 = vector.shape_cast %122 : vector<1x2x128xf32> to vector<2x128xf32>
    %124 = vector.shape_cast %121 : vector<2x128xf32> to vector<1x2x128xf32>
    tpu.vector_store %arg12[%c2, %c0_47, %c0_48], %124 {strides = array<i32>} : memref<30x2x128xf32, #tpu.memory_space<vmem>>, vector<1x2x128xf32>,
    %cst_49 = arith.constant dense<0xFF800000> : vector<2xf32>
    %125 = vector.multi_reduction <maximumf>, %121, %cst_49 [1] : vector<2x128xf32> to vector<2xf32>
    %126 = vector.shape_cast %125 : vector<2xf32> to vector<2x1xf32>
    %127 = vector.broadcast %126 : vector<2x1xf32> to vector<2x128xf32>
    %128 = arith.cmpf oeq, %121, %127 : vector<2x128xf32>
    %c128_i32_50 = arith.constant 128 : i32
    %129 = vector.broadcast %c128_i32_50 : i32 to vector<2x128xi32>
    %130 = arith.select %128, %30, %129 : vector<2x128xi1>, vector<2x128xi32>
    %cst_51 = arith.constant dense<2147483647> : vector<2xi32>
    %131 = vector.multi_reduction <minsi>, %130, %cst_51 [1] : vector<2x128xi32> to vector<2xi32>
    %132 = vector.shape_cast %131 : vector<2xi32> to vector<2x1xi32>
    %133 = vector.broadcast %132 : vector<2x1xi32> to vector<2x64xi32>
    %134 = arith.cmpi eq, %31, %133 : vector<2x64xi32>
    %135 = arith.extui %134 : vector<2x64xi1> to vector<2x64xi32>
    %136 = arith.sitofp %135 : vector<2x64xi32> to vector<2x64xf32>
    %137 = tpu.concatenate %119, %136 in 1 : vector<2x64xf32>, vector<2x64xf32> -> vector<2x128xf32>
    %cst_52 = arith.constant dense<0.000000e+00> : vector<2x256xf32>
    %138 = tpu.matmul %137, %22, %cst_52 {dimension_numbers = #tpu.dot_dimension_numbers<[1], [0], [0], [1], [0, 0, 1, 1], [], []>} : vector<2x128xf32>, vector<128x256xf32>, vector<2x256xf32> -> vector<2x256xf32>
    %139 = arith.addf %138, %26 : vector<2x256xf32>
    %140 = vector.extract_strided_slice %139 {offsets = [0, 0], sizes = [2, 192], strides = [1, 1]} : vector<2x256xf32> to vector<2x192xf32>
    %141 = arith.negf %140 : vector<2x192xf32>
    %142 = math.exp %141 : vector<2x192xf32>
    %cst_53 = arith.constant 1.000000e+00 : f32
    %143 = vector.broadcast %cst_53 : f32 to vector<2x192xf32>
    %144 = arith.addf %143, %142 : vector<2x192xf32>
    %145 = arith.divf %143, %144 : vector<2x192xf32>
    %146 = vector.extract_strided_slice %139 {offsets = [0, 192], sizes = [2, 64], strides = [1, 1]} : vector<2x256xf32> to vector<2x64xf32>
    %147 = math.tanh %146 : vector<2x64xf32>
    %148 = vector.extract_strided_slice %145 {offsets = [0, 64], sizes = [2, 64], strides = [1, 1]} : vector<2x192xf32> to vector<2x64xf32>
    %149 = arith.mulf %148, %116 : vector<2x64xf32>
    %150 = vector.extract_strided_slice %145 {offsets = [0, 0], sizes = [2, 64], strides = [1, 1]} : vector<2x192xf32> to vector<2x64xf32>
    %151 = arith.mulf %150, %147 : vector<2x64xf32>
    %152 = arith.addf %149, %151 : vector<2x64xf32>
    %153 = vector.extract_strided_slice %145 {offsets = [0, 128], sizes = [2, 64], strides = [1, 1]} : vector<2x192xf32> to vector<2x64xf32>
    %154 = math.tanh %152 : vector<2x64xf32>
    %155 = arith.mulf %153, %154 : vector<2x64xf32>
    %cst_54 = arith.constant dense<0.000000e+00> : vector<2x128xf32>
    %156 = tpu.matmul %155, %23, %cst_54 {dimension_numbers = #tpu.dot_dimension_numbers<[1], [0], [0], [1], [0, 0, 1, 1], [], []>} : vector<2x64xf32>, vector<64x128xf32>, vector<2x128xf32> -> vector<2x128xf32>
    %157 = arith.addf %156, %29 : vector<2x128xf32>
    %c3 = arith.constant 3 : index
    %c0_55 = arith.constant 0 : index
    %c0_56 = arith.constant 0 : index
    %158 = vector.load %arg12[%c3, %c0_55, %c0_56] : memref<30x2x128xf32, #tpu.memory_space<vmem>>, vector<1x2x128xf32>
    %159 = vector.shape_cast %158 : vector<1x2x128xf32> to vector<2x128xf32>
    %160 = vector.shape_cast %157 : vector<2x128xf32> to vector<1x2x128xf32>
    tpu.vector_store %arg12[%c3, %c0_55, %c0_56], %160 {strides = array<i32>} : memref<30x2x128xf32, #tpu.memory_space<vmem>>, vector<1x2x128xf32>,
    %cst_57 = arith.constant dense<0xFF800000> : vector<2xf32>
    %161 = vector.multi_reduction <maximumf>, %157, %cst_57 [1] : vector<2x128xf32> to vector<2xf32>
    %162 = vector.shape_cast %161 : vector<2xf32> to vector<2x1xf32>
    %163 = vector.broadcast %162 : vector<2x1xf32> to vector<2x128xf32>
    %164 = arith.cmpf oeq, %157, %163 : vector<2x128xf32>
    %c128_i32_58 = arith.constant 128 : i32
    %165 = vector.broadcast %c128_i32_58 : i32 to vector<2x128xi32>
    %166 = arith.select %164, %30, %165 : vector<2x128xi1>, vector<2x128xi32>
    %cst_59 = arith.constant dense<2147483647> : vector<2xi32>
    %167 = vector.multi_reduction <minsi>, %166, %cst_59 [1] : vector<2x128xi32> to vector<2xi32>
    %168 = vector.shape_cast %167 : vector<2xi32> to vector<2x1xi32>
    %169 = vector.broadcast %168 : vector<2x1xi32> to vector<2x64xi32>
    %170 = arith.cmpi eq, %31, %169 : vector<2x64xi32>
    %171 = arith.extui %170 : vector<2x64xi1> to vector<2x64xi32>
    %172 = arith.sitofp %171 : vector<2x64xi32> to vector<2x64xf32>
    %173 = tpu.concatenate %155, %172 in 1 : vector<2x64xf32>, vector<2x64xf32> -> vector<2x128xf32>
    %cst_60 = arith.constant dense<0.000000e+00> : vector<2x256xf32>
    %174 = tpu.matmul %173, %22, %cst_60 {dimension_numbers = #tpu.dot_dimension_numbers<[1], [0], [0], [1], [0, 0, 1, 1], [], []>} : vector<2x128xf32>, vector<128x256xf32>, vector<2x256xf32> -> vector<2x256xf32>
    %175 = arith.addf %174, %26 : vector<2x256xf32>
    %176 = vector.extract_strided_slice %175 {offsets = [0, 0], sizes = [2, 192], strides = [1, 1]} : vector<2x256xf32> to vector<2x192xf32>
    %177 = arith.negf %176 : vector<2x192xf32>
    %178 = math.exp %177 : vector<2x192xf32>
    %cst_61 = arith.constant 1.000000e+00 : f32
    %179 = vector.broadcast %cst_61 : f32 to vector<2x192xf32>
    %180 = arith.addf %179, %178 : vector<2x192xf32>
    %181 = arith.divf %179, %180 : vector<2x192xf32>
    %182 = vector.extract_strided_slice %175 {offsets = [0, 192], sizes = [2, 64], strides = [1, 1]} : vector<2x256xf32> to vector<2x64xf32>
    %183 = math.tanh %182 : vector<2x64xf32>
    %184 = vector.extract_strided_slice %181 {offsets = [0, 64], sizes = [2, 64], strides = [1, 1]} : vector<2x192xf32> to vector<2x64xf32>
    %185 = arith.mulf %184, %152 : vector<2x64xf32>
    %186 = vector.extract_strided_slice %181 {offsets = [0, 0], sizes = [2, 64], strides = [1, 1]} : vector<2x192xf32> to vector<2x64xf32>
    %187 = arith.mulf %186, %183 : vector<2x64xf32>
    %188 = arith.addf %185, %187 : vector<2x64xf32>
    %189 = vector.extract_strided_slice %181 {offsets = [0, 128], sizes = [2, 64], strides = [1, 1]} : vector<2x192xf32> to vector<2x64xf32>
    %190 = math.tanh %188 : vector<2x64xf32>
    %191 = arith.mulf %189, %190 : vector<2x64xf32>
    %cst_62 = arith.constant dense<0.000000e+00> : vector<2x128xf32>
    %192 = tpu.matmul %191, %23, %cst_62 {dimension_numbers = #tpu.dot_dimension_numbers<[1], [0], [0], [1], [0, 0, 1, 1], [], []>} : vector<2x64xf32>, vector<64x128xf32>, vector<2x128xf32> -> vector<2x128xf32>
    %193 = arith.addf %192, %29 : vector<2x128xf32>
    %c4 = arith.constant 4 : index
    %c0_63 = arith.constant 0 : index
    %c0_64 = arith.constant 0 : index
    %194 = vector.load %arg12[%c4, %c0_63, %c0_64] : memref<30x2x128xf32, #tpu.memory_space<vmem>>, vector<1x2x128xf32>
    %195 = vector.shape_cast %194 : vector<1x2x128xf32> to vector<2x128xf32>
    %196 = vector.shape_cast %193 : vector<2x128xf32> to vector<1x2x128xf32>
    tpu.vector_store %arg12[%c4, %c0_63, %c0_64], %196 {strides = array<i32>} : memref<30x2x128xf32, #tpu.memory_space<vmem>>, vector<1x2x128xf32>,
    %cst_65 = arith.constant dense<0xFF800000> : vector<2xf32>
    %197 = vector.multi_reduction <maximumf>, %193, %cst_65 [1] : vector<2x128xf32> to vector<2xf32>
    %198 = vector.shape_cast %197 : vector<2xf32> to vector<2x1xf32>
    %199 = vector.broadcast %198 : vector<2x1xf32> to vector<2x128xf32>
    %200 = arith.cmpf oeq, %193, %199 : vector<2x128xf32>
    %c128_i32_66 = arith.constant 128 : i32
    %201 = vector.broadcast %c128_i32_66 : i32 to vector<2x128xi32>
    %202 = arith.select %200, %30, %201 : vector<2x128xi1>, vector<2x128xi32>
    %cst_67 = arith.constant dense<2147483647> : vector<2xi32>
    %203 = vector.multi_reduction <minsi>, %202, %cst_67 [1] : vector<2x128xi32> to vector<2xi32>
    %204 = vector.shape_cast %203 : vector<2xi32> to vector<2x1xi32>
    %205 = vector.broadcast %204 : vector<2x1xi32> to vector<2x64xi32>
    %206 = arith.cmpi eq, %31, %205 : vector<2x64xi32>
    %207 = arith.extui %206 : vector<2x64xi1> to vector<2x64xi32>
    %208 = arith.sitofp %207 : vector<2x64xi32> to vector<2x64xf32>
    %209 = tpu.concatenate %191, %208 in 1 : vector<2x64xf32>, vector<2x64xf32> -> vector<2x128xf32>
    %cst_68 = arith.constant dense<0.000000e+00> : vector<2x256xf32>
    %210 = tpu.matmul %209, %22, %cst_68 {dimension_numbers = #tpu.dot_dimension_numbers<[1], [0], [0], [1], [0, 0, 1, 1], [], []>} : vector<2x128xf32>, vector<128x256xf32>, vector<2x256xf32> -> vector<2x256xf32>
    %211 = arith.addf %210, %26 : vector<2x256xf32>
    %212 = vector.extract_strided_slice %211 {offsets = [0, 0], sizes = [2, 192], strides = [1, 1]} : vector<2x256xf32> to vector<2x192xf32>
    %213 = arith.negf %212 : vector<2x192xf32>
    %214 = math.exp %213 : vector<2x192xf32>
    %cst_69 = arith.constant 1.000000e+00 : f32
    %215 = vector.broadcast %cst_69 : f32 to vector<2x192xf32>
    %216 = arith.addf %215, %214 : vector<2x192xf32>
    %217 = arith.divf %215, %216 : vector<2x192xf32>
    %218 = vector.extract_strided_slice %211 {offsets = [0, 192], sizes = [2, 64], strides = [1, 1]} : vector<2x256xf32> to vector<2x64xf32>
    %219 = math.tanh %218 : vector<2x64xf32>
    %220 = vector.extract_strided_slice %217 {offsets = [0, 64], sizes = [2, 64], strides = [1, 1]} : vector<2x192xf32> to vector<2x64xf32>
    %221 = arith.mulf %220, %188 : vector<2x64xf32>
    %222 = vector.extract_strided_slice %217 {offsets = [0, 0], sizes = [2, 64], strides = [1, 1]} : vector<2x192xf32> to vector<2x64xf32>
    %223 = arith.mulf %222, %219 : vector<2x64xf32>
    %224 = arith.addf %221, %223 : vector<2x64xf32>
    %225 = vector.extract_strided_slice %217 {offsets = [0, 128], sizes = [2, 64], strides = [1, 1]} : vector<2x192xf32> to vector<2x64xf32>
    %226 = math.tanh %224 : vector<2x64xf32>
    %227 = arith.mulf %225, %226 : vector<2x64xf32>
    %cst_70 = arith.constant dense<0.000000e+00> : vector<2x128xf32>
    %228 = tpu.matmul %227, %23, %cst_70 {dimension_numbers = #tpu.dot_dimension_numbers<[1], [0], [0], [1], [0, 0, 1, 1], [], []>} : vector<2x64xf32>, vector<64x128xf32>, vector<2x128xf32> -> vector<2x128xf32>
    %229 = arith.addf %228, %29 : vector<2x128xf32>
    %c5 = arith.constant 5 : index
    %c0_71 = arith.constant 0 : index
    %c0_72 = arith.constant 0 : index
    %230 = vector.load %arg12[%c5, %c0_71, %c0_72] : memref<30x2x128xf32, #tpu.memory_space<vmem>>, vector<1x2x128xf32>
    %231 = vector.shape_cast %230 : vector<1x2x128xf32> to vector<2x128xf32>
    %232 = vector.shape_cast %229 : vector<2x128xf32> to vector<1x2x128xf32>
    tpu.vector_store %arg12[%c5, %c0_71, %c0_72], %232 {strides = array<i32>} : memref<30x2x128xf32, #tpu.memory_space<vmem>>, vector<1x2x128xf32>,
    %cst_73 = arith.constant dense<0xFF800000> : vector<2xf32>
    %233 = vector.multi_reduction <maximumf>, %229, %cst_73 [1] : vector<2x128xf32> to vector<2xf32>
    %234 = vector.shape_cast %233 : vector<2xf32> to vector<2x1xf32>
    %235 = vector.broadcast %234 : vector<2x1xf32> to vector<2x128xf32>
    %236 = arith.cmpf oeq, %229, %235 : vector<2x128xf32>
    %c128_i32_74 = arith.constant 128 : i32
    %237 = vector.broadcast %c128_i32_74 : i32 to vector<2x128xi32>
    %238 = arith.select %236, %30, %237 : vector<2x128xi1>, vector<2x128xi32>
    %cst_75 = arith.constant dense<2147483647> : vector<2xi32>
    %239 = vector.multi_reduction <minsi>, %238, %cst_75 [1] : vector<2x128xi32> to vector<2xi32>
    %240 = vector.shape_cast %239 : vector<2xi32> to vector<2x1xi32>
    %241 = vector.broadcast %240 : vector<2x1xi32> to vector<2x64xi32>
    %242 = arith.cmpi eq, %31, %241 : vector<2x64xi32>
    %243 = arith.extui %242 : vector<2x64xi1> to vector<2x64xi32>
    %244 = arith.sitofp %243 : vector<2x64xi32> to vector<2x64xf32>
    %245 = tpu.concatenate %227, %244 in 1 : vector<2x64xf32>, vector<2x64xf32> -> vector<2x128xf32>
    %cst_76 = arith.constant dense<0.000000e+00> : vector<2x256xf32>
    %246 = tpu.matmul %245, %22, %cst_76 {dimension_numbers = #tpu.dot_dimension_numbers<[1], [0], [0], [1], [0, 0, 1, 1], [], []>} : vector<2x128xf32>, vector<128x256xf32>, vector<2x256xf32> -> vector<2x256xf32>
    %247 = arith.addf %246, %26 : vector<2x256xf32>
    %248 = vector.extract_strided_slice %247 {offsets = [0, 0], sizes = [2, 192], strides = [1, 1]} : vector<2x256xf32> to vector<2x192xf32>
    %249 = arith.negf %248 : vector<2x192xf32>
    %250 = math.exp %249 : vector<2x192xf32>
    %cst_77 = arith.constant 1.000000e+00 : f32
    %251 = vector.broadcast %cst_77 : f32 to vector<2x192xf32>
    %252 = arith.addf %251, %250 : vector<2x192xf32>
    %253 = arith.divf %251, %252 : vector<2x192xf32>
    %254 = vector.extract_strided_slice %247 {offsets = [0, 192], sizes = [2, 64], strides = [1, 1]} : vector<2x256xf32> to vector<2x64xf32>
    %255 = math.tanh %254 : vector<2x64xf32>
    %256 = vector.extract_strided_slice %253 {offsets = [0, 64], sizes = [2, 64], strides = [1, 1]} : vector<2x192xf32> to vector<2x64xf32>
    %257 = arith.mulf %256, %224 : vector<2x64xf32>
    %258 = vector.extract_strided_slice %253 {offsets = [0, 0], sizes = [2, 64], strides = [1, 1]} : vector<2x192xf32> to vector<2x64xf32>
    %259 = arith.mulf %258, %255 : vector<2x64xf32>
    %260 = arith.addf %257, %259 : vector<2x64xf32>
    %261 = vector.extract_strided_slice %253 {offsets = [0, 128], sizes = [2, 64], strides = [1, 1]} : vector<2x192xf32> to vector<2x64xf32>
    %262 = math.tanh %260 : vector<2x64xf32>
    %263 = arith.mulf %261, %262 : vector<2x64xf32>
    %cst_78 = arith.constant dense<0.000000e+00> : vector<2x128xf32>
    %264 = tpu.matmul %263, %23, %cst_78 {dimension_numbers = #tpu.dot_dimension_numbers<[1], [0], [0], [1], [0, 0, 1, 1], [], []>} : vector<2x64xf32>, vector<64x128xf32>, vector<2x128xf32> -> vector<2x128xf32>
    %265 = arith.addf %264, %29 : vector<2x128xf32>
    %c6 = arith.constant 6 : index
    %c0_79 = arith.constant 0 : index
    %c0_80 = arith.constant 0 : index
    %266 = vector.load %arg12[%c6, %c0_79, %c0_80] : memref<30x2x128xf32, #tpu.memory_space<vmem>>, vector<1x2x128xf32>
    %267 = vector.shape_cast %266 : vector<1x2x128xf32> to vector<2x128xf32>
    %268 = vector.shape_cast %265 : vector<2x128xf32> to vector<1x2x128xf32>
    tpu.vector_store %arg12[%c6, %c0_79, %c0_80], %268 {strides = array<i32>} : memref<30x2x128xf32, #tpu.memory_space<vmem>>, vector<1x2x128xf32>,
    %cst_81 = arith.constant dense<0xFF800000> : vector<2xf32>
    %269 = vector.multi_reduction <maximumf>, %265, %cst_81 [1] : vector<2x128xf32> to vector<2xf32>
    %270 = vector.shape_cast %269 : vector<2xf32> to vector<2x1xf32>
    %271 = vector.broadcast %270 : vector<2x1xf32> to vector<2x128xf32>
    %272 = arith.cmpf oeq, %265, %271 : vector<2x128xf32>
    %c128_i32_82 = arith.constant 128 : i32
    %273 = vector.broadcast %c128_i32_82 : i32 to vector<2x128xi32>
    %274 = arith.select %272, %30, %273 : vector<2x128xi1>, vector<2x128xi32>
    %cst_83 = arith.constant dense<2147483647> : vector<2xi32>
    %275 = vector.multi_reduction <minsi>, %274, %cst_83 [1] : vector<2x128xi32> to vector<2xi32>
    %276 = vector.shape_cast %275 : vector<2xi32> to vector<2x1xi32>
    %277 = vector.broadcast %276 : vector<2x1xi32> to vector<2x64xi32>
    %278 = arith.cmpi eq, %31, %277 : vector<2x64xi32>
    %279 = arith.extui %278 : vector<2x64xi1> to vector<2x64xi32>
    %280 = arith.sitofp %279 : vector<2x64xi32> to vector<2x64xf32>
    %281 = tpu.concatenate %263, %280 in 1 : vector<2x64xf32>, vector<2x64xf32> -> vector<2x128xf32>
    %cst_84 = arith.constant dense<0.000000e+00> : vector<2x256xf32>
    %282 = tpu.matmul %281, %22, %cst_84 {dimension_numbers = #tpu.dot_dimension_numbers<[1], [0], [0], [1], [0, 0, 1, 1], [], []>} : vector<2x128xf32>, vector<128x256xf32>, vector<2x256xf32> -> vector<2x256xf32>
    %283 = arith.addf %282, %26 : vector<2x256xf32>
    %284 = vector.extract_strided_slice %283 {offsets = [0, 0], sizes = [2, 192], strides = [1, 1]} : vector<2x256xf32> to vector<2x192xf32>
    %285 = arith.negf %284 : vector<2x192xf32>
    %286 = math.exp %285 : vector<2x192xf32>
    %cst_85 = arith.constant 1.000000e+00 : f32
    %287 = vector.broadcast %cst_85 : f32 to vector<2x192xf32>
    %288 = arith.addf %287, %286 : vector<2x192xf32>
    %289 = arith.divf %287, %288 : vector<2x192xf32>
    %290 = vector.extract_strided_slice %283 {offsets = [0, 192], sizes = [2, 64], strides = [1, 1]} : vector<2x256xf32> to vector<2x64xf32>
    %291 = math.tanh %290 : vector<2x64xf32>
    %292 = vector.extract_strided_slice %289 {offsets = [0, 64], sizes = [2, 64], strides = [1, 1]} : vector<2x192xf32> to vector<2x64xf32>
    %293 = arith.mulf %292, %260 : vector<2x64xf32>
    %294 = vector.extract_strided_slice %289 {offsets = [0, 0], sizes = [2, 64], strides = [1, 1]} : vector<2x192xf32> to vector<2x64xf32>
    %295 = arith.mulf %294, %291 : vector<2x64xf32>
    %296 = arith.addf %293, %295 : vector<2x64xf32>
    %297 = vector.extract_strided_slice %289 {offsets = [0, 128], sizes = [2, 64], strides = [1, 1]} : vector<2x192xf32> to vector<2x64xf32>
    %298 = math.tanh %296 : vector<2x64xf32>
    %299 = arith.mulf %297, %298 : vector<2x64xf32>
    %cst_86 = arith.constant dense<0.000000e+00> : vector<2x128xf32>
    %300 = tpu.matmul %299, %23, %cst_86 {dimension_numbers = #tpu.dot_dimension_numbers<[1], [0], [0], [1], [0, 0, 1, 1], [], []>} : vector<2x64xf32>, vector<64x128xf32>, vector<2x128xf32> -> vector<2x128xf32>
    %301 = arith.addf %300, %29 : vector<2x128xf32>
    %c7 = arith.constant 7 : index
    %c0_87 = arith.constant 0 : index
    %c0_88 = arith.constant 0 : index
    %302 = vector.load %arg12[%c7, %c0_87, %c0_88] : memref<30x2x128xf32, #tpu.memory_space<vmem>>, vector<1x2x128xf32>
    %303 = vector.shape_cast %302 : vector<1x2x128xf32> to vector<2x128xf32>
    %304 = vector.shape_cast %301 : vector<2x128xf32> to vector<1x2x128xf32>
    tpu.vector_store %arg12[%c7, %c0_87, %c0_88], %304 {strides = array<i32>} : memref<30x2x128xf32, #tpu.memory_space<vmem>>, vector<1x2x128xf32>,
    %cst_89 = arith.constant dense<0xFF800000> : vector<2xf32>
    %305 = vector.multi_reduction <maximumf>, %301, %cst_89 [1] : vector<2x128xf32> to vector<2xf32>
    %306 = vector.shape_cast %305 : vector<2xf32> to vector<2x1xf32>
    %307 = vector.broadcast %306 : vector<2x1xf32> to vector<2x128xf32>
    %308 = arith.cmpf oeq, %301, %307 : vector<2x128xf32>
    %c128_i32_90 = arith.constant 128 : i32
    %309 = vector.broadcast %c128_i32_90 : i32 to vector<2x128xi32>
    %310 = arith.select %308, %30, %309 : vector<2x128xi1>, vector<2x128xi32>
    %cst_91 = arith.constant dense<2147483647> : vector<2xi32>
    %311 = vector.multi_reduction <minsi>, %310, %cst_91 [1] : vector<2x128xi32> to vector<2xi32>
    %312 = vector.shape_cast %311 : vector<2xi32> to vector<2x1xi32>
    %313 = vector.broadcast %312 : vector<2x1xi32> to vector<2x64xi32>
    %314 = arith.cmpi eq, %31, %313 : vector<2x64xi32>
    %315 = arith.extui %314 : vector<2x64xi1> to vector<2x64xi32>
    %316 = arith.sitofp %315 : vector<2x64xi32> to vector<2x64xf32>
    %317 = tpu.concatenate %299, %316 in 1 : vector<2x64xf32>, vector<2x64xf32> -> vector<2x128xf32>
    %cst_92 = arith.constant dense<0.000000e+00> : vector<2x256xf32>
    %318 = tpu.matmul %317, %22, %cst_92 {dimension_numbers = #tpu.dot_dimension_numbers<[1], [0], [0], [1], [0, 0, 1, 1], [], []>} : vector<2x128xf32>, vector<128x256xf32>, vector<2x256xf32> -> vector<2x256xf32>
    %319 = arith.addf %318, %26 : vector<2x256xf32>
    %320 = vector.extract_strided_slice %319 {offsets = [0, 0], sizes = [2, 192], strides = [1, 1]} : vector<2x256xf32> to vector<2x192xf32>
    %321 = arith.negf %320 : vector<2x192xf32>
    %322 = math.exp %321 : vector<2x192xf32>
    %cst_93 = arith.constant 1.000000e+00 : f32
    %323 = vector.broadcast %cst_93 : f32 to vector<2x192xf32>
    %324 = arith.addf %323, %322 : vector<2x192xf32>
    %325 = arith.divf %323, %324 : vector<2x192xf32>
    %326 = vector.extract_strided_slice %319 {offsets = [0, 192], sizes = [2, 64], strides = [1, 1]} : vector<2x256xf32> to vector<2x64xf32>
    %327 = math.tanh %326 : vector<2x64xf32>
    %328 = vector.extract_strided_slice %325 {offsets = [0, 64], sizes = [2, 64], strides = [1, 1]} : vector<2x192xf32> to vector<2x64xf32>
    %329 = arith.mulf %328, %296 : vector<2x64xf32>
    %330 = vector.extract_strided_slice %325 {offsets = [0, 0], sizes = [2, 64], strides = [1, 1]} : vector<2x192xf32> to vector<2x64xf32>
    %331 = arith.mulf %330, %327 : vector<2x64xf32>
    %332 = arith.addf %329, %331 : vector<2x64xf32>
    %333 = vector.extract_strided_slice %325 {offsets = [0, 128], sizes = [2, 64], strides = [1, 1]} : vector<2x192xf32> to vector<2x64xf32>
    %334 = math.tanh %332 : vector<2x64xf32>
    %335 = arith.mulf %333, %334 : vector<2x64xf32>
    %cst_94 = arith.constant dense<0.000000e+00> : vector<2x128xf32>
    %336 = tpu.matmul %335, %23, %cst_94 {dimension_numbers = #tpu.dot_dimension_numbers<[1], [0], [0], [1], [0, 0, 1, 1], [], []>} : vector<2x64xf32>, vector<64x128xf32>, vector<2x128xf32> -> vector<2x128xf32>
    %337 = arith.addf %336, %29 : vector<2x128xf32>
    %c8 = arith.constant 8 : index
    %c0_95 = arith.constant 0 : index
    %c0_96 = arith.constant 0 : index
    %338 = vector.load %arg12[%c8, %c0_95, %c0_96] : memref<30x2x128xf32, #tpu.memory_space<vmem>>, vector<1x2x128xf32>
    %339 = vector.shape_cast %338 : vector<1x2x128xf32> to vector<2x128xf32>
    %340 = vector.shape_cast %337 : vector<2x128xf32> to vector<1x2x128xf32>
    tpu.vector_store %arg12[%c8, %c0_95, %c0_96], %340 {strides = array<i32>} : memref<30x2x128xf32, #tpu.memory_space<vmem>>, vector<1x2x128xf32>,
    %cst_97 = arith.constant dense<0xFF800000> : vector<2xf32>
    %341 = vector.multi_reduction <maximumf>, %337, %cst_97 [1] : vector<2x128xf32> to vector<2xf32>
    %342 = vector.shape_cast %341 : vector<2xf32> to vector<2x1xf32>
    %343 = vector.broadcast %342 : vector<2x1xf32> to vector<2x128xf32>
    %344 = arith.cmpf oeq, %337, %343 : vector<2x128xf32>
    %c128_i32_98 = arith.constant 128 : i32
    %345 = vector.broadcast %c128_i32_98 : i32 to vector<2x128xi32>
    %346 = arith.select %344, %30, %345 : vector<2x128xi1>, vector<2x128xi32>
    %cst_99 = arith.constant dense<2147483647> : vector<2xi32>
    %347 = vector.multi_reduction <minsi>, %346, %cst_99 [1] : vector<2x128xi32> to vector<2xi32>
    %348 = vector.shape_cast %347 : vector<2xi32> to vector<2x1xi32>
    %349 = vector.broadcast %348 : vector<2x1xi32> to vector<2x64xi32>
    %350 = arith.cmpi eq, %31, %349 : vector<2x64xi32>
    %351 = arith.extui %350 : vector<2x64xi1> to vector<2x64xi32>
    %352 = arith.sitofp %351 : vector<2x64xi32> to vector<2x64xf32>
    %353 = tpu.concatenate %335, %352 in 1 : vector<2x64xf32>, vector<2x64xf32> -> vector<2x128xf32>
    %cst_100 = arith.constant dense<0.000000e+00> : vector<2x256xf32>
    %354 = tpu.matmul %353, %22, %cst_100 {dimension_numbers = #tpu.dot_dimension_numbers<[1], [0], [0], [1], [0, 0, 1, 1], [], []>} : vector<2x128xf32>, vector<128x256xf32>, vector<2x256xf32> -> vector<2x256xf32>
    %355 = arith.addf %354, %26 : vector<2x256xf32>
    %356 = vector.extract_strided_slice %355 {offsets = [0, 0], sizes = [2, 192], strides = [1, 1]} : vector<2x256xf32> to vector<2x192xf32>
    %357 = arith.negf %356 : vector<2x192xf32>
    %358 = math.exp %357 : vector<2x192xf32>
    %cst_101 = arith.constant 1.000000e+00 : f32
    %359 = vector.broadcast %cst_101 : f32 to vector<2x192xf32>
    %360 = arith.addf %359, %358 : vector<2x192xf32>
    %361 = arith.divf %359, %360 : vector<2x192xf32>
    %362 = vector.extract_strided_slice %355 {offsets = [0, 192], sizes = [2, 64], strides = [1, 1]} : vector<2x256xf32> to vector<2x64xf32>
    %363 = math.tanh %362 : vector<2x64xf32>
    %364 = vector.extract_strided_slice %361 {offsets = [0, 64], sizes = [2, 64], strides = [1, 1]} : vector<2x192xf32> to vector<2x64xf32>
    %365 = arith.mulf %364, %332 : vector<2x64xf32>
    %366 = vector.extract_strided_slice %361 {offsets = [0, 0], sizes = [2, 64], strides = [1, 1]} : vector<2x192xf32> to vector<2x64xf32>
    %367 = arith.mulf %366, %363 : vector<2x64xf32>
    %368 = arith.addf %365, %367 : vector<2x64xf32>
    %369 = vector.extract_strided_slice %361 {offsets = [0, 128], sizes = [2, 64], strides = [1, 1]} : vector<2x192xf32> to vector<2x64xf32>
    %370 = math.tanh %368 : vector<2x64xf32>
    %371 = arith.mulf %369, %370 : vector<2x64xf32>
    %cst_102 = arith.constant dense<0.000000e+00> : vector<2x128xf32>
    %372 = tpu.matmul %371, %23, %cst_102 {dimension_numbers = #tpu.dot_dimension_numbers<[1], [0], [0], [1], [0, 0, 1, 1], [], []>} : vector<2x64xf32>, vector<64x128xf32>, vector<2x128xf32> -> vector<2x128xf32>
    %373 = arith.addf %372, %29 : vector<2x128xf32>
    %c9 = arith.constant 9 : index
    %c0_103 = arith.constant 0 : index
    %c0_104 = arith.constant 0 : index
    %374 = vector.load %arg12[%c9, %c0_103, %c0_104] : memref<30x2x128xf32, #tpu.memory_space<vmem>>, vector<1x2x128xf32>
    %375 = vector.shape_cast %374 : vector<1x2x128xf32> to vector<2x128xf32>
    %376 = vector.shape_cast %373 : vector<2x128xf32> to vector<1x2x128xf32>
    tpu.vector_store %arg12[%c9, %c0_103, %c0_104], %376 {strides = array<i32>} : memref<30x2x128xf32, #tpu.memory_space<vmem>>, vector<1x2x128xf32>,
    %cst_105 = arith.constant dense<0xFF800000> : vector<2xf32>
    %377 = vector.multi_reduction <maximumf>, %373, %cst_105 [1] : vector<2x128xf32> to vector<2xf32>
    %378 = vector.shape_cast %377 : vector<2xf32> to vector<2x1xf32>
    %379 = vector.broadcast %378 : vector<2x1xf32> to vector<2x128xf32>
    %380 = arith.cmpf oeq, %373, %379 : vector<2x128xf32>
    %c128_i32_106 = arith.constant 128 : i32
    %381 = vector.broadcast %c128_i32_106 : i32 to vector<2x128xi32>
    %382 = arith.select %380, %30, %381 : vector<2x128xi1>, vector<2x128xi32>
    %cst_107 = arith.constant dense<2147483647> : vector<2xi32>
    %383 = vector.multi_reduction <minsi>, %382, %cst_107 [1] : vector<2x128xi32> to vector<2xi32>
    %384 = vector.shape_cast %383 : vector<2xi32> to vector<2x1xi32>
    %385 = vector.broadcast %384 : vector<2x1xi32> to vector<2x64xi32>
    %386 = arith.cmpi eq, %31, %385 : vector<2x64xi32>
    %387 = arith.extui %386 : vector<2x64xi1> to vector<2x64xi32>
    %388 = arith.sitofp %387 : vector<2x64xi32> to vector<2x64xf32>
    %389 = tpu.concatenate %371, %388 in 1 : vector<2x64xf32>, vector<2x64xf32> -> vector<2x128xf32>
    %cst_108 = arith.constant dense<0.000000e+00> : vector<2x256xf32>
    %390 = tpu.matmul %389, %22, %cst_108 {dimension_numbers = #tpu.dot_dimension_numbers<[1], [0], [0], [1], [0, 0, 1, 1], [], []>} : vector<2x128xf32>, vector<128x256xf32>, vector<2x256xf32> -> vector<2x256xf32>
    %391 = arith.addf %390, %26 : vector<2x256xf32>
    %392 = vector.extract_strided_slice %391 {offsets = [0, 0], sizes = [2, 192], strides = [1, 1]} : vector<2x256xf32> to vector<2x192xf32>
    %393 = arith.negf %392 : vector<2x192xf32>
    %394 = math.exp %393 : vector<2x192xf32>
    %cst_109 = arith.constant 1.000000e+00 : f32
    %395 = vector.broadcast %cst_109 : f32 to vector<2x192xf32>
    %396 = arith.addf %395, %394 : vector<2x192xf32>
    %397 = arith.divf %395, %396 : vector<2x192xf32>
    %398 = vector.extract_strided_slice %391 {offsets = [0, 192], sizes = [2, 64], strides = [1, 1]} : vector<2x256xf32> to vector<2x64xf32>
    %399 = math.tanh %398 : vector<2x64xf32>
    %400 = vector.extract_strided_slice %397 {offsets = [0, 64], sizes = [2, 64], strides = [1, 1]} : vector<2x192xf32> to vector<2x64xf32>
    %401 = arith.mulf %400, %368 : vector<2x64xf32>
    %402 = vector.extract_strided_slice %397 {offsets = [0, 0], sizes = [2, 64], strides = [1, 1]} : vector<2x192xf32> to vector<2x64xf32>
    %403 = arith.mulf %402, %399 : vector<2x64xf32>
    %404 = arith.addf %401, %403 : vector<2x64xf32>
    %405 = vector.extract_strided_slice %397 {offsets = [0, 128], sizes = [2, 64], strides = [1, 1]} : vector<2x192xf32> to vector<2x64xf32>
    %406 = math.tanh %404 : vector<2x64xf32>
    %407 = arith.mulf %405, %406 : vector<2x64xf32>
    %cst_110 = arith.constant dense<0.000000e+00> : vector<2x128xf32>
    %408 = tpu.matmul %407, %23, %cst_110 {dimension_numbers = #tpu.dot_dimension_numbers<[1], [0], [0], [1], [0, 0, 1, 1], [], []>} : vector<2x64xf32>, vector<64x128xf32>, vector<2x128xf32> -> vector<2x128xf32>
    %409 = arith.addf %408, %29 : vector<2x128xf32>
    %c10 = arith.constant 10 : index
    %c0_111 = arith.constant 0 : index
    %c0_112 = arith.constant 0 : index
    %410 = vector.load %arg12[%c10, %c0_111, %c0_112] : memref<30x2x128xf32, #tpu.memory_space<vmem>>, vector<1x2x128xf32>
    %411 = vector.shape_cast %410 : vector<1x2x128xf32> to vector<2x128xf32>
    %412 = vector.shape_cast %409 : vector<2x128xf32> to vector<1x2x128xf32>
    tpu.vector_store %arg12[%c10, %c0_111, %c0_112], %412 {strides = array<i32>} : memref<30x2x128xf32, #tpu.memory_space<vmem>>, vector<1x2x128xf32>,
    %cst_113 = arith.constant dense<0xFF800000> : vector<2xf32>
    %413 = vector.multi_reduction <maximumf>, %409, %cst_113 [1] : vector<2x128xf32> to vector<2xf32>
    %414 = vector.shape_cast %413 : vector<2xf32> to vector<2x1xf32>
    %415 = vector.broadcast %414 : vector<2x1xf32> to vector<2x128xf32>
    %416 = arith.cmpf oeq, %409, %415 : vector<2x128xf32>
    %c128_i32_114 = arith.constant 128 : i32
    %417 = vector.broadcast %c128_i32_114 : i32 to vector<2x128xi32>
    %418 = arith.select %416, %30, %417 : vector<2x128xi1>, vector<2x128xi32>
    %cst_115 = arith.constant dense<2147483647> : vector<2xi32>
    %419 = vector.multi_reduction <minsi>, %418, %cst_115 [1] : vector<2x128xi32> to vector<2xi32>
    %420 = vector.shape_cast %419 : vector<2xi32> to vector<2x1xi32>
    %421 = vector.broadcast %420 : vector<2x1xi32> to vector<2x64xi32>
    %422 = arith.cmpi eq, %31, %421 : vector<2x64xi32>
    %423 = arith.extui %422 : vector<2x64xi1> to vector<2x64xi32>
    %424 = arith.sitofp %423 : vector<2x64xi32> to vector<2x64xf32>
    %425 = tpu.concatenate %407, %424 in 1 : vector<2x64xf32>, vector<2x64xf32> -> vector<2x128xf32>
    %cst_116 = arith.constant dense<0.000000e+00> : vector<2x256xf32>
    %426 = tpu.matmul %425, %22, %cst_116 {dimension_numbers = #tpu.dot_dimension_numbers<[1], [0], [0], [1], [0, 0, 1, 1], [], []>} : vector<2x128xf32>, vector<128x256xf32>, vector<2x256xf32> -> vector<2x256xf32>
    %427 = arith.addf %426, %26 : vector<2x256xf32>
    %428 = vector.extract_strided_slice %427 {offsets = [0, 0], sizes = [2, 192], strides = [1, 1]} : vector<2x256xf32> to vector<2x192xf32>
    %429 = arith.negf %428 : vector<2x192xf32>
    %430 = math.exp %429 : vector<2x192xf32>
    %cst_117 = arith.constant 1.000000e+00 : f32
    %431 = vector.broadcast %cst_117 : f32 to vector<2x192xf32>
    %432 = arith.addf %431, %430 : vector<2x192xf32>
    %433 = arith.divf %431, %432 : vector<2x192xf32>
    %434 = vector.extract_strided_slice %427 {offsets = [0, 192], sizes = [2, 64], strides = [1, 1]} : vector<2x256xf32> to vector<2x64xf32>
    %435 = math.tanh %434 : vector<2x64xf32>
    %436 = vector.extract_strided_slice %433 {offsets = [0, 64], sizes = [2, 64], strides = [1, 1]} : vector<2x192xf32> to vector<2x64xf32>
    %437 = arith.mulf %436, %404 : vector<2x64xf32>
    %438 = vector.extract_strided_slice %433 {offsets = [0, 0], sizes = [2, 64], strides = [1, 1]} : vector<2x192xf32> to vector<2x64xf32>
    %439 = arith.mulf %438, %435 : vector<2x64xf32>
    %440 = arith.addf %437, %439 : vector<2x64xf32>
    %441 = vector.extract_strided_slice %433 {offsets = [0, 128], sizes = [2, 64], strides = [1, 1]} : vector<2x192xf32> to vector<2x64xf32>
    %442 = math.tanh %440 : vector<2x64xf32>
    %443 = arith.mulf %441, %442 : vector<2x64xf32>
    %cst_118 = arith.constant dense<0.000000e+00> : vector<2x128xf32>
    %444 = tpu.matmul %443, %23, %cst_118 {dimension_numbers = #tpu.dot_dimension_numbers<[1], [0], [0], [1], [0, 0, 1, 1], [], []>} : vector<2x64xf32>, vector<64x128xf32>, vector<2x128xf32> -> vector<2x128xf32>
    %445 = arith.addf %444, %29 : vector<2x128xf32>
    %c11 = arith.constant 11 : index
    %c0_119 = arith.constant 0 : index
    %c0_120 = arith.constant 0 : index
    %446 = vector.load %arg12[%c11, %c0_119, %c0_120] : memref<30x2x128xf32, #tpu.memory_space<vmem>>, vector<1x2x128xf32>
    %447 = vector.shape_cast %446 : vector<1x2x128xf32> to vector<2x128xf32>
    %448 = vector.shape_cast %445 : vector<2x128xf32> to vector<1x2x128xf32>
    tpu.vector_store %arg12[%c11, %c0_119, %c0_120], %448 {strides = array<i32>} : memref<30x2x128xf32, #tpu.memory_space<vmem>>, vector<1x2x128xf32>,
    %cst_121 = arith.constant dense<0xFF800000> : vector<2xf32>
    %449 = vector.multi_reduction <maximumf>, %445, %cst_121 [1] : vector<2x128xf32> to vector<2xf32>
    %450 = vector.shape_cast %449 : vector<2xf32> to vector<2x1xf32>
    %451 = vector.broadcast %450 : vector<2x1xf32> to vector<2x128xf32>
    %452 = arith.cmpf oeq, %445, %451 : vector<2x128xf32>
    %c128_i32_122 = arith.constant 128 : i32
    %453 = vector.broadcast %c128_i32_122 : i32 to vector<2x128xi32>
    %454 = arith.select %452, %30, %453 : vector<2x128xi1>, vector<2x128xi32>
    %cst_123 = arith.constant dense<2147483647> : vector<2xi32>
    %455 = vector.multi_reduction <minsi>, %454, %cst_123 [1] : vector<2x128xi32> to vector<2xi32>
    %456 = vector.shape_cast %455 : vector<2xi32> to vector<2x1xi32>
    %457 = vector.broadcast %456 : vector<2x1xi32> to vector<2x64xi32>
    %458 = arith.cmpi eq, %31, %457 : vector<2x64xi32>
    %459 = arith.extui %458 : vector<2x64xi1> to vector<2x64xi32>
    %460 = arith.sitofp %459 : vector<2x64xi32> to vector<2x64xf32>
    %461 = tpu.concatenate %443, %460 in 1 : vector<2x64xf32>, vector<2x64xf32> -> vector<2x128xf32>
    %cst_124 = arith.constant dense<0.000000e+00> : vector<2x256xf32>
    %462 = tpu.matmul %461, %22, %cst_124 {dimension_numbers = #tpu.dot_dimension_numbers<[1], [0], [0], [1], [0, 0, 1, 1], [], []>} : vector<2x128xf32>, vector<128x256xf32>, vector<2x256xf32> -> vector<2x256xf32>
    %463 = arith.addf %462, %26 : vector<2x256xf32>
    %464 = vector.extract_strided_slice %463 {offsets = [0, 0], sizes = [2, 192], strides = [1, 1]} : vector<2x256xf32> to vector<2x192xf32>
    %465 = arith.negf %464 : vector<2x192xf32>
    %466 = math.exp %465 : vector<2x192xf32>
    %cst_125 = arith.constant 1.000000e+00 : f32
    %467 = vector.broadcast %cst_125 : f32 to vector<2x192xf32>
    %468 = arith.addf %467, %466 : vector<2x192xf32>
    %469 = arith.divf %467, %468 : vector<2x192xf32>
    %470 = vector.extract_strided_slice %463 {offsets = [0, 192], sizes = [2, 64], strides = [1, 1]} : vector<2x256xf32> to vector<2x64xf32>
    %471 = math.tanh %470 : vector<2x64xf32>
    %472 = vector.extract_strided_slice %469 {offsets = [0, 64], sizes = [2, 64], strides = [1, 1]} : vector<2x192xf32> to vector<2x64xf32>
    %473 = arith.mulf %472, %440 : vector<2x64xf32>
    %474 = vector.extract_strided_slice %469 {offsets = [0, 0], sizes = [2, 64], strides = [1, 1]} : vector<2x192xf32> to vector<2x64xf32>
    %475 = arith.mulf %474, %471 : vector<2x64xf32>
    %476 = arith.addf %473, %475 : vector<2x64xf32>
    %477 = vector.extract_strided_slice %469 {offsets = [0, 128], sizes = [2, 64], strides = [1, 1]} : vector<2x192xf32> to vector<2x64xf32>
    %478 = math.tanh %476 : vector<2x64xf32>
    %479 = arith.mulf %477, %478 : vector<2x64xf32>
    %cst_126 = arith.constant dense<0.000000e+00> : vector<2x128xf32>
    %480 = tpu.matmul %479, %23, %cst_126 {dimension_numbers = #tpu.dot_dimension_numbers<[1], [0], [0], [1], [0, 0, 1, 1], [], []>} : vector<2x64xf32>, vector<64x128xf32>, vector<2x128xf32> -> vector<2x128xf32>
    %481 = arith.addf %480, %29 : vector<2x128xf32>
    %c12 = arith.constant 12 : index
    %c0_127 = arith.constant 0 : index
    %c0_128 = arith.constant 0 : index
    %482 = vector.load %arg12[%c12, %c0_127, %c0_128] : memref<30x2x128xf32, #tpu.memory_space<vmem>>, vector<1x2x128xf32>
    %483 = vector.shape_cast %482 : vector<1x2x128xf32> to vector<2x128xf32>
    %484 = vector.shape_cast %481 : vector<2x128xf32> to vector<1x2x128xf32>
    tpu.vector_store %arg12[%c12, %c0_127, %c0_128], %484 {strides = array<i32>} : memref<30x2x128xf32, #tpu.memory_space<vmem>>, vector<1x2x128xf32>,
    %cst_129 = arith.constant dense<0xFF800000> : vector<2xf32>
    %485 = vector.multi_reduction <maximumf>, %481, %cst_129 [1] : vector<2x128xf32> to vector<2xf32>
    %486 = vector.shape_cast %485 : vector<2xf32> to vector<2x1xf32>
    %487 = vector.broadcast %486 : vector<2x1xf32> to vector<2x128xf32>
    %488 = arith.cmpf oeq, %481, %487 : vector<2x128xf32>
    %c128_i32_130 = arith.constant 128 : i32
    %489 = vector.broadcast %c128_i32_130 : i32 to vector<2x128xi32>
    %490 = arith.select %488, %30, %489 : vector<2x128xi1>, vector<2x128xi32>
    %cst_131 = arith.constant dense<2147483647> : vector<2xi32>
    %491 = vector.multi_reduction <minsi>, %490, %cst_131 [1] : vector<2x128xi32> to vector<2xi32>
    %492 = vector.shape_cast %491 : vector<2xi32> to vector<2x1xi32>
    %493 = vector.broadcast %492 : vector<2x1xi32> to vector<2x64xi32>
    %494 = arith.cmpi eq, %31, %493 : vector<2x64xi32>
    %495 = arith.extui %494 : vector<2x64xi1> to vector<2x64xi32>
    %496 = arith.sitofp %495 : vector<2x64xi32> to vector<2x64xf32>
    %497 = tpu.concatenate %479, %496 in 1 : vector<2x64xf32>, vector<2x64xf32> -> vector<2x128xf32>
    %cst_132 = arith.constant dense<0.000000e+00> : vector<2x256xf32>
    %498 = tpu.matmul %497, %22, %cst_132 {dimension_numbers = #tpu.dot_dimension_numbers<[1], [0], [0], [1], [0, 0, 1, 1], [], []>} : vector<2x128xf32>, vector<128x256xf32>, vector<2x256xf32> -> vector<2x256xf32>
    %499 = arith.addf %498, %26 : vector<2x256xf32>
    %500 = vector.extract_strided_slice %499 {offsets = [0, 0], sizes = [2, 192], strides = [1, 1]} : vector<2x256xf32> to vector<2x192xf32>
    %501 = arith.negf %500 : vector<2x192xf32>
    %502 = math.exp %501 : vector<2x192xf32>
    %cst_133 = arith.constant 1.000000e+00 : f32
    %503 = vector.broadcast %cst_133 : f32 to vector<2x192xf32>
    %504 = arith.addf %503, %502 : vector<2x192xf32>
    %505 = arith.divf %503, %504 : vector<2x192xf32>
    %506 = vector.extract_strided_slice %499 {offsets = [0, 192], sizes = [2, 64], strides = [1, 1]} : vector<2x256xf32> to vector<2x64xf32>
    %507 = math.tanh %506 : vector<2x64xf32>
    %508 = vector.extract_strided_slice %505 {offsets = [0, 64], sizes = [2, 64], strides = [1, 1]} : vector<2x192xf32> to vector<2x64xf32>
    %509 = arith.mulf %508, %476 : vector<2x64xf32>
    %510 = vector.extract_strided_slice %505 {offsets = [0, 0], sizes = [2, 64], strides = [1, 1]} : vector<2x192xf32> to vector<2x64xf32>
    %511 = arith.mulf %510, %507 : vector<2x64xf32>
    %512 = arith.addf %509, %511 : vector<2x64xf32>
    %513 = vector.extract_strided_slice %505 {offsets = [0, 128], sizes = [2, 64], strides = [1, 1]} : vector<2x192xf32> to vector<2x64xf32>
    %514 = math.tanh %512 : vector<2x64xf32>
    %515 = arith.mulf %513, %514 : vector<2x64xf32>
    %cst_134 = arith.constant dense<0.000000e+00> : vector<2x128xf32>
    %516 = tpu.matmul %515, %23, %cst_134 {dimension_numbers = #tpu.dot_dimension_numbers<[1], [0], [0], [1], [0, 0, 1, 1], [], []>} : vector<2x64xf32>, vector<64x128xf32>, vector<2x128xf32> -> vector<2x128xf32>
    %517 = arith.addf %516, %29 : vector<2x128xf32>
    %c13 = arith.constant 13 : index
    %c0_135 = arith.constant 0 : index
    %c0_136 = arith.constant 0 : index
    %518 = vector.load %arg12[%c13, %c0_135, %c0_136] : memref<30x2x128xf32, #tpu.memory_space<vmem>>, vector<1x2x128xf32>
    %519 = vector.shape_cast %518 : vector<1x2x128xf32> to vector<2x128xf32>
    %520 = vector.shape_cast %517 : vector<2x128xf32> to vector<1x2x128xf32>
    tpu.vector_store %arg12[%c13, %c0_135, %c0_136], %520 {strides = array<i32>} : memref<30x2x128xf32, #tpu.memory_space<vmem>>, vector<1x2x128xf32>,
    %cst_137 = arith.constant dense<0xFF800000> : vector<2xf32>
    %521 = vector.multi_reduction <maximumf>, %517, %cst_137 [1] : vector<2x128xf32> to vector<2xf32>
    %522 = vector.shape_cast %521 : vector<2xf32> to vector<2x1xf32>
    %523 = vector.broadcast %522 : vector<2x1xf32> to vector<2x128xf32>
    %524 = arith.cmpf oeq, %517, %523 : vector<2x128xf32>
    %c128_i32_138 = arith.constant 128 : i32
    %525 = vector.broadcast %c128_i32_138 : i32 to vector<2x128xi32>
    %526 = arith.select %524, %30, %525 : vector<2x128xi1>, vector<2x128xi32>
    %cst_139 = arith.constant dense<2147483647> : vector<2xi32>
    %527 = vector.multi_reduction <minsi>, %526, %cst_139 [1] : vector<2x128xi32> to vector<2xi32>
    %528 = vector.shape_cast %527 : vector<2xi32> to vector<2x1xi32>
    %529 = vector.broadcast %528 : vector<2x1xi32> to vector<2x64xi32>
    %530 = arith.cmpi eq, %31, %529 : vector<2x64xi32>
    %531 = arith.extui %530 : vector<2x64xi1> to vector<2x64xi32>
    %532 = arith.sitofp %531 : vector<2x64xi32> to vector<2x64xf32>
    %533 = tpu.concatenate %515, %532 in 1 : vector<2x64xf32>, vector<2x64xf32> -> vector<2x128xf32>
    %cst_140 = arith.constant dense<0.000000e+00> : vector<2x256xf32>
    %534 = tpu.matmul %533, %22, %cst_140 {dimension_numbers = #tpu.dot_dimension_numbers<[1], [0], [0], [1], [0, 0, 1, 1], [], []>} : vector<2x128xf32>, vector<128x256xf32>, vector<2x256xf32> -> vector<2x256xf32>
    %535 = arith.addf %534, %26 : vector<2x256xf32>
    %536 = vector.extract_strided_slice %535 {offsets = [0, 0], sizes = [2, 192], strides = [1, 1]} : vector<2x256xf32> to vector<2x192xf32>
    %537 = arith.negf %536 : vector<2x192xf32>
    %538 = math.exp %537 : vector<2x192xf32>
    %cst_141 = arith.constant 1.000000e+00 : f32
    %539 = vector.broadcast %cst_141 : f32 to vector<2x192xf32>
    %540 = arith.addf %539, %538 : vector<2x192xf32>
    %541 = arith.divf %539, %540 : vector<2x192xf32>
    %542 = vector.extract_strided_slice %535 {offsets = [0, 192], sizes = [2, 64], strides = [1, 1]} : vector<2x256xf32> to vector<2x64xf32>
    %543 = math.tanh %542 : vector<2x64xf32>
    %544 = vector.extract_strided_slice %541 {offsets = [0, 64], sizes = [2, 64], strides = [1, 1]} : vector<2x192xf32> to vector<2x64xf32>
    %545 = arith.mulf %544, %512 : vector<2x64xf32>
    %546 = vector.extract_strided_slice %541 {offsets = [0, 0], sizes = [2, 64], strides = [1, 1]} : vector<2x192xf32> to vector<2x64xf32>
    %547 = arith.mulf %546, %543 : vector<2x64xf32>
    %548 = arith.addf %545, %547 : vector<2x64xf32>
    %549 = vector.extract_strided_slice %541 {offsets = [0, 128], sizes = [2, 64], strides = [1, 1]} : vector<2x192xf32> to vector<2x64xf32>
    %550 = math.tanh %548 : vector<2x64xf32>
    %551 = arith.mulf %549, %550 : vector<2x64xf32>
    %cst_142 = arith.constant dense<0.000000e+00> : vector<2x128xf32>
    %552 = tpu.matmul %551, %23, %cst_142 {dimension_numbers = #tpu.dot_dimension_numbers<[1], [0], [0], [1], [0, 0, 1, 1], [], []>} : vector<2x64xf32>, vector<64x128xf32>, vector<2x128xf32> -> vector<2x128xf32>
    %553 = arith.addf %552, %29 : vector<2x128xf32>
    %c14 = arith.constant 14 : index
    %c0_143 = arith.constant 0 : index
    %c0_144 = arith.constant 0 : index
    %554 = vector.load %arg12[%c14, %c0_143, %c0_144] : memref<30x2x128xf32, #tpu.memory_space<vmem>>, vector<1x2x128xf32>
    %555 = vector.shape_cast %554 : vector<1x2x128xf32> to vector<2x128xf32>
    %556 = vector.shape_cast %553 : vector<2x128xf32> to vector<1x2x128xf32>
    tpu.vector_store %arg12[%c14, %c0_143, %c0_144], %556 {strides = array<i32>} : memref<30x2x128xf32, #tpu.memory_space<vmem>>, vector<1x2x128xf32>,
    %cst_145 = arith.constant dense<0xFF800000> : vector<2xf32>
    %557 = vector.multi_reduction <maximumf>, %553, %cst_145 [1] : vector<2x128xf32> to vector<2xf32>
    %558 = vector.shape_cast %557 : vector<2xf32> to vector<2x1xf32>
    %559 = vector.broadcast %558 : vector<2x1xf32> to vector<2x128xf32>
    %560 = arith.cmpf oeq, %553, %559 : vector<2x128xf32>
    %c128_i32_146 = arith.constant 128 : i32
    %561 = vector.broadcast %c128_i32_146 : i32 to vector<2x128xi32>
    %562 = arith.select %560, %30, %561 : vector<2x128xi1>, vector<2x128xi32>
    %cst_147 = arith.constant dense<2147483647> : vector<2xi32>
    %563 = vector.multi_reduction <minsi>, %562, %cst_147 [1] : vector<2x128xi32> to vector<2xi32>
    %564 = vector.shape_cast %563 : vector<2xi32> to vector<2x1xi32>
    %565 = vector.broadcast %564 : vector<2x1xi32> to vector<2x64xi32>
    %566 = arith.cmpi eq, %31, %565 : vector<2x64xi32>
    %567 = arith.extui %566 : vector<2x64xi1> to vector<2x64xi32>
    %568 = arith.sitofp %567 : vector<2x64xi32> to vector<2x64xf32>
    %569 = tpu.concatenate %551, %568 in 1 : vector<2x64xf32>, vector<2x64xf32> -> vector<2x128xf32>
    %cst_148 = arith.constant dense<0.000000e+00> : vector<2x256xf32>
    %570 = tpu.matmul %569, %22, %cst_148 {dimension_numbers = #tpu.dot_dimension_numbers<[1], [0], [0], [1], [0, 0, 1, 1], [], []>} : vector<2x128xf32>, vector<128x256xf32>, vector<2x256xf32> -> vector<2x256xf32>
    %571 = arith.addf %570, %26 : vector<2x256xf32>
    %572 = vector.extract_strided_slice %571 {offsets = [0, 0], sizes = [2, 192], strides = [1, 1]} : vector<2x256xf32> to vector<2x192xf32>
    %573 = arith.negf %572 : vector<2x192xf32>
    %574 = math.exp %573 : vector<2x192xf32>
    %cst_149 = arith.constant 1.000000e+00 : f32
    %575 = vector.broadcast %cst_149 : f32 to vector<2x192xf32>
    %576 = arith.addf %575, %574 : vector<2x192xf32>
    %577 = arith.divf %575, %576 : vector<2x192xf32>
    %578 = vector.extract_strided_slice %571 {offsets = [0, 192], sizes = [2, 64], strides = [1, 1]} : vector<2x256xf32> to vector<2x64xf32>
    %579 = math.tanh %578 : vector<2x64xf32>
    %580 = vector.extract_strided_slice %577 {offsets = [0, 64], sizes = [2, 64], strides = [1, 1]} : vector<2x192xf32> to vector<2x64xf32>
    %581 = arith.mulf %580, %548 : vector<2x64xf32>
    %582 = vector.extract_strided_slice %577 {offsets = [0, 0], sizes = [2, 64], strides = [1, 1]} : vector<2x192xf32> to vector<2x64xf32>
    %583 = arith.mulf %582, %579 : vector<2x64xf32>
    %584 = arith.addf %581, %583 : vector<2x64xf32>
    %585 = vector.extract_strided_slice %577 {offsets = [0, 128], sizes = [2, 64], strides = [1, 1]} : vector<2x192xf32> to vector<2x64xf32>
    %586 = math.tanh %584 : vector<2x64xf32>
    %587 = arith.mulf %585, %586 : vector<2x64xf32>
    %cst_150 = arith.constant dense<0.000000e+00> : vector<2x128xf32>
    %588 = tpu.matmul %587, %23, %cst_150 {dimension_numbers = #tpu.dot_dimension_numbers<[1], [0], [0], [1], [0, 0, 1, 1], [], []>} : vector<2x64xf32>, vector<64x128xf32>, vector<2x128xf32> -> vector<2x128xf32>
    %589 = arith.addf %588, %29 : vector<2x128xf32>
    %c15 = arith.constant 15 : index
    %c0_151 = arith.constant 0 : index
    %c0_152 = arith.constant 0 : index
    %590 = vector.load %arg12[%c15, %c0_151, %c0_152] : memref<30x2x128xf32, #tpu.memory_space<vmem>>, vector<1x2x128xf32>
    %591 = vector.shape_cast %590 : vector<1x2x128xf32> to vector<2x128xf32>
    %592 = vector.shape_cast %589 : vector<2x128xf32> to vector<1x2x128xf32>
    tpu.vector_store %arg12[%c15, %c0_151, %c0_152], %592 {strides = array<i32>} : memref<30x2x128xf32, #tpu.memory_space<vmem>>, vector<1x2x128xf32>,
    %cst_153 = arith.constant dense<0xFF800000> : vector<2xf32>
    %593 = vector.multi_reduction <maximumf>, %589, %cst_153 [1] : vector<2x128xf32> to vector<2xf32>
    %594 = vector.shape_cast %593 : vector<2xf32> to vector<2x1xf32>
    %595 = vector.broadcast %594 : vector<2x1xf32> to vector<2x128xf32>
    %596 = arith.cmpf oeq, %589, %595 : vector<2x128xf32>
    %c128_i32_154 = arith.constant 128 : i32
    %597 = vector.broadcast %c128_i32_154 : i32 to vector<2x128xi32>
    %598 = arith.select %596, %30, %597 : vector<2x128xi1>, vector<2x128xi32>
    %cst_155 = arith.constant dense<2147483647> : vector<2xi32>
    %599 = vector.multi_reduction <minsi>, %598, %cst_155 [1] : vector<2x128xi32> to vector<2xi32>
    %600 = vector.shape_cast %599 : vector<2xi32> to vector<2x1xi32>
    %601 = vector.broadcast %600 : vector<2x1xi32> to vector<2x64xi32>
    %602 = arith.cmpi eq, %31, %601 : vector<2x64xi32>
    %603 = arith.extui %602 : vector<2x64xi1> to vector<2x64xi32>
    %604 = arith.sitofp %603 : vector<2x64xi32> to vector<2x64xf32>
    %605 = tpu.concatenate %587, %604 in 1 : vector<2x64xf32>, vector<2x64xf32> -> vector<2x128xf32>
    %cst_156 = arith.constant dense<0.000000e+00> : vector<2x256xf32>
    %606 = tpu.matmul %605, %22, %cst_156 {dimension_numbers = #tpu.dot_dimension_numbers<[1], [0], [0], [1], [0, 0, 1, 1], [], []>} : vector<2x128xf32>, vector<128x256xf32>, vector<2x256xf32> -> vector<2x256xf32>
    %607 = arith.addf %606, %26 : vector<2x256xf32>
    %608 = vector.extract_strided_slice %607 {offsets = [0, 0], sizes = [2, 192], strides = [1, 1]} : vector<2x256xf32> to vector<2x192xf32>
    %609 = arith.negf %608 : vector<2x192xf32>
    %610 = math.exp %609 : vector<2x192xf32>
    %cst_157 = arith.constant 1.000000e+00 : f32
    %611 = vector.broadcast %cst_157 : f32 to vector<2x192xf32>
    %612 = arith.addf %611, %610 : vector<2x192xf32>
    %613 = arith.divf %611, %612 : vector<2x192xf32>
    %614 = vector.extract_strided_slice %607 {offsets = [0, 192], sizes = [2, 64], strides = [1, 1]} : vector<2x256xf32> to vector<2x64xf32>
    %615 = math.tanh %614 : vector<2x64xf32>
    %616 = vector.extract_strided_slice %613 {offsets = [0, 64], sizes = [2, 64], strides = [1, 1]} : vector<2x192xf32> to vector<2x64xf32>
    %617 = arith.mulf %616, %584 : vector<2x64xf32>
    %618 = vector.extract_strided_slice %613 {offsets = [0, 0], sizes = [2, 64], strides = [1, 1]} : vector<2x192xf32> to vector<2x64xf32>
    %619 = arith.mulf %618, %615 : vector<2x64xf32>
    %620 = arith.addf %617, %619 : vector<2x64xf32>
    %621 = vector.extract_strided_slice %613 {offsets = [0, 128], sizes = [2, 64], strides = [1, 1]} : vector<2x192xf32> to vector<2x64xf32>
    %622 = math.tanh %620 : vector<2x64xf32>
    %623 = arith.mulf %621, %622 : vector<2x64xf32>
    %cst_158 = arith.constant dense<0.000000e+00> : vector<2x128xf32>
    %624 = tpu.matmul %623, %23, %cst_158 {dimension_numbers = #tpu.dot_dimension_numbers<[1], [0], [0], [1], [0, 0, 1, 1], [], []>} : vector<2x64xf32>, vector<64x128xf32>, vector<2x128xf32> -> vector<2x128xf32>
    %625 = arith.addf %624, %29 : vector<2x128xf32>
    %c16 = arith.constant 16 : index
    %c0_159 = arith.constant 0 : index
    %c0_160 = arith.constant 0 : index
    %626 = vector.load %arg12[%c16, %c0_159, %c0_160] : memref<30x2x128xf32, #tpu.memory_space<vmem>>, vector<1x2x128xf32>
    %627 = vector.shape_cast %626 : vector<1x2x128xf32> to vector<2x128xf32>
    %628 = vector.shape_cast %625 : vector<2x128xf32> to vector<1x2x128xf32>
    tpu.vector_store %arg12[%c16, %c0_159, %c0_160], %628 {strides = array<i32>} : memref<30x2x128xf32, #tpu.memory_space<vmem>>, vector<1x2x128xf32>,
    %cst_161 = arith.constant dense<0xFF800000> : vector<2xf32>
    %629 = vector.multi_reduction <maximumf>, %625, %cst_161 [1] : vector<2x128xf32> to vector<2xf32>
    %630 = vector.shape_cast %629 : vector<2xf32> to vector<2x1xf32>
    %631 = vector.broadcast %630 : vector<2x1xf32> to vector<2x128xf32>
    %632 = arith.cmpf oeq, %625, %631 : vector<2x128xf32>
    %c128_i32_162 = arith.constant 128 : i32
    %633 = vector.broadcast %c128_i32_162 : i32 to vector<2x128xi32>
    %634 = arith.select %632, %30, %633 : vector<2x128xi1>, vector<2x128xi32>
    %cst_163 = arith.constant dense<2147483647> : vector<2xi32>
    %635 = vector.multi_reduction <minsi>, %634, %cst_163 [1] : vector<2x128xi32> to vector<2xi32>
    %636 = vector.shape_cast %635 : vector<2xi32> to vector<2x1xi32>
    %637 = vector.broadcast %636 : vector<2x1xi32> to vector<2x64xi32>
    %638 = arith.cmpi eq, %31, %637 : vector<2x64xi32>
    %639 = arith.extui %638 : vector<2x64xi1> to vector<2x64xi32>
    %640 = arith.sitofp %639 : vector<2x64xi32> to vector<2x64xf32>
    %641 = tpu.concatenate %623, %640 in 1 : vector<2x64xf32>, vector<2x64xf32> -> vector<2x128xf32>
    %cst_164 = arith.constant dense<0.000000e+00> : vector<2x256xf32>
    %642 = tpu.matmul %641, %22, %cst_164 {dimension_numbers = #tpu.dot_dimension_numbers<[1], [0], [0], [1], [0, 0, 1, 1], [], []>} : vector<2x128xf32>, vector<128x256xf32>, vector<2x256xf32> -> vector<2x256xf32>
    %643 = arith.addf %642, %26 : vector<2x256xf32>
    %644 = vector.extract_strided_slice %643 {offsets = [0, 0], sizes = [2, 192], strides = [1, 1]} : vector<2x256xf32> to vector<2x192xf32>
    %645 = arith.negf %644 : vector<2x192xf32>
    %646 = math.exp %645 : vector<2x192xf32>
    %cst_165 = arith.constant 1.000000e+00 : f32
    %647 = vector.broadcast %cst_165 : f32 to vector<2x192xf32>
    %648 = arith.addf %647, %646 : vector<2x192xf32>
    %649 = arith.divf %647, %648 : vector<2x192xf32>
    %650 = vector.extract_strided_slice %643 {offsets = [0, 192], sizes = [2, 64], strides = [1, 1]} : vector<2x256xf32> to vector<2x64xf32>
    %651 = math.tanh %650 : vector<2x64xf32>
    %652 = vector.extract_strided_slice %649 {offsets = [0, 64], sizes = [2, 64], strides = [1, 1]} : vector<2x192xf32> to vector<2x64xf32>
    %653 = arith.mulf %652, %620 : vector<2x64xf32>
    %654 = vector.extract_strided_slice %649 {offsets = [0, 0], sizes = [2, 64], strides = [1, 1]} : vector<2x192xf32> to vector<2x64xf32>
    %655 = arith.mulf %654, %651 : vector<2x64xf32>
    %656 = arith.addf %653, %655 : vector<2x64xf32>
    %657 = vector.extract_strided_slice %649 {offsets = [0, 128], sizes = [2, 64], strides = [1, 1]} : vector<2x192xf32> to vector<2x64xf32>
    %658 = math.tanh %656 : vector<2x64xf32>
    %659 = arith.mulf %657, %658 : vector<2x64xf32>
    %cst_166 = arith.constant dense<0.000000e+00> : vector<2x128xf32>
    %660 = tpu.matmul %659, %23, %cst_166 {dimension_numbers = #tpu.dot_dimension_numbers<[1], [0], [0], [1], [0, 0, 1, 1], [], []>} : vector<2x64xf32>, vector<64x128xf32>, vector<2x128xf32> -> vector<2x128xf32>
    %661 = arith.addf %660, %29 : vector<2x128xf32>
    %c17 = arith.constant 17 : index
    %c0_167 = arith.constant 0 : index
    %c0_168 = arith.constant 0 : index
    %662 = vector.load %arg12[%c17, %c0_167, %c0_168] : memref<30x2x128xf32, #tpu.memory_space<vmem>>, vector<1x2x128xf32>
    %663 = vector.shape_cast %662 : vector<1x2x128xf32> to vector<2x128xf32>
    %664 = vector.shape_cast %661 : vector<2x128xf32> to vector<1x2x128xf32>
    tpu.vector_store %arg12[%c17, %c0_167, %c0_168], %664 {strides = array<i32>} : memref<30x2x128xf32, #tpu.memory_space<vmem>>, vector<1x2x128xf32>,
    %cst_169 = arith.constant dense<0xFF800000> : vector<2xf32>
    %665 = vector.multi_reduction <maximumf>, %661, %cst_169 [1] : vector<2x128xf32> to vector<2xf32>
    %666 = vector.shape_cast %665 : vector<2xf32> to vector<2x1xf32>
    %667 = vector.broadcast %666 : vector<2x1xf32> to vector<2x128xf32>
    %668 = arith.cmpf oeq, %661, %667 : vector<2x128xf32>
    %c128_i32_170 = arith.constant 128 : i32
    %669 = vector.broadcast %c128_i32_170 : i32 to vector<2x128xi32>
    %670 = arith.select %668, %30, %669 : vector<2x128xi1>, vector<2x128xi32>
    %cst_171 = arith.constant dense<2147483647> : vector<2xi32>
    %671 = vector.multi_reduction <minsi>, %670, %cst_171 [1] : vector<2x128xi32> to vector<2xi32>
    %672 = vector.shape_cast %671 : vector<2xi32> to vector<2x1xi32>
    %673 = vector.broadcast %672 : vector<2x1xi32> to vector<2x64xi32>
    %674 = arith.cmpi eq, %31, %673 : vector<2x64xi32>
    %675 = arith.extui %674 : vector<2x64xi1> to vector<2x64xi32>
    %676 = arith.sitofp %675 : vector<2x64xi32> to vector<2x64xf32>
    %677 = tpu.concatenate %659, %676 in 1 : vector<2x64xf32>, vector<2x64xf32> -> vector<2x128xf32>
    %cst_172 = arith.constant dense<0.000000e+00> : vector<2x256xf32>
    %678 = tpu.matmul %677, %22, %cst_172 {dimension_numbers = #tpu.dot_dimension_numbers<[1], [0], [0], [1], [0, 0, 1, 1], [], []>} : vector<2x128xf32>, vector<128x256xf32>, vector<2x256xf32> -> vector<2x256xf32>
    %679 = arith.addf %678, %26 : vector<2x256xf32>
    %680 = vector.extract_strided_slice %679 {offsets = [0, 0], sizes = [2, 192], strides = [1, 1]} : vector<2x256xf32> to vector<2x192xf32>
    %681 = arith.negf %680 : vector<2x192xf32>
    %682 = math.exp %681 : vector<2x192xf32>
    %cst_173 = arith.constant 1.000000e+00 : f32
    %683 = vector.broadcast %cst_173 : f32 to vector<2x192xf32>
    %684 = arith.addf %683, %682 : vector<2x192xf32>
    %685 = arith.divf %683, %684 : vector<2x192xf32>
    %686 = vector.extract_strided_slice %679 {offsets = [0, 192], sizes = [2, 64], strides = [1, 1]} : vector<2x256xf32> to vector<2x64xf32>
    %687 = math.tanh %686 : vector<2x64xf32>
    %688 = vector.extract_strided_slice %685 {offsets = [0, 64], sizes = [2, 64], strides = [1, 1]} : vector<2x192xf32> to vector<2x64xf32>
    %689 = arith.mulf %688, %656 : vector<2x64xf32>
    %690 = vector.extract_strided_slice %685 {offsets = [0, 0], sizes = [2, 64], strides = [1, 1]} : vector<2x192xf32> to vector<2x64xf32>
    %691 = arith.mulf %690, %687 : vector<2x64xf32>
    %692 = arith.addf %689, %691 : vector<2x64xf32>
    %693 = vector.extract_strided_slice %685 {offsets = [0, 128], sizes = [2, 64], strides = [1, 1]} : vector<2x192xf32> to vector<2x64xf32>
    %694 = math.tanh %692 : vector<2x64xf32>
    %695 = arith.mulf %693, %694 : vector<2x64xf32>
    %cst_174 = arith.constant dense<0.000000e+00> : vector<2x128xf32>
    %696 = tpu.matmul %695, %23, %cst_174 {dimension_numbers = #tpu.dot_dimension_numbers<[1], [0], [0], [1], [0, 0, 1, 1], [], []>} : vector<2x64xf32>, vector<64x128xf32>, vector<2x128xf32> -> vector<2x128xf32>
    %697 = arith.addf %696, %29 : vector<2x128xf32>
    %c18 = arith.constant 18 : index
    %c0_175 = arith.constant 0 : index
    %c0_176 = arith.constant 0 : index
    %698 = vector.load %arg12[%c18, %c0_175, %c0_176] : memref<30x2x128xf32, #tpu.memory_space<vmem>>, vector<1x2x128xf32>
    %699 = vector.shape_cast %698 : vector<1x2x128xf32> to vector<2x128xf32>
    %700 = vector.shape_cast %697 : vector<2x128xf32> to vector<1x2x128xf32>
    tpu.vector_store %arg12[%c18, %c0_175, %c0_176], %700 {strides = array<i32>} : memref<30x2x128xf32, #tpu.memory_space<vmem>>, vector<1x2x128xf32>,
    %cst_177 = arith.constant dense<0xFF800000> : vector<2xf32>
    %701 = vector.multi_reduction <maximumf>, %697, %cst_177 [1] : vector<2x128xf32> to vector<2xf32>
    %702 = vector.shape_cast %701 : vector<2xf32> to vector<2x1xf32>
    %703 = vector.broadcast %702 : vector<2x1xf32> to vector<2x128xf32>
    %704 = arith.cmpf oeq, %697, %703 : vector<2x128xf32>
    %c128_i32_178 = arith.constant 128 : i32
    %705 = vector.broadcast %c128_i32_178 : i32 to vector<2x128xi32>
    %706 = arith.select %704, %30, %705 : vector<2x128xi1>, vector<2x128xi32>
    %cst_179 = arith.constant dense<2147483647> : vector<2xi32>
    %707 = vector.multi_reduction <minsi>, %706, %cst_179 [1] : vector<2x128xi32> to vector<2xi32>
    %708 = vector.shape_cast %707 : vector<2xi32> to vector<2x1xi32>
    %709 = vector.broadcast %708 : vector<2x1xi32> to vector<2x64xi32>
    %710 = arith.cmpi eq, %31, %709 : vector<2x64xi32>
    %711 = arith.extui %710 : vector<2x64xi1> to vector<2x64xi32>
    %712 = arith.sitofp %711 : vector<2x64xi32> to vector<2x64xf32>
    %713 = tpu.concatenate %695, %712 in 1 : vector<2x64xf32>, vector<2x64xf32> -> vector<2x128xf32>
    %cst_180 = arith.constant dense<0.000000e+00> : vector<2x256xf32>
    %714 = tpu.matmul %713, %22, %cst_180 {dimension_numbers = #tpu.dot_dimension_numbers<[1], [0], [0], [1], [0, 0, 1, 1], [], []>} : vector<2x128xf32>, vector<128x256xf32>, vector<2x256xf32> -> vector<2x256xf32>
    %715 = arith.addf %714, %26 : vector<2x256xf32>
    %716 = vector.extract_strided_slice %715 {offsets = [0, 0], sizes = [2, 192], strides = [1, 1]} : vector<2x256xf32> to vector<2x192xf32>
    %717 = arith.negf %716 : vector<2x192xf32>
    %718 = math.exp %717 : vector<2x192xf32>
    %cst_181 = arith.constant 1.000000e+00 : f32
    %719 = vector.broadcast %cst_181 : f32 to vector<2x192xf32>
    %720 = arith.addf %719, %718 : vector<2x192xf32>
    %721 = arith.divf %719, %720 : vector<2x192xf32>
    %722 = vector.extract_strided_slice %715 {offsets = [0, 192], sizes = [2, 64], strides = [1, 1]} : vector<2x256xf32> to vector<2x64xf32>
    %723 = math.tanh %722 : vector<2x64xf32>
    %724 = vector.extract_strided_slice %721 {offsets = [0, 64], sizes = [2, 64], strides = [1, 1]} : vector<2x192xf32> to vector<2x64xf32>
    %725 = arith.mulf %724, %692 : vector<2x64xf32>
    %726 = vector.extract_strided_slice %721 {offsets = [0, 0], sizes = [2, 64], strides = [1, 1]} : vector<2x192xf32> to vector<2x64xf32>
    %727 = arith.mulf %726, %723 : vector<2x64xf32>
    %728 = arith.addf %725, %727 : vector<2x64xf32>
    %729 = vector.extract_strided_slice %721 {offsets = [0, 128], sizes = [2, 64], strides = [1, 1]} : vector<2x192xf32> to vector<2x64xf32>
    %730 = math.tanh %728 : vector<2x64xf32>
    %731 = arith.mulf %729, %730 : vector<2x64xf32>
    %cst_182 = arith.constant dense<0.000000e+00> : vector<2x128xf32>
    %732 = tpu.matmul %731, %23, %cst_182 {dimension_numbers = #tpu.dot_dimension_numbers<[1], [0], [0], [1], [0, 0, 1, 1], [], []>} : vector<2x64xf32>, vector<64x128xf32>, vector<2x128xf32> -> vector<2x128xf32>
    %733 = arith.addf %732, %29 : vector<2x128xf32>
    %c19 = arith.constant 19 : index
    %c0_183 = arith.constant 0 : index
    %c0_184 = arith.constant 0 : index
    %734 = vector.load %arg12[%c19, %c0_183, %c0_184] : memref<30x2x128xf32, #tpu.memory_space<vmem>>, vector<1x2x128xf32>
    %735 = vector.shape_cast %734 : vector<1x2x128xf32> to vector<2x128xf32>
    %736 = vector.shape_cast %733 : vector<2x128xf32> to vector<1x2x128xf32>
    tpu.vector_store %arg12[%c19, %c0_183, %c0_184], %736 {strides = array<i32>} : memref<30x2x128xf32, #tpu.memory_space<vmem>>, vector<1x2x128xf32>,
    %cst_185 = arith.constant dense<0xFF800000> : vector<2xf32>
    %737 = vector.multi_reduction <maximumf>, %733, %cst_185 [1] : vector<2x128xf32> to vector<2xf32>
    %738 = vector.shape_cast %737 : vector<2xf32> to vector<2x1xf32>
    %739 = vector.broadcast %738 : vector<2x1xf32> to vector<2x128xf32>
    %740 = arith.cmpf oeq, %733, %739 : vector<2x128xf32>
    %c128_i32_186 = arith.constant 128 : i32
    %741 = vector.broadcast %c128_i32_186 : i32 to vector<2x128xi32>
    %742 = arith.select %740, %30, %741 : vector<2x128xi1>, vector<2x128xi32>
    %cst_187 = arith.constant dense<2147483647> : vector<2xi32>
    %743 = vector.multi_reduction <minsi>, %742, %cst_187 [1] : vector<2x128xi32> to vector<2xi32>
    %744 = vector.shape_cast %743 : vector<2xi32> to vector<2x1xi32>
    %745 = vector.broadcast %744 : vector<2x1xi32> to vector<2x64xi32>
    %746 = arith.cmpi eq, %31, %745 : vector<2x64xi32>
    %747 = arith.extui %746 : vector<2x64xi1> to vector<2x64xi32>
    %748 = arith.sitofp %747 : vector<2x64xi32> to vector<2x64xf32>
    %749 = tpu.concatenate %731, %748 in 1 : vector<2x64xf32>, vector<2x64xf32> -> vector<2x128xf32>
    %cst_188 = arith.constant dense<0.000000e+00> : vector<2x256xf32>
    %750 = tpu.matmul %749, %22, %cst_188 {dimension_numbers = #tpu.dot_dimension_numbers<[1], [0], [0], [1], [0, 0, 1, 1], [], []>} : vector<2x128xf32>, vector<128x256xf32>, vector<2x256xf32> -> vector<2x256xf32>
    %751 = arith.addf %750, %26 : vector<2x256xf32>
    %752 = vector.extract_strided_slice %751 {offsets = [0, 0], sizes = [2, 192], strides = [1, 1]} : vector<2x256xf32> to vector<2x192xf32>
    %753 = arith.negf %752 : vector<2x192xf32>
    %754 = math.exp %753 : vector<2x192xf32>
    %cst_189 = arith.constant 1.000000e+00 : f32
    %755 = vector.broadcast %cst_189 : f32 to vector<2x192xf32>
    %756 = arith.addf %755, %754 : vector<2x192xf32>
    %757 = arith.divf %755, %756 : vector<2x192xf32>
    %758 = vector.extract_strided_slice %751 {offsets = [0, 192], sizes = [2, 64], strides = [1, 1]} : vector<2x256xf32> to vector<2x64xf32>
    %759 = math.tanh %758 : vector<2x64xf32>
    %760 = vector.extract_strided_slice %757 {offsets = [0, 64], sizes = [2, 64], strides = [1, 1]} : vector<2x192xf32> to vector<2x64xf32>
    %761 = arith.mulf %760, %728 : vector<2x64xf32>
    %762 = vector.extract_strided_slice %757 {offsets = [0, 0], sizes = [2, 64], strides = [1, 1]} : vector<2x192xf32> to vector<2x64xf32>
    %763 = arith.mulf %762, %759 : vector<2x64xf32>
    %764 = arith.addf %761, %763 : vector<2x64xf32>
    %765 = vector.extract_strided_slice %757 {offsets = [0, 128], sizes = [2, 64], strides = [1, 1]} : vector<2x192xf32> to vector<2x64xf32>
    %766 = math.tanh %764 : vector<2x64xf32>
    %767 = arith.mulf %765, %766 : vector<2x64xf32>
    %cst_190 = arith.constant dense<0.000000e+00> : vector<2x128xf32>
    %768 = tpu.matmul %767, %23, %cst_190 {dimension_numbers = #tpu.dot_dimension_numbers<[1], [0], [0], [1], [0, 0, 1, 1], [], []>} : vector<2x64xf32>, vector<64x128xf32>, vector<2x128xf32> -> vector<2x128xf32>
    %769 = arith.addf %768, %29 : vector<2x128xf32>
    %c20 = arith.constant 20 : index
    %c0_191 = arith.constant 0 : index
    %c0_192 = arith.constant 0 : index
    %770 = vector.load %arg12[%c20, %c0_191, %c0_192] : memref<30x2x128xf32, #tpu.memory_space<vmem>>, vector<1x2x128xf32>
    %771 = vector.shape_cast %770 : vector<1x2x128xf32> to vector<2x128xf32>
    %772 = vector.shape_cast %769 : vector<2x128xf32> to vector<1x2x128xf32>
    tpu.vector_store %arg12[%c20, %c0_191, %c0_192], %772 {strides = array<i32>} : memref<30x2x128xf32, #tpu.memory_space<vmem>>, vector<1x2x128xf32>,
    %cst_193 = arith.constant dense<0xFF800000> : vector<2xf32>
    %773 = vector.multi_reduction <maximumf>, %769, %cst_193 [1] : vector<2x128xf32> to vector<2xf32>
    %774 = vector.shape_cast %773 : vector<2xf32> to vector<2x1xf32>
    %775 = vector.broadcast %774 : vector<2x1xf32> to vector<2x128xf32>
    %776 = arith.cmpf oeq, %769, %775 : vector<2x128xf32>
    %c128_i32_194 = arith.constant 128 : i32
    %777 = vector.broadcast %c128_i32_194 : i32 to vector<2x128xi32>
    %778 = arith.select %776, %30, %777 : vector<2x128xi1>, vector<2x128xi32>
    %cst_195 = arith.constant dense<2147483647> : vector<2xi32>
    %779 = vector.multi_reduction <minsi>, %778, %cst_195 [1] : vector<2x128xi32> to vector<2xi32>
    %780 = vector.shape_cast %779 : vector<2xi32> to vector<2x1xi32>
    %781 = vector.broadcast %780 : vector<2x1xi32> to vector<2x64xi32>
    %782 = arith.cmpi eq, %31, %781 : vector<2x64xi32>
    %783 = arith.extui %782 : vector<2x64xi1> to vector<2x64xi32>
    %784 = arith.sitofp %783 : vector<2x64xi32> to vector<2x64xf32>
    %785 = tpu.concatenate %767, %784 in 1 : vector<2x64xf32>, vector<2x64xf32> -> vector<2x128xf32>
    %cst_196 = arith.constant dense<0.000000e+00> : vector<2x256xf32>
    %786 = tpu.matmul %785, %22, %cst_196 {dimension_numbers = #tpu.dot_dimension_numbers<[1], [0], [0], [1], [0, 0, 1, 1], [], []>} : vector<2x128xf32>, vector<128x256xf32>, vector<2x256xf32> -> vector<2x256xf32>
    %787 = arith.addf %786, %26 : vector<2x256xf32>
    %788 = vector.extract_strided_slice %787 {offsets = [0, 0], sizes = [2, 192], strides = [1, 1]} : vector<2x256xf32> to vector<2x192xf32>
    %789 = arith.negf %788 : vector<2x192xf32>
    %790 = math.exp %789 : vector<2x192xf32>
    %cst_197 = arith.constant 1.000000e+00 : f32
    %791 = vector.broadcast %cst_197 : f32 to vector<2x192xf32>
    %792 = arith.addf %791, %790 : vector<2x192xf32>
    %793 = arith.divf %791, %792 : vector<2x192xf32>
    %794 = vector.extract_strided_slice %787 {offsets = [0, 192], sizes = [2, 64], strides = [1, 1]} : vector<2x256xf32> to vector<2x64xf32>
    %795 = math.tanh %794 : vector<2x64xf32>
    %796 = vector.extract_strided_slice %793 {offsets = [0, 64], sizes = [2, 64], strides = [1, 1]} : vector<2x192xf32> to vector<2x64xf32>
    %797 = arith.mulf %796, %764 : vector<2x64xf32>
    %798 = vector.extract_strided_slice %793 {offsets = [0, 0], sizes = [2, 64], strides = [1, 1]} : vector<2x192xf32> to vector<2x64xf32>
    %799 = arith.mulf %798, %795 : vector<2x64xf32>
    %800 = arith.addf %797, %799 : vector<2x64xf32>
    %801 = vector.extract_strided_slice %793 {offsets = [0, 128], sizes = [2, 64], strides = [1, 1]} : vector<2x192xf32> to vector<2x64xf32>
    %802 = math.tanh %800 : vector<2x64xf32>
    %803 = arith.mulf %801, %802 : vector<2x64xf32>
    %cst_198 = arith.constant dense<0.000000e+00> : vector<2x128xf32>
    %804 = tpu.matmul %803, %23, %cst_198 {dimension_numbers = #tpu.dot_dimension_numbers<[1], [0], [0], [1], [0, 0, 1, 1], [], []>} : vector<2x64xf32>, vector<64x128xf32>, vector<2x128xf32> -> vector<2x128xf32>
    %805 = arith.addf %804, %29 : vector<2x128xf32>
    %c21 = arith.constant 21 : index
    %c0_199 = arith.constant 0 : index
    %c0_200 = arith.constant 0 : index
    %806 = vector.load %arg12[%c21, %c0_199, %c0_200] : memref<30x2x128xf32, #tpu.memory_space<vmem>>, vector<1x2x128xf32>
    %807 = vector.shape_cast %806 : vector<1x2x128xf32> to vector<2x128xf32>
    %808 = vector.shape_cast %805 : vector<2x128xf32> to vector<1x2x128xf32>
    tpu.vector_store %arg12[%c21, %c0_199, %c0_200], %808 {strides = array<i32>} : memref<30x2x128xf32, #tpu.memory_space<vmem>>, vector<1x2x128xf32>,
    %cst_201 = arith.constant dense<0xFF800000> : vector<2xf32>
    %809 = vector.multi_reduction <maximumf>, %805, %cst_201 [1] : vector<2x128xf32> to vector<2xf32>
    %810 = vector.shape_cast %809 : vector<2xf32> to vector<2x1xf32>
    %811 = vector.broadcast %810 : vector<2x1xf32> to vector<2x128xf32>
    %812 = arith.cmpf oeq, %805, %811 : vector<2x128xf32>
    %c128_i32_202 = arith.constant 128 : i32
    %813 = vector.broadcast %c128_i32_202 : i32 to vector<2x128xi32>
    %814 = arith.select %812, %30, %813 : vector<2x128xi1>, vector<2x128xi32>
    %cst_203 = arith.constant dense<2147483647> : vector<2xi32>
    %815 = vector.multi_reduction <minsi>, %814, %cst_203 [1] : vector<2x128xi32> to vector<2xi32>
    %816 = vector.shape_cast %815 : vector<2xi32> to vector<2x1xi32>
    %817 = vector.broadcast %816 : vector<2x1xi32> to vector<2x64xi32>
    %818 = arith.cmpi eq, %31, %817 : vector<2x64xi32>
    %819 = arith.extui %818 : vector<2x64xi1> to vector<2x64xi32>
    %820 = arith.sitofp %819 : vector<2x64xi32> to vector<2x64xf32>
    %821 = tpu.concatenate %803, %820 in 1 : vector<2x64xf32>, vector<2x64xf32> -> vector<2x128xf32>
    %cst_204 = arith.constant dense<0.000000e+00> : vector<2x256xf32>
    %822 = tpu.matmul %821, %22, %cst_204 {dimension_numbers = #tpu.dot_dimension_numbers<[1], [0], [0], [1], [0, 0, 1, 1], [], []>} : vector<2x128xf32>, vector<128x256xf32>, vector<2x256xf32> -> vector<2x256xf32>
    %823 = arith.addf %822, %26 : vector<2x256xf32>
    %824 = vector.extract_strided_slice %823 {offsets = [0, 0], sizes = [2, 192], strides = [1, 1]} : vector<2x256xf32> to vector<2x192xf32>
    %825 = arith.negf %824 : vector<2x192xf32>
    %826 = math.exp %825 : vector<2x192xf32>
    %cst_205 = arith.constant 1.000000e+00 : f32
    %827 = vector.broadcast %cst_205 : f32 to vector<2x192xf32>
    %828 = arith.addf %827, %826 : vector<2x192xf32>
    %829 = arith.divf %827, %828 : vector<2x192xf32>
    %830 = vector.extract_strided_slice %823 {offsets = [0, 192], sizes = [2, 64], strides = [1, 1]} : vector<2x256xf32> to vector<2x64xf32>
    %831 = math.tanh %830 : vector<2x64xf32>
    %832 = vector.extract_strided_slice %829 {offsets = [0, 64], sizes = [2, 64], strides = [1, 1]} : vector<2x192xf32> to vector<2x64xf32>
    %833 = arith.mulf %832, %800 : vector<2x64xf32>
    %834 = vector.extract_strided_slice %829 {offsets = [0, 0], sizes = [2, 64], strides = [1, 1]} : vector<2x192xf32> to vector<2x64xf32>
    %835 = arith.mulf %834, %831 : vector<2x64xf32>
    %836 = arith.addf %833, %835 : vector<2x64xf32>
    %837 = vector.extract_strided_slice %829 {offsets = [0, 128], sizes = [2, 64], strides = [1, 1]} : vector<2x192xf32> to vector<2x64xf32>
    %838 = math.tanh %836 : vector<2x64xf32>
    %839 = arith.mulf %837, %838 : vector<2x64xf32>
    %cst_206 = arith.constant dense<0.000000e+00> : vector<2x128xf32>
    %840 = tpu.matmul %839, %23, %cst_206 {dimension_numbers = #tpu.dot_dimension_numbers<[1], [0], [0], [1], [0, 0, 1, 1], [], []>} : vector<2x64xf32>, vector<64x128xf32>, vector<2x128xf32> -> vector<2x128xf32>
    %841 = arith.addf %840, %29 : vector<2x128xf32>
    %c22 = arith.constant 22 : index
    %c0_207 = arith.constant 0 : index
    %c0_208 = arith.constant 0 : index
    %842 = vector.load %arg12[%c22, %c0_207, %c0_208] : memref<30x2x128xf32, #tpu.memory_space<vmem>>, vector<1x2x128xf32>
    %843 = vector.shape_cast %842 : vector<1x2x128xf32> to vector<2x128xf32>
    %844 = vector.shape_cast %841 : vector<2x128xf32> to vector<1x2x128xf32>
    tpu.vector_store %arg12[%c22, %c0_207, %c0_208], %844 {strides = array<i32>} : memref<30x2x128xf32, #tpu.memory_space<vmem>>, vector<1x2x128xf32>,
    %cst_209 = arith.constant dense<0xFF800000> : vector<2xf32>
    %845 = vector.multi_reduction <maximumf>, %841, %cst_209 [1] : vector<2x128xf32> to vector<2xf32>
    %846 = vector.shape_cast %845 : vector<2xf32> to vector<2x1xf32>
    %847 = vector.broadcast %846 : vector<2x1xf32> to vector<2x128xf32>
    %848 = arith.cmpf oeq, %841, %847 : vector<2x128xf32>
    %c128_i32_210 = arith.constant 128 : i32
    %849 = vector.broadcast %c128_i32_210 : i32 to vector<2x128xi32>
    %850 = arith.select %848, %30, %849 : vector<2x128xi1>, vector<2x128xi32>
    %cst_211 = arith.constant dense<2147483647> : vector<2xi32>
    %851 = vector.multi_reduction <minsi>, %850, %cst_211 [1] : vector<2x128xi32> to vector<2xi32>
    %852 = vector.shape_cast %851 : vector<2xi32> to vector<2x1xi32>
    %853 = vector.broadcast %852 : vector<2x1xi32> to vector<2x64xi32>
    %854 = arith.cmpi eq, %31, %853 : vector<2x64xi32>
    %855 = arith.extui %854 : vector<2x64xi1> to vector<2x64xi32>
    %856 = arith.sitofp %855 : vector<2x64xi32> to vector<2x64xf32>
    %857 = tpu.concatenate %839, %856 in 1 : vector<2x64xf32>, vector<2x64xf32> -> vector<2x128xf32>
    %cst_212 = arith.constant dense<0.000000e+00> : vector<2x256xf32>
    %858 = tpu.matmul %857, %22, %cst_212 {dimension_numbers = #tpu.dot_dimension_numbers<[1], [0], [0], [1], [0, 0, 1, 1], [], []>} : vector<2x128xf32>, vector<128x256xf32>, vector<2x256xf32> -> vector<2x256xf32>
    %859 = arith.addf %858, %26 : vector<2x256xf32>
    %860 = vector.extract_strided_slice %859 {offsets = [0, 0], sizes = [2, 192], strides = [1, 1]} : vector<2x256xf32> to vector<2x192xf32>
    %861 = arith.negf %860 : vector<2x192xf32>
    %862 = math.exp %861 : vector<2x192xf32>
    %cst_213 = arith.constant 1.000000e+00 : f32
    %863 = vector.broadcast %cst_213 : f32 to vector<2x192xf32>
    %864 = arith.addf %863, %862 : vector<2x192xf32>
    %865 = arith.divf %863, %864 : vector<2x192xf32>
    %866 = vector.extract_strided_slice %859 {offsets = [0, 192], sizes = [2, 64], strides = [1, 1]} : vector<2x256xf32> to vector<2x64xf32>
    %867 = math.tanh %866 : vector<2x64xf32>
    %868 = vector.extract_strided_slice %865 {offsets = [0, 64], sizes = [2, 64], strides = [1, 1]} : vector<2x192xf32> to vector<2x64xf32>
    %869 = arith.mulf %868, %836 : vector<2x64xf32>
    %870 = vector.extract_strided_slice %865 {offsets = [0, 0], sizes = [2, 64], strides = [1, 1]} : vector<2x192xf32> to vector<2x64xf32>
    %871 = arith.mulf %870, %867 : vector<2x64xf32>
    %872 = arith.addf %869, %871 : vector<2x64xf32>
    %873 = vector.extract_strided_slice %865 {offsets = [0, 128], sizes = [2, 64], strides = [1, 1]} : vector<2x192xf32> to vector<2x64xf32>
    %874 = math.tanh %872 : vector<2x64xf32>
    %875 = arith.mulf %873, %874 : vector<2x64xf32>
    %cst_214 = arith.constant dense<0.000000e+00> : vector<2x128xf32>
    %876 = tpu.matmul %875, %23, %cst_214 {dimension_numbers = #tpu.dot_dimension_numbers<[1], [0], [0], [1], [0, 0, 1, 1], [], []>} : vector<2x64xf32>, vector<64x128xf32>, vector<2x128xf32> -> vector<2x128xf32>
    %877 = arith.addf %876, %29 : vector<2x128xf32>
    %c23 = arith.constant 23 : index
    %c0_215 = arith.constant 0 : index
    %c0_216 = arith.constant 0 : index
    %878 = vector.load %arg12[%c23, %c0_215, %c0_216] : memref<30x2x128xf32, #tpu.memory_space<vmem>>, vector<1x2x128xf32>
    %879 = vector.shape_cast %878 : vector<1x2x128xf32> to vector<2x128xf32>
    %880 = vector.shape_cast %877 : vector<2x128xf32> to vector<1x2x128xf32>
    tpu.vector_store %arg12[%c23, %c0_215, %c0_216], %880 {strides = array<i32>} : memref<30x2x128xf32, #tpu.memory_space<vmem>>, vector<1x2x128xf32>,
    %cst_217 = arith.constant dense<0xFF800000> : vector<2xf32>
    %881 = vector.multi_reduction <maximumf>, %877, %cst_217 [1] : vector<2x128xf32> to vector<2xf32>
    %882 = vector.shape_cast %881 : vector<2xf32> to vector<2x1xf32>
    %883 = vector.broadcast %882 : vector<2x1xf32> to vector<2x128xf32>
    %884 = arith.cmpf oeq, %877, %883 : vector<2x128xf32>
    %c128_i32_218 = arith.constant 128 : i32
    %885 = vector.broadcast %c128_i32_218 : i32 to vector<2x128xi32>
    %886 = arith.select %884, %30, %885 : vector<2x128xi1>, vector<2x128xi32>
    %cst_219 = arith.constant dense<2147483647> : vector<2xi32>
    %887 = vector.multi_reduction <minsi>, %886, %cst_219 [1] : vector<2x128xi32> to vector<2xi32>
    %888 = vector.shape_cast %887 : vector<2xi32> to vector<2x1xi32>
    %889 = vector.broadcast %888 : vector<2x1xi32> to vector<2x64xi32>
    %890 = arith.cmpi eq, %31, %889 : vector<2x64xi32>
    %891 = arith.extui %890 : vector<2x64xi1> to vector<2x64xi32>
    %892 = arith.sitofp %891 : vector<2x64xi32> to vector<2x64xf32>
    %893 = tpu.concatenate %875, %892 in 1 : vector<2x64xf32>, vector<2x64xf32> -> vector<2x128xf32>
    %cst_220 = arith.constant dense<0.000000e+00> : vector<2x256xf32>
    %894 = tpu.matmul %893, %22, %cst_220 {dimension_numbers = #tpu.dot_dimension_numbers<[1], [0], [0], [1], [0, 0, 1, 1], [], []>} : vector<2x128xf32>, vector<128x256xf32>, vector<2x256xf32> -> vector<2x256xf32>
    %895 = arith.addf %894, %26 : vector<2x256xf32>
    %896 = vector.extract_strided_slice %895 {offsets = [0, 0], sizes = [2, 192], strides = [1, 1]} : vector<2x256xf32> to vector<2x192xf32>
    %897 = arith.negf %896 : vector<2x192xf32>
    %898 = math.exp %897 : vector<2x192xf32>
    %cst_221 = arith.constant 1.000000e+00 : f32
    %899 = vector.broadcast %cst_221 : f32 to vector<2x192xf32>
    %900 = arith.addf %899, %898 : vector<2x192xf32>
    %901 = arith.divf %899, %900 : vector<2x192xf32>
    %902 = vector.extract_strided_slice %895 {offsets = [0, 192], sizes = [2, 64], strides = [1, 1]} : vector<2x256xf32> to vector<2x64xf32>
    %903 = math.tanh %902 : vector<2x64xf32>
    %904 = vector.extract_strided_slice %901 {offsets = [0, 64], sizes = [2, 64], strides = [1, 1]} : vector<2x192xf32> to vector<2x64xf32>
    %905 = arith.mulf %904, %872 : vector<2x64xf32>
    %906 = vector.extract_strided_slice %901 {offsets = [0, 0], sizes = [2, 64], strides = [1, 1]} : vector<2x192xf32> to vector<2x64xf32>
    %907 = arith.mulf %906, %903 : vector<2x64xf32>
    %908 = arith.addf %905, %907 : vector<2x64xf32>
    %909 = vector.extract_strided_slice %901 {offsets = [0, 128], sizes = [2, 64], strides = [1, 1]} : vector<2x192xf32> to vector<2x64xf32>
    %910 = math.tanh %908 : vector<2x64xf32>
    %911 = arith.mulf %909, %910 : vector<2x64xf32>
    %cst_222 = arith.constant dense<0.000000e+00> : vector<2x128xf32>
    %912 = tpu.matmul %911, %23, %cst_222 {dimension_numbers = #tpu.dot_dimension_numbers<[1], [0], [0], [1], [0, 0, 1, 1], [], []>} : vector<2x64xf32>, vector<64x128xf32>, vector<2x128xf32> -> vector<2x128xf32>
    %913 = arith.addf %912, %29 : vector<2x128xf32>
    %c24 = arith.constant 24 : index
    %c0_223 = arith.constant 0 : index
    %c0_224 = arith.constant 0 : index
    %914 = vector.load %arg12[%c24, %c0_223, %c0_224] : memref<30x2x128xf32, #tpu.memory_space<vmem>>, vector<1x2x128xf32>
    %915 = vector.shape_cast %914 : vector<1x2x128xf32> to vector<2x128xf32>
    %916 = vector.shape_cast %913 : vector<2x128xf32> to vector<1x2x128xf32>
    tpu.vector_store %arg12[%c24, %c0_223, %c0_224], %916 {strides = array<i32>} : memref<30x2x128xf32, #tpu.memory_space<vmem>>, vector<1x2x128xf32>,
    %cst_225 = arith.constant dense<0xFF800000> : vector<2xf32>
    %917 = vector.multi_reduction <maximumf>, %913, %cst_225 [1] : vector<2x128xf32> to vector<2xf32>
    %918 = vector.shape_cast %917 : vector<2xf32> to vector<2x1xf32>
    %919 = vector.broadcast %918 : vector<2x1xf32> to vector<2x128xf32>
    %920 = arith.cmpf oeq, %913, %919 : vector<2x128xf32>
    %c128_i32_226 = arith.constant 128 : i32
    %921 = vector.broadcast %c128_i32_226 : i32 to vector<2x128xi32>
    %922 = arith.select %920, %30, %921 : vector<2x128xi1>, vector<2x128xi32>
    %cst_227 = arith.constant dense<2147483647> : vector<2xi32>
    %923 = vector.multi_reduction <minsi>, %922, %cst_227 [1] : vector<2x128xi32> to vector<2xi32>
    %924 = vector.shape_cast %923 : vector<2xi32> to vector<2x1xi32>
    %925 = vector.broadcast %924 : vector<2x1xi32> to vector<2x64xi32>
    %926 = arith.cmpi eq, %31, %925 : vector<2x64xi32>
    %927 = arith.extui %926 : vector<2x64xi1> to vector<2x64xi32>
    %928 = arith.sitofp %927 : vector<2x64xi32> to vector<2x64xf32>
    %929 = tpu.concatenate %911, %928 in 1 : vector<2x64xf32>, vector<2x64xf32> -> vector<2x128xf32>
    %cst_228 = arith.constant dense<0.000000e+00> : vector<2x256xf32>
    %930 = tpu.matmul %929, %22, %cst_228 {dimension_numbers = #tpu.dot_dimension_numbers<[1], [0], [0], [1], [0, 0, 1, 1], [], []>} : vector<2x128xf32>, vector<128x256xf32>, vector<2x256xf32> -> vector<2x256xf32>
    %931 = arith.addf %930, %26 : vector<2x256xf32>
    %932 = vector.extract_strided_slice %931 {offsets = [0, 0], sizes = [2, 192], strides = [1, 1]} : vector<2x256xf32> to vector<2x192xf32>
    %933 = arith.negf %932 : vector<2x192xf32>
    %934 = math.exp %933 : vector<2x192xf32>
    %cst_229 = arith.constant 1.000000e+00 : f32
    %935 = vector.broadcast %cst_229 : f32 to vector<2x192xf32>
    %936 = arith.addf %935, %934 : vector<2x192xf32>
    %937 = arith.divf %935, %936 : vector<2x192xf32>
    %938 = vector.extract_strided_slice %931 {offsets = [0, 192], sizes = [2, 64], strides = [1, 1]} : vector<2x256xf32> to vector<2x64xf32>
    %939 = math.tanh %938 : vector<2x64xf32>
    %940 = vector.extract_strided_slice %937 {offsets = [0, 64], sizes = [2, 64], strides = [1, 1]} : vector<2x192xf32> to vector<2x64xf32>
    %941 = arith.mulf %940, %908 : vector<2x64xf32>
    %942 = vector.extract_strided_slice %937 {offsets = [0, 0], sizes = [2, 64], strides = [1, 1]} : vector<2x192xf32> to vector<2x64xf32>
    %943 = arith.mulf %942, %939 : vector<2x64xf32>
    %944 = arith.addf %941, %943 : vector<2x64xf32>
    %945 = vector.extract_strided_slice %937 {offsets = [0, 128], sizes = [2, 64], strides = [1, 1]} : vector<2x192xf32> to vector<2x64xf32>
    %946 = math.tanh %944 : vector<2x64xf32>
    %947 = arith.mulf %945, %946 : vector<2x64xf32>
    %cst_230 = arith.constant dense<0.000000e+00> : vector<2x128xf32>
    %948 = tpu.matmul %947, %23, %cst_230 {dimension_numbers = #tpu.dot_dimension_numbers<[1], [0], [0], [1], [0, 0, 1, 1], [], []>} : vector<2x64xf32>, vector<64x128xf32>, vector<2x128xf32> -> vector<2x128xf32>
    %949 = arith.addf %948, %29 : vector<2x128xf32>
    %c25 = arith.constant 25 : index
    %c0_231 = arith.constant 0 : index
    %c0_232 = arith.constant 0 : index
    %950 = vector.load %arg12[%c25, %c0_231, %c0_232] : memref<30x2x128xf32, #tpu.memory_space<vmem>>, vector<1x2x128xf32>
    %951 = vector.shape_cast %950 : vector<1x2x128xf32> to vector<2x128xf32>
    %952 = vector.shape_cast %949 : vector<2x128xf32> to vector<1x2x128xf32>
    tpu.vector_store %arg12[%c25, %c0_231, %c0_232], %952 {strides = array<i32>} : memref<30x2x128xf32, #tpu.memory_space<vmem>>, vector<1x2x128xf32>,
    %cst_233 = arith.constant dense<0xFF800000> : vector<2xf32>
    %953 = vector.multi_reduction <maximumf>, %949, %cst_233 [1] : vector<2x128xf32> to vector<2xf32>
    %954 = vector.shape_cast %953 : vector<2xf32> to vector<2x1xf32>
    %955 = vector.broadcast %954 : vector<2x1xf32> to vector<2x128xf32>
    %956 = arith.cmpf oeq, %949, %955 : vector<2x128xf32>
    %c128_i32_234 = arith.constant 128 : i32
    %957 = vector.broadcast %c128_i32_234 : i32 to vector<2x128xi32>
    %958 = arith.select %956, %30, %957 : vector<2x128xi1>, vector<2x128xi32>
    %cst_235 = arith.constant dense<2147483647> : vector<2xi32>
    %959 = vector.multi_reduction <minsi>, %958, %cst_235 [1] : vector<2x128xi32> to vector<2xi32>
    %960 = vector.shape_cast %959 : vector<2xi32> to vector<2x1xi32>
    %961 = vector.broadcast %960 : vector<2x1xi32> to vector<2x64xi32>
    %962 = arith.cmpi eq, %31, %961 : vector<2x64xi32>
    %963 = arith.extui %962 : vector<2x64xi1> to vector<2x64xi32>
    %964 = arith.sitofp %963 : vector<2x64xi32> to vector<2x64xf32>
    %965 = tpu.concatenate %947, %964 in 1 : vector<2x64xf32>, vector<2x64xf32> -> vector<2x128xf32>
    %cst_236 = arith.constant dense<0.000000e+00> : vector<2x256xf32>
    %966 = tpu.matmul %965, %22, %cst_236 {dimension_numbers = #tpu.dot_dimension_numbers<[1], [0], [0], [1], [0, 0, 1, 1], [], []>} : vector<2x128xf32>, vector<128x256xf32>, vector<2x256xf32> -> vector<2x256xf32>
    %967 = arith.addf %966, %26 : vector<2x256xf32>
    %968 = vector.extract_strided_slice %967 {offsets = [0, 0], sizes = [2, 192], strides = [1, 1]} : vector<2x256xf32> to vector<2x192xf32>
    %969 = arith.negf %968 : vector<2x192xf32>
    %970 = math.exp %969 : vector<2x192xf32>
    %cst_237 = arith.constant 1.000000e+00 : f32
    %971 = vector.broadcast %cst_237 : f32 to vector<2x192xf32>
    %972 = arith.addf %971, %970 : vector<2x192xf32>
    %973 = arith.divf %971, %972 : vector<2x192xf32>
    %974 = vector.extract_strided_slice %967 {offsets = [0, 192], sizes = [2, 64], strides = [1, 1]} : vector<2x256xf32> to vector<2x64xf32>
    %975 = math.tanh %974 : vector<2x64xf32>
    %976 = vector.extract_strided_slice %973 {offsets = [0, 64], sizes = [2, 64], strides = [1, 1]} : vector<2x192xf32> to vector<2x64xf32>
    %977 = arith.mulf %976, %944 : vector<2x64xf32>
    %978 = vector.extract_strided_slice %973 {offsets = [0, 0], sizes = [2, 64], strides = [1, 1]} : vector<2x192xf32> to vector<2x64xf32>
    %979 = arith.mulf %978, %975 : vector<2x64xf32>
    %980 = arith.addf %977, %979 : vector<2x64xf32>
    %981 = vector.extract_strided_slice %973 {offsets = [0, 128], sizes = [2, 64], strides = [1, 1]} : vector<2x192xf32> to vector<2x64xf32>
    %982 = math.tanh %980 : vector<2x64xf32>
    %983 = arith.mulf %981, %982 : vector<2x64xf32>
    %cst_238 = arith.constant dense<0.000000e+00> : vector<2x128xf32>
    %984 = tpu.matmul %983, %23, %cst_238 {dimension_numbers = #tpu.dot_dimension_numbers<[1], [0], [0], [1], [0, 0, 1, 1], [], []>} : vector<2x64xf32>, vector<64x128xf32>, vector<2x128xf32> -> vector<2x128xf32>
    %985 = arith.addf %984, %29 : vector<2x128xf32>
    %c26 = arith.constant 26 : index
    %c0_239 = arith.constant 0 : index
    %c0_240 = arith.constant 0 : index
    %986 = vector.load %arg12[%c26, %c0_239, %c0_240] : memref<30x2x128xf32, #tpu.memory_space<vmem>>, vector<1x2x128xf32>
    %987 = vector.shape_cast %986 : vector<1x2x128xf32> to vector<2x128xf32>
    %988 = vector.shape_cast %985 : vector<2x128xf32> to vector<1x2x128xf32>
    tpu.vector_store %arg12[%c26, %c0_239, %c0_240], %988 {strides = array<i32>} : memref<30x2x128xf32, #tpu.memory_space<vmem>>, vector<1x2x128xf32>,
    %cst_241 = arith.constant dense<0xFF800000> : vector<2xf32>
    %989 = vector.multi_reduction <maximumf>, %985, %cst_241 [1] : vector<2x128xf32> to vector<2xf32>
    %990 = vector.shape_cast %989 : vector<2xf32> to vector<2x1xf32>
    %991 = vector.broadcast %990 : vector<2x1xf32> to vector<2x128xf32>
    %992 = arith.cmpf oeq, %985, %991 : vector<2x128xf32>
    %c128_i32_242 = arith.constant 128 : i32
    %993 = vector.broadcast %c128_i32_242 : i32 to vector<2x128xi32>
    %994 = arith.select %992, %30, %993 : vector<2x128xi1>, vector<2x128xi32>
    %cst_243 = arith.constant dense<2147483647> : vector<2xi32>
    %995 = vector.multi_reduction <minsi>, %994, %cst_243 [1] : vector<2x128xi32> to vector<2xi32>
    %996 = vector.shape_cast %995 : vector<2xi32> to vector<2x1xi32>
    %997 = vector.broadcast %996 : vector<2x1xi32> to vector<2x64xi32>
    %998 = arith.cmpi eq, %31, %997 : vector<2x64xi32>
    %999 = arith.extui %998 : vector<2x64xi1> to vector<2x64xi32>
    %1000 = arith.sitofp %999 : vector<2x64xi32> to vector<2x64xf32>
    %1001 = tpu.concatenate %983, %1000 in 1 : vector<2x64xf32>, vector<2x64xf32> -> vector<2x128xf32>
    %cst_244 = arith.constant dense<0.000000e+00> : vector<2x256xf32>
    %1002 = tpu.matmul %1001, %22, %cst_244 {dimension_numbers = #tpu.dot_dimension_numbers<[1], [0], [0], [1], [0, 0, 1, 1], [], []>} : vector<2x128xf32>, vector<128x256xf32>, vector<2x256xf32> -> vector<2x256xf32>
    %1003 = arith.addf %1002, %26 : vector<2x256xf32>
    %1004 = vector.extract_strided_slice %1003 {offsets = [0, 0], sizes = [2, 192], strides = [1, 1]} : vector<2x256xf32> to vector<2x192xf32>
    %1005 = arith.negf %1004 : vector<2x192xf32>
    %1006 = math.exp %1005 : vector<2x192xf32>
    %cst_245 = arith.constant 1.000000e+00 : f32
    %1007 = vector.broadcast %cst_245 : f32 to vector<2x192xf32>
    %1008 = arith.addf %1007, %1006 : vector<2x192xf32>
    %1009 = arith.divf %1007, %1008 : vector<2x192xf32>
    %1010 = vector.extract_strided_slice %1003 {offsets = [0, 192], sizes = [2, 64], strides = [1, 1]} : vector<2x256xf32> to vector<2x64xf32>
    %1011 = math.tanh %1010 : vector<2x64xf32>
    %1012 = vector.extract_strided_slice %1009 {offsets = [0, 64], sizes = [2, 64], strides = [1, 1]} : vector<2x192xf32> to vector<2x64xf32>
    %1013 = arith.mulf %1012, %980 : vector<2x64xf32>
    %1014 = vector.extract_strided_slice %1009 {offsets = [0, 0], sizes = [2, 64], strides = [1, 1]} : vector<2x192xf32> to vector<2x64xf32>
    %1015 = arith.mulf %1014, %1011 : vector<2x64xf32>
    %1016 = arith.addf %1013, %1015 : vector<2x64xf32>
    %1017 = vector.extract_strided_slice %1009 {offsets = [0, 128], sizes = [2, 64], strides = [1, 1]} : vector<2x192xf32> to vector<2x64xf32>
    %1018 = math.tanh %1016 : vector<2x64xf32>
    %1019 = arith.mulf %1017, %1018 : vector<2x64xf32>
    %cst_246 = arith.constant dense<0.000000e+00> : vector<2x128xf32>
    %1020 = tpu.matmul %1019, %23, %cst_246 {dimension_numbers = #tpu.dot_dimension_numbers<[1], [0], [0], [1], [0, 0, 1, 1], [], []>} : vector<2x64xf32>, vector<64x128xf32>, vector<2x128xf32> -> vector<2x128xf32>
    %1021 = arith.addf %1020, %29 : vector<2x128xf32>
    %c27 = arith.constant 27 : index
    %c0_247 = arith.constant 0 : index
    %c0_248 = arith.constant 0 : index
    %1022 = vector.load %arg12[%c27, %c0_247, %c0_248] : memref<30x2x128xf32, #tpu.memory_space<vmem>>, vector<1x2x128xf32>
    %1023 = vector.shape_cast %1022 : vector<1x2x128xf32> to vector<2x128xf32>
    %1024 = vector.shape_cast %1021 : vector<2x128xf32> to vector<1x2x128xf32>
    tpu.vector_store %arg12[%c27, %c0_247, %c0_248], %1024 {strides = array<i32>} : memref<30x2x128xf32, #tpu.memory_space<vmem>>, vector<1x2x128xf32>,
    %cst_249 = arith.constant dense<0xFF800000> : vector<2xf32>
    %1025 = vector.multi_reduction <maximumf>, %1021, %cst_249 [1] : vector<2x128xf32> to vector<2xf32>
    %1026 = vector.shape_cast %1025 : vector<2xf32> to vector<2x1xf32>
    %1027 = vector.broadcast %1026 : vector<2x1xf32> to vector<2x128xf32>
    %1028 = arith.cmpf oeq, %1021, %1027 : vector<2x128xf32>
    %c128_i32_250 = arith.constant 128 : i32
    %1029 = vector.broadcast %c128_i32_250 : i32 to vector<2x128xi32>
    %1030 = arith.select %1028, %30, %1029 : vector<2x128xi1>, vector<2x128xi32>
    %cst_251 = arith.constant dense<2147483647> : vector<2xi32>
    %1031 = vector.multi_reduction <minsi>, %1030, %cst_251 [1] : vector<2x128xi32> to vector<2xi32>
    %1032 = vector.shape_cast %1031 : vector<2xi32> to vector<2x1xi32>
    %1033 = vector.broadcast %1032 : vector<2x1xi32> to vector<2x64xi32>
    %1034 = arith.cmpi eq, %31, %1033 : vector<2x64xi32>
    %1035 = arith.extui %1034 : vector<2x64xi1> to vector<2x64xi32>
    %1036 = arith.sitofp %1035 : vector<2x64xi32> to vector<2x64xf32>
    %1037 = tpu.concatenate %1019, %1036 in 1 : vector<2x64xf32>, vector<2x64xf32> -> vector<2x128xf32>
    %cst_252 = arith.constant dense<0.000000e+00> : vector<2x256xf32>
    %1038 = tpu.matmul %1037, %22, %cst_252 {dimension_numbers = #tpu.dot_dimension_numbers<[1], [0], [0], [1], [0, 0, 1, 1], [], []>} : vector<2x128xf32>, vector<128x256xf32>, vector<2x256xf32> -> vector<2x256xf32>
    %1039 = arith.addf %1038, %26 : vector<2x256xf32>
    %1040 = vector.extract_strided_slice %1039 {offsets = [0, 0], sizes = [2, 192], strides = [1, 1]} : vector<2x256xf32> to vector<2x192xf32>
    %1041 = arith.negf %1040 : vector<2x192xf32>
    %1042 = math.exp %1041 : vector<2x192xf32>
    %cst_253 = arith.constant 1.000000e+00 : f32
    %1043 = vector.broadcast %cst_253 : f32 to vector<2x192xf32>
    %1044 = arith.addf %1043, %1042 : vector<2x192xf32>
    %1045 = arith.divf %1043, %1044 : vector<2x192xf32>
    %1046 = vector.extract_strided_slice %1039 {offsets = [0, 192], sizes = [2, 64], strides = [1, 1]} : vector<2x256xf32> to vector<2x64xf32>
    %1047 = math.tanh %1046 : vector<2x64xf32>
    %1048 = vector.extract_strided_slice %1045 {offsets = [0, 64], sizes = [2, 64], strides = [1, 1]} : vector<2x192xf32> to vector<2x64xf32>
    %1049 = arith.mulf %1048, %1016 : vector<2x64xf32>
    %1050 = vector.extract_strided_slice %1045 {offsets = [0, 0], sizes = [2, 64], strides = [1, 1]} : vector<2x192xf32> to vector<2x64xf32>
    %1051 = arith.mulf %1050, %1047 : vector<2x64xf32>
    %1052 = arith.addf %1049, %1051 : vector<2x64xf32>
    %1053 = vector.extract_strided_slice %1045 {offsets = [0, 128], sizes = [2, 64], strides = [1, 1]} : vector<2x192xf32> to vector<2x64xf32>
    %1054 = math.tanh %1052 : vector<2x64xf32>
    %1055 = arith.mulf %1053, %1054 : vector<2x64xf32>
    %cst_254 = arith.constant dense<0.000000e+00> : vector<2x128xf32>
    %1056 = tpu.matmul %1055, %23, %cst_254 {dimension_numbers = #tpu.dot_dimension_numbers<[1], [0], [0], [1], [0, 0, 1, 1], [], []>} : vector<2x64xf32>, vector<64x128xf32>, vector<2x128xf32> -> vector<2x128xf32>
    %1057 = arith.addf %1056, %29 : vector<2x128xf32>
    %c28 = arith.constant 28 : index
    %c0_255 = arith.constant 0 : index
    %c0_256 = arith.constant 0 : index
    %1058 = vector.load %arg12[%c28, %c0_255, %c0_256] : memref<30x2x128xf32, #tpu.memory_space<vmem>>, vector<1x2x128xf32>
    %1059 = vector.shape_cast %1058 : vector<1x2x128xf32> to vector<2x128xf32>
    %1060 = vector.shape_cast %1057 : vector<2x128xf32> to vector<1x2x128xf32>
    tpu.vector_store %arg12[%c28, %c0_255, %c0_256], %1060 {strides = array<i32>} : memref<30x2x128xf32, #tpu.memory_space<vmem>>, vector<1x2x128xf32>,
    %cst_257 = arith.constant dense<0xFF800000> : vector<2xf32>
    %1061 = vector.multi_reduction <maximumf>, %1057, %cst_257 [1] : vector<2x128xf32> to vector<2xf32>
    %1062 = vector.shape_cast %1061 : vector<2xf32> to vector<2x1xf32>
    %1063 = vector.broadcast %1062 : vector<2x1xf32> to vector<2x128xf32>
    %1064 = arith.cmpf oeq, %1057, %1063 : vector<2x128xf32>
    %c128_i32_258 = arith.constant 128 : i32
    %1065 = vector.broadcast %c128_i32_258 : i32 to vector<2x128xi32>
    %1066 = arith.select %1064, %30, %1065 : vector<2x128xi1>, vector<2x128xi32>
    %cst_259 = arith.constant dense<2147483647> : vector<2xi32>
    %1067 = vector.multi_reduction <minsi>, %1066, %cst_259 [1] : vector<2x128xi32> to vector<2xi32>
    %1068 = vector.shape_cast %1067 : vector<2xi32> to vector<2x1xi32>
    %1069 = vector.broadcast %1068 : vector<2x1xi32> to vector<2x64xi32>
    %1070 = arith.cmpi eq, %31, %1069 : vector<2x64xi32>
    %1071 = arith.extui %1070 : vector<2x64xi1> to vector<2x64xi32>
    %1072 = arith.sitofp %1071 : vector<2x64xi32> to vector<2x64xf32>
    %1073 = tpu.concatenate %1055, %1072 in 1 : vector<2x64xf32>, vector<2x64xf32> -> vector<2x128xf32>
    %cst_260 = arith.constant dense<0.000000e+00> : vector<2x256xf32>
    %1074 = tpu.matmul %1073, %22, %cst_260 {dimension_numbers = #tpu.dot_dimension_numbers<[1], [0], [0], [1], [0, 0, 1, 1], [], []>} : vector<2x128xf32>, vector<128x256xf32>, vector<2x256xf32> -> vector<2x256xf32>
    %1075 = arith.addf %1074, %26 : vector<2x256xf32>
    %1076 = vector.extract_strided_slice %1075 {offsets = [0, 0], sizes = [2, 192], strides = [1, 1]} : vector<2x256xf32> to vector<2x192xf32>
    %1077 = arith.negf %1076 : vector<2x192xf32>
    %1078 = math.exp %1077 : vector<2x192xf32>
    %cst_261 = arith.constant 1.000000e+00 : f32
    %1079 = vector.broadcast %cst_261 : f32 to vector<2x192xf32>
    %1080 = arith.addf %1079, %1078 : vector<2x192xf32>
    %1081 = arith.divf %1079, %1080 : vector<2x192xf32>
    %1082 = vector.extract_strided_slice %1075 {offsets = [0, 192], sizes = [2, 64], strides = [1, 1]} : vector<2x256xf32> to vector<2x64xf32>
    %1083 = math.tanh %1082 : vector<2x64xf32>
    %1084 = vector.extract_strided_slice %1081 {offsets = [0, 64], sizes = [2, 64], strides = [1, 1]} : vector<2x192xf32> to vector<2x64xf32>
    %1085 = arith.mulf %1084, %1052 : vector<2x64xf32>
    %1086 = vector.extract_strided_slice %1081 {offsets = [0, 0], sizes = [2, 64], strides = [1, 1]} : vector<2x192xf32> to vector<2x64xf32>
    %1087 = arith.mulf %1086, %1083 : vector<2x64xf32>
    %1088 = arith.addf %1085, %1087 : vector<2x64xf32>
    %1089 = vector.extract_strided_slice %1081 {offsets = [0, 128], sizes = [2, 64], strides = [1, 1]} : vector<2x192xf32> to vector<2x64xf32>
    %1090 = math.tanh %1088 : vector<2x64xf32>
    %1091 = arith.mulf %1089, %1090 : vector<2x64xf32>
    %cst_262 = arith.constant dense<0.000000e+00> : vector<2x128xf32>
    %1092 = tpu.matmul %1091, %23, %cst_262 {dimension_numbers = #tpu.dot_dimension_numbers<[1], [0], [0], [1], [0, 0, 1, 1], [], []>} : vector<2x64xf32>, vector<64x128xf32>, vector<2x128xf32> -> vector<2x128xf32>
    %1093 = arith.addf %1092, %29 : vector<2x128xf32>
    %c29 = arith.constant 29 : index
    %c0_263 = arith.constant 0 : index
    %c0_264 = arith.constant 0 : index
    %1094 = vector.load %arg12[%c29, %c0_263, %c0_264] : memref<30x2x128xf32, #tpu.memory_space<vmem>>, vector<1x2x128xf32>
    %1095 = vector.shape_cast %1094 : vector<1x2x128xf32> to vector<2x128xf32>
    %1096 = vector.shape_cast %1093 : vector<2x128xf32> to vector<1x2x128xf32>
    tpu.vector_store %arg12[%c29, %c0_263, %c0_264], %1096 {strides = array<i32>} : memref<30x2x128xf32, #tpu.memory_space<vmem>>, vector<1x2x128xf32>,
    return
  }
}

</mosaic_0001>

<llo_original>
// kernel: tpu_custom_call.1
$region0: #{tpu_custom_call.1}
  #allocation0 [shape = 'u32[]', space=smem, size = 0x4, offset = 0x4, fixed_abs, tag = 'smem constant byte address 0x4 - core index']
  #allocation1 [shape = 'u32[144,128]{1,0:T(1,128)}', space=vmem, size = 0x12000, scoped, tag = 'internal scratch']
  %s0 = inlined_call_operand.vmem [shape: f32[2,220], index: 0, kind: input, shape index: {}]
  %s1 = inlined_call_operand.vmem [shape: f32[220,64], index: 1, kind: input, shape index: {}]
  %s2 = inlined_call_operand.vmem [shape: f32[1,64], index: 2, kind: input, shape index: {}]
  %s3 = inlined_call_operand.vmem [shape: f32[64,64], index: 3, kind: input, shape index: {}]
  %s4 = inlined_call_operand.vmem [shape: f32[1,64], index: 4, kind: input, shape index: {}]
  %s5 = inlined_call_operand.hbm [shape: f32[64,64], index: 5, kind: input, shape index: {}]
  %s6 = inlined_call_operand.vmem [shape: f32[1,64], index: 6, kind: input, shape index: {}]
  %s7 = inlined_call_operand.hbm [shape: f32[64,256], index: 7, kind: input, shape index: {}]
  %s8 = inlined_call_operand.vmem [shape: f32[128,256], index: 8, kind: input, shape index: {}]
  %s9 = inlined_call_operand.vmem [shape: f32[1,256], index: 9, kind: input, shape index: {}]
  %s10 = inlined_call_operand.hbm [shape: f32[64,128], index: 10, kind: input, shape index: {}]
  %s11 = inlined_call_operand.vmem [shape: f32[1,128], index: 11, kind: input, shape index: {}]
  %s12 = inlined_call_operand.hbm [shape: f32[30,2,128], index: 12, kind: output, shape index: {}]
  %s13 = sld [smem:[#allocation0]]
  $region70: #{tpu_custom_call.1} parent=0
    _
  %s15 = ssub.s32 1, %s13
  %s16 = scalar_select 0, %s15, %s13
  $region1: #{tpu_custom_call.1} parent=0
    #allocation2 [shape = 'u8[32768]{0}', space=vmem, size = 0x8000, scoped, tag = 'input window, operand 5, single buffered']
    #allocation3 [shape = 's32[1]{0}', space=sflag, size = 0x4, scoped, tag = 'scoped memory for tpu_custom_call.1']
    #allocation4 [shape = 's32[1]{0}', space=sflag, size = 0x4, scoped, tag = 'scoped memory for tpu_custom_call.1']
    #allocation5 [shape = 'u8[65536]{0}', space=vmem, size = 0x10000, scoped, tag = 'input window, operand 7, single buffered']
    #allocation6 [shape = 's32[1]{0}', space=sflag, size = 0x4, scoped, tag = 'scoped memory for tpu_custom_call.1']
    #allocation7 [shape = 'u8[32768]{0}', space=vmem, size = 0x8000, scoped, tag = 'input window, operand 10, single buffered']
    #allocation8 [shape = 'u8[30720]{0}', space=vmem, size = 0x7800, scoped, tag = 'output window, operand 0, single buffered']
    %17 = vsyncpa [#allocation3], 0
    %18 = vsyncpa [#allocation6], 0
    %19 = vsyncpa [#allocation4], 0
    // Predicated region
    $region2: #{tpu_custom_call.1} parent=1 // pred_check
      _
    $region3: #{tpu_custom_call.1} parent=1 // pred_check_branch
      %21 = sbr.rel (0) target = $region5
    $region4: #{tpu_custom_call.1} parent=1 // pred_region
      _
    $region5: #{tpu_custom_call.1} parent=1 // pred_fallthru
      _
    // Predicated region
    $region6: #{tpu_custom_call.1} parent=1 // pred_check
      _
    $region7: #{tpu_custom_call.1} parent=1 // pred_check_branch
      %23 = sbr.rel (0) target = $region9
    $region8: #{tpu_custom_call.1} parent=1 // pred_region
      _
    $region9: #{tpu_custom_call.1} parent=1 // pred_fallthru
      _
    // Predicated region
    $region10: #{tpu_custom_call.1} parent=1 // pred_check
      _
    $region11: #{tpu_custom_call.1} parent=1 // pred_check_branch
      %25 = sbr.rel (0) target = $region13
    $region12: #{tpu_custom_call.1} parent=1 // pred_region
      _
    $region13: #{tpu_custom_call.1} parent=1 // pred_fallthru
      _
    // Predicated region
    $region14: #{tpu_custom_call.1} parent=1 // pred_check
      _
    $region15: #{tpu_custom_call.1} parent=1 // pred_check_branch
      %27 = sbr.rel (0) target = $region17
    $region16: #{tpu_custom_call.1} parent=1 // pred_region
      _
    $region17: #{tpu_custom_call.1} parent=1 // pred_fallthru
      _
    // Predicated region
    $region18: #{tpu_custom_call.1} parent=1 // pred_check
      _
    $region19: #{tpu_custom_call.1} parent=1 // pred_check_branch
      %29 = sbr.rel (0) target = $region21
    $region20: #{tpu_custom_call.1} parent=1 // pred_region
      _
    $region21: #{tpu_custom_call.1} parent=1 // pred_fallthru
      _
    // Predicated region
    $region22: #{tpu_custom_call.1} parent=1 // pred_check
      _
    $region23: #{tpu_custom_call.1} parent=1 // pred_check_branch
      %31 = sbr.rel (0) target = $region25
    $region24: #{tpu_custom_call.1} parent=1 // pred_region
      %s33 = ssub.s32 1024, 1024
      %34 = vsyncadd [#allocation3], %s33
      %s35 = sshll.u32 [#allocation2], 4
      %s36 = int_to_ptr.vmem [resolvable:$true] %s35
      %41 = dma.hbm_to_vmem [thread:$0]  %s5, 1024, %s36, [#allocation3], 128, 128, 8
    $region25: #{tpu_custom_call.1} parent=1 // pred_fallthru
      _
    // Predicated region
    $region26: #{tpu_custom_call.1} parent=1 // pred_check
      _
    $region27: #{tpu_custom_call.1} parent=1 // pred_check_branch
      %43 = sbr.rel (0) target = $region29
    $region28: #{tpu_custom_call.1} parent=1 // pred_region
      _
    $region29: #{tpu_custom_call.1} parent=1 // pred_fallthru
      _
    // Predicated region
    $region30: #{tpu_custom_call.1} parent=1 // pred_check
      _
    $region31: #{tpu_custom_call.1} parent=1 // pred_check_branch
      %45 = sbr.rel (0) target = $region33
    $region32: #{tpu_custom_call.1} parent=1 // pred_region
      %s47 = ssub.s32 2048, 2048
      %48 = vsyncadd [#allocation6], %s47
      %s49 = sshll.u32 [#allocation5], 4
      %s50 = int_to_ptr.vmem [resolvable:$true] %s49
      %55 = dma.hbm_to_vmem [thread:$0]  %s7, 2048, %s50, [#allocation6], 256, 256, 16
    $region33: #{tpu_custom_call.1} parent=1 // pred_fallthru
      _
    // Predicated region
    $region34: #{tpu_custom_call.1} parent=1 // pred_check
      _
    $region35: #{tpu_custom_call.1} parent=1 // pred_check_branch
      %57 = sbr.rel (0) target = $region37
    $region36: #{tpu_custom_call.1} parent=1 // pred_region
      _
    $region37: #{tpu_custom_call.1} parent=1 // pred_fallthru
      _
    // Predicated region
    $region38: #{tpu_custom_call.1} parent=1 // pred_check
      _
    $region39: #{tpu_custom_call.1} parent=1 // pred_check_branch
      %59 = sbr.rel (0) target = $region41
    $region40: #{tpu_custom_call.1} parent=1 // pred_region
      _
    $region41: #{tpu_custom_call.1} parent=1 // pred_fallthru
      _
    // Predicated region
    $region42: #{tpu_custom_call.1} parent=1 // pred_check
      _
    $region43: #{tpu_custom_call.1} parent=1 // pred_check_branch
      %61 = sbr.rel (0) target = $region45
    $region44: #{tpu_custom_call.1} parent=1 // pred_region
      %s63 = ssub.s32 1024, 1024
      %64 = vsyncadd [#allocation6], %s63
      %s65 = sshll.u32 [#allocation7], 4
      %s66 = int_to_ptr.vmem [resolvable:$true] %s65
      %71 = dma.hbm_to_vmem [thread:$0]  %s10, 1024, %s66, [#allocation6], 128, 128, 8
    $region45: #{tpu_custom_call.1} parent=1 // pred_fallthru
      _
    // Predicated region
    $region46: #{tpu_custom_call.1} parent=1 // pred_check
      _
    $region47: #{tpu_custom_call.1} parent=1 // pred_check_branch
      %73 = sbr.rel (0) target = $region49
    $region48: #{tpu_custom_call.1} parent=1 // pred_region
      _
    $region49: #{tpu_custom_call.1} parent=1 // pred_fallthru
      _
    // Predicated region
    $region50: #{tpu_custom_call.1} parent=1 // pred_check
      _
    $region51: #{tpu_custom_call.1} parent=1 // pred_check_branch
      %75 = sbr.rel (0) target = $region53
    $region52: #{tpu_custom_call.1} parent=1 // pred_region
      %76 = dma.done [#allocation3], 1024
    $region53: #{tpu_custom_call.1} parent=1 // pred_fallthru
      _
    // Predicated region
    $region54: #{tpu_custom_call.1} parent=1 // pred_check
      _
    $region55: #{tpu_custom_call.1} parent=1 // pred_check_branch
      %78 = sbr.rel (0) target = $region57
    $region56: #{tpu_custom_call.1} parent=1 // pred_region
      %79 = dma.done [#allocation6], 2048
    $region57: #{tpu_custom_call.1} parent=1 // pred_fallthru
      _
    // Predicated region
    $region58: #{tpu_custom_call.1} parent=1 // pred_check
      _
    $region59: #{tpu_custom_call.1} parent=1 // pred_check_branch
      %81 = sbr.rel (0) target = $region61
    $region60: #{tpu_custom_call.1} parent=1 // pred_region
      %82 = dma.done [#allocation6], 1024
    $region61: #{tpu_custom_call.1} parent=1 // pred_fallthru
      _
    %v83 = vld [vmem:[%s0] sm:$0xf]
    %v84 = vld [vmem:[%s1] sm:$0xff]
    %v85 = vld [vmem:[%s1 + $0x8] sm:$0xff]
    %v86 = vld [vmem:[%s1 + $0x10] sm:$0xff]
    %v87 = vld [vmem:[%s1 + $0x18] sm:$0xff]
    %v88 = vld [vmem:[%s1 + $0x20] sm:$0xff]
    %v89 = vld [vmem:[%s1 + $0x28] sm:$0xff]
    %v90 = vld [vmem:[%s1 + $0x30] sm:$0xff]
    %v91 = vld [vmem:[%s1 + $0x38] sm:$0xff]
    %v92 = vld [vmem:[%s1 + $0x40] sm:$0xff]
    %v93 = vld [vmem:[%s1 + $0x48] sm:$0xff]
    %v94 = vld [vmem:[%s1 + $0x50] sm:$0xff]
    %v95 = vld [vmem:[%s1 + $0x58] sm:$0xff]
    %v96 = vld [vmem:[%s1 + $0x60] sm:$0xff]
    %v97 = vld [vmem:[%s1 + $0x68] sm:$0xff]
    %v98 = vld [vmem:[%s1 + $0x70] sm:$0xff]
    %v99 = vld [vmem:[%s1 + $0x78] sm:$0xff]
    %v100 = vld [vmem:[%s1 + $0x80] sm:$0xff]
    %v101 = vld [vmem:[%s1 + $0x88] sm:$0xff]
    %v102 = vld [vmem:[%s1 + $0x90] sm:$0xff]
    %v103 = vld [vmem:[%s1 + $0x98] sm:$0xff]
    %v104 = vld [vmem:[%s1 + $0xa0] sm:$0xff]
    %v105 = vld [vmem:[%s1 + $0xa8] sm:$0xff]
    %v106 = vld [vmem:[%s1 + $0xb0] sm:$0xff]
    %v107 = vld [vmem:[%s1 + $0xb8] sm:$0xff]
    %v108 = vld [vmem:[%s1 + $0xc0] sm:$0xff]
    %v109 = vld [vmem:[%s1 + $0xc8] sm:$0xff]
    %v110 = vld [vmem:[%s1 + $0xd0] sm:$0xff]
    %v111 = vld [vmem:[%s1 + $0xd8] sm:$0xf]
    %v112 = vld [vmem:[%s2] sm:$0x1]
    %v114 = vlaneseq
    %v115 = vshrl.u32 %v114, 7
    %v116 = vsub.s32 0, %v115
    %v117 = vrot.slane %v112, %v116
    %v121 = vunpack.c.l.s4 1983009808
    %v122 = vunpack.c.0.s8 %v121
    %v123 = vlaneseq
    %v124 = vshrl.u32 %v123, 7
    %v125 = vsub.s32 %v122, %v124
    %v126 = vrot.slane %v83, %v125
    %v127 = vcombine.high %v126, %v126
    %vm129 = vcmask 752640
    %v130 = vsel %vm129, %v127, 0
    %vm132 = vcmask 1043456
    %v134 = vsel %vm132, %v111, 0
    %136 = vmatprep.subr.mxu0 0.0
    %137 = vmatpush1.msra.mxu0 %v99
    %138 = vmatprep.subr.mxu0 0.0
    %139 = vmatpush1.msra.mxu0 %v98
    %140 = vmatprep.subr.mxu0 0.0
    %141 = vmatpush1.msra.mxu0 %v97
    %142 = vmatprep.subr.mxu0 0.0
    %143 = vmatpush1.msra.mxu0 %v96
    %144 = vmatprep.subr.mxu0 0.0
    %145 = vmatpush1.msra.mxu0 %v95
    %146 = vmatprep.subr.mxu0 0.0
    %147 = vmatpush1.msra.mxu0 %v94
    %148 = vmatprep.subr.mxu0 0.0
    %149 = vmatpush1.msra.mxu0 %v93
    %150 = vmatprep.subr.mxu0 0.0
    %151 = vmatpush1.msra.mxu0 %v92
    %152 = vmatprep.subr.mxu0 0.0
    %153 = vmatpush1.msra.mxu0 %v91
    %154 = vmatprep.subr.mxu0 0.0
    %155 = vmatpush1.msra.mxu0 %v90
    %156 = vmatprep.subr.mxu0 0.0
    %157 = vmatpush1.msra.mxu0 %v89
    %158 = vmatprep.subr.mxu0 0.0
    %159 = vmatpush1.msra.mxu0 %v88
    %160 = vmatprep.subr.mxu0 0.0
    %161 = vmatpush1.msra.mxu0 %v87
    %162 = vmatprep.subr.mxu0 0.0
    %163 = vmatpush1.msra.mxu0 %v86
    %164 = vmatprep.subr.mxu0 0.0
    %165 = vmatpush1.msra.mxu0 %v85
    %166 = vmatprep.subr.mxu0 0.0
    %167 = vmatpush1.msra.mxu0 %v84
    %168 = vmatprep.subr.mxu0 0.0
    %169 = vmatpush2.msra.mxu0 0.0
    %170 = vmatprep.subr.mxu0 0.0
    %171 = vmatpush2.msra.mxu0 0.0
    %172 = vmatprep.subr.mxu0 0.0
    %173 = vmatpush2.msra.mxu0 0.0
    %174 = vmatprep.subr.mxu0 0.0
    %175 = vmatpush2.msra.mxu0 0.0
    %176 = vmatprep.subr.mxu0 0.0
    %177 = vmatpush2.msra.mxu0 %v134
    %178 = vmatprep.subr.mxu0 0.0
    %179 = vmatpush2.msra.mxu0 %v110
    %180 = vmatprep.subr.mxu0 0.0
    %181 = vmatpush2.msra.mxu0 %v109
    %182 = vmatprep.subr.mxu0 0.0
    %183 = vmatpush2.msra.mxu0 %v108
    %184 = vmatprep.subr.mxu0 0.0
    %185 = vmatpush2.msra.mxu0 %v107
    %186 = vmatprep.subr.mxu0 0.0
    %187 = vmatpush2.msra.mxu0 %v106
    %188 = vmatprep.subr.mxu0 0.0
    %189 = vmatpush2.msra.mxu0 %v105
    %190 = vmatprep.subr.mxu0 0.0
    %191 = vmatpush2.msra.mxu0 %v104
    %192 = vmatprep.subr.mxu0 0.0
    %193 = vmatpush2.msra.mxu0 %v103
    %194 = vmatprep.subr.mxu0 0.0
    %195 = vmatpush2.msra.mxu0 %v102
    %196 = vmatprep.subr.mxu0 0.0
    %197 = vmatpush2.msra.mxu0 %v101
    %198 = vmatprep.subr.mxu0 0.0
    %199 = vmatpush2.msra.mxu0 %v100
    %200 = vmatprep.mubr.f32.mxu0 %v130
    %201 = vmatmul.mubr.f32.gmra.mxu0 %v126
    %v202 = vpop.f32.mrf.mxu0
    %v203 = vadd.f32 %v117, %v202
    %v204 = vpop.f32.mrf.mxu0
    %205 = vdwg.mxu0
    %v206 = vmax.f32 %v203, 0.0
    %v207 = vld [vmem:[%s3] sm:$0xff]
    %v208 = vld [vmem:[%s3 + $0x8] sm:$0xff]
    %v209 = vld [vmem:[%s3 + $0x10] sm:$0xff]
    %v210 = vld [vmem:[%s3 + $0x18] sm:$0xff]
    %v211 = vld [vmem:[%s3 + $0x20] sm:$0xff]
    %v212 = vld [vmem:[%s3 + $0x28] sm:$0xff]
    %v213 = vld [vmem:[%s3 + $0x30] sm:$0xff]
    %v214 = vld [vmem:[%s3 + $0x38] sm:$0xff]
    %v215 = vld [vmem:[%s4] sm:$0x1]
    %v217 = vlaneseq
    %v218 = vshrl.u32 %v217, 7
    %v219 = vsub.s32 0, %v218
    %v220 = vrot.slane %v215, %v219
    %vm222 = vcmask 523264
    %v224 = vsel %vm222, %v206, 0
    %226 = vmatprep.subr.mxu0 0.0
    %227 = vmatpush1.msra.mxu0 0.0
    %228 = vmatprep.subr.mxu0 0.0
    %229 = vmatpush1.msra.mxu0 0.0
    %230 = vmatprep.subr.mxu0 0.0
    %231 = vmatpush1.msra.mxu0 0.0
    %232 = vmatprep.subr.mxu0 0.0
    %233 = vmatpush1.msra.mxu0 0.0
    %234 = vmatprep.subr.mxu0 0.0
    %235 = vmatpush1.msra.mxu0 0.0
    %236 = vmatprep.subr.mxu0 0.0
    %237 = vmatpush1.msra.mxu0 0.0
    %238 = vmatprep.subr.mxu0 0.0
    %239 = vmatpush1.msra.mxu0 0.0
    %240 = vmatprep.subr.mxu0 0.0
    %241 = vmatpush1.msra.mxu0 0.0
    %242 = vmatprep.subr.mxu0 0.0
    %243 = vmatpush1.msra.mxu0 %v214
    %244 = vmatprep.subr.mxu0 0.0
    %245 = vmatpush1.msra.mxu0 %v213
    %246 = vmatprep.subr.mxu0 0.0
    %247 = vmatpush1.msra.mxu0 %v212
    %248 = vmatprep.subr.mxu0 0.0
    %249 = vmatpush1.msra.mxu0 %v211
    %250 = vmatprep.subr.mxu0 0.0
    %251 = vmatpush1.msra.mxu0 %v210
    %252 = vmatprep.subr.mxu0 0.0
    %253 = vmatpush1.msra.mxu0 %v209
    %254 = vmatprep.subr.mxu0 0.0
    %255 = vmatpush1.msra.mxu0 %v208
    %256 = vmatprep.subr.mxu0 0.0
    %257 = vmatpush1.msra.mxu0 %v207
    %258 = vmatprep.subr.mxu0 0.0
    %259 = vmatpush2.msra.mxu0 0.0
    %260 = vmatprep.subr.mxu0 0.0
    %261 = vmatpush2.msra.mxu0 0.0
    %262 = vmatprep.subr.mxu0 0.0
    %263 = vmatpush2.msra.mxu0 0.0
    %264 = vmatprep.subr.mxu0 0.0
    %265 = vmatpush2.msra.mxu0 0.0
    %266 = vmatprep.subr.mxu0 0.0
    %267 = vmatpush2.msra.mxu0 0.0
    %268 = vmatprep.subr.mxu0 0.0
    %269 = vmatpush2.msra.mxu0 0.0
    %270 = vmatprep.subr.mxu0 0.0
    %271 = vmatpush2.msra.mxu0 0.0
    %272 = vmatprep.subr.mxu0 0.0
    %273 = vmatpush2.msra.mxu0 0.0
    %274 = vmatprep.subr.mxu0 0.0
    %275 = vmatpush2.msra.mxu0 0.0
    %276 = vmatprep.subr.mxu0 0.0
    %277 = vmatpush2.msra.mxu0 0.0
    %278 = vmatprep.subr.mxu0 0.0
    %279 = vmatpush2.msra.mxu0 0.0
    %280 = vmatprep.subr.mxu0 0.0
    %281 = vmatpush2.msra.mxu0 0.0
    %282 = vmatprep.subr.mxu0 0.0
    %283 = vmatpush2.msra.mxu0 0.0
    %284 = vmatprep.subr.mxu0 0.0
    %285 = vmatpush2.msra.mxu0 0.0
    %286 = vmatprep.subr.mxu0 0.0
    %287 = vmatpush2.msra.mxu0 0.0
    %288 = vmatprep.subr.mxu0 0.0
    %289 = vmatpush2.msra.mxu0 0.0
    %290 = vmatprep.mubr.f32.mxu0 0.0
    %291 = vmatmul.mubr.f32.gmra.mxu0 %v224
    %v292 = vpop.f32.mrf.mxu0
    %v293 = vadd.f32 %v220, %v292
    %v294 = vpop.f32.mrf.mxu0
    %295 = vdwg.mxu0
    %v296 = vmax.f32 %v293, 0.0
    %v297 = vld [vmem:[#allocation2] sm:$0xff]
    %v298 = vld [vmem:[#allocation2 + $0x8] sm:$0xff]
    %v299 = vld [vmem:[#allocation2 + $0x10] sm:$0xff]
    %v300 = vld [vmem:[#allocation2 + $0x18] sm:$0xff]
    %v301 = vld [vmem:[#allocation2 + $0x20] sm:$0xff]
    %v302 = vld [vmem:[#allocation2 + $0x28] sm:$0xff]
    %v303 = vld [vmem:[#allocation2 + $0x30] sm:$0xff]
    %v304 = vld [vmem:[#allocation2 + $0x38] sm:$0xff]
    %v305 = vld [vmem:[%s6] sm:$0x1]
    %v307 = vlaneseq
    %v308 = vshrl.u32 %v307, 7
    %v309 = vsub.s32 0, %v308
    %v310 = vrot.slane %v305, %v309
    %v313 = vsel %vm222, %v296, 0
    %315 = vmatprep.subr.mxu0 0.0
    %316 = vmatpush1.msra.mxu0 0.0
    %317 = vmatprep.subr.mxu0 0.0
    %318 = vmatpush1.msra.mxu0 0.0
    %319 = vmatprep.subr.mxu0 0.0
    %320 = vmatpush1.msra.mxu0 0.0
    %321 = vmatprep.subr.mxu0 0.0
    %322 = vmatpush1.msra.mxu0 0.0
    %323 = vmatprep.subr.mxu0 0.0
    %324 = vmatpush1.msra.mxu0 0.0
    %325 = vmatprep.subr.mxu0 0.0
    %326 = vmatpush1.msra.mxu0 0.0
    %327 = vmatprep.subr.mxu0 0.0
    %328 = vmatpush1.msra.mxu0 0.0
    %329 = vmatprep.subr.mxu0 0.0
    %330 = vmatpush1.msra.mxu0 0.0
    %331 = vmatprep.subr.mxu0 0.0
    %332 = vmatpush1.msra.mxu0 %v304
    %333 = vmatprep.subr.mxu0 0.0
    %334 = vmatpush1.msra.mxu0 %v303
    %335 = vmatprep.subr.mxu0 0.0
    %336 = vmatpush1.msra.mxu0 %v302
    %337 = vmatprep.subr.mxu0 0.0
    %338 = vmatpush1.msra.mxu0 %v301
    %339 = vmatprep.subr.mxu0 0.0
    %340 = vmatpush1.msra.mxu0 %v300
    %341 = vmatprep.subr.mxu0 0.0
    %342 = vmatpush1.msra.mxu0 %v299
    %343 = vmatprep.subr.mxu0 0.0
    %344 = vmatpush1.msra.mxu0 %v298
    %345 = vmatprep.subr.mxu0 0.0
    %346 = vmatpush1.msra.mxu0 %v297
    %347 = vmatprep.subr.mxu0 0.0
    %348 = vmatpush2.msra.mxu0 0.0
    %349 = vmatprep.subr.mxu0 0.0
    %350 = vmatpush2.msra.mxu0 0.0
    %351 = vmatprep.subr.mxu0 0.0
    %352 = vmatpush2.msra.mxu0 0.0
    %353 = vmatprep.subr.mxu0 0.0
    %354 = vmatpush2.msra.mxu0 0.0
    %355 = vmatprep.subr.mxu0 0.0
    %356 = vmatpush2.msra.mxu0 0.0
    %357 = vmatprep.subr.mxu0 0.0
    %358 = vmatpush2.msra.mxu0 0.0
    %359 = vmatprep.subr.mxu0 0.0
    %360 = vmatpush2.msra.mxu0 0.0
    %361 = vmatprep.subr.mxu0 0.0
    %362 = vmatpush2.msra.mxu0 0.0
    %363 = vmatprep.subr.mxu0 0.0
    %364 = vmatpush2.msra.mxu0 0.0
    %365 = vmatprep.subr.mxu0 0.0
    %366 = vmatpush2.msra.mxu0 0.0
    %367 = vmatprep.subr.mxu0 0.0
    %368 = vmatpush2.msra.mxu0 0.0
    %369 = vmatprep.subr.mxu0 0.0
    %370 = vmatpush2.msra.mxu0 0.0
    %371 = vmatprep.subr.mxu0 0.0
    %372 = vmatpush2.msra.mxu0 0.0
    %373 = vmatprep.subr.mxu0 0.0
    %374 = vmatpush2.msra.mxu0 0.0
    %375 = vmatprep.subr.mxu0 0.0
    %376 = vmatpush2.msra.mxu0 0.0
    %377 = vmatprep.subr.mxu0 0.0
    %378 = vmatpush2.msra.mxu0 0.0
    %379 = vmatprep.mubr.f32.mxu0 0.0
    %380 = vmatmul.mubr.f32.gmra.mxu0 %v313
    %v381 = vpop.f32.mrf.mxu0
    %v382 = vadd.f32 %v310, %v381
    %v383 = vpop.f32.mrf.mxu0
    %384 = vdwg.mxu0
    %v385 = vmax.f32 %v382, 0.0
    %v386 = vld [vmem:[%s8] sm:$0xff]
    %v387 = vld [vmem:[%s8 + $0x8] sm:$0xff]
    %v388 = vld [vmem:[%s8 + $0x10] sm:$0xff]
    %v389 = vld [vmem:[%s8 + $0x18] sm:$0xff]
    %v390 = vld [vmem:[%s8 + $0x20] sm:$0xff]
    %v391 = vld [vmem:[%s8 + $0x28] sm:$0xff]
    %v392 = vld [vmem:[%s8 + $0x30] sm:$0xff]
    %v393 = vld [vmem:[%s8 + $0x38] sm:$0xff]
    %v394 = vld [vmem:[%s8 + $0x40] sm:$0xff]
    %v395 = vld [vmem:[%s8 + $0x48] sm:$0xff]
    %v396 = vld [vmem:[%s8 + $0x50] sm:$0xff]
    %v397 = vld [vmem:[%s8 + $0x58] sm:$0xff]
    %v398 = vld [vmem:[%s8 + $0x60] sm:$0xff]
    %v399 = vld [vmem:[%s8 + $0x68] sm:$0xff]
    %v400 = vld [vmem:[%s8 + $0x70] sm:$0xff]
    %v401 = vld [vmem:[%s8 + $0x78] sm:$0xff]
    %v402 = vld [vmem:[%s8 + $0x80] sm:$0xff]
    %v403 = vld [vmem:[%s8 + $0x88] sm:$0xff]
    %v404 = vld [vmem:[%s8 + $0x90] sm:$0xff]
    %v405 = vld [vmem:[%s8 + $0x98] sm:$0xff]
    %v406 = vld [vmem:[%s8 + $0xa0] sm:$0xff]
    %v407 = vld [vmem:[%s8 + $0xa8] sm:$0xff]
    %v408 = vld [vmem:[%s8 + $0xb0] sm:$0xff]
    %v409 = vld [vmem:[%s8 + $0xb8] sm:$0xff]
    %v410 = vld [vmem:[%s8 + $0xc0] sm:$0xff]
    %v411 = vld [vmem:[%s8 + $0xc8] sm:$0xff]
    %v412 = vld [vmem:[%s8 + $0xd0] sm:$0xff]
    %v413 = vld [vmem:[%s8 + $0xd8] sm:$0xff]
    %v414 = vld [vmem:[%s8 + $0xe0] sm:$0xff]
    %v415 = vld [vmem:[%s8 + $0xe8] sm:$0xff]
    %v416 = vld [vmem:[%s8 + $0xf0] sm:$0xff]
    %v417 = vld [vmem:[%s8 + $0xf8] sm:$0xff]
    %v418 = vld [vmem:[#allocation7] sm:$0xff]
    %v419 = vld [vmem:[#allocation7 + $0x8] sm:$0xff]
    %v420 = vld [vmem:[#allocation7 + $0x10] sm:$0xff]
    %v421 = vld [vmem:[#allocation7 + $0x18] sm:$0xff]
    %v422 = vld [vmem:[#allocation7 + $0x20] sm:$0xff]
    %v423 = vld [vmem:[#allocation7 + $0x28] sm:$0xff]
    %v424 = vld [vmem:[#allocation7 + $0x30] sm:$0xff]
    %v425 = vld [vmem:[#allocation7 + $0x38] sm:$0xff]
    %v426 = vld [vmem:[%s9] sm:$0x3]
    %v428 = vlaneseq
    %v429 = vshrl.u32 %v428, 7
    %v430 = vsub.s32 0, %v429
    %v431 = vrot.slane %v426, %v430
    %v432 = vlaneseq
    %v433 = vshrl.u32 %v432, 7
    %v434 = vsub.s32 1, %v433
    %v435 = vrot.slane %v426, %v434
    %v438 = vld [vmem:[%s11] sm:$0x1]
    %v440 = vlaneseq
    %v441 = vshrl.u32 %v440, 7
    %v442 = vsub.s32 0, %v441
    %v443 = vrot.slane %v438, %v442
    %v445 = vlaneseq
    %v446 = vand.u32 %v445, 127
    %v447 = vld [vmem:[#allocation5] sm:$0xff]
    %v448 = vld [vmem:[#allocation5 + $0x8] sm:$0xff]
    %v449 = vld [vmem:[#allocation5 + $0x10] sm:$0xff]
    %v450 = vld [vmem:[#allocation5 + $0x18] sm:$0xff]
    %v451 = vld [vmem:[#allocation5 + $0x20] sm:$0xff]
    %v452 = vld [vmem:[#allocation5 + $0x28] sm:$0xff]
    %v453 = vld [vmem:[#allocation5 + $0x30] sm:$0xff]
    %v454 = vld [vmem:[#allocation5 + $0x38] sm:$0xff]
    %v455 = vld [vmem:[#allocation5 + $0x40] sm:$0xff]
    %v456 = vld [vmem:[#allocation5 + $0x48] sm:$0xff]
    %v457 = vld [vmem:[#allocation5 + $0x50] sm:$0xff]
    %v458 = vld [vmem:[#allocation5 + $0x58] sm:$0xff]
    %v459 = vld [vmem:[#allocation5 + $0x60] sm:$0xff]
    %v460 = vld [vmem:[#allocation5 + $0x68] sm:$0xff]
    %v461 = vld [vmem:[#allocation5 + $0x70] sm:$0xff]
    %v462 = vld [vmem:[#allocation5 + $0x78] sm:$0xff]
    %v464 = vsel %vm222, %v385, 0
    %466 = vmatprep.subr.mxu0 0.0
    %467 = vmatpush1.msra.mxu0 0.0
    %468 = vmatprep.subr.mxu0 0.0
    %469 = vmatpush1.msra.mxu0 0.0
    %470 = vmatprep.subr.mxu0 0.0
    %471 = vmatpush1.msra.mxu0 0.0
    %472 = vmatprep.subr.mxu0 0.0
    %473 = vmatpush1.msra.mxu0 0.0
    %474 = vmatprep.subr.mxu0 0.0
    %475 = vmatpush1.msra.mxu0 0.0
    %476 = vmatprep.subr.mxu0 0.0
    %477 = vmatpush1.msra.mxu0 0.0
    %478 = vmatprep.subr.mxu0 0.0
    %479 = vmatpush1.msra.mxu0 0.0
    %480 = vmatprep.subr.mxu0 0.0
    %481 = vmatpush1.msra.mxu0 0.0
    %482 = vmatprep.subr.mxu0 %v462
    %483 = vmatpush1.msra.mxu0 %v461
    %484 = vmatprep.subr.mxu0 %v460
    %485 = vmatpush1.msra.mxu0 %v459
    %486 = vmatprep.subr.mxu0 %v458
    %487 = vmatpush1.msra.mxu0 %v457
    %488 = vmatprep.subr.mxu0 %v456
    %489 = vmatpush1.msra.mxu0 %v455
    %490 = vmatprep.subr.mxu0 %v454
    %491 = vmatpush1.msra.mxu0 %v453
    %492 = vmatprep.subr.mxu0 %v452
    %493 = vmatpush1.msra.mxu0 %v451
    %494 = vmatprep.subr.mxu0 %v450
    %495 = vmatpush1.msra.mxu0 %v449
    %496 = vmatprep.subr.mxu0 %v448
    %497 = vmatpush1.msra.mxu0 %v447
    %498 = vmatprep.subr.mxu0 0.0
    %499 = vmatpush2.msra.mxu0 0.0
    %500 = vmatprep.subr.mxu0 0.0
    %501 = vmatpush2.msra.mxu0 0.0
    %502 = vmatprep.subr.mxu0 0.0
    %503 = vmatpush2.msra.mxu0 0.0
    %504 = vmatprep.subr.mxu0 0.0
    %505 = vmatpush2.msra.mxu0 0.0
    %506 = vmatprep.subr.mxu0 0.0
    %507 = vmatpush2.msra.mxu0 0.0
    %508 = vmatprep.subr.mxu0 0.0
    %509 = vmatpush2.msra.mxu0 0.0
    %510 = vmatprep.subr.mxu0 0.0
    %511 = vmatpush2.msra.mxu0 0.0
    %512 = vmatprep.subr.mxu0 0.0
    %513 = vmatpush2.msra.mxu0 0.0
    %514 = vmatprep.subr.mxu0 0.0
    %515 = vmatpush2.msra.mxu0 0.0
    %516 = vmatprep.subr.mxu0 0.0
    %517 = vmatpush2.msra.mxu0 0.0
    %518 = vmatprep.subr.mxu0 0.0
    %519 = vmatpush2.msra.mxu0 0.0
    %520 = vmatprep.subr.mxu0 0.0
    %521 = vmatpush2.msra.mxu0 0.0
    %522 = vmatprep.subr.mxu0 0.0
    %523 = vmatpush2.msra.mxu0 0.0
    %524 = vmatprep.subr.mxu0 0.0
    %525 = vmatpush2.msra.mxu0 0.0
    %526 = vmatprep.subr.mxu0 0.0
    %527 = vmatpush2.msra.mxu0 0.0
    %528 = vmatprep.subr.mxu0 0.0
    %529 = vmatpush2.msra.mxu0 0.0
    %530 = vmatprep.mubr.f32.mxu0 0.0
    %531 = vmatmul.mubr.f32.gmra.mxu0 %v464
    %v532 = vpop.f32.mrf.mxu0
    %v533 = vadd.f32 %v431, %v532
    %v534 = vpop.f32.mrf.mxu0
    %v535 = vadd.f32 %v435, %v534
    %536 = vdwg.mxu0
    %v537 = vxor.u32 %v533, 2147483648
    %v538 = vxor.u32 %v535, 2147483648
    %v539 = vmul.f32 %v537, 1.442695
    %v540 = vpow.pop %v539
    %v541 = vmul.f32 %v538, 1.442695
    %v542 = vpow.pop %v541
    %v543 = vadd.f32 %v540, 1.0
    %v544 = vadd.f32 %v542, 1.0
    %v545 = vrcp.pop %v543
    %v546 = vmul.f32 1.0, %v545
    %v547 = vrcp.pop %v544
    %v548 = vmul.f32 1.0, %v547
    %v549 = vtanh.pop %v535
    %551 = vrot.lane.b32.xlu0 %v549, 64
    %v552 = vpop.permute.xlu0 %551
    %v554 = vmul.f32 %v546, %v552
    %v555 = vtanh.pop %v554
    %v556 = vmul.f32 %v548, %v555
    %v558 = vsel %vm222, %v556, 0
    %560 = vmatprep.subr.mxu0 0.0
    %561 = vmatpush1.msra.mxu0 0.0
    %562 = vmatprep.subr.mxu0 0.0
    %563 = vmatpush1.msra.mxu0 0.0
    %564 = vmatprep.subr.mxu0 0.0
    %565 = vmatpush1.msra.mxu0 0.0
    %566 = vmatprep.subr.mxu0 0.0
    %567 = vmatpush1.msra.mxu0 0.0
    %568 = vmatprep.subr.mxu0 0.0
    %569 = vmatpush1.msra.mxu0 0.0
    %570 = vmatprep.subr.mxu0 0.0
    %571 = vmatpush1.msra.mxu0 0.0
    %572 = vmatprep.subr.mxu0 0.0
    %573 = vmatpush1.msra.mxu0 0.0
    %574 = vmatprep.subr.mxu0 0.0
    %575 = vmatpush1.msra.mxu0 0.0
    %576 = vmatprep.subr.mxu0 0.0
    %577 = vmatpush1.msra.mxu0 %v425
    %578 = vmatprep.subr.mxu0 0.0
    %579 = vmatpush1.msra.mxu0 %v424
    %580 = vmatprep.subr.mxu0 0.0
    %581 = vmatpush1.msra.mxu0 %v423
    %582 = vmatprep.subr.mxu0 0.0
    %583 = vmatpush1.msra.mxu0 %v422
    %584 = vmatprep.subr.mxu0 0.0
    %585 = vmatpush1.msra.mxu0 %v421
    %586 = vmatprep.subr.mxu0 0.0
    %587 = vmatpush1.msra.mxu0 %v420
    %588 = vmatprep.subr.mxu0 0.0
    %589 = vmatpush1.msra.mxu0 %v419
    %590 = vmatprep.subr.mxu0 0.0
    %591 = vmatpush1.msra.mxu0 %v418
    %592 = vmatprep.subr.mxu0 0.0
    %593 = vmatpush2.msra.mxu0 0.0
    %594 = vmatprep.subr.mxu0 0.0
    %595 = vmatpush2.msra.mxu0 0.0
    %596 = vmatprep.subr.mxu0 0.0
    %597 = vmatpush2.msra.mxu0 0.0
    %598 = vmatprep.subr.mxu0 0.0
    %599 = vmatpush2.msra.mxu0 0.0
    %600 = vmatprep.subr.mxu0 0.0
    %601 = vmatpush2.msra.mxu0 0.0
    %602 = vmatprep.subr.mxu0 0.0
    %603 = vmatpush2.msra.mxu0 0.0
    %604 = vmatprep.subr.mxu0 0.0
    %605 = vmatpush2.msra.mxu0 0.0
    %606 = vmatprep.subr.mxu0 0.0
    %607 = vmatpush2.msra.mxu0 0.0
    %608 = vmatprep.subr.mxu0 0.0
    %609 = vmatpush2.msra.mxu0 0.0
    %610 = vmatprep.subr.mxu0 0.0
    %611 = vmatpush2.msra.mxu0 0.0
    %612 = vmatprep.subr.mxu0 0.0
    %613 = vmatpush2.msra.mxu0 0.0
    %614 = vmatprep.subr.mxu0 0.0
    %615 = vmatpush2.msra.mxu0 0.0
    %616 = vmatprep.subr.mxu0 0.0
    %617 = vmatpush2.msra.mxu0 0.0
    %618 = vmatprep.subr.mxu0 0.0
    %619 = vmatpush2.msra.mxu0 0.0
    %620 = vmatprep.subr.mxu0 0.0
    %621 = vmatpush2.msra.mxu0 0.0
    %622 = vmatprep.subr.mxu0 0.0
    %623 = vmatpush2.msra.mxu0 0.0
    %624 = vmatprep.mubr.f32.mxu0 0.0
    %625 = vmatmul.mubr.f32.gmra.mxu0 %v558
    %v626 = vpop.f32.mrf.mxu0
    %v627 = vadd.f32 %v443, %v626
    %v628 = vpop.f32.mrf.mxu0
    %629 = vdwg.mxu0
    %630 = vst [vmem:[#allocation8] sm:$0x3] %v627
    %vm631 = vcmask 1041408
    %v632 = vsel %vm631, %v627, -inf
    %633 = vmax.xlane.f32.xlu0 %v632
    %v634 = vpop.xlane.xlu0 %633
    %vm635 = vcmp.eq.f32.partialorder %v627, %v634
    %v636 = vsel %vm635, %v446, 128
    %v637 = vsel %vm631, %v636, 2147483647
    %v638 = vand.u32 %v637, 65535
    %v639 = vshra.s32 %v637, 16
    %v640 = vcvt.s32.f32 %v638
    %v641 = vcvt.s32.f32 %v639
    %642 = vmin.xlane.f32.xlu0 %v641
    %v643 = vpop.xlane.xlu0 %642
    %vm644 = vcmp.eq.f32.partialorder %v641, %v643
    %v645 = vsel %vm644, %v640, inf
    %646 = vmin.xlane.f32.xlu0 %v645
    %v647 = vpop.xlane.xlu0 %646
    %v648 = vcvt.f32.s32 %v647
    %v649 = vcvt.f32.s32 %v643
    %v650 = vshll.u32 %v649, 16
    %v651 = vadd.s32 %v650, %v648
    %vm652 = vcmp.eq.s32.totalorder %v446, %v651
    %v653 = vsel %vm652, 1, 0
    %v654 = vcvt.s32.f32 %v653
    %656 = vrot.lane.b32.xlu0 %v654, 64
    %v657 = vpop.permute.xlu0 %656
    %v659 = vsel %vm222, %v556, %v657
    %660 = vmatprep.subr.mxu0 %v417
    %661 = vmatpush1.msra.mxu0 %v416
    %662 = vmatprep.subr.mxu0 %v415
    %663 = vmatpush1.msra.mxu0 %v414
    %664 = vmatprep.subr.mxu0 %v413
    %665 = vmatpush1.msra.mxu0 %v412
    %666 = vmatprep.subr.mxu0 %v411
    %667 = vmatpush1.msra.mxu0 %v410
    %668 = vmatprep.subr.mxu0 %v409
    %669 = vmatpush1.msra.mxu0 %v408
    %670 = vmatprep.subr.mxu0 %v407
    %671 = vmatpush1.msra.mxu0 %v406
    %672 = vmatprep.subr.mxu0 %v405
    %673 = vmatpush1.msra.mxu0 %v404
    %674 = vmatprep.subr.mxu0 %v403
    %675 = vmatpush1.msra.mxu0 %v402
    %676 = vmatprep.subr.mxu0 %v401
    %677 = vmatpush1.msra.mxu0 %v400
    %678 = vmatprep.subr.mxu0 %v399
    %679 = vmatpush1.msra.mxu0 %v398
    %680 = vmatprep.subr.mxu0 %v397
    %681 = vmatpush1.msra.mxu0 %v396
    %682 = vmatprep.subr.mxu0 %v395
    %683 = vmatpush1.msra.mxu0 %v394
    %684 = vmatprep.subr.mxu0 %v393
    %685 = vmatpush1.msra.mxu0 %v392
    %686 = vmatprep.subr.mxu0 %v391
    %687 = vmatpush1.msra.mxu0 %v390
    %688 = vmatprep.subr.mxu0 %v389
    %689 = vmatpush1.msra.mxu0 %v388
    %690 = vmatprep.subr.mxu0 %v387
    %691 = vmatpush1.msra.mxu0 %v386
    %692 = vmatprep.subr.mxu0 0.0
    %693 = vmatpush2.msra.mxu0 0.0
    %694 = vmatprep.subr.mxu0 0.0
    %695 = vmatpush2.msra.mxu0 0.0
    %696 = vmatprep.subr.mxu0 0.0
    %697 = vmatpush2.msra.mxu0 0.0
    %698 = vmatprep.subr.mxu0 0.0
    %699 = vmatpush2.msra.mxu0 0.0
    %700 = vmatprep.subr.mxu0 0.0
    %701 = vmatpush2.msra.mxu0 0.0
    %702 = vmatprep.subr.mxu0 0.0
    %703 = vmatpush2.msra.mxu0 0.0
    %704 = vmatprep.subr.mxu0 0.0
    %705 = vmatpush2.msra.mxu0 0.0
    %706 = vmatprep.subr.mxu0 0.0
    %707 = vmatpush2.msra.mxu0 0.0
    %708 = vmatprep.subr.mxu0 0.0
    %709 = vmatpush2.msra.mxu0 0.0
    %710 = vmatprep.subr.mxu0 0.0
    %711 = vmatpush2.msra.mxu0 0.0
    %712 = vmatprep.subr.mxu0 0.0
    %713 = vmatpush2.msra.mxu0 0.0
    %714 = vmatprep.subr.mxu0 0.0
    %715 = vmatpush2.msra.mxu0 0.0
    %716 = vmatprep.subr.mxu0 0.0
    %717 = vmatpush2.msra.mxu0 0.0
    %718 = vmatprep.subr.mxu0 0.0
    %719 = vmatpush2.msra.mxu0 0.0
    %720 = vmatprep.subr.mxu0 0.0
    %721 = vmatpush2.msra.mxu0 0.0
    %722 = vmatprep.subr.mxu0 0.0
    %723 = vmatpush2.msra.mxu0 0.0
    %724 = vmatprep.mubr.f32.mxu0 0.0
    %725 = vmatmul.mubr.f32.gmra.mxu0 %v659
    %v726 = vpop.f32.mrf.mxu0
    %v727 = vadd.f32 %v431, %v726
    %v728 = vpop.f32.mrf.mxu0
    %v729 = vadd.f32 %v435, %v728
    %730 = vdwg.mxu0
    %v731 = vxor.u32 %v727, 2147483648
    %v732 = vxor.u32 %v729, 2147483648
    %v733 = vmul.f32 %v731, 1.442695
    %v734 = vpow.pop %v733
    %v735 = vmul.f32 %v732, 1.442695
    %v736 = vpow.pop %v735
    %v737 = vadd.f32 %v734, 1.0
    %v738 = vadd.f32 %v736, 1.0
    %v739 = vrcp.pop %v737
    %v740 = vmul.f32 1.0, %v739
    %v741 = vrcp.pop %v738
    %v742 = vmul.f32 1.0, %v741
    %v743 = vtanh.pop %v729
    %745 = vrot.lane.b32.xlu0 %v554, 64
    %v746 = vpop.permute.xlu0 %745
    %v748 = vmul.f32 %v740, %v746
    %750 = vrot.lane.b32.xlu0 %v743, 64
    %v751 = vpop.permute.xlu0 %750
    %v753 = vmul.f32 %v740, %v751
    %755 = vrot.lane.b32.xlu0 %v753, 64
    %v756 = vpop.permute.xlu0 %755
    %v758 = vadd.f32 %v748, %v756
    %v759 = vtanh.pop %v758
    %761 = vrot.lane.b32.xlu0 %v759, 64
    %v762 = vpop.permute.xlu0 %761
    %v764 = vmul.f32 %v742, %v762
    %v766 = vsel %vm222, %v764, 0
    %768 = vmatprep.subr.mxu0 0.0
    %769 = vmatpush1.msra.mxu0 0.0
    %770 = vmatprep.subr.mxu0 0.0
    %771 = vmatpush1.msra.mxu0 0.0
    %772 = vmatprep.subr.mxu0 0.0
    %773 = vmatpush1.msra.mxu0 0.0
    %774 = vmatprep.subr.mxu0 0.0
    %775 = vmatpush1.msra.mxu0 0.0
    %776 = vmatprep.subr.mxu0 0.0
    %777 = vmatpush1.msra.mxu0 0.0
    %778 = vmatprep.subr.mxu0 0.0
    %779 = vmatpush1.msra.mxu0 0.0
    %780 = vmatprep.subr.mxu0 0.0
    %781 = vmatpush1.msra.mxu0 0.0
    %782 = vmatprep.subr.mxu0 0.0
    %783 = vmatpush1.msra.mxu0 0.0
    %784 = vmatprep.subr.mxu0 0.0
    %785 = vmatpush1.msra.mxu0 %v425
    %786 = vmatprep.subr.mxu0 0.0
    %787 = vmatpush1.msra.mxu0 %v424
    %788 = vmatprep.subr.mxu0 0.0
    %789 = vmatpush1.msra.mxu0 %v423
    %790 = vmatprep.subr.mxu0 0.0
    %791 = vmatpush1.msra.mxu0 %v422
    %792 = vmatprep.subr.mxu0 0.0
    %793 = vmatpush1.msra.mxu0 %v421
    %794 = vmatprep.subr.mxu0 0.0
    %795 = vmatpush1.msra.mxu0 %v420
    %796 = vmatprep.subr.mxu0 0.0
    %797 = vmatpush1.msra.mxu0 %v419
    %798 = vmatprep.subr.mxu0 0.0
    %799 = vmatpush1.msra.mxu0 %v418
    %800 = vmatprep.subr.mxu0 0.0
    %801 = vmatpush2.msra.mxu0 0.0
    %802 = vmatprep.subr.mxu0 0.0
    %803 = vmatpush2.msra.mxu0 0.0
    %804 = vmatprep.subr.mxu0 0.0
    %805 = vmatpush2.msra.mxu0 0.0
    %806 = vmatprep.subr.mxu0 0.0
    %807 = vmatpush2.msra.mxu0 0.0
    %808 = vmatprep.subr.mxu0 0.0
    %809 = vmatpush2.msra.mxu0 0.0
    %810 = vmatprep.subr.mxu0 0.0
    %811 = vmatpush2.msra.mxu0 0.0
    %812 = vmatprep.subr.mxu0 0.0
    %813 = vmatpush2.msra.mxu0 0.0
    %814 = vmatprep.subr.mxu0 0.0
    %815 = vmatpush2.msra.mxu0 0.0
    %816 = vmatprep.subr.mxu0 0.0
    %817 = vmatpush2.msra.mxu0 0.0
    %818 = vmatprep.subr.mxu0 0.0
    %819 = vmatpush2.msra.mxu0 0.0
    %820 = vmatprep.subr.mxu0 0.0
    %821 = vmatpush2.msra.mxu0 0.0
    %822 = vmatprep.subr.mxu0 0.0
    %823 = vmatpush2.msra.mxu0 0.0
    %824 = vmatprep.subr.mxu0 0.0
    %825 = vmatpush2.msra.mxu0 0.0
    %826 = vmatprep.subr.mxu0 0.0
    %827 = vmatpush2.msra.mxu0 0.0
    %828 = vmatprep.subr.mxu0 0.0
    %829 = vmatpush2.msra.mxu0 0.0
    %830 = vmatprep.subr.mxu0 0.0
    %831 = vmatpush2.msra.mxu0 0.0
    %832 = vmatprep.mubr.f32.mxu0 0.0
    %833 = vmatmul.mubr.f32.gmra.mxu0 %v766
    %v834 = vpop.f32.mrf.mxu0
    %v835 = vadd.f32 %v443, %v834
    %v836 = vpop.f32.mrf.mxu0
    %837 = vdwg.mxu0
    %s838 = scalar_lea.vmem [#allocation8], 2
    %839 = vst [vmem:[%s838] sm:$0x3] %v835
    %v840 = vsel %vm631, %v835, -inf
    %841 = vmax.xlane.f32.xlu0 %v840
    %v842 = vpop.xlane.xlu0 %841
    %vm843 = vcmp.eq.f32.partialorder %v835, %v842
    %v844 = vsel %vm843, %v446, 128
    %v845 = vsel %vm631, %v844, 2147483647
    %v846 = vand.u32 %v845, 65535
    %v847 = vshra.s32 %v845, 16
    %v848 = vcvt.s32.f32 %v846
    %v849 = vcvt.s32.f32 %v847
    %850 = vmin.xlane.f32.xlu0 %v849
    %v851 = vpop.xlane.xlu0 %850
    %vm852 = vcmp.eq.f32.partialorder %v849, %v851
    %v853 = vsel %vm852, %v848, inf
    %854 = vmin.xlane.f32.xlu0 %v853
    %v855 = vpop.xlane.xlu0 %854
    %v856 = vcvt.f32.s32 %v855
    %v857 = vcvt.f32.s32 %v851
    %v858 = vshll.u32 %v857, 16
    %v859 = vadd.s32 %v858, %v856
    %vm860 = vcmp.eq.s32.totalorder %v446, %v859
    %v861 = vsel %vm860, 1, 0
    %v862 = vcvt.s32.f32 %v861
    %864 = vrot.lane.b32.xlu0 %v862, 64
    %v865 = vpop.permute.xlu0 %864
    %v867 = vsel %vm222, %v764, %v865
    %868 = vmatprep.subr.mxu0 %v417
    %869 = vmatpush1.msra.mxu0 %v416
    %870 = vmatprep.subr.mxu0 %v415
    %871 = vmatpush1.msra.mxu0 %v414
    %872 = vmatprep.subr.mxu0 %v413
    %873 = vmatpush1.msra.mxu0 %v412
    %874 = vmatprep.subr.mxu0 %v411
    %875 = vmatpush1.msra.mxu0 %v410
    %876 = vmatprep.subr.mxu0 %v409
    %877 = vmatpush1.msra.mxu0 %v408
    %878 = vmatprep.subr.mxu0 %v407
    %879 = vmatpush1.msra.mxu0 %v406
    %880 = vmatprep.subr.mxu0 %v405
    %881 = vmatpush1.msra.mxu0 %v404
    %882 = vmatprep.subr.mxu0 %v403
    %883 = vmatpush1.msra.mxu0 %v402
    %884 = vmatprep.subr.mxu0 %v401
    %885 = vmatpush1.msra.mxu0 %v400
    %886 = vmatprep.subr.mxu0 %v399
    %887 = vmatpush1.msra.mxu0 %v398
    %888 = vmatprep.subr.mxu0 %v397
    %889 = vmatpush1.msra.mxu0 %v396
    %890 = vmatprep.subr.mxu0 %v395
    %891 = vmatpush1.msra.mxu0 %v394
    %892 = vmatprep.subr.mxu0 %v393
    %893 = vmatpush1.msra.mxu0 %v392
    %894 = vmatprep.subr.mxu0 %v391
    %895 = vmatpush1.msra.mxu0 %v390
    %896 = vmatprep.subr.mxu0 %v389
    %897 = vmatpush1.msra.mxu0 %v388
    %898 = vmatprep.subr.mxu0 %v387
    %899 = vmatpush1.msra.mxu0 %v386
    %900 = vmatprep.subr.mxu0 0.0
    %901 = vmatpush2.msra.mxu0 0.0
    %902 = vmatprep.subr.mxu0 0.0
    %903 = vmatpush2.msra.mxu0 0.0
    %904 = vmatprep.subr.mxu0 0.0
    %905 = vmatpush2.msra.mxu0 0.0
    %906 = vmatprep.subr.mxu0 0.0
    %907 = vmatpush2.msra.mxu0 0.0
    %908 = vmatprep.subr.mxu0 0.0
    %909 = vmatpush2.msra.mxu0 0.0
    %910 = vmatprep.subr.mxu0 0.0
    %911 = vmatpush2.msra.mxu0 0.0
    %912 = vmatprep.subr.mxu0 0.0
    %913 = vmatpush2.msra.mxu0 0.0
    %914 = vmatprep.subr.mxu0 0.0
    %915 = vmatpush2.msra.mxu0 0.0
    %916 = vmatprep.subr.mxu0 0.0
    %917 = vmatpush2.msra.mxu0 0.0
    %918 = vmatprep.subr.mxu0 0.0
    %919 = vmatpush2.msra.mxu0 0.0
    %920 = vmatprep.subr.mxu0 0.0
    %921 = vmatpush2.msra.mxu0 0.0
    %922 = vmatprep.subr.mxu0 0.0
    %923 = vmatpush2.msra.mxu0 0.0
    %924 = vmatprep.subr.mxu0 0.0
    %925 = vmatpush2.msra.mxu0 0.0
    %926 = vmatprep.subr.mxu0 0.0
    %927 = vmatpush2.msra.mxu0 0.0
    %928 = vmatprep.subr.mxu0 0.0
    %929 = vmatpush2.msra.mxu0 0.0
    %930 = vmatprep.subr.mxu0 0.0
    %931 = vmatpush2.msra.mxu0 0.0
    %932 = vmatprep.mubr.f32.mxu0 0.0
    %933 = vmatmul.mubr.f32.gmra.mxu0 %v867
    %v934 = vpop.f32.mrf.mxu0
    %v935 = vadd.f32 %v431, %v934
    %v936 = vpop.f32.mrf.mxu0
    %v937 = vadd.f32 %v435, %v936
    %938 = vdwg.mxu0
    %v939 = vxor.u32 %v935, 2147483648
    %v940 = vxor.u32 %v937, 2147483648
    %v941 = vmul.f32 %v939, 1.442695
    %v942 = vpow.pop %v941
    %v943 = vmul.f32 %v940, 1.442695
    %v944 = vpow.pop %v943
    %v945 = vadd.f32 %v942, 1.0
    %v946 = vadd.f32 %v944, 1.0
    %v947 = vrcp.pop %v945
    %v948 = vmul.f32 1.0, %v947
    %v949 = vrcp.pop %v946
    %v950 = vmul.f32 1.0, %v949
    %v951 = vtanh.pop %v937
    %v952 = vmul.f32 %v948, %v758
    %954 = vrot.lane.b32.xlu0 %v951, 64
    %v955 = vpop.permute.xlu0 %954
    %v957 = vmul.f32 %v948, %v955
    %959 = vrot.lane.b32.xlu0 %v957, 64
    %v960 = vpop.permute.xlu0 %959
    %v962 = vadd.f32 %v952, %v960
    %v963 = vtanh.pop %v962
    %965 = vrot.lane.b32.xlu0 %v963, 64
    %v966 = vpop.permute.xlu0 %965
    %v968 = vmul.f32 %v950, %v966
    %v970 = vsel %vm222, %v968, 0
    %972 = vmatprep.subr.mxu0 0.0
    %973 = vmatpush1.msra.mxu0 0.0
    %974 = vmatprep.subr.mxu0 0.0
    %975 = vmatpush1.msra.mxu0 0.0
    %976 = vmatprep.subr.mxu0 0.0
    %977 = vmatpush1.msra.mxu0 0.0
    %978 = vmatprep.subr.mxu0 0.0
    %979 = vmatpush1.msra.mxu0 0.0
    %980 = vmatprep.subr.mxu0 0.0
    %981 = vmatpush1.msra.mxu0 0.0
    %982 = vmatprep.subr.mxu0 0.0
    %983 = vmatpush1.msra.mxu0 0.0
    %984 = vmatprep.subr.mxu0 0.0
    %985 = vmatpush1.msra.mxu0 0.0
    %986 = vmatprep.subr.mxu0 0.0
    %987 = vmatpush1.msra.mxu0 0.0
    %988 = vmatprep.subr.mxu0 0.0
    %989 = vmatpush1.msra.mxu0 %v425
    %990 = vmatprep.subr.mxu0 0.0
    %991 = vmatpush1.msra.mxu0 %v424
    %992 = vmatprep.subr.mxu0 0.0
    %993 = vmatpush1.msra.mxu0 %v423
    %994 = vmatprep.subr.mxu0 0.0
    %995 = vmatpush1.msra.mxu0 %v422
    %996 = vmatprep.subr.mxu0 0.0
    %997 = vmatpush1.msra.mxu0 %v421
    %998 = vmatprep.subr.mxu0 0.0
    %999 = vmatpush1.msra.mxu0 %v420
    %1000 = vmatprep.subr.mxu0 0.0
    %1001 = vmatpush1.msra.mxu0 %v419
    %1002 = vmatprep.subr.mxu0 0.0
    %1003 = vmatpush1.msra.mxu0 %v418
    %1004 = vmatprep.subr.mxu0 0.0
    %1005 = vmatpush2.msra.mxu0 0.0
    %1006 = vmatprep.subr.mxu0 0.0
    %1007 = vmatpush2.msra.mxu0 0.0
    %1008 = vmatprep.subr.mxu0 0.0
    %1009 = vmatpush2.msra.mxu0 0.0
    %1010 = vmatprep.subr.mxu0 0.0
    %1011 = vmatpush2.msra.mxu0 0.0
    %1012 = vmatprep.subr.mxu0 0.0
    %1013 = vmatpush2.msra.mxu0 0.0
    %1014 = vmatprep.subr.mxu0 0.0
    %1015 = vmatpush2.msra.mxu0 0.0
    %1016 = vmatprep.subr.mxu0 0.0
    %1017 = vmatpush2.msra.mxu0 0.0
    %1018 = vmatprep.subr.mxu0 0.0
    %1019 = vmatpush2.msra.mxu0 0.0
    %1020 = vmatprep.subr.mxu0 0.0
    %1021 = vmatpush2.msra.mxu0 0.0
    %1022 = vmatprep.subr.mxu0 0.0
    %1023 = vmatpush2.msra.mxu0 0.0
    %1024 = vmatprep.subr.mxu0 0.0
    %1025 = vmatpush2.msra.mxu0 0.0
    %1026 = vmatprep.subr.mxu0 0.0
    %1027 = vmatpush2.msra.mxu0 0.0
    %1028 = vmatprep.subr.mxu0 0.0
    %1029 = vmatpush2.msra.mxu0 0.0
    %1030 = vmatprep.subr.mxu0 0.0
    %1031 = vmatpush2.msra.mxu0 0.0
    %1032 = vmatprep.subr.mxu0 0.0
    %1033 = vmatpush2.msra.mxu0 0.0
    %1034 = vmatprep.subr.mxu0 0.0
    %1035 = vmatpush2.msra.mxu0 0.0
    %1036 = vmatprep.mubr.f32.mxu0 0.0
    %1037 = vmatmul.mubr.f32.gmra.mxu0 %v970
    %v1038 = vpop.f32.mrf.mxu0
    %v1039 = vadd.f32 %v443, %v1038
    %v1040 = vpop.f32.mrf.mxu0
    %1041 = vdwg.mxu0
    %s1042 = scalar_lea.vmem [#allocation8], 4
    %1043 = vst [vmem:[%s1042] sm:$0x3] %v1039
    %v1044 = vsel %vm631, %v1039, -inf
    %1045 = vmax.xlane.f32.xlu0 %v1044
    %v1046 = vpop.xlane.xlu0 %1045
    %vm1047 = vcmp.eq.f32.partialorder %v1039, %v1046
    %v1048 = vsel %vm1047, %v446, 128
    %v1049 = vsel %vm631, %v1048, 2147483647
    %v1050 = vand.u32 %v1049, 65535
    %v1051 = vshra.s32 %v1049, 16
    %v1052 = vcvt.s32.f32 %v1050
    %v1053 = vcvt.s32.f32 %v1051
    %1054 = vmin.xlane.f32.xlu0 %v1053
    %v1055 = vpop.xlane.xlu0 %1054
    %vm1056 = vcmp.eq.f32.partialorder %v1053, %v1055
    %v1057 = vsel %vm1056, %v1052, inf
    %1058 = vmin.xlane.f32.xlu0 %v1057
    %v1059 = vpop.xlane.xlu0 %1058
    %v1060 = vcvt.f32.s32 %v1059
    %v1061 = vcvt.f32.s32 %v1055
    %v1062 = vshll.u32 %v1061, 16
    %v1063 = vadd.s32 %v1062, %v1060
    %vm1064 = vcmp.eq.s32.totalorder %v446, %v1063
    %v1065 = vsel %vm1064, 1, 0
    %v1066 = vcvt.s32.f32 %v1065
    %1068 = vrot.lane.b32.xlu0 %v1066, 64
    %v1069 = vpop.permute.xlu0 %1068
    %v1071 = vsel %vm222, %v968, %v1069
    %1072 = vmatprep.subr.mxu0 %v417
    %1073 = vmatpush1.msra.mxu0 %v416
    %1074 = vmatprep.subr.mxu0 %v415
    %1075 = vmatpush1.msra.mxu0 %v414
    %1076 = vmatprep.subr.mxu0 %v413
    %1077 = vmatpush1.msra.mxu0 %v412
    %1078 = vmatprep.subr.mxu0 %v411
    %1079 = vmatpush1.msra.mxu0 %v410
    %1080 = vmatprep.subr.mxu0 %v409
    %1081 = vmatpush1.msra.mxu0 %v408
    %1082 = vmatprep.subr.mxu0 %v407
    %1083 = vmatpush1.msra.mxu0 %v406
    %1084 = vmatprep.subr.mxu0 %v405
    %1085 = vmatpush1.msra.mxu0 %v404
    %1086 = vmatprep.subr.mxu0 %v403
    %1087 = vmatpush1.msra.mxu0 %v402
    %1088 = vmatprep.subr.mxu0 %v401
    %1089 = vmatpush1.msra.mxu0 %v400
    %1090 = vmatprep.subr.mxu0 %v399
    %1091 = vmatpush1.msra.mxu0 %v398
    %1092 = vmatprep.subr.mxu0 %v397
    %1093 = vmatpush1.msra.mxu0 %v396
    %1094 = vmatprep.subr.mxu0 %v395
    %1095 = vmatpush1.msra.mxu0 %v394
    %1096 = vmatprep.subr.mxu0 %v393
    %1097 = vmatpush1.msra.mxu0 %v392
    %1098 = vmatprep.subr.mxu0 %v391
    %1099 = vmatpush1.msra.mxu0 %v390
    %1100 = vmatprep.subr.mxu0 %v389
    %1101 = vmatpush1.msra.mxu0 %v388
    %1102 = vmatprep.subr.mxu0 %v387
    %1103 = vmatpush1.msra.mxu0 %v386
    %1104 = vmatprep.subr.mxu0 0.0
    %1105 = vmatpush2.msra.mxu0 0.0
    %1106 = vmatprep.subr.mxu0 0.0
    %1107 = vmatpush2.msra.mxu0 0.0
    %1108 = vmatprep.subr.mxu0 0.0
    %1109 = vmatpush2.msra.mxu0 0.0
    %1110 = vmatprep.subr.mxu0 0.0
    %1111 = vmatpush2.msra.mxu0 0.0
    %1112 = vmatprep.subr.mxu0 0.0
    %1113 = vmatpush2.msra.mxu0 0.0
    %1114 = vmatprep.subr.mxu0 0.0
    %1115 = vmatpush2.msra.mxu0 0.0
    %1116 = vmatprep.subr.mxu0 0.0
    %1117 = vmatpush2.msra.mxu0 0.0
    %1118 = vmatprep.subr.mxu0 0.0
    %1119 = vmatpush2.msra.mxu0 0.0
    %1120 = vmatprep.subr.mxu0 0.0
    %1121 = vmatpush2.msra.mxu0 0.0
    %1122 = vmatprep.subr.mxu0 0.0
    %1123 = vmatpush2.msra.mxu0 0.0
    %1124 = vmatprep.subr.mxu0 0.0
    %1125 = vmatpush2.msra.mxu0 0.0
    %1126 = vmatprep.subr.mxu0 0.0
    %1127 = vmatpush2.msra.mxu0 0.0
    %1128 = vmatprep.subr.mxu0 0.0
    %1129 = vmatpush2.msra.mxu0 0.0
    %1130 = vmatprep.subr.mxu0 0.0
    %1131 = vmatpush2.msra.mxu0 0.0
    %1132 = vmatprep.subr.mxu0 0.0
    %1133 = vmatpush2.msra.mxu0 0.0
    %1134 = vmatprep.subr.mxu0 0.0
    %1135 = vmatpush2.msra.mxu0 0.0
    %1136 = vmatprep.mubr.f32.mxu0 0.0
    %1137 = vmatmul.mubr.f32.gmra.mxu0 %v1071
    %v1138 = vpop.f32.mrf.mxu0
    %v1139 = vadd.f32 %v431, %v1138
    %v1140 = vpop.f32.mrf.mxu0
    %v1141 = vadd.f32 %v435, %v1140
    %1142 = vdwg.mxu0
    %v1143 = vxor.u32 %v1139, 2147483648
    %v1144 = vxor.u32 %v1141, 2147483648
    %v1145 = vmul.f32 %v1143, 1.442695
    %v1146 = vpow.pop %v1145
    %v1147 = vmul.f32 %v1144, 1.442695
    %v1148 = vpow.pop %v1147
    %v1149 = vadd.f32 %v1146, 1.0
    %v1150 = vadd.f32 %v1148, 1.0
    %v1151 = vrcp.pop %v1149
    %v1152 = vmul.f32 1.0, %v1151
    %v1153 = vrcp.pop %v1150
    %v1154 = vmul.f32 1.0, %v1153
    %v1155 = vtanh.pop %v1141
    %v1156 = vmul.f32 %v1152, %v962
    %1158 = vrot.lane.b32.xlu0 %v1155, 64
    %v1159 = vpop.permute.xlu0 %1158
    %v1161 = vmul.f32 %v1152, %v1159
    %1163 = vrot.lane.b32.xlu0 %v1161, 64
    %v1164 = vpop.permute.xlu0 %1163
    %v1166 = vadd.f32 %v1156, %v1164
    %v1167 = vtanh.pop %v1166
    %1169 = vrot.lane.b32.xlu0 %v1167, 64
    %v1170 = vpop.permute.xlu0 %1169
    %v1172 = vmul.f32 %v1154, %v1170
    %v1174 = vsel %vm222, %v1172, 0
    %1176 = vmatprep.subr.mxu0 0.0
    %1177 = vmatpush1.msra.mxu0 0.0
    %1178 = vmatprep.subr.mxu0 0.0
    %1179 = vmatpush1.msra.mxu0 0.0
    %1180 = vmatprep.subr.mxu0 0.0
    %1181 = vmatpush1.msra.mxu0 0.0
    %1182 = vmatprep.subr.mxu0 0.0
    %1183 = vmatpush1.msra.mxu0 0.0
    %1184 = vmatprep.subr.mxu0 0.0
    %1185 = vmatpush1.msra.mxu0 0.0
    %1186 = vmatprep.subr.mxu0 0.0
    %1187 = vmatpush1.msra.mxu0 0.0
    %1188 = vmatprep.subr.mxu0 0.0
    %1189 = vmatpush1.msra.mxu0 0.0
    %1190 = vmatprep.subr.mxu0 0.0
    %1191 = vmatpush1.msra.mxu0 0.0
    %1192 = vmatprep.subr.mxu0 0.0
    %1193 = vmatpush1.msra.mxu0 %v425
    %1194 = vmatprep.subr.mxu0 0.0
    %1195 = vmatpush1.msra.mxu0 %v424
    %1196 = vmatprep.subr.mxu0 0.0
    %1197 = vmatpush1.msra.mxu0 %v423
    %1198 = vmatprep.subr.mxu0 0.0
    %1199 = vmatpush1.msra.mxu0 %v422
    %1200 = vmatprep.subr.mxu0 0.0
    %1201 = vmatpush1.msra.mxu0 %v421
    %1202 = vmatprep.subr.mxu0 0.0
    %1203 = vmatpush1.msra.mxu0 %v420
    %1204 = vmatprep.subr.mxu0 0.0
    %1205 = vmatpush1.msra.mxu0 %v419
    %1206 = vmatprep.subr.mxu0 0.0
    %1207 = vmatpush1.msra.mxu0 %v418
    %1208 = vmatprep.subr.mxu0 0.0
    %1209 = vmatpush2.msra.mxu0 0.0
    %1210 = vmatprep.subr.mxu0 0.0
    %1211 = vmatpush2.msra.mxu0 0.0
    %1212 = vmatprep.subr.mxu0 0.0
    %1213 = vmatpush2.msra.mxu0 0.0
    %1214 = vmatprep.subr.mxu0 0.0
    %1215 = vmatpush2.msra.mxu0 0.0
    %1216 = vmatprep.subr.mxu0 0.0
    %1217 = vmatpush2.msra.mxu0 0.0
    %1218 = vmatprep.subr.mxu0 0.0
    %1219 = vmatpush2.msra.mxu0 0.0
    %1220 = vmatprep.subr.mxu0 0.0
    %1221 = vmatpush2.msra.mxu0 0.0
    %1222 = vmatprep.subr.mxu0 0.0
    %1223 = vmatpush2.msra.mxu0 0.0
    %1224 = vmatprep.subr.mxu0 0.0
    %1225 = vmatpush2.msra.mxu0 0.0
    %1226 = vmatprep.subr.mxu0 0.0
    %1227 = vmatpush2.msra.mxu0 0.0
    %1228 = vmatprep.subr.mxu0 0.0
    %1229 = vmatpush2.msra.mxu0 0.0
    %1230 = vmatprep.subr.mxu0 0.0
    %1231 = vmatpush2.msra.mxu0 0.0
    %1232 = vmatprep.subr.mxu0 0.0
    %1233 = vmatpush2.msra.mxu0 0.0
    %1234 = vmatprep.subr.mxu0 0.0
    %1235 = vmatpush2.msra.mxu0 0.0
    %1236 = vmatprep.subr.mxu0 0.0
    %1237 = vmatpush2.msra.mxu0 0.0
    %1238 = vmatprep.subr.mxu0 0.0
    %1239 = vmatpush2.msra.mxu0 0.0
    %1240 = vmatprep.mubr.f32.mxu0 0.0
    %1241 = vmatmul.mubr.f32.gmra.mxu0 %v1174
    %v1242 = vpop.f32.mrf.mxu0
    %v1243 = vadd.f32 %v443, %v1242
    %v1244 = vpop.f32.mrf.mxu0
    %1245 = vdwg.mxu0
    %s1246 = scalar_lea.vmem [#allocation8], 6
    %1247 = vst [vmem:[%s1246] sm:$0x3] %v1243
    %v1248 = vsel %vm631, %v1243, -inf
    %1249 = vmax.xlane.f32.xlu0 %v1248
    %v1250 = vpop.xlane.xlu0 %1249
    %vm1251 = vcmp.eq.f32.partialorder %v1243, %v1250
    %v1252 = vsel %vm1251, %v446, 128
    %v1253 = vsel %vm631, %v1252, 2147483647
    %v1254 = vand.u32 %v1253, 65535
    %v1255 = vshra.s32 %v1253, 16
    %v1256 = vcvt.s32.f32 %v1254
    %v1257 = vcvt.s32.f32 %v1255
    %1258 = vmin.xlane.f32.xlu0 %v1257
    %v1259 = vpop.xlane.xlu0 %1258
    %vm1260 = vcmp.eq.f32.partialorder %v1257, %v1259
    %v1261 = vsel %vm1260, %v1256, inf
    %1262 = vmin.xlane.f32.xlu0 %v1261
    %v1263 = vpop.xlane.xlu0 %1262
    %v1264 = vcvt.f32.s32 %v1263
    %v1265 = vcvt.f32.s32 %v1259
    %v1266 = vshll.u32 %v1265, 16
    %v1267 = vadd.s32 %v1266, %v1264
    %vm1268 = vcmp.eq.s32.totalorder %v446, %v1267
    %v1269 = vsel %vm1268, 1, 0
    %v1270 = vcvt.s32.f32 %v1269
    %1272 = vrot.lane.b32.xlu0 %v1270, 64
    %v1273 = vpop.permute.xlu0 %1272
    %v1275 = vsel %vm222, %v1172, %v1273
    %1276 = vmatprep.subr.mxu0 %v417
    %1277 = vmatpush1.msra.mxu0 %v416
    %1278 = vmatprep.subr.mxu0 %v415
    %1279 = vmatpush1.msra.mxu0 %v414
    %1280 = vmatprep.subr.mxu0 %v413
    %1281 = vmatpush1.msra.mxu0 %v412
    %1282 = vmatprep.subr.mxu0 %v411
    %1283 = vmatpush1.msra.mxu0 %v410
    %1284 = vmatprep.subr.mxu0 %v409
    %1285 = vmatpush1.msra.mxu0 %v408
    %1286 = vmatprep.subr.mxu0 %v407
    %1287 = vmatpush1.msra.mxu0 %v406
    %1288 = vmatprep.subr.mxu0 %v405
    %1289 = vmatpush1.msra.mxu0 %v404
    %1290 = vmatprep.subr.mxu0 %v403
    %1291 = vmatpush1.msra.mxu0 %v402
    %1292 = vmatprep.subr.mxu0 %v401
    %1293 = vmatpush1.msra.mxu0 %v400
    %1294 = vmatprep.subr.mxu0 %v399
    %1295 = vmatpush1.msra.mxu0 %v398
    %1296 = vmatprep.subr.mxu0 %v397
    %1297 = vmatpush1.msra.mxu0 %v396
    %1298 = vmatprep.subr.mxu0 %v395
    %1299 = vmatpush1.msra.mxu0 %v394
    %1300 = vmatprep.subr.mxu0 %v393
    %1301 = vmatpush1.msra.mxu0 %v392
    %1302 = vmatprep.subr.mxu0 %v391
    %1303 = vmatpush1.msra.mxu0 %v390
    %1304 = vmatprep.subr.mxu0 %v389
    %1305 = vmatpush1.msra.mxu0 %v388
    %1306 = vmatprep.subr.mxu0 %v387
    %1307 = vmatpush1.msra.mxu0 %v386
    %1308 = vmatprep.subr.mxu0 0.0
    %1309 = vmatpush2.msra.mxu0 0.0
    %1310 = vmatprep.subr.mxu0 0.0
    %1311 = vmatpush2.msra.mxu0 0.0
    %1312 = vmatprep.subr.mxu0 0.0
    %1313 = vmatpush2.msra.mxu0 0.0
    %1314 = vmatprep.subr.mxu0 0.0
    %1315 = vmatpush2.msra.mxu0 0.0
    %1316 = vmatprep.subr.mxu0 0.0
    %1317 = vmatpush2.msra.mxu0 0.0
    %1318 = vmatprep.subr.mxu0 0.0
    %1319 = vmatpush2.msra.mxu0 0.0
    %1320 = vmatprep.subr.mxu0 0.0
    %1321 = vmatpush2.msra.mxu0 0.0
    %1322 = vmatprep.subr.mxu0 0.0
    %1323 = vmatpush2.msra.mxu0 0.0
    %1324 = vmatprep.subr.mxu0 0.0
    %1325 = vmatpush2.msra.mxu0 0.0
    %1326 = vmatprep.subr.mxu0 0.0
    %1327 = vmatpush2.msra.mxu0 0.0
    %1328 = vmatprep.subr.mxu0 0.0
    %1329 = vmatpush2.msra.mxu0 0.0
    %1330 = vmatprep.subr.mxu0 0.0
    %1331 = vmatpush2.msra.mxu0 0.0
    %1332 = vmatprep.subr.mxu0 0.0
    %1333 = vmatpush2.msra.mxu0 0.0
    %1334 = vmatprep.subr.mxu0 0.0
    %1335 = vmatpush2.msra.mxu0 0.0
    %1336 = vmatprep.subr.mxu0 0.0
    %1337 = vmatpush2.msra.mxu0 0.0
    %1338 = vmatprep.subr.mxu0 0.0
    %1339 = vmatpush2.msra.mxu0 0.0
    %1340 = vmatprep.mubr.f32.mxu0 0.0
    %1341 = vmatmul.mubr.f32.gmra.mxu0 %v1275
    %v1342 = vpop.f32.mrf.mxu0
    %v1343 = vadd.f32 %v431, %v1342
    %v1344 = vpop.f32.mrf.mxu0
    %v1345 = vadd.f32 %v435, %v1344
    %1346 = vdwg.mxu0
    %v1347 = vxor.u32 %v1343, 2147483648
    %v1348 = vxor.u32 %v1345, 2147483648
    %v1349 = vmul.f32 %v1347, 1.442695
    %v1350 = vpow.pop %v1349
    %v1351 = vmul.f32 %v1348, 1.442695
    %v1352 = vpow.pop %v1351
    %v1353 = vadd.f32 %v1350, 1.0
    %v1354 = vadd.f32 %v1352, 1.0
    %v1355 = vrcp.pop %v1353
    %v1356 = vmul.f32 1.0, %v1355
    %v1357 = vrcp.pop %v1354
    %v1358 = vmul.f32 1.0, %v1357
    %v1359 = vtanh.pop %v1345
    %v1360 = vmul.f32 %v1356, %v1166
    %1362 = vrot.lane.b32.xlu0 %v1359, 64
    %v1363 = vpop.permute.xlu0 %1362
    %v1365 = vmul.f32 %v1356, %v1363
    %1367 = vrot.lane.b32.xlu0 %v1365, 64
    %v1368 = vpop.permute.xlu0 %1367
    %v1370 = vadd.f32 %v1360, %v1368
    %v1371 = vtanh.pop %v1370
    %1373 = vrot.lane.b32.xlu0 %v1371, 64
    %v1374 = vpop.permute.xlu0 %1373
    %v1376 = vmul.f32 %v1358, %v1374
    %v1378 = vsel %vm222, %v1376, 0
    %1380 = vmatprep.subr.mxu0 0.0
    %1381 = vmatpush1.msra.mxu0 0.0
    %1382 = vmatprep.subr.mxu0 0.0
    %1383 = vmatpush1.msra.mxu0 0.0
    %1384 = vmatprep.subr.mxu0 0.0
    %1385 = vmatpush1.msra.mxu0 0.0
    %1386 = vmatprep.subr.mxu0 0.0
    %1387 = vmatpush1.msra.mxu0 0.0
    %1388 = vmatprep.subr.mxu0 0.0
    %1389 = vmatpush1.msra.mxu0 0.0
    %1390 = vmatprep.subr.mxu0 0.0
    %1391 = vmatpush1.msra.mxu0 0.0
    %1392 = vmatprep.subr.mxu0 0.0
    %1393 = vmatpush1.msra.mxu0 0.0
    %1394 = vmatprep.subr.mxu0 0.0
    %1395 = vmatpush1.msra.mxu0 0.0
    %1396 = vmatprep.subr.mxu0 0.0
    %1397 = vmatpush1.msra.mxu0 %v425
    %1398 = vmatprep.subr.mxu0 0.0
    %1399 = vmatpush1.msra.mxu0 %v424
    %1400 = vmatprep.subr.mxu0 0.0
    %1401 = vmatpush1.msra.mxu0 %v423
    %1402 = vmatprep.subr.mxu0 0.0
    %1403 = vmatpush1.msra.mxu0 %v422
    %1404 = vmatprep.subr.mxu0 0.0
    %1405 = vmatpush1.msra.mxu0 %v421
    %1406 = vmatprep.subr.mxu0 0.0
    %1407 = vmatpush1.msra.mxu0 %v420
    %1408 = vmatprep.subr.mxu0 0.0
    %1409 = vmatpush1.msra.mxu0 %v419
    %1410 = vmatprep.subr.mxu0 0.0
    %1411 = vmatpush1.msra.mxu0 %v418
    %1412 = vmatprep.subr.mxu0 0.0
    %1413 = vmatpush2.msra.mxu0 0.0
    %1414 = vmatprep.subr.mxu0 0.0
    %1415 = vmatpush2.msra.mxu0 0.0
    %1416 = vmatprep.subr.mxu0 0.0
    %1417 = vmatpush2.msra.mxu0 0.0
    %1418 = vmatprep.subr.mxu0 0.0
    %1419 = vmatpush2.msra.mxu0 0.0
    %1420 = vmatprep.subr.mxu0 0.0
    %1421 = vmatpush2.msra.mxu0 0.0
    %1422 = vmatprep.subr.mxu0 0.0
    %1423 = vmatpush2.msra.mxu0 0.0
    %1424 = vmatprep.subr.mxu0 0.0
    %1425 = vmatpush2.msra.mxu0 0.0
    %1426 = vmatprep.subr.mxu0 0.0
    %1427 = vmatpush2.msra.mxu0 0.0
    %1428 = vmatprep.subr.mxu0 0.0
    %1429 = vmatpush2.msra.mxu0 0.0
    %1430 = vmatprep.subr.mxu0 0.0
    %1431 = vmatpush2.msra.mxu0 0.0
    %1432 = vmatprep.subr.mxu0 0.0
    %1433 = vmatpush2.msra.mxu0 0.0
    %1434 = vmatprep.subr.mxu0 0.0
    %1435 = vmatpush2.msra.mxu0 0.0
    %1436 = vmatprep.subr.mxu0 0.0
    %1437 = vmatpush2.msra.mxu0 0.0
    %1438 = vmatprep.subr.mxu0 0.0
    %1439 = vmatpush2.msra.mxu0 0.0
    %1440 = vmatprep.subr.mxu0 0.0
    %1441 = vmatpush2.msra.mxu0 0.0
    %1442 = vmatprep.subr.mxu0 0.0
    %1443 = vmatpush2.msra.mxu0 0.0
    %1444 = vmatprep.mubr.f32.mxu0 0.0
    %1445 = vmatmul.mubr.f32.gmra.mxu0 %v1378
    %v1446 = vpop.f32.mrf.mxu0
    %v1447 = vadd.f32 %v443, %v1446
    %v1448 = vpop.f32.mrf.mxu0
    %1449 = vdwg.mxu0
    %s1450 = scalar_lea.vmem [#allocation8], 8
    %1451 = vst [vmem:[%s1450] sm:$0x3] %v1447
    %v1452 = vsel %vm631, %v1447, -inf
    %1453 = vmax.xlane.f32.xlu0 %v1452
    %v1454 = vpop.xlane.xlu0 %1453
    %vm1455 = vcmp.eq.f32.partialorder %v1447, %v1454
    %v1456 = vsel %vm1455, %v446, 128
    %v1457 = vsel %vm631, %v1456, 2147483647
    %v1458 = vand.u32 %v1457, 65535
    %v1459 = vshra.s32 %v1457, 16
    %v1460 = vcvt.s32.f32 %v1458
    %v1461 = vcvt.s32.f32 %v1459
    %1462 = vmin.xlane.f32.xlu0 %v1461
    %v1463 = vpop.xlane.xlu0 %1462
    %vm1464 = vcmp.eq.f32.partialorder %v1461, %v1463
    %v1465 = vsel %vm1464, %v1460, inf
    %1466 = vmin.xlane.f32.xlu0 %v1465
    %v1467 = vpop.xlane.xlu0 %1466
    %v1468 = vcvt.f32.s32 %v1467
    %v1469 = vcvt.f32.s32 %v1463
    %v1470 = vshll.u32 %v1469, 16
    %v1471 = vadd.s32 %v1470, %v1468
    %vm1472 = vcmp.eq.s32.totalorder %v446, %v1471
    %v1473 = vsel %vm1472, 1, 0
    %v1474 = vcvt.s32.f32 %v1473
    %1476 = vrot.lane.b32.xlu0 %v1474, 64
    %v1477 = vpop.permute.xlu0 %1476
    %v1479 = vsel %vm222, %v1376, %v1477
    %1480 = vmatprep.subr.mxu0 %v417
    %1481 = vmatpush1.msra.mxu0 %v416
    %1482 = vmatprep.subr.mxu0 %v415
    %1483 = vmatpush1.msra.mxu0 %v414
    %1484 = vmatprep.subr.mxu0 %v413
    %1485 = vmatpush1.msra.mxu0 %v412
    %1486 = vmatprep.subr.mxu0 %v411
    %1487 = vmatpush1.msra.mxu0 %v410
    %1488 = vmatprep.subr.mxu0 %v409
    %1489 = vmatpush1.msra.mxu0 %v408
    %1490 = vmatprep.subr.mxu0 %v407
    %1491 = vmatpush1.msra.mxu0 %v406
    %1492 = vmatprep.subr.mxu0 %v405
    %1493 = vmatpush1.msra.mxu0 %v404
    %1494 = vmatprep.subr.mxu0 %v403
    %1495 = vmatpush1.msra.mxu0 %v402
    %1496 = vmatprep.subr.mxu0 %v401
    %1497 = vmatpush1.msra.mxu0 %v400
    %1498 = vmatprep.subr.mxu0 %v399
    %1499 = vmatpush1.msra.mxu0 %v398
    %1500 = vmatprep.subr.mxu0 %v397
    %1501 = vmatpush1.msra.mxu0 %v396
    %1502 = vmatprep.subr.mxu0 %v395
    %1503 = vmatpush1.msra.mxu0 %v394
    %1504 = vmatprep.subr.mxu0 %v393
    %1505 = vmatpush1.msra.mxu0 %v392
    %1506 = vmatprep.subr.mxu0 %v391
    %1507 = vmatpush1.msra.mxu0 %v390
    %1508 = vmatprep.subr.mxu0 %v389
    %1509 = vmatpush1.msra.mxu0 %v388
    %1510 = vmatprep.subr.mxu0 %v387
    %1511 = vmatpush1.msra.mxu0 %v386
    %1512 = vmatprep.subr.mxu0 0.0
    %1513 = vmatpush2.msra.mxu0 0.0
    %1514 = vmatprep.subr.mxu0 0.0
    %1515 = vmatpush2.msra.mxu0 0.0
    %1516 = vmatprep.subr.mxu0 0.0
    %1517 = vmatpush2.msra.mxu0 0.0
    %1518 = vmatprep.subr.mxu0 0.0
    %1519 = vmatpush2.msra.mxu0 0.0
    %1520 = vmatprep.subr.mxu0 0.0
    %1521 = vmatpush2.msra.mxu0 0.0
    %1522 = vmatprep.subr.mxu0 0.0
    %1523 = vmatpush2.msra.mxu0 0.0
    %1524 = vmatprep.subr.mxu0 0.0
    %1525 = vmatpush2.msra.mxu0 0.0
    %1526 = vmatprep.subr.mxu0 0.0
    %1527 = vmatpush2.msra.mxu0 0.0
    %1528 = vmatprep.subr.mxu0 0.0
    %1529 = vmatpush2.msra.mxu0 0.0
    %1530 = vmatprep.subr.mxu0 0.0
    %1531 = vmatpush2.msra.mxu0 0.0
    %1532 = vmatprep.subr.mxu0 0.0
    %1533 = vmatpush2.msra.mxu0 0.0
    %1534 = vmatprep.subr.mxu0 0.0
    %1535 = vmatpush2.msra.mxu0 0.0
    %1536 = vmatprep.subr.mxu0 0.0
    %1537 = vmatpush2.msra.mxu0 0.0
    %1538 = vmatprep.subr.mxu0 0.0
    %1539 = vmatpush2.msra.mxu0 0.0
    %1540 = vmatprep.subr.mxu0 0.0
    %1541 = vmatpush2.msra.mxu0 0.0
    %1542 = vmatprep.subr.mxu0 0.0
    %1543 = vmatpush2.msra.mxu0 0.0
    %1544 = vmatprep.mubr.f32.mxu0 0.0
    %1545 = vmatmul.mubr.f32.gmra.mxu0 %v1479
    %v1546 = vpop.f32.mrf.mxu0
    %v1547 = vadd.f32 %v431, %v1546
    %v1548 = vpop.f32.mrf.mxu0
    %v1549 = vadd.f32 %v435, %v1548
    %1550 = vdwg.mxu0
    %v1551 = vxor.u32 %v1547, 2147483648
    %v1552 = vxor.u32 %v1549, 2147483648
    %v1553 = vmul.f32 %v1551, 1.442695
    %v1554 = vpow.pop %v1553
    %v1555 = vmul.f32 %v1552, 1.442695
    %v1556 = vpow.pop %v1555
    %v1557 = vadd.f32 %v1554, 1.0
    %v1558 = vadd.f32 %v1556, 1.0
    %v1559 = vrcp.pop %v1557
    %v1560 = vmul.f32 1.0, %v1559
    %v1561 = vrcp.pop %v1558
    %v1562 = vmul.f32 1.0, %v1561
    %v1563 = vtanh.pop %v1549
    %v1564 = vmul.f32 %v1560, %v1370
    %1566 = vrot.lane.b32.xlu0 %v1563, 64
    %v1567 = vpop.permute.xlu0 %1566
    %v1569 = vmul.f32 %v1560, %v1567
    %1571 = vrot.lane.b32.xlu0 %v1569, 64
    %v1572 = vpop.permute.xlu0 %1571
    %v1574 = vadd.f32 %v1564, %v1572
    %v1575 = vtanh.pop %v1574
    %1577 = vrot.lane.b32.xlu0 %v1575, 64
    %v1578 = vpop.permute.xlu0 %1577
    %v1580 = vmul.f32 %v1562, %v1578
    %v1582 = vsel %vm222, %v1580, 0
    %1584 = vmatprep.subr.mxu0 0.0
    %1585 = vmatpush1.msra.mxu0 0.0
    %1586 = vmatprep.subr.mxu0 0.0
    %1587 = vmatpush1.msra.mxu0 0.0
    %1588 = vmatprep.subr.mxu0 0.0
    %1589 = vmatpush1.msra.mxu0 0.0
    %1590 = vmatprep.subr.mxu0 0.0
    %1591 = vmatpush1.msra.mxu0 0.0
    %1592 = vmatprep.subr.mxu0 0.0
    %1593 = vmatpush1.msra.mxu0 0.0
    %1594 = vmatprep.subr.mxu0 0.0
    %1595 = vmatpush1.msra.mxu0 0.0
    %1596 = vmatprep.subr.mxu0 0.0
    %1597 = vmatpush1.msra.mxu0 0.0
    %1598 = vmatprep.subr.mxu0 0.0
    %1599 = vmatpush1.msra.mxu0 0.0
    %1600 = vmatprep.subr.mxu0 0.0
    %1601 = vmatpush1.msra.mxu0 %v425
    %1602 = vmatprep.subr.mxu0 0.0
    %1603 = vmatpush1.msra.mxu0 %v424
    %1604 = vmatprep.subr.mxu0 0.0
    %1605 = vmatpush1.msra.mxu0 %v423
    %1606 = vmatprep.subr.mxu0 0.0
    %1607 = vmatpush1.msra.mxu0 %v422
    %1608 = vmatprep.subr.mxu0 0.0
    %1609 = vmatpush1.msra.mxu0 %v421
    %1610 = vmatprep.subr.mxu0 0.0
    %1611 = vmatpush1.msra.mxu0 %v420
    %1612 = vmatprep.subr.mxu0 0.0
    %1613 = vmatpush1.msra.mxu0 %v419
    %1614 = vmatprep.subr.mxu0 0.0
    %1615 = vmatpush1.msra.mxu0 %v418
    %1616 = vmatprep.subr.mxu0 0.0
    %1617 = vmatpush2.msra.mxu0 0.0
    %1618 = vmatprep.subr.mxu0 0.0
    %1619 = vmatpush2.msra.mxu0 0.0
    %1620 = vmatprep.subr.mxu0 0.0
    %1621 = vmatpush2.msra.mxu0 0.0
    %1622 = vmatprep.subr.mxu0 0.0
    %1623 = vmatpush2.msra.mxu0 0.0
    %1624 = vmatprep.subr.mxu0 0.0
    %1625 = vmatpush2.msra.mxu0 0.0
    %1626 = vmatprep.subr.mxu0 0.0
    %1627 = vmatpush2.msra.mxu0 0.0
    %1628 = vmatprep.subr.mxu0 0.0
    %1629 = vmatpush2.msra.mxu0 0.0
    %1630 = vmatprep.subr.mxu0 0.0
    %1631 = vmatpush2.msra.mxu0 0.0
    %1632 = vmatprep.subr.mxu0 0.0
    %1633 = vmatpush2.msra.mxu0 0.0
    %1634 = vmatprep.subr.mxu0 0.0
    %1635 = vmatpush2.msra.mxu0 0.0
    %1636 = vmatprep.subr.mxu0 0.0
    %1637 = vmatpush2.msra.mxu0 0.0
    %1638 = vmatprep.subr.mxu0 0.0
    %1639 = vmatpush2.msra.mxu0 0.0
    %1640 = vmatprep.subr.mxu0 0.0
    %1641 = vmatpush2.msra.mxu0 0.0
    %1642 = vmatprep.subr.mxu0 0.0
    %1643 = vmatpush2.msra.mxu0 0.0
    %1644 = vmatprep.subr.mxu0 0.0
    %1645 = vmatpush2.msra.mxu0 0.0
    %1646 = vmatprep.subr.mxu0 0.0
    %1647 = vmatpush2.msra.mxu0 0.0
    %1648 = vmatprep.mubr.f32.mxu0 0.0
    %1649 = vmatmul.mubr.f32.gmra.mxu0 %v1582
    %v1650 = vpop.f32.mrf.mxu0
    %v1651 = vadd.f32 %v443, %v1650
    %v1652 = vpop.f32.mrf.mxu0
    %1653 = vdwg.mxu0
    %s1654 = scalar_lea.vmem [#allocation8], 10
    %1655 = vst [vmem:[%s1654] sm:$0x3] %v1651
    %v1656 = vsel %vm631, %v1651, -inf
    %1657 = vmax.xlane.f32.xlu0 %v1656
    %v1658 = vpop.xlane.xlu0 %1657
    %vm1659 = vcmp.eq.f32.partialorder %v1651, %v1658
    %v1660 = vsel %vm1659, %v446, 128
    %v1661 = vsel %vm631, %v1660, 2147483647
    %v1662 = vand.u32 %v1661, 65535
    %v1663 = vshra.s32 %v1661, 16
    %v1664 = vcvt.s32.f32 %v1662
    %v1665 = vcvt.s32.f32 %v1663
    %1666 = vmin.xlane.f32.xlu0 %v1665
    %v1667 = vpop.xlane.xlu0 %1666
    %vm1668 = vcmp.eq.f32.partialorder %v1665, %v1667
    %v1669 = vsel %vm1668, %v1664, inf
    %1670 = vmin.xlane.f32.xlu0 %v1669
    %v1671 = vpop.xlane.xlu0 %1670
    %v1672 = vcvt.f32.s32 %v1671
    %v1673 = vcvt.f32.s32 %v1667
    %v1674 = vshll.u32 %v1673, 16
    %v1675 = vadd.s32 %v1674, %v1672
    %vm1676 = vcmp.eq.s32.totalorder %v446, %v1675
    %v1677 = vsel %vm1676, 1, 0
    %v1678 = vcvt.s32.f32 %v1677
    %1680 = vrot.lane.b32.xlu0 %v1678, 64
    %v1681 = vpop.permute.xlu0 %1680
    %v1683 = vsel %vm222, %v1580, %v1681
    %1684 = vmatprep.subr.mxu0 %v417
    %1685 = vmatpush1.msra.mxu0 %v416
    %1686 = vmatprep.subr.mxu0 %v415
    %1687 = vmatpush1.msra.mxu0 %v414
    %1688 = vmatprep.subr.mxu0 %v413
    %1689 = vmatpush1.msra.mxu0 %v412
    %1690 = vmatprep.subr.mxu0 %v411
    %1691 = vmatpush1.msra.mxu0 %v410
    %1692 = vmatprep.subr.mxu0 %v409
    %1693 = vmatpush1.msra.mxu0 %v408
    %1694 = vmatprep.subr.mxu0 %v407
    %1695 = vmatpush1.msra.mxu0 %v406
    %1696 = vmatprep.subr.mxu0 %v405
    %1697 = vmatpush1.msra.mxu0 %v404
    %1698 = vmatprep.subr.mxu0 %v403
    %1699 = vmatpush1.msra.mxu0 %v402
    %1700 = vmatprep.subr.mxu0 %v401
    %1701 = vmatpush1.msra.mxu0 %v400
    %1702 = vmatprep.subr.mxu0 %v399
    %1703 = vmatpush1.msra.mxu0 %v398
    %1704 = vmatprep.subr.mxu0 %v397
    %1705 = vmatpush1.msra.mxu0 %v396
    %1706 = vmatprep.subr.mxu0 %v395
    %1707 = vmatpush1.msra.mxu0 %v394
    %1708 = vmatprep.subr.mxu0 %v393
    %1709 = vmatpush1.msra.mxu0 %v392
    %1710 = vmatprep.subr.mxu0 %v391
    %1711 = vmatpush1.msra.mxu0 %v390
    %1712 = vmatprep.subr.mxu0 %v389
    %1713 = vmatpush1.msra.mxu0 %v388
    %1714 = vmatprep.subr.mxu0 %v387
    %1715 = vmatpush1.msra.mxu0 %v386
    %1716 = vmatprep.subr.mxu0 0.0
    %1717 = vmatpush2.msra.mxu0 0.0
    %1718 = vmatprep.subr.mxu0 0.0
    %1719 = vmatpush2.msra.mxu0 0.0
    %1720 = vmatprep.subr.mxu0 0.0
    %1721 = vmatpush2.msra.mxu0 0.0
    %1722 = vmatprep.subr.mxu0 0.0
    %1723 = vmatpush2.msra.mxu0 0.0
    %1724 = vmatprep.subr.mxu0 0.0
    %1725 = vmatpush2.msra.mxu0 0.0
    %1726 = vmatprep.subr.mxu0 0.0
    %1727 = vmatpush2.msra.mxu0 0.0
    %1728 = vmatprep.subr.mxu0 0.0
    %1729 = vmatpush2.msra.mxu0 0.0
    %1730 = vmatprep.subr.mxu0 0.0
    %1731 = vmatpush2.msra.mxu0 0.0
    %1732 = vmatprep.subr.mxu0 0.0
    %1733 = vmatpush2.msra.mxu0 0.0
    %1734 = vmatprep.subr.mxu0 0.0
    %1735 = vmatpush2.msra.mxu0 0.0
    %1736 = vmatprep.subr.mxu0 0.0
    %1737 = vmatpush2.msra.mxu0 0.0
    %1738 = vmatprep.subr.mxu0 0.0
    %1739 = vmatpush2.msra.mxu0 0.0
    %1740 = vmatprep.subr.mxu0 0.0
    %1741 = vmatpush2.msra.mxu0 0.0
    %1742 = vmatprep.subr.mxu0 0.0
    %1743 = vmatpush2.msra.mxu0 0.0
    %1744 = vmatprep.subr.mxu0 0.0
    %1745 = vmatpush2.msra.mxu0 0.0
    %1746 = vmatprep.subr.mxu0 0.0
    %1747 = vmatpush2.msra.mxu0 0.0
    %1748 = vmatprep.mubr.f32.mxu0 0.0
    %1749 = vmatmul.mubr.f32.gmra.mxu0 %v1683
    %v1750 = vpop.f32.mrf.mxu0
    %v1751 = vadd.f32 %v431, %v1750
    %v1752 = vpop.f32.mrf.mxu0
    %v1753 = vadd.f32 %v435, %v1752
    %1754 = vdwg.mxu0
    %v1755 = vxor.u32 %v1751, 2147483648
    %v1756 = vxor.u32 %v1753, 2147483648
    %v1757 = vmul.f32 %v1755, 1.442695
    %v1758 = vpow.pop %v1757
    %v1759 = vmul.f32 %v1756, 1.442695
    %v1760 = vpow.pop %v1759
    %v1761 = vadd.f32 %v1758, 1.0
    %v1762 = vadd.f32 %v1760, 1.0
    %v1763 = vrcp.pop %v1761
    %v1764 = vmul.f32 1.0, %v1763
    %v1765 = vrcp.pop %v1762
    %v1766 = vmul.f32 1.0, %v1765
    %v1767 = vtanh.pop %v1753
    %v1768 = vmul.f32 %v1764, %v1574
    %1770 = vrot.lane.b32.xlu0 %v1767, 64
    %v1771 = vpop.permute.xlu0 %1770
    %v1773 = vmul.f32 %v1764, %v1771
    %1775 = vrot.lane.b32.xlu0 %v1773, 64
    %v1776 = vpop.permute.xlu0 %1775
    %v1778 = vadd.f32 %v1768, %v1776
    %v1779 = vtanh.pop %v1778
    %1781 = vrot.lane.b32.xlu0 %v1779, 64
    %v1782 = vpop.permute.xlu0 %1781
    %v1784 = vmul.f32 %v1766, %v1782
    %v1786 = vsel %vm222, %v1784, 0
    %1788 = vmatprep.subr.mxu0 0.0
    %1789 = vmatpush1.msra.mxu0 0.0
    %1790 = vmatprep.subr.mxu0 0.0
    %1791 = vmatpush1.msra.mxu0 0.0
    %1792 = vmatprep.subr.mxu0 0.0
    %1793 = vmatpush1.msra.mxu0 0.0
    %1794 = vmatprep.subr.mxu0 0.0
    %1795 = vmatpush1.msra.mxu0 0.0
    %1796 = vmatprep.subr.mxu0 0.0
    %1797 = vmatpush1.msra.mxu0 0.0
    %1798 = vmatprep.subr.mxu0 0.0
    %1799 = vmatpush1.msra.mxu0 0.0
    %1800 = vmatprep.subr.mxu0 0.0
    %1801 = vmatpush1.msra.mxu0 0.0
    %1802 = vmatprep.subr.mxu0 0.0
    %1803 = vmatpush1.msra.mxu0 0.0
    %1804 = vmatprep.subr.mxu0 0.0
    %1805 = vmatpush1.msra.mxu0 %v425
    %1806 = vmatprep.subr.mxu0 0.0
    %1807 = vmatpush1.msra.mxu0 %v424
    %1808 = vmatprep.subr.mxu0 0.0
    %1809 = vmatpush1.msra.mxu0 %v423
    %1810 = vmatprep.subr.mxu0 0.0
    %1811 = vmatpush1.msra.mxu0 %v422
    %1812 = vmatprep.subr.mxu0 0.0
    %1813 = vmatpush1.msra.mxu0 %v421
    %1814 = vmatprep.subr.mxu0 0.0
    %1815 = vmatpush1.msra.mxu0 %v420
    %1816 = vmatprep.subr.mxu0 0.0
    %1817 = vmatpush1.msra.mxu0 %v419
    %1818 = vmatprep.subr.mxu0 0.0
    %1819 = vmatpush1.msra.mxu0 %v418
    %1820 = vmatprep.subr.mxu0 0.0
    %1821 = vmatpush2.msra.mxu0 0.0
    %1822 = vmatprep.subr.mxu0 0.0
    %1823 = vmatpush2.msra.mxu0 0.0
    %1824 = vmatprep.subr.mxu0 0.0
    %1825 = vmatpush2.msra.mxu0 0.0
    %1826 = vmatprep.subr.mxu0 0.0
    %1827 = vmatpush2.msra.mxu0 0.0
    %1828 = vmatprep.subr.mxu0 0.0
    %1829 = vmatpush2.msra.mxu0 0.0
    %1830 = vmatprep.subr.mxu0 0.0
    %1831 = vmatpush2.msra.mxu0 0.0
    %1832 = vmatprep.subr.mxu0 0.0
    %1833 = vmatpush2.msra.mxu0 0.0
    %1834 = vmatprep.subr.mxu0 0.0
    %1835 = vmatpush2.msra.mxu0 0.0
    %1836 = vmatprep.subr.mxu0 0.0
    %1837 = vmatpush2.msra.mxu0 0.0
    %1838 = vmatprep.subr.mxu0 0.0
    %1839 = vmatpush2.msra.mxu0 0.0
    %1840 = vmatprep.subr.mxu0 0.0
    %1841 = vmatpush2.msra.mxu0 0.0
    %1842 = vmatprep.subr.mxu0 0.0
    %1843 = vmatpush2.msra.mxu0 0.0
    %1844 = vmatprep.subr.mxu0 0.0
    %1845 = vmatpush2.msra.mxu0 0.0
    %1846 = vmatprep.subr.mxu0 0.0
    %1847 = vmatpush2.msra.mxu0 0.0
    %1848 = vmatprep.subr.mxu0 0.0
    %1849 = vmatpush2.msra.mxu0 0.0
    %1850 = vmatprep.subr.mxu0 0.0
    %1851 = vmatpush2.msra.mxu0 0.0
    %1852 = vmatprep.mubr.f32.mxu0 0.0
    %1853 = vmatmul.mubr.f32.gmra.mxu0 %v1786
    %v1854 = vpop.f32.mrf.mxu0
    %v1855 = vadd.f32 %v443, %v1854
    %v1856 = vpop.f32.mrf.mxu0
    %1857 = vdwg.mxu0
    %s1858 = scalar_lea.vmem [#allocation8], 12
    %1859 = vst [vmem:[%s1858] sm:$0x3] %v1855
    %v1860 = vsel %vm631, %v1855, -inf
    %1861 = vmax.xlane.f32.xlu0 %v1860
    %v1862 = vpop.xlane.xlu0 %1861
    %vm1863 = vcmp.eq.f32.partialorder %v1855, %v1862
    %v1864 = vsel %vm1863, %v446, 128
    %v1865 = vsel %vm631, %v1864, 2147483647
    %v1866 = vand.u32 %v1865, 65535
    %v1867 = vshra.s32 %v1865, 16
    %v1868 = vcvt.s32.f32 %v1866
    %v1869 = vcvt.s32.f32 %v1867
    %1870 = vmin.xlane.f32.xlu0 %v1869
    %v1871 = vpop.xlane.xlu0 %1870
    %vm1872 = vcmp.eq.f32.partialorder %v1869, %v1871
    %v1873 = vsel %vm1872, %v1868, inf
    %1874 = vmin.xlane.f32.xlu0 %v1873
    %v1875 = vpop.xlane.xlu0 %1874
    %v1876 = vcvt.f32.s32 %v1875
    %v1877 = vcvt.f32.s32 %v1871
    %v1878 = vshll.u32 %v1877, 16
    %v1879 = vadd.s32 %v1878, %v1876
    %vm1880 = vcmp.eq.s32.totalorder %v446, %v1879
    %v1881 = vsel %vm1880, 1, 0
    %v1882 = vcvt.s32.f32 %v1881
    %1884 = vrot.lane.b32.xlu0 %v1882, 64
    %v1885 = vpop.permute.xlu0 %1884
    %v1887 = vsel %vm222, %v1784, %v1885
    %1888 = vmatprep.subr.mxu0 %v417
    %1889 = vmatpush1.msra.mxu0 %v416
    %1890 = vmatprep.subr.mxu0 %v415
    %1891 = vmatpush1.msra.mxu0 %v414
    %1892 = vmatprep.subr.mxu0 %v413
    %1893 = vmatpush1.msra.mxu0 %v412
    %1894 = vmatprep.subr.mxu0 %v411
    %1895 = vmatpush1.msra.mxu0 %v410
    %1896 = vmatprep.subr.mxu0 %v409
    %1897 = vmatpush1.msra.mxu0 %v408
    %1898 = vmatprep.subr.mxu0 %v407
    %1899 = vmatpush1.msra.mxu0 %v406
    %1900 = vmatprep.subr.mxu0 %v405
    %1901 = vmatpush1.msra.mxu0 %v404
    %1902 = vmatprep.subr.mxu0 %v403
    %1903 = vmatpush1.msra.mxu0 %v402
    %1904 = vmatprep.subr.mxu0 %v401
    %1905 = vmatpush1.msra.mxu0 %v400
    %1906 = vmatprep.subr.mxu0 %v399
    %1907 = vmatpush1.msra.mxu0 %v398
    %1908 = vmatprep.subr.mxu0 %v397
    %1909 = vmatpush1.msra.mxu0 %v396
    %1910 = vmatprep.subr.mxu0 %v395
    %1911 = vmatpush1.msra.mxu0 %v394
    %1912 = vmatprep.subr.mxu0 %v393
    %1913 = vmatpush1.msra.mxu0 %v392
    %1914 = vmatprep.subr.mxu0 %v391
    %1915 = vmatpush1.msra.mxu0 %v390
    %1916 = vmatprep.subr.mxu0 %v389
    %1917 = vmatpush1.msra.mxu0 %v388
    %1918 = vmatprep.subr.mxu0 %v387
    %1919 = vmatpush1.msra.mxu0 %v386
    %1920 = vmatprep.subr.mxu0 0.0
    %1921 = vmatpush2.msra.mxu0 0.0
    %1922 = vmatprep.subr.mxu0 0.0
    %1923 = vmatpush2.msra.mxu0 0.0
    %1924 = vmatprep.subr.mxu0 0.0
    %1925 = vmatpush2.msra.mxu0 0.0
    %1926 = vmatprep.subr.mxu0 0.0
    %1927 = vmatpush2.msra.mxu0 0.0
    %1928 = vmatprep.subr.mxu0 0.0
    %1929 = vmatpush2.msra.mxu0 0.0
    %1930 = vmatprep.subr.mxu0 0.0
    %1931 = vmatpush2.msra.mxu0 0.0
    %1932 = vmatprep.subr.mxu0 0.0
    %1933 = vmatpush2.msra.mxu0 0.0
    %1934 = vmatprep.subr.mxu0 0.0
    %1935 = vmatpush2.msra.mxu0 0.0
    %1936 = vmatprep.subr.mxu0 0.0
    %1937 = vmatpush2.msra.mxu0 0.0
    %1938 = vmatprep.subr.mxu0 0.0
    %1939 = vmatpush2.msra.mxu0 0.0
    %1940 = vmatprep.subr.mxu0 0.0
    %1941 = vmatpush2.msra.mxu0 0.0
    %1942 = vmatprep.subr.mxu0 0.0
    %1943 = vmatpush2.msra.mxu0 0.0
    %1944 = vmatprep.subr.mxu0 0.0
    %1945 = vmatpush2.msra.mxu0 0.0
    %1946 = vmatprep.subr.mxu0 0.0
    %1947 = vmatpush2.msra.mxu0 0.0
    %1948 = vmatprep.subr.mxu0 0.0
    %1949 = vmatpush2.msra.mxu0 0.0
    %1950 = vmatprep.subr.mxu0 0.0
    %1951 = vmatpush2.msra.mxu0 0.0
    %1952 = vmatprep.mubr.f32.mxu0 0.0
    %1953 = vmatmul.mubr.f32.gmra.mxu0 %v1887
    %v1954 = vpop.f32.mrf.mxu0
    %v1955 = vadd.f32 %v431, %v1954
    %v1956 = vpop.f32.mrf.mxu0
    %v1957 = vadd.f32 %v435, %v1956
    %1958 = vdwg.mxu0
    %v1959 = vxor.u32 %v1955, 2147483648
    %v1960 = vxor.u32 %v1957, 2147483648
    %v1961 = vmul.f32 %v1959, 1.442695
    %v1962 = vpow.pop %v1961
    %v1963 = vmul.f32 %v1960, 1.442695
    %v1964 = vpow.pop %v1963
    %v1965 = vadd.f32 %v1962, 1.0
    %v1966 = vadd.f32 %v1964, 1.0
    %v1967 = vrcp.pop %v1965
    %v1968 = vmul.f32 1.0, %v1967
    %v1969 = vrcp.pop %v1966
    %v1970 = vmul.f32 1.0, %v1969
    %v1971 = vtanh.pop %v1957
    %v1972 = vmul.f32 %v1968, %v1778
    %1974 = vrot.lane.b32.xlu0 %v1971, 64
    %v1975 = vpop.permute.xlu0 %1974
    %v1977 = vmul.f32 %v1968, %v1975
    %1979 = vrot.lane.b32.xlu0 %v1977, 64
    %v1980 = vpop.permute.xlu0 %1979
    %v1982 = vadd.f32 %v1972, %v1980
    %v1983 = vtanh.pop %v1982
    %1985 = vrot.lane.b32.xlu0 %v1983, 64
    %v1986 = vpop.permute.xlu0 %1985
    %v1988 = vmul.f32 %v1970, %v1986
    %v1990 = vsel %vm222, %v1988, 0
    %1992 = vmatprep.subr.mxu0 0.0
    %1993 = vmatpush1.msra.mxu0 0.0
    %1994 = vmatprep.subr.mxu0 0.0
    %1995 = vmatpush1.msra.mxu0 0.0
    %1996 = vmatprep.subr.mxu0 0.0
    %1997 = vmatpush1.msra.mxu0 0.0
    %1998 = vmatprep.subr.mxu0 0.0
    %1999 = vmatpush1.msra.mxu0 0.0
    %2000 = vmatprep.subr.mxu0 0.0
    %2001 = vmatpush1.msra.mxu0 0.0
    %2002 = vmatprep.subr.mxu0 0.0
    %2003 = vmatpush1.msra.mxu0 0.0
    %2004 = vmatprep.subr.mxu0 0.0
    %2005 = vmatpush1.msra.mxu0 0.0
    %2006 = vmatprep.subr.mxu0 0.0
    %2007 = vmatpush1.msra.mxu0 0.0
    %2008 = vmatprep.subr.mxu0 0.0
    %2009 = vmatpush1.msra.mxu0 %v425
    %2010 = vmatprep.subr.mxu0 0.0
    %2011 = vmatpush1.msra.mxu0 %v424
    %2012 = vmatprep.subr.mxu0 0.0
    %2013 = vmatpush1.msra.mxu0 %v423
    %2014 = vmatprep.subr.mxu0 0.0
    %2015 = vmatpush1.msra.mxu0 %v422
    %2016 = vmatprep.subr.mxu0 0.0
    %2017 = vmatpush1.msra.mxu0 %v421
    %2018 = vmatprep.subr.mxu0 0.0
    %2019 = vmatpush1.msra.mxu0 %v420
    %2020 = vmatprep.subr.mxu0 0.0
    %2021 = vmatpush1.msra.mxu0 %v419
    %2022 = vmatprep.subr.mxu0 0.0
    %2023 = vmatpush1.msra.mxu0 %v418
    %2024 = vmatprep.subr.mxu0 0.0
    %2025 = vmatpush2.msra.mxu0 0.0
    %2026 = vmatprep.subr.mxu0 0.0
    %2027 = vmatpush2.msra.mxu0 0.0
    %2028 = vmatprep.subr.mxu0 0.0
    %2029 = vmatpush2.msra.mxu0 0.0
    %2030 = vmatprep.subr.mxu0 0.0
    %2031 = vmatpush2.msra.mxu0 0.0
    %2032 = vmatprep.subr.mxu0 0.0
    %2033 = vmatpush2.msra.mxu0 0.0
    %2034 = vmatprep.subr.mxu0 0.0
    %2035 = vmatpush2.msra.mxu0 0.0
    %2036 = vmatprep.subr.mxu0 0.0
    %2037 = vmatpush2.msra.mxu0 0.0
    %2038 = vmatprep.subr.mxu0 0.0
    %2039 = vmatpush2.msra.mxu0 0.0
    %2040 = vmatprep.subr.mxu0 0.0
    %2041 = vmatpush2.msra.mxu0 0.0
    %2042 = vmatprep.subr.mxu0 0.0
    %2043 = vmatpush2.msra.mxu0 0.0
    %2044 = vmatprep.subr.mxu0 0.0
    %2045 = vmatpush2.msra.mxu0 0.0
    %2046 = vmatprep.subr.mxu0 0.0
    %2047 = vmatpush2.msra.mxu0 0.0
    %2048 = vmatprep.subr.mxu0 0.0
    %2049 = vmatpush2.msra.mxu0 0.0
    %2050 = vmatprep.subr.mxu0 0.0
    %2051 = vmatpush2.msra.mxu0 0.0
    %2052 = vmatprep.subr.mxu0 0.0
    %2053 = vmatpush2.msra.mxu0 0.0
    %2054 = vmatprep.subr.mxu0 0.0
    %2055 = vmatpush2.msra.mxu0 0.0
    %2056 = vmatprep.mubr.f32.mxu0 0.0
    %2057 = vmatmul.mubr.f32.gmra.mxu0 %v1990
    %v2058 = vpop.f32.mrf.mxu0
    %v2059 = vadd.f32 %v443, %v2058
    %v2060 = vpop.f32.mrf.mxu0
    %2061 = vdwg.mxu0
    %s2062 = scalar_lea.vmem [#allocation8], 14
    %2063 = vst [vmem:[%s2062] sm:$0x3] %v2059
    %v2064 = vsel %vm631, %v2059, -inf
    %2065 = vmax.xlane.f32.xlu0 %v2064
    %v2066 = vpop.xlane.xlu0 %2065
    %vm2067 = vcmp.eq.f32.partialorder %v2059, %v2066
    %v2068 = vsel %vm2067, %v446, 128
    %v2069 = vsel %vm631, %v2068, 2147483647
    %v2070 = vand.u32 %v2069, 65535
    %v2071 = vshra.s32 %v2069, 16
    %v2072 = vcvt.s32.f32 %v2070
    %v2073 = vcvt.s32.f32 %v2071
    %2074 = vmin.xlane.f32.xlu0 %v2073
    %v2075 = vpop.xlane.xlu0 %2074
    %vm2076 = vcmp.eq.f32.partialorder %v2073, %v2075
    %v2077 = vsel %vm2076, %v2072, inf
    %2078 = vmin.xlane.f32.xlu0 %v2077
    %v2079 = vpop.xlane.xlu0 %2078
    %v2080 = vcvt.f32.s32 %v2079
    %v2081 = vcvt.f32.s32 %v2075
    %v2082 = vshll.u32 %v2081, 16
    %v2083 = vadd.s32 %v2082, %v2080
    %vm2084 = vcmp.eq.s32.totalorder %v446, %v2083
    %v2085 = vsel %vm2084, 1, 0
    %v2086 = vcvt.s32.f32 %v2085
    %2088 = vrot.lane.b32.xlu0 %v2086, 64
    %v2089 = vpop.permute.xlu0 %2088
    %v2091 = vsel %vm222, %v1988, %v2089
    %2092 = vmatprep.subr.mxu0 %v417
    %2093 = vmatpush1.msra.mxu0 %v416
    %2094 = vmatprep.subr.mxu0 %v415
    %2095 = vmatpush1.msra.mxu0 %v414
    %2096 = vmatprep.subr.mxu0 %v413
    %2097 = vmatpush1.msra.mxu0 %v412
    %2098 = vmatprep.subr.mxu0 %v411
    %2099 = vmatpush1.msra.mxu0 %v410
    %2100 = vmatprep.subr.mxu0 %v409
    %2101 = vmatpush1.msra.mxu0 %v408
    %2102 = vmatprep.subr.mxu0 %v407
    %2103 = vmatpush1.msra.mxu0 %v406
    %2104 = vmatprep.subr.mxu0 %v405
    %2105 = vmatpush1.msra.mxu0 %v404
    %2106 = vmatprep.subr.mxu0 %v403
    %2107 = vmatpush1.msra.mxu0 %v402
    %2108 = vmatprep.subr.mxu0 %v401
    %2109 = vmatpush1.msra.mxu0 %v400
    %2110 = vmatprep.subr.mxu0 %v399
    %2111 = vmatpush1.msra.mxu0 %v398
    %2112 = vmatprep.subr.mxu0 %v397
    %2113 = vmatpush1.msra.mxu0 %v396
    %2114 = vmatprep.subr.mxu0 %v395
    %2115 = vmatpush1.msra.mxu0 %v394
    %2116 = vmatprep.subr.mxu0 %v393
    %2117 = vmatpush1.msra.mxu0 %v392
    %2118 = vmatprep.subr.mxu0 %v391
    %2119 = vmatpush1.msra.mxu0 %v390
    %2120 = vmatprep.subr.mxu0 %v389
    %2121 = vmatpush1.msra.mxu0 %v388
    %2122 = vmatprep.subr.mxu0 %v387
    %2123 = vmatpush1.msra.mxu0 %v386
    %2124 = vmatprep.subr.mxu0 0.0
    %2125 = vmatpush2.msra.mxu0 0.0
    %2126 = vmatprep.subr.mxu0 0.0
    %2127 = vmatpush2.msra.mxu0 0.0
    %2128 = vmatprep.subr.mxu0 0.0
    %2129 = vmatpush2.msra.mxu0 0.0
    %2130 = vmatprep.subr.mxu0 0.0
    %2131 = vmatpush2.msra.mxu0 0.0
    %2132 = vmatprep.subr.mxu0 0.0
    %2133 = vmatpush2.msra.mxu0 0.0
    %2134 = vmatprep.subr.mxu0 0.0
    %2135 = vmatpush2.msra.mxu0 0.0
    %2136 = vmatprep.subr.mxu0 0.0
    %2137 = vmatpush2.msra.mxu0 0.0
    %2138 = vmatprep.subr.mxu0 0.0
    %2139 = vmatpush2.msra.mxu0 0.0
    %2140 = vmatprep.subr.mxu0 0.0
    %2141 = vmatpush2.msra.mxu0 0.0
    %2142 = vmatprep.subr.mxu0 0.0
    %2143 = vmatpush2.msra.mxu0 0.0
    %2144 = vmatprep.subr.mxu0 0.0
    %2145 = vmatpush2.msra.mxu0 0.0
    %2146 = vmatprep.subr.mxu0 0.0
    %2147 = vmatpush2.msra.mxu0 0.0
    %2148 = vmatprep.subr.mxu0 0.0
    %2149 = vmatpush2.msra.mxu0 0.0
    %2150 = vmatprep.subr.mxu0 0.0
    %2151 = vmatpush2.msra.mxu0 0.0
    %2152 = vmatprep.subr.mxu0 0.0
    %2153 = vmatpush2.msra.mxu0 0.0
    %2154 = vmatprep.subr.mxu0 0.0
    %2155 = vmatpush2.msra.mxu0 0.0
    %2156 = vmatprep.mubr.f32.mxu0 0.0
    %2157 = vmatmul.mubr.f32.gmra.mxu0 %v2091
    %v2158 = vpop.f32.mrf.mxu0
    %v2159 = vadd.f32 %v431, %v2158
    %v2160 = vpop.f32.mrf.mxu0
    %v2161 = vadd.f32 %v435, %v2160
    %2162 = vdwg.mxu0
    %v2163 = vxor.u32 %v2159, 2147483648
    %v2164 = vxor.u32 %v2161, 2147483648
    %v2165 = vmul.f32 %v2163, 1.442695
    %v2166 = vpow.pop %v2165
    %v2167 = vmul.f32 %v2164, 1.442695
    %v2168 = vpow.pop %v2167
    %v2169 = vadd.f32 %v2166, 1.0
    %v2170 = vadd.f32 %v2168, 1.0
    %v2171 = vrcp.pop %v2169
    %v2172 = vmul.f32 1.0, %v2171
    %v2173 = vrcp.pop %v2170
    %v2174 = vmul.f32 1.0, %v2173
    %v2175 = vtanh.pop %v2161
    %v2176 = vmul.f32 %v2172, %v1982
    %2178 = vrot.lane.b32.xlu0 %v2175, 64
    %v2179 = vpop.permute.xlu0 %2178
    %v2181 = vmul.f32 %v2172, %v2179
    %2183 = vrot.lane.b32.xlu0 %v2181, 64
    %v2184 = vpop.permute.xlu0 %2183
    %v2186 = vadd.f32 %v2176, %v2184
    %v2187 = vtanh.pop %v2186
    %2189 = vrot.lane.b32.xlu0 %v2187, 64
    %v2190 = vpop.permute.xlu0 %2189
    %v2192 = vmul.f32 %v2174, %v2190
    %v2194 = vsel %vm222, %v2192, 0
    %2196 = vmatprep.subr.mxu0 0.0
    %2197 = vmatpush1.msra.mxu0 0.0
    %2198 = vmatprep.subr.mxu0 0.0
    %2199 = vmatpush1.msra.mxu0 0.0
    %2200 = vmatprep.subr.mxu0 0.0
    %2201 = vmatpush1.msra.mxu0 0.0
    %2202 = vmatprep.subr.mxu0 0.0
    %2203 = vmatpush1.msra.mxu0 0.0
    %2204 = vmatprep.subr.mxu0 0.0
    %2205 = vmatpush1.msra.mxu0 0.0
    %2206 = vmatprep.subr.mxu0 0.0
    %2207 = vmatpush1.msra.mxu0 0.0
    %2208 = vmatprep.subr.mxu0 0.0
    %2209 = vmatpush1.msra.mxu0 0.0
    %2210 = vmatprep.subr.mxu0 0.0
    %2211 = vmatpush1.msra.mxu0 0.0
    %2212 = vmatprep.subr.mxu0 0.0
    %2213 = vmatpush1.msra.mxu0 %v425
    %2214 = vmatprep.subr.mxu0 0.0
    %2215 = vmatpush1.msra.mxu0 %v424
    %2216 = vmatprep.subr.mxu0 0.0
    %2217 = vmatpush1.msra.mxu0 %v423
    %2218 = vmatprep.subr.mxu0 0.0
    %2219 = vmatpush1.msra.mxu0 %v422
    %2220 = vmatprep.subr.mxu0 0.0
    %2221 = vmatpush1.msra.mxu0 %v421
    %2222 = vmatprep.subr.mxu0 0.0
    %2223 = vmatpush1.msra.mxu0 %v420
    %2224 = vmatprep.subr.mxu0 0.0
    %2225 = vmatpush1.msra.mxu0 %v419
    %2226 = vmatprep.subr.mxu0 0.0
    %2227 = vmatpush1.msra.mxu0 %v418
    %2228 = vmatprep.subr.mxu0 0.0
    %2229 = vmatpush2.msra.mxu0 0.0
    %2230 = vmatprep.subr.mxu0 0.0
    %2231 = vmatpush2.msra.mxu0 0.0
    %2232 = vmatprep.subr.mxu0 0.0
    %2233 = vmatpush2.msra.mxu0 0.0
    %2234 = vmatprep.subr.mxu0 0.0
    %2235 = vmatpush2.msra.mxu0 0.0
    %2236 = vmatprep.subr.mxu0 0.0
    %2237 = vmatpush2.msra.mxu0 0.0
    %2238 = vmatprep.subr.mxu0 0.0
    %2239 = vmatpush2.msra.mxu0 0.0
    %2240 = vmatprep.subr.mxu0 0.0
    %2241 = vmatpush2.msra.mxu0 0.0
    %2242 = vmatprep.subr.mxu0 0.0
    %2243 = vmatpush2.msra.mxu0 0.0
    %2244 = vmatprep.subr.mxu0 0.0
    %2245 = vmatpush2.msra.mxu0 0.0
    %2246 = vmatprep.subr.mxu0 0.0
    %2247 = vmatpush2.msra.mxu0 0.0
    %2248 = vmatprep.subr.mxu0 0.0
    %2249 = vmatpush2.msra.mxu0 0.0
    %2250 = vmatprep.subr.mxu0 0.0
    %2251 = vmatpush2.msra.mxu0 0.0
    %2252 = vmatprep.subr.mxu0 0.0
    %2253 = vmatpush2.msra.mxu0 0.0
    %2254 = vmatprep.subr.mxu0 0.0
    %2255 = vmatpush2.msra.mxu0 0.0
    %2256 = vmatprep.subr.mxu0 0.0
    %2257 = vmatpush2.msra.mxu0 0.0
    %2258 = vmatprep.subr.mxu0 0.0
    %2259 = vmatpush2.msra.mxu0 0.0
    %2260 = vmatprep.mubr.f32.mxu0 0.0
    %2261 = vmatmul.mubr.f32.gmra.mxu0 %v2194
    %v2262 = vpop.f32.mrf.mxu0
    %v2263 = vadd.f32 %v443, %v2262
    %v2264 = vpop.f32.mrf.mxu0
    %2265 = vdwg.mxu0
    %s2266 = scalar_lea.vmem [#allocation8], 16
    %2267 = vst [vmem:[%s2266] sm:$0x3] %v2263
    %v2268 = vsel %vm631, %v2263, -inf
    %2269 = vmax.xlane.f32.xlu0 %v2268
    %v2270 = vpop.xlane.xlu0 %2269
    %vm2271 = vcmp.eq.f32.partialorder %v2263, %v2270
    %v2272 = vsel %vm2271, %v446, 128
    %v2273 = vsel %vm631, %v2272, 2147483647
    %v2274 = vand.u32 %v2273, 65535
    %v2275 = vshra.s32 %v2273, 16
    %v2276 = vcvt.s32.f32 %v2274
    %v2277 = vcvt.s32.f32 %v2275
    %2278 = vmin.xlane.f32.xlu0 %v2277
    %v2279 = vpop.xlane.xlu0 %2278
    %vm2280 = vcmp.eq.f32.partialorder %v2277, %v2279
    %v2281 = vsel %vm2280, %v2276, inf
    %2282 = vmin.xlane.f32.xlu0 %v2281
    %v2283 = vpop.xlane.xlu0 %2282
    %v2284 = vcvt.f32.s32 %v2283
    %v2285 = vcvt.f32.s32 %v2279
    %v2286 = vshll.u32 %v2285, 16
    %v2287 = vadd.s32 %v2286, %v2284
    %vm2288 = vcmp.eq.s32.totalorder %v446, %v2287
    %v2289 = vsel %vm2288, 1, 0
    %v2290 = vcvt.s32.f32 %v2289
    %2292 = vrot.lane.b32.xlu0 %v2290, 64
    %v2293 = vpop.permute.xlu0 %2292
    %v2295 = vsel %vm222, %v2192, %v2293
    %2296 = vmatprep.subr.mxu0 %v417
    %2297 = vmatpush1.msra.mxu0 %v416
    %2298 = vmatprep.subr.mxu0 %v415
    %2299 = vmatpush1.msra.mxu0 %v414
    %2300 = vmatprep.subr.mxu0 %v413
    %2301 = vmatpush1.msra.mxu0 %v412
    %2302 = vmatprep.subr.mxu0 %v411
    %2303 = vmatpush1.msra.mxu0 %v410
    %2304 = vmatprep.subr.mxu0 %v409
    %2305 = vmatpush1.msra.mxu0 %v408
    %2306 = vmatprep.subr.mxu0 %v407
    %2307 = vmatpush1.msra.mxu0 %v406
    %2308 = vmatprep.subr.mxu0 %v405
    %2309 = vmatpush1.msra.mxu0 %v404
    %2310 = vmatprep.subr.mxu0 %v403
    %2311 = vmatpush1.msra.mxu0 %v402
    %2312 = vmatprep.subr.mxu0 %v401
    %2313 = vmatpush1.msra.mxu0 %v400
    %2314 = vmatprep.subr.mxu0 %v399
    %2315 = vmatpush1.msra.mxu0 %v398
    %2316 = vmatprep.subr.mxu0 %v397
    %2317 = vmatpush1.msra.mxu0 %v396
    %2318 = vmatprep.subr.mxu0 %v395
    %2319 = vmatpush1.msra.mxu0 %v394
    %2320 = vmatprep.subr.mxu0 %v393
    %2321 = vmatpush1.msra.mxu0 %v392
    %2322 = vmatprep.subr.mxu0 %v391
    %2323 = vmatpush1.msra.mxu0 %v390
    %2324 = vmatprep.subr.mxu0 %v389
    %2325 = vmatpush1.msra.mxu0 %v388
    %2326 = vmatprep.subr.mxu0 %v387
    %2327 = vmatpush1.msra.mxu0 %v386
    %2328 = vmatprep.subr.mxu0 0.0
    %2329 = vmatpush2.msra.mxu0 0.0
    %2330 = vmatprep.subr.mxu0 0.0
    %2331 = vmatpush2.msra.mxu0 0.0
    %2332 = vmatprep.subr.mxu0 0.0
    %2333 = vmatpush2.msra.mxu0 0.0
    %2334 = vmatprep.subr.mxu0 0.0
    %2335 = vmatpush2.msra.mxu0 0.0
    %2336 = vmatprep.subr.mxu0 0.0
    %2337 = vmatpush2.msra.mxu0 0.0
    %2338 = vmatprep.subr.mxu0 0.0
    %2339 = vmatpush2.msra.mxu0 0.0
    %2340 = vmatprep.subr.mxu0 0.0
    %2341 = vmatpush2.msra.mxu0 0.0
    %2342 = vmatprep.subr.mxu0 0.0
    %2343 = vmatpush2.msra.mxu0 0.0
    %2344 = vmatprep.subr.mxu0 0.0
    %2345 = vmatpush2.msra.mxu0 0.0
    %2346 = vmatprep.subr.mxu0 0.0
    %2347 = vmatpush2.msra.mxu0 0.0
    %2348 = vmatprep.subr.mxu0 0.0
    %2349 = vmatpush2.msra.mxu0 0.0
    %2350 = vmatprep.subr.mxu0 0.0
    %2351 = vmatpush2.msra.mxu0 0.0
    %2352 = vmatprep.subr.mxu0 0.0
    %2353 = vmatpush2.msra.mxu0 0.0
    %2354 = vmatprep.subr.mxu0 0.0
    %2355 = vmatpush2.msra.mxu0 0.0
    %2356 = vmatprep.subr.mxu0 0.0
    %2357 = vmatpush2.msra.mxu0 0.0
    %2358 = vmatprep.subr.mxu0 0.0
    %2359 = vmatpush2.msra.mxu0 0.0
    %2360 = vmatprep.mubr.f32.mxu0 0.0
    %2361 = vmatmul.mubr.f32.gmra.mxu0 %v2295
    %v2362 = vpop.f32.mrf.mxu0
    %v2363 = vadd.f32 %v431, %v2362
    %v2364 = vpop.f32.mrf.mxu0
    %v2365 = vadd.f32 %v435, %v2364
    %2366 = vdwg.mxu0
    %v2367 = vxor.u32 %v2363, 2147483648
    %v2368 = vxor.u32 %v2365, 2147483648
    %v2369 = vmul.f32 %v2367, 1.442695
    %v2370 = vpow.pop %v2369
    %v2371 = vmul.f32 %v2368, 1.442695
    %v2372 = vpow.pop %v2371
    %v2373 = vadd.f32 %v2370, 1.0
    %v2374 = vadd.f32 %v2372, 1.0
    %v2375 = vrcp.pop %v2373
    %v2376 = vmul.f32 1.0, %v2375
    %v2377 = vrcp.pop %v2374
    %v2378 = vmul.f32 1.0, %v2377
    %v2379 = vtanh.pop %v2365
    %v2380 = vmul.f32 %v2376, %v2186
    %2382 = vrot.lane.b32.xlu0 %v2379, 64
    %v2383 = vpop.permute.xlu0 %2382
    %v2385 = vmul.f32 %v2376, %v2383
    %2387 = vrot.lane.b32.xlu0 %v2385, 64
    %v2388 = vpop.permute.xlu0 %2387
    %v2390 = vadd.f32 %v2380, %v2388
    %v2391 = vtanh.pop %v2390
    %2393 = vrot.lane.b32.xlu0 %v2391, 64
    %v2394 = vpop.permute.xlu0 %2393
    %v2396 = vmul.f32 %v2378, %v2394
    %v2398 = vsel %vm222, %v2396, 0
    %2400 = vmatprep.subr.mxu0 0.0
    %2401 = vmatpush1.msra.mxu0 0.0
    %2402 = vmatprep.subr.mxu0 0.0
    %2403 = vmatpush1.msra.mxu0 0.0
    %2404 = vmatprep.subr.mxu0 0.0
    %2405 = vmatpush1.msra.mxu0 0.0
    %2406 = vmatprep.subr.mxu0 0.0
    %2407 = vmatpush1.msra.mxu0 0.0
    %2408 = vmatprep.subr.mxu0 0.0
    %2409 = vmatpush1.msra.mxu0 0.0
    %2410 = vmatprep.subr.mxu0 0.0
    %2411 = vmatpush1.msra.mxu0 0.0
    %2412 = vmatprep.subr.mxu0 0.0
    %2413 = vmatpush1.msra.mxu0 0.0
    %2414 = vmatprep.subr.mxu0 0.0
    %2415 = vmatpush1.msra.mxu0 0.0
    %2416 = vmatprep.subr.mxu0 0.0
    %2417 = vmatpush1.msra.mxu0 %v425
    %2418 = vmatprep.subr.mxu0 0.0
    %2419 = vmatpush1.msra.mxu0 %v424
    %2420 = vmatprep.subr.mxu0 0.0
    %2421 = vmatpush1.msra.mxu0 %v423
    %2422 = vmatprep.subr.mxu0 0.0
    %2423 = vmatpush1.msra.mxu0 %v422
    %2424 = vmatprep.subr.mxu0 0.0
    %2425 = vmatpush1.msra.mxu0 %v421
    %2426 = vmatprep.subr.mxu0 0.0
    %2427 = vmatpush1.msra.mxu0 %v420
    %2428 = vmatprep.subr.mxu0 0.0
    %2429 = vmatpush1.msra.mxu0 %v419
    %2430 = vmatprep.subr.mxu0 0.0
    %2431 = vmatpush1.msra.mxu0 %v418
    %2432 = vmatprep.subr.mxu0 0.0
    %2433 = vmatpush2.msra.mxu0 0.0
    %2434 = vmatprep.subr.mxu0 0.0
    %2435 = vmatpush2.msra.mxu0 0.0
    %2436 = vmatprep.subr.mxu0 0.0
    %2437 = vmatpush2.msra.mxu0 0.0
    %2438 = vmatprep.subr.mxu0 0.0
    %2439 = vmatpush2.msra.mxu0 0.0
    %2440 = vmatprep.subr.mxu0 0.0
    %2441 = vmatpush2.msra.mxu0 0.0
    %2442 = vmatprep.subr.mxu0 0.0
    %2443 = vmatpush2.msra.mxu0 0.0
    %2444 = vmatprep.subr.mxu0 0.0
    %2445 = vmatpush2.msra.mxu0 0.0
    %2446 = vmatprep.subr.mxu0 0.0
    %2447 = vmatpush2.msra.mxu0 0.0
    %2448 = vmatprep.subr.mxu0 0.0
    %2449 = vmatpush2.msra.mxu0 0.0
    %2450 = vmatprep.subr.mxu0 0.0
    %2451 = vmatpush2.msra.mxu0 0.0
    %2452 = vmatprep.subr.mxu0 0.0
    %2453 = vmatpush2.msra.mxu0 0.0
    %2454 = vmatprep.subr.mxu0 0.0
    %2455 = vmatpush2.msra.mxu0 0.0
    %2456 = vmatprep.subr.mxu0 0.0
    %2457 = vmatpush2.msra.mxu0 0.0
    %2458 = vmatprep.subr.mxu0 0.0
    %2459 = vmatpush2.msra.mxu0 0.0
    %2460 = vmatprep.subr.mxu0 0.0
    %2461 = vmatpush2.msra.mxu0 0.0
    %2462 = vmatprep.subr.mxu0 0.0
    %2463 = vmatpush2.msra.mxu0 0.0
    %2464 = vmatprep.mubr.f32.mxu0 0.0
    %2465 = vmatmul.mubr.f32.gmra.mxu0 %v2398
    %v2466 = vpop.f32.mrf.mxu0
    %v2467 = vadd.f32 %v443, %v2466
    %v2468 = vpop.f32.mrf.mxu0
    %2469 = vdwg.mxu0
    %s2470 = scalar_lea.vmem [#allocation8], 18
    %2471 = vst [vmem:[%s2470] sm:$0x3] %v2467
    %v2472 = vsel %vm631, %v2467, -inf
    %2473 = vmax.xlane.f32.xlu0 %v2472
    %v2474 = vpop.xlane.xlu0 %2473
    %vm2475 = vcmp.eq.f32.partialorder %v2467, %v2474
    %v2476 = vsel %vm2475, %v446, 128
    %v2477 = vsel %vm631, %v2476, 2147483647
    %v2478 = vand.u32 %v2477, 65535
    %v2479 = vshra.s32 %v2477, 16
    %v2480 = vcvt.s32.f32 %v2478
    %v2481 = vcvt.s32.f32 %v2479
    %2482 = vmin.xlane.f32.xlu0 %v2481
    %v2483 = vpop.xlane.xlu0 %2482
    %vm2484 = vcmp.eq.f32.partialorder %v2481, %v2483
    %v2485 = vsel %vm2484, %v2480, inf
    %2486 = vmin.xlane.f32.xlu0 %v2485
    %v2487 = vpop.xlane.xlu0 %2486
    %v2488 = vcvt.f32.s32 %v2487
    %v2489 = vcvt.f32.s32 %v2483
    %v2490 = vshll.u32 %v2489, 16
    %v2491 = vadd.s32 %v2490, %v2488
    %vm2492 = vcmp.eq.s32.totalorder %v446, %v2491
    %v2493 = vsel %vm2492, 1, 0
    %v2494 = vcvt.s32.f32 %v2493
    %2496 = vrot.lane.b32.xlu0 %v2494, 64
    %v2497 = vpop.permute.xlu0 %2496
    %v2499 = vsel %vm222, %v2396, %v2497
    %2500 = vmatprep.subr.mxu0 %v417
    %2501 = vmatpush1.msra.mxu0 %v416
    %2502 = vmatprep.subr.mxu0 %v415
    %2503 = vmatpush1.msra.mxu0 %v414
    %2504 = vmatprep.subr.mxu0 %v413
    %2505 = vmatpush1.msra.mxu0 %v412
    %2506 = vmatprep.subr.mxu0 %v411
    %2507 = vmatpush1.msra.mxu0 %v410
    %2508 = vmatprep.subr.mxu0 %v409
    %2509 = vmatpush1.msra.mxu0 %v408
    %2510 = vmatprep.subr.mxu0 %v407
    %2511 = vmatpush1.msra.mxu0 %v406
    %2512 = vmatprep.subr.mxu0 %v405
    %2513 = vmatpush1.msra.mxu0 %v404
    %2514 = vmatprep.subr.mxu0 %v403
    %2515 = vmatpush1.msra.mxu0 %v402
    %2516 = vmatprep.subr.mxu0 %v401
    %2517 = vmatpush1.msra.mxu0 %v400
    %2518 = vmatprep.subr.mxu0 %v399
    %2519 = vmatpush1.msra.mxu0 %v398
    %2520 = vmatprep.subr.mxu0 %v397
    %2521 = vmatpush1.msra.mxu0 %v396
    %2522 = vmatprep.subr.mxu0 %v395
    %2523 = vmatpush1.msra.mxu0 %v394
    %2524 = vmatprep.subr.mxu0 %v393
    %2525 = vmatpush1.msra.mxu0 %v392
    %2526 = vmatprep.subr.mxu0 %v391
    %2527 = vmatpush1.msra.mxu0 %v390
    %2528 = vmatprep.subr.mxu0 %v389
    %2529 = vmatpush1.msra.mxu0 %v388
    %2530 = vmatprep.subr.mxu0 %v387
    %2531 = vmatpush1.msra.mxu0 %v386
    %2532 = vmatprep.subr.mxu0 0.0
    %2533 = vmatpush2.msra.mxu0 0.0
    %2534 = vmatprep.subr.mxu0 0.0
    %2535 = vmatpush2.msra.mxu0 0.0
    %2536 = vmatprep.subr.mxu0 0.0
    %2537 = vmatpush2.msra.mxu0 0.0
    %2538 = vmatprep.subr.mxu0 0.0
    %2539 = vmatpush2.msra.mxu0 0.0
    %2540 = vmatprep.subr.mxu0 0.0
    %2541 = vmatpush2.msra.mxu0 0.0
    %2542 = vmatprep.subr.mxu0 0.0
    %2543 = vmatpush2.msra.mxu0 0.0
    %2544 = vmatprep.subr.mxu0 0.0
    %2545 = vmatpush2.msra.mxu0 0.0
    %2546 = vmatprep.subr.mxu0 0.0
    %2547 = vmatpush2.msra.mxu0 0.0
    %2548 = vmatprep.subr.mxu0 0.0
    %2549 = vmatpush2.msra.mxu0 0.0
    %2550 = vmatprep.subr.mxu0 0.0
    %2551 = vmatpush2.msra.mxu0 0.0
    %2552 = vmatprep.subr.mxu0 0.0
    %2553 = vmatpush2.msra.mxu0 0.0
    %2554 = vmatprep.subr.mxu0 0.0
    %2555 = vmatpush2.msra.mxu0 0.0
    %2556 = vmatprep.subr.mxu0 0.0
    %2557 = vmatpush2.msra.mxu0 0.0
    %2558 = vmatprep.subr.mxu0 0.0
    %2559 = vmatpush2.msra.mxu0 0.0
    %2560 = vmatprep.subr.mxu0 0.0
    %2561 = vmatpush2.msra.mxu0 0.0
    %2562 = vmatprep.subr.mxu0 0.0
    %2563 = vmatpush2.msra.mxu0 0.0
    %2564 = vmatprep.mubr.f32.mxu0 0.0
    %2565 = vmatmul.mubr.f32.gmra.mxu0 %v2499
    %v2566 = vpop.f32.mrf.mxu0
    %v2567 = vadd.f32 %v431, %v2566
    %v2568 = vpop.f32.mrf.mxu0
    %v2569 = vadd.f32 %v435, %v2568
    %2570 = vdwg.mxu0
    %v2571 = vxor.u32 %v2567, 2147483648
    %v2572 = vxor.u32 %v2569, 2147483648
    %v2573 = vmul.f32 %v2571, 1.442695
    %v2574 = vpow.pop %v2573
    %v2575 = vmul.f32 %v2572, 1.442695
    %v2576 = vpow.pop %v2575
    %v2577 = vadd.f32 %v2574, 1.0
    %v2578 = vadd.f32 %v2576, 1.0
    %v2579 = vrcp.pop %v2577
    %v2580 = vmul.f32 1.0, %v2579
    %v2581 = vrcp.pop %v2578
    %v2582 = vmul.f32 1.0, %v2581
    %v2583 = vtanh.pop %v2569
    %v2584 = vmul.f32 %v2580, %v2390
    %2586 = vrot.lane.b32.xlu0 %v2583, 64
    %v2587 = vpop.permute.xlu0 %2586
    %v2589 = vmul.f32 %v2580, %v2587
    %2591 = vrot.lane.b32.xlu0 %v2589, 64
    %v2592 = vpop.permute.xlu0 %2591
    %v2594 = vadd.f32 %v2584, %v2592
    %v2595 = vtanh.pop %v2594
    %2597 = vrot.lane.b32.xlu0 %v2595, 64
    %v2598 = vpop.permute.xlu0 %2597
    %v2600 = vmul.f32 %v2582, %v2598
    %v2602 = vsel %vm222, %v2600, 0
    %2604 = vmatprep.subr.mxu0 0.0
    %2605 = vmatpush1.msra.mxu0 0.0
    %2606 = vmatprep.subr.mxu0 0.0
    %2607 = vmatpush1.msra.mxu0 0.0
    %2608 = vmatprep.subr.mxu0 0.0
    %2609 = vmatpush1.msra.mxu0 0.0
    %2610 = vmatprep.subr.mxu0 0.0
    %2611 = vmatpush1.msra.mxu0 0.0
    %2612 = vmatprep.subr.mxu0 0.0
    %2613 = vmatpush1.msra.mxu0 0.0
    %2614 = vmatprep.subr.mxu0 0.0
    %2615 = vmatpush1.msra.mxu0 0.0
    %2616 = vmatprep.subr.mxu0 0.0
    %2617 = vmatpush1.msra.mxu0 0.0
    %2618 = vmatprep.subr.mxu0 0.0
    %2619 = vmatpush1.msra.mxu0 0.0
    %2620 = vmatprep.subr.mxu0 0.0
    %2621 = vmatpush1.msra.mxu0 %v425
    %2622 = vmatprep.subr.mxu0 0.0
    %2623 = vmatpush1.msra.mxu0 %v424
    %2624 = vmatprep.subr.mxu0 0.0
    %2625 = vmatpush1.msra.mxu0 %v423
    %2626 = vmatprep.subr.mxu0 0.0
    %2627 = vmatpush1.msra.mxu0 %v422
    %2628 = vmatprep.subr.mxu0 0.0
    %2629 = vmatpush1.msra.mxu0 %v421
    %2630 = vmatprep.subr.mxu0 0.0
    %2631 = vmatpush1.msra.mxu0 %v420
    %2632 = vmatprep.subr.mxu0 0.0
    %2633 = vmatpush1.msra.mxu0 %v419
    %2634 = vmatprep.subr.mxu0 0.0
    %2635 = vmatpush1.msra.mxu0 %v418
    %2636 = vmatprep.subr.mxu0 0.0
    %2637 = vmatpush2.msra.mxu0 0.0
    %2638 = vmatprep.subr.mxu0 0.0
    %2639 = vmatpush2.msra.mxu0 0.0
    %2640 = vmatprep.subr.mxu0 0.0
    %2641 = vmatpush2.msra.mxu0 0.0
    %2642 = vmatprep.subr.mxu0 0.0
    %2643 = vmatpush2.msra.mxu0 0.0
    %2644 = vmatprep.subr.mxu0 0.0
    %2645 = vmatpush2.msra.mxu0 0.0
    %2646 = vmatprep.subr.mxu0 0.0
    %2647 = vmatpush2.msra.mxu0 0.0
    %2648 = vmatprep.subr.mxu0 0.0
    %2649 = vmatpush2.msra.mxu0 0.0
    %2650 = vmatprep.subr.mxu0 0.0
    %2651 = vmatpush2.msra.mxu0 0.0
    %2652 = vmatprep.subr.mxu0 0.0
    %2653 = vmatpush2.msra.mxu0 0.0
    %2654 = vmatprep.subr.mxu0 0.0
    %2655 = vmatpush2.msra.mxu0 0.0
    %2656 = vmatprep.subr.mxu0 0.0
    %2657 = vmatpush2.msra.mxu0 0.0
    %2658 = vmatprep.subr.mxu0 0.0
    %2659 = vmatpush2.msra.mxu0 0.0
    %2660 = vmatprep.subr.mxu0 0.0
    %2661 = vmatpush2.msra.mxu0 0.0
    %2662 = vmatprep.subr.mxu0 0.0
    %2663 = vmatpush2.msra.mxu0 0.0
    %2664 = vmatprep.subr.mxu0 0.0
    %2665 = vmatpush2.msra.mxu0 0.0
    %2666 = vmatprep.subr.mxu0 0.0
    %2667 = vmatpush2.msra.mxu0 0.0
    %2668 = vmatprep.mubr.f32.mxu0 0.0
    %2669 = vmatmul.mubr.f32.gmra.mxu0 %v2602
    %v2670 = vpop.f32.mrf.mxu0
    %v2671 = vadd.f32 %v443, %v2670
    %v2672 = vpop.f32.mrf.mxu0
    %2673 = vdwg.mxu0
    %s2674 = scalar_lea.vmem [#allocation8], 20
    %2675 = vst [vmem:[%s2674] sm:$0x3] %v2671
    %v2676 = vsel %vm631, %v2671, -inf
    %2677 = vmax.xlane.f32.xlu0 %v2676
    %v2678 = vpop.xlane.xlu0 %2677
    %vm2679 = vcmp.eq.f32.partialorder %v2671, %v2678
    %v2680 = vsel %vm2679, %v446, 128
    %v2681 = vsel %vm631, %v2680, 2147483647
    %v2682 = vand.u32 %v2681, 65535
    %v2683 = vshra.s32 %v2681, 16
    %v2684 = vcvt.s32.f32 %v2682
    %v2685 = vcvt.s32.f32 %v2683
    %2686 = vmin.xlane.f32.xlu0 %v2685
    %v2687 = vpop.xlane.xlu0 %2686
    %vm2688 = vcmp.eq.f32.partialorder %v2685, %v2687
    %v2689 = vsel %vm2688, %v2684, inf
    %2690 = vmin.xlane.f32.xlu0 %v2689
    %v2691 = vpop.xlane.xlu0 %2690
    %v2692 = vcvt.f32.s32 %v2691
    %v2693 = vcvt.f32.s32 %v2687
    %v2694 = vshll.u32 %v2693, 16
    %v2695 = vadd.s32 %v2694, %v2692
    %vm2696 = vcmp.eq.s32.totalorder %v446, %v2695
    %v2697 = vsel %vm2696, 1, 0
    %v2698 = vcvt.s32.f32 %v2697
    %2700 = vrot.lane.b32.xlu0 %v2698, 64
    %v2701 = vpop.permute.xlu0 %2700
    %v2703 = vsel %vm222, %v2600, %v2701
    %2704 = vmatprep.subr.mxu0 %v417
    %2705 = vmatpush1.msra.mxu0 %v416
    %2706 = vmatprep.subr.mxu0 %v415
    %2707 = vmatpush1.msra.mxu0 %v414
    %2708 = vmatprep.subr.mxu0 %v413
    %2709 = vmatpush1.msra.mxu0 %v412
    %2710 = vmatprep.subr.mxu0 %v411
    %2711 = vmatpush1.msra.mxu0 %v410
    %2712 = vmatprep.subr.mxu0 %v409
    %2713 = vmatpush1.msra.mxu0 %v408
    %2714 = vmatprep.subr.mxu0 %v407
    %2715 = vmatpush1.msra.mxu0 %v406
    %2716 = vmatprep.subr.mxu0 %v405
    %2717 = vmatpush1.msra.mxu0 %v404
    %2718 = vmatprep.subr.mxu0 %v403
    %2719 = vmatpush1.msra.mxu0 %v402
    %2720 = vmatprep.subr.mxu0 %v401
    %2721 = vmatpush1.msra.mxu0 %v400
    %2722 = vmatprep.subr.mxu0 %v399
    %2723 = vmatpush1.msra.mxu0 %v398
    %2724 = vmatprep.subr.mxu0 %v397
    %2725 = vmatpush1.msra.mxu0 %v396
    %2726 = vmatprep.subr.mxu0 %v395
    %2727 = vmatpush1.msra.mxu0 %v394
    %2728 = vmatprep.subr.mxu0 %v393
    %2729 = vmatpush1.msra.mxu0 %v392
    %2730 = vmatprep.subr.mxu0 %v391
    %2731 = vmatpush1.msra.mxu0 %v390
    %2732 = vmatprep.subr.mxu0 %v389
    %2733 = vmatpush1.msra.mxu0 %v388
    %2734 = vmatprep.subr.mxu0 %v387
    %2735 = vmatpush1.msra.mxu0 %v386
    %2736 = vmatprep.subr.mxu0 0.0
    %2737 = vmatpush2.msra.mxu0 0.0
    %2738 = vmatprep.subr.mxu0 0.0
    %2739 = vmatpush2.msra.mxu0 0.0
    %2740 = vmatprep.subr.mxu0 0.0
    %2741 = vmatpush2.msra.mxu0 0.0
    %2742 = vmatprep.subr.mxu0 0.0
    %2743 = vmatpush2.msra.mxu0 0.0
    %2744 = vmatprep.subr.mxu0 0.0
    %2745 = vmatpush2.msra.mxu0 0.0
    %2746 = vmatprep.subr.mxu0 0.0
    %2747 = vmatpush2.msra.mxu0 0.0
    %2748 = vmatprep.subr.mxu0 0.0
    %2749 = vmatpush2.msra.mxu0 0.0
    %2750 = vmatprep.subr.mxu0 0.0
    %2751 = vmatpush2.msra.mxu0 0.0
    %2752 = vmatprep.subr.mxu0 0.0
    %2753 = vmatpush2.msra.mxu0 0.0
    %2754 = vmatprep.subr.mxu0 0.0
    %2755 = vmatpush2.msra.mxu0 0.0
    %2756 = vmatprep.subr.mxu0 0.0
    %2757 = vmatpush2.msra.mxu0 0.0
    %2758 = vmatprep.subr.mxu0 0.0
    %2759 = vmatpush2.msra.mxu0 0.0
    %2760 = vmatprep.subr.mxu0 0.0
    %2761 = vmatpush2.msra.mxu0 0.0
    %2762 = vmatprep.subr.mxu0 0.0
    %2763 = vmatpush2.msra.mxu0 0.0
    %2764 = vmatprep.subr.mxu0 0.0
    %2765 = vmatpush2.msra.mxu0 0.0
    %2766 = vmatprep.subr.mxu0 0.0
    %2767 = vmatpush2.msra.mxu0 0.0
    %2768 = vmatprep.mubr.f32.mxu0 0.0
    %2769 = vmatmul.mubr.f32.gmra.mxu0 %v2703
    %v2770 = vpop.f32.mrf.mxu0
    %v2771 = vadd.f32 %v431, %v2770
    %v2772 = vpop.f32.mrf.mxu0
    %v2773 = vadd.f32 %v435, %v2772
    %2774 = vdwg.mxu0
    %v2775 = vxor.u32 %v2771, 2147483648
    %v2776 = vxor.u32 %v2773, 2147483648
    %v2777 = vmul.f32 %v2775, 1.442695
    %v2778 = vpow.pop %v2777
    %v2779 = vmul.f32 %v2776, 1.442695
    %v2780 = vpow.pop %v2779
    %v2781 = vadd.f32 %v2778, 1.0
    %v2782 = vadd.f32 %v2780, 1.0
    %v2783 = vrcp.pop %v2781
    %v2784 = vmul.f32 1.0, %v2783
    %v2785 = vrcp.pop %v2782
    %v2786 = vmul.f32 1.0, %v2785
    %v2787 = vtanh.pop %v2773
    %v2788 = vmul.f32 %v2784, %v2594
    %2790 = vrot.lane.b32.xlu0 %v2787, 64
    %v2791 = vpop.permute.xlu0 %2790
    %v2793 = vmul.f32 %v2784, %v2791
    %2795 = vrot.lane.b32.xlu0 %v2793, 64
    %v2796 = vpop.permute.xlu0 %2795
    %v2798 = vadd.f32 %v2788, %v2796
    %v2799 = vtanh.pop %v2798
    %2801 = vrot.lane.b32.xlu0 %v2799, 64
    %v2802 = vpop.permute.xlu0 %2801
    %v2804 = vmul.f32 %v2786, %v2802
    %v2806 = vsel %vm222, %v2804, 0
    %2808 = vmatprep.subr.mxu0 0.0
    %2809 = vmatpush1.msra.mxu0 0.0
    %2810 = vmatprep.subr.mxu0 0.0
    %2811 = vmatpush1.msra.mxu0 0.0
    %2812 = vmatprep.subr.mxu0 0.0
    %2813 = vmatpush1.msra.mxu0 0.0
    %2814 = vmatprep.subr.mxu0 0.0
    %2815 = vmatpush1.msra.mxu0 0.0
    %2816 = vmatprep.subr.mxu0 0.0
    %2817 = vmatpush1.msra.mxu0 0.0
    %2818 = vmatprep.subr.mxu0 0.0
    %2819 = vmatpush1.msra.mxu0 0.0
    %2820 = vmatprep.subr.mxu0 0.0
    %2821 = vmatpush1.msra.mxu0 0.0
    %2822 = vmatprep.subr.mxu0 0.0
    %2823 = vmatpush1.msra.mxu0 0.0
    %2824 = vmatprep.subr.mxu0 0.0
    %2825 = vmatpush1.msra.mxu0 %v425
    %2826 = vmatprep.subr.mxu0 0.0
    %2827 = vmatpush1.msra.mxu0 %v424
    %2828 = vmatprep.subr.mxu0 0.0
    %2829 = vmatpush1.msra.mxu0 %v423
    %2830 = vmatprep.subr.mxu0 0.0
    %2831 = vmatpush1.msra.mxu0 %v422
    %2832 = vmatprep.subr.mxu0 0.0
    %2833 = vmatpush1.msra.mxu0 %v421
    %2834 = vmatprep.subr.mxu0 0.0
    %2835 = vmatpush1.msra.mxu0 %v420
    %2836 = vmatprep.subr.mxu0 0.0
    %2837 = vmatpush1.msra.mxu0 %v419
    %2838 = vmatprep.subr.mxu0 0.0
    %2839 = vmatpush1.msra.mxu0 %v418
    %2840 = vmatprep.subr.mxu0 0.0
    %2841 = vmatpush2.msra.mxu0 0.0
    %2842 = vmatprep.subr.mxu0 0.0
    %2843 = vmatpush2.msra.mxu0 0.0
    %2844 = vmatprep.subr.mxu0 0.0
    %2845 = vmatpush2.msra.mxu0 0.0
    %2846 = vmatprep.subr.mxu0 0.0
    %2847 = vmatpush2.msra.mxu0 0.0
    %2848 = vmatprep.subr.mxu0 0.0
    %2849 = vmatpush2.msra.mxu0 0.0
    %2850 = vmatprep.subr.mxu0 0.0
    %2851 = vmatpush2.msra.mxu0 0.0
    %2852 = vmatprep.subr.mxu0 0.0
    %2853 = vmatpush2.msra.mxu0 0.0
    %2854 = vmatprep.subr.mxu0 0.0
    %2855 = vmatpush2.msra.mxu0 0.0
    %2856 = vmatprep.subr.mxu0 0.0
    %2857 = vmatpush2.msra.mxu0 0.0
    %2858 = vmatprep.subr.mxu0 0.0
    %2859 = vmatpush2.msra.mxu0 0.0
    %2860 = vmatprep.subr.mxu0 0.0
    %2861 = vmatpush2.msra.mxu0 0.0
    %2862 = vmatprep.subr.mxu0 0.0
    %2863 = vmatpush2.msra.mxu0 0.0
    %2864 = vmatprep.subr.mxu0 0.0
    %2865 = vmatpush2.msra.mxu0 0.0
    %2866 = vmatprep.subr.mxu0 0.0
    %2867 = vmatpush2.msra.mxu0 0.0
    %2868 = vmatprep.subr.mxu0 0.0
    %2869 = vmatpush2.msra.mxu0 0.0
    %2870 = vmatprep.subr.mxu0 0.0
    %2871 = vmatpush2.msra.mxu0 0.0
    %2872 = vmatprep.mubr.f32.mxu0 0.0
    %2873 = vmatmul.mubr.f32.gmra.mxu0 %v2806
    %v2874 = vpop.f32.mrf.mxu0
    %v2875 = vadd.f32 %v443, %v2874
    %v2876 = vpop.f32.mrf.mxu0
    %2877 = vdwg.mxu0
    %s2878 = scalar_lea.vmem [#allocation8], 22
    %2879 = vst [vmem:[%s2878] sm:$0x3] %v2875
    %v2880 = vsel %vm631, %v2875, -inf
    %2881 = vmax.xlane.f32.xlu0 %v2880
    %v2882 = vpop.xlane.xlu0 %2881
    %vm2883 = vcmp.eq.f32.partialorder %v2875, %v2882
    %v2884 = vsel %vm2883, %v446, 128
    %v2885 = vsel %vm631, %v2884, 2147483647
    %v2886 = vand.u32 %v2885, 65535
    %v2887 = vshra.s32 %v2885, 16
    %v2888 = vcvt.s32.f32 %v2886
    %v2889 = vcvt.s32.f32 %v2887
    %2890 = vmin.xlane.f32.xlu0 %v2889
    %v2891 = vpop.xlane.xlu0 %2890
    %vm2892 = vcmp.eq.f32.partialorder %v2889, %v2891
    %v2893 = vsel %vm2892, %v2888, inf
    %2894 = vmin.xlane.f32.xlu0 %v2893
    %v2895 = vpop.xlane.xlu0 %2894
    %v2896 = vcvt.f32.s32 %v2895
    %v2897 = vcvt.f32.s32 %v2891
    %v2898 = vshll.u32 %v2897, 16
    %v2899 = vadd.s32 %v2898, %v2896
    %vm2900 = vcmp.eq.s32.totalorder %v446, %v2899
    %v2901 = vsel %vm2900, 1, 0
    %v2902 = vcvt.s32.f32 %v2901
    %2904 = vrot.lane.b32.xlu0 %v2902, 64
    %v2905 = vpop.permute.xlu0 %2904
    %v2907 = vsel %vm222, %v2804, %v2905
    %2908 = vmatprep.subr.mxu0 %v417
    %2909 = vmatpush1.msra.mxu0 %v416
    %2910 = vmatprep.subr.mxu0 %v415
    %2911 = vmatpush1.msra.mxu0 %v414
    %2912 = vmatprep.subr.mxu0 %v413
    %2913 = vmatpush1.msra.mxu0 %v412
    %2914 = vmatprep.subr.mxu0 %v411
    %2915 = vmatpush1.msra.mxu0 %v410
    %2916 = vmatprep.subr.mxu0 %v409
    %2917 = vmatpush1.msra.mxu0 %v408
    %2918 = vmatprep.subr.mxu0 %v407
    %2919 = vmatpush1.msra.mxu0 %v406
    %2920 = vmatprep.subr.mxu0 %v405
    %2921 = vmatpush1.msra.mxu0 %v404
    %2922 = vmatprep.subr.mxu0 %v403
    %2923 = vmatpush1.msra.mxu0 %v402
    %2924 = vmatprep.subr.mxu0 %v401
    %2925 = vmatpush1.msra.mxu0 %v400
    %2926 = vmatprep.subr.mxu0 %v399
    %2927 = vmatpush1.msra.mxu0 %v398
    %2928 = vmatprep.subr.mxu0 %v397
    %2929 = vmatpush1.msra.mxu0 %v396
    %2930 = vmatprep.subr.mxu0 %v395
    %2931 = vmatpush1.msra.mxu0 %v394
    %2932 = vmatprep.subr.mxu0 %v393
    %2933 = vmatpush1.msra.mxu0 %v392
    %2934 = vmatprep.subr.mxu0 %v391
    %2935 = vmatpush1.msra.mxu0 %v390
    %2936 = vmatprep.subr.mxu0 %v389
    %2937 = vmatpush1.msra.mxu0 %v388
    %2938 = vmatprep.subr.mxu0 %v387
    %2939 = vmatpush1.msra.mxu0 %v386
    %2940 = vmatprep.subr.mxu0 0.0
    %2941 = vmatpush2.msra.mxu0 0.0
    %2942 = vmatprep.subr.mxu0 0.0
    %2943 = vmatpush2.msra.mxu0 0.0
    %2944 = vmatprep.subr.mxu0 0.0
    %2945 = vmatpush2.msra.mxu0 0.0
    %2946 = vmatprep.subr.mxu0 0.0
    %2947 = vmatpush2.msra.mxu0 0.0
    %2948 = vmatprep.subr.mxu0 0.0
    %2949 = vmatpush2.msra.mxu0 0.0
    %2950 = vmatprep.subr.mxu0 0.0
    %2951 = vmatpush2.msra.mxu0 0.0
    %2952 = vmatprep.subr.mxu0 0.0
    %2953 = vmatpush2.msra.mxu0 0.0
    %2954 = vmatprep.subr.mxu0 0.0
    %2955 = vmatpush2.msra.mxu0 0.0
    %2956 = vmatprep.subr.mxu0 0.0
    %2957 = vmatpush2.msra.mxu0 0.0
    %2958 = vmatprep.subr.mxu0 0.0
    %2959 = vmatpush2.msra.mxu0 0.0
    %2960 = vmatprep.subr.mxu0 0.0
    %2961 = vmatpush2.msra.mxu0 0.0
    %2962 = vmatprep.subr.mxu0 0.0
    %2963 = vmatpush2.msra.mxu0 0.0
    %2964 = vmatprep.subr.mxu0 0.0
    %2965 = vmatpush2.msra.mxu0 0.0
    %2966 = vmatprep.subr.mxu0 0.0
    %2967 = vmatpush2.msra.mxu0 0.0
    %2968 = vmatprep.subr.mxu0 0.0
    %2969 = vmatpush2.msra.mxu0 0.0
    %2970 = vmatprep.subr.mxu0 0.0
    %2971 = vmatpush2.msra.mxu0 0.0
    %2972 = vmatprep.mubr.f32.mxu0 0.0
    %2973 = vmatmul.mubr.f32.gmra.mxu0 %v2907
    %v2974 = vpop.f32.mrf.mxu0
    %v2975 = vadd.f32 %v431, %v2974
    %v2976 = vpop.f32.mrf.mxu0
    %v2977 = vadd.f32 %v435, %v2976
    %2978 = vdwg.mxu0
    %v2979 = vxor.u32 %v2975, 2147483648
    %v2980 = vxor.u32 %v2977, 2147483648
    %v2981 = vmul.f32 %v2979, 1.442695
    %v2982 = vpow.pop %v2981
    %v2983 = vmul.f32 %v2980, 1.442695
    %v2984 = vpow.pop %v2983
    %v2985 = vadd.f32 %v2982, 1.0
    %v2986 = vadd.f32 %v2984, 1.0
    %v2987 = vrcp.pop %v2985
    %v2988 = vmul.f32 1.0, %v2987
    %v2989 = vrcp.pop %v2986
    %v2990 = vmul.f32 1.0, %v2989
    %v2991 = vtanh.pop %v2977
    %v2992 = vmul.f32 %v2988, %v2798
    %2994 = vrot.lane.b32.xlu0 %v2991, 64
    %v2995 = vpop.permute.xlu0 %2994
    %v2997 = vmul.f32 %v2988, %v2995
    %2999 = vrot.lane.b32.xlu0 %v2997, 64
    %v3000 = vpop.permute.xlu0 %2999
    %v3002 = vadd.f32 %v2992, %v3000
    %v3003 = vtanh.pop %v3002
    %3005 = vrot.lane.b32.xlu0 %v3003, 64
    %v3006 = vpop.permute.xlu0 %3005
    %v3008 = vmul.f32 %v2990, %v3006
    %v3010 = vsel %vm222, %v3008, 0
    %3012 = vmatprep.subr.mxu0 0.0
    %3013 = vmatpush1.msra.mxu0 0.0
    %3014 = vmatprep.subr.mxu0 0.0
    %3015 = vmatpush1.msra.mxu0 0.0
    %3016 = vmatprep.subr.mxu0 0.0
    %3017 = vmatpush1.msra.mxu0 0.0
    %3018 = vmatprep.subr.mxu0 0.0
    %3019 = vmatpush1.msra.mxu0 0.0
    %3020 = vmatprep.subr.mxu0 0.0
    %3021 = vmatpush1.msra.mxu0 0.0
    %3022 = vmatprep.subr.mxu0 0.0
    %3023 = vmatpush1.msra.mxu0 0.0
    %3024 = vmatprep.subr.mxu0 0.0
    %3025 = vmatpush1.msra.mxu0 0.0
    %3026 = vmatprep.subr.mxu0 0.0
    %3027 = vmatpush1.msra.mxu0 0.0
    %3028 = vmatprep.subr.mxu0 0.0
    %3029 = vmatpush1.msra.mxu0 %v425
    %3030 = vmatprep.subr.mxu0 0.0
    %3031 = vmatpush1.msra.mxu0 %v424
    %3032 = vmatprep.subr.mxu0 0.0
    %3033 = vmatpush1.msra.mxu0 %v423
    %3034 = vmatprep.subr.mxu0 0.0
    %3035 = vmatpush1.msra.mxu0 %v422
    %3036 = vmatprep.subr.mxu0 0.0
    %3037 = vmatpush1.msra.mxu0 %v421
    %3038 = vmatprep.subr.mxu0 0.0
    %3039 = vmatpush1.msra.mxu0 %v420
    %3040 = vmatprep.subr.mxu0 0.0
    %3041 = vmatpush1.msra.mxu0 %v419
    %3042 = vmatprep.subr.mxu0 0.0
    %3043 = vmatpush1.msra.mxu0 %v418
    %3044 = vmatprep.subr.mxu0 0.0
    %3045 = vmatpush2.msra.mxu0 0.0
    %3046 = vmatprep.subr.mxu0 0.0
    %3047 = vmatpush2.msra.mxu0 0.0
    %3048 = vmatprep.subr.mxu0 0.0
    %3049 = vmatpush2.msra.mxu0 0.0
    %3050 = vmatprep.subr.mxu0 0.0
    %3051 = vmatpush2.msra.mxu0 0.0
    %3052 = vmatprep.subr.mxu0 0.0
    %3053 = vmatpush2.msra.mxu0 0.0
    %3054 = vmatprep.subr.mxu0 0.0
    %3055 = vmatpush2.msra.mxu0 0.0
    %3056 = vmatprep.subr.mxu0 0.0
    %3057 = vmatpush2.msra.mxu0 0.0
    %3058 = vmatprep.subr.mxu0 0.0
    %3059 = vmatpush2.msra.mxu0 0.0
    %3060 = vmatprep.subr.mxu0 0.0
    %3061 = vmatpush2.msra.mxu0 0.0
    %3062 = vmatprep.subr.mxu0 0.0
    %3063 = vmatpush2.msra.mxu0 0.0
    %3064 = vmatprep.subr.mxu0 0.0
    %3065 = vmatpush2.msra.mxu0 0.0
    %3066 = vmatprep.subr.mxu0 0.0
    %3067 = vmatpush2.msra.mxu0 0.0
    %3068 = vmatprep.subr.mxu0 0.0
    %3069 = vmatpush2.msra.mxu0 0.0
    %3070 = vmatprep.subr.mxu0 0.0
    %3071 = vmatpush2.msra.mxu0 0.0
    %3072 = vmatprep.subr.mxu0 0.0
    %3073 = vmatpush2.msra.mxu0 0.0
    %3074 = vmatprep.subr.mxu0 0.0
    %3075 = vmatpush2.msra.mxu0 0.0
    %3076 = vmatprep.mubr.f32.mxu0 0.0
    %3077 = vmatmul.mubr.f32.gmra.mxu0 %v3010
    %v3078 = vpop.f32.mrf.mxu0
    %v3079 = vadd.f32 %v443, %v3078
    %v3080 = vpop.f32.mrf.mxu0
    %3081 = vdwg.mxu0
    %s3082 = scalar_lea.vmem [#allocation8], 24
    %3083 = vst [vmem:[%s3082] sm:$0x3] %v3079
    %v3084 = vsel %vm631, %v3079, -inf
    %3085 = vmax.xlane.f32.xlu0 %v3084
    %v3086 = vpop.xlane.xlu0 %3085
    %vm3087 = vcmp.eq.f32.partialorder %v3079, %v3086
    %v3088 = vsel %vm3087, %v446, 128
    %v3089 = vsel %vm631, %v3088, 2147483647
    %v3090 = vand.u32 %v3089, 65535
    %v3091 = vshra.s32 %v3089, 16
    %v3092 = vcvt.s32.f32 %v3090
    %v3093 = vcvt.s32.f32 %v3091
    %3094 = vmin.xlane.f32.xlu0 %v3093
    %v3095 = vpop.xlane.xlu0 %3094
    %vm3096 = vcmp.eq.f32.partialorder %v3093, %v3095
    %v3097 = vsel %vm3096, %v3092, inf
    %3098 = vmin.xlane.f32.xlu0 %v3097
    %v3099 = vpop.xlane.xlu0 %3098
    %v3100 = vcvt.f32.s32 %v3099
    %v3101 = vcvt.f32.s32 %v3095
    %v3102 = vshll.u32 %v3101, 16
    %v3103 = vadd.s32 %v3102, %v3100
    %vm3104 = vcmp.eq.s32.totalorder %v446, %v3103
    %v3105 = vsel %vm3104, 1, 0
    %v3106 = vcvt.s32.f32 %v3105
    %3108 = vrot.lane.b32.xlu0 %v3106, 64
    %v3109 = vpop.permute.xlu0 %3108
    %v3111 = vsel %vm222, %v3008, %v3109
    %3112 = vmatprep.subr.mxu0 %v417
    %3113 = vmatpush1.msra.mxu0 %v416
    %3114 = vmatprep.subr.mxu0 %v415
    %3115 = vmatpush1.msra.mxu0 %v414
    %3116 = vmatprep.subr.mxu0 %v413
    %3117 = vmatpush1.msra.mxu0 %v412
    %3118 = vmatprep.subr.mxu0 %v411
    %3119 = vmatpush1.msra.mxu0 %v410
    %3120 = vmatprep.subr.mxu0 %v409
    %3121 = vmatpush1.msra.mxu0 %v408
    %3122 = vmatprep.subr.mxu0 %v407
    %3123 = vmatpush1.msra.mxu0 %v406
    %3124 = vmatprep.subr.mxu0 %v405
    %3125 = vmatpush1.msra.mxu0 %v404
    %3126 = vmatprep.subr.mxu0 %v403
    %3127 = vmatpush1.msra.mxu0 %v402
    %3128 = vmatprep.subr.mxu0 %v401
    %3129 = vmatpush1.msra.mxu0 %v400
    %3130 = vmatprep.subr.mxu0 %v399
    %3131 = vmatpush1.msra.mxu0 %v398
    %3132 = vmatprep.subr.mxu0 %v397
    %3133 = vmatpush1.msra.mxu0 %v396
    %3134 = vmatprep.subr.mxu0 %v395
    %3135 = vmatpush1.msra.mxu0 %v394
    %3136 = vmatprep.subr.mxu0 %v393
    %3137 = vmatpush1.msra.mxu0 %v392
    %3138 = vmatprep.subr.mxu0 %v391
    %3139 = vmatpush1.msra.mxu0 %v390
    %3140 = vmatprep.subr.mxu0 %v389
    %3141 = vmatpush1.msra.mxu0 %v388
    %3142 = vmatprep.subr.mxu0 %v387
    %3143 = vmatpush1.msra.mxu0 %v386
    %3144 = vmatprep.subr.mxu0 0.0
    %3145 = vmatpush2.msra.mxu0 0.0
    %3146 = vmatprep.subr.mxu0 0.0
    %3147 = vmatpush2.msra.mxu0 0.0
    %3148 = vmatprep.subr.mxu0 0.0
    %3149 = vmatpush2.msra.mxu0 0.0
    %3150 = vmatprep.subr.mxu0 0.0
    %3151 = vmatpush2.msra.mxu0 0.0
    %3152 = vmatprep.subr.mxu0 0.0
    %3153 = vmatpush2.msra.mxu0 0.0
    %3154 = vmatprep.subr.mxu0 0.0
    %3155 = vmatpush2.msra.mxu0 0.0
    %3156 = vmatprep.subr.mxu0 0.0
    %3157 = vmatpush2.msra.mxu0 0.0
    %3158 = vmatprep.subr.mxu0 0.0
    %3159 = vmatpush2.msra.mxu0 0.0
    %3160 = vmatprep.subr.mxu0 0.0
    %3161 = vmatpush2.msra.mxu0 0.0
    %3162 = vmatprep.subr.mxu0 0.0
    %3163 = vmatpush2.msra.mxu0 0.0
    %3164 = vmatprep.subr.mxu0 0.0
    %3165 = vmatpush2.msra.mxu0 0.0
    %3166 = vmatprep.subr.mxu0 0.0
    %3167 = vmatpush2.msra.mxu0 0.0
    %3168 = vmatprep.subr.mxu0 0.0
    %3169 = vmatpush2.msra.mxu0 0.0
    %3170 = vmatprep.subr.mxu0 0.0
    %3171 = vmatpush2.msra.mxu0 0.0
    %3172 = vmatprep.subr.mxu0 0.0
    %3173 = vmatpush2.msra.mxu0 0.0
    %3174 = vmatprep.subr.mxu0 0.0
    %3175 = vmatpush2.msra.mxu0 0.0
    %3176 = vmatprep.mubr.f32.mxu0 0.0
    %3177 = vmatmul.mubr.f32.gmra.mxu0 %v3111
    %v3178 = vpop.f32.mrf.mxu0
    %v3179 = vadd.f32 %v431, %v3178
    %v3180 = vpop.f32.mrf.mxu0
    %v3181 = vadd.f32 %v435, %v3180
    %3182 = vdwg.mxu0
    %v3183 = vxor.u32 %v3179, 2147483648
    %v3184 = vxor.u32 %v3181, 2147483648
    %v3185 = vmul.f32 %v3183, 1.442695
    %v3186 = vpow.pop %v3185
    %v3187 = vmul.f32 %v3184, 1.442695
    %v3188 = vpow.pop %v3187
    %v3189 = vadd.f32 %v3186, 1.0
    %v3190 = vadd.f32 %v3188, 1.0
    %v3191 = vrcp.pop %v3189
    %v3192 = vmul.f32 1.0, %v3191
    %v3193 = vrcp.pop %v3190
    %v3194 = vmul.f32 1.0, %v3193
    %v3195 = vtanh.pop %v3181
    %v3196 = vmul.f32 %v3192, %v3002
    %3198 = vrot.lane.b32.xlu0 %v3195, 64
    %v3199 = vpop.permute.xlu0 %3198
    %v3201 = vmul.f32 %v3192, %v3199
    %3203 = vrot.lane.b32.xlu0 %v3201, 64
    %v3204 = vpop.permute.xlu0 %3203
    %v3206 = vadd.f32 %v3196, %v3204
    %v3207 = vtanh.pop %v3206
    %3209 = vrot.lane.b32.xlu0 %v3207, 64
    %v3210 = vpop.permute.xlu0 %3209
    %v3212 = vmul.f32 %v3194, %v3210
    %v3214 = vsel %vm222, %v3212, 0
    %3216 = vmatprep.subr.mxu0 0.0
    %3217 = vmatpush1.msra.mxu0 0.0
    %3218 = vmatprep.subr.mxu0 0.0
    %3219 = vmatpush1.msra.mxu0 0.0
    %3220 = vmatprep.subr.mxu0 0.0
    %3221 = vmatpush1.msra.mxu0 0.0
    %3222 = vmatprep.subr.mxu0 0.0
    %3223 = vmatpush1.msra.mxu0 0.0
    %3224 = vmatprep.subr.mxu0 0.0
    %3225 = vmatpush1.msra.mxu0 0.0
    %3226 = vmatprep.subr.mxu0 0.0
    %3227 = vmatpush1.msra.mxu0 0.0
    %3228 = vmatprep.subr.mxu0 0.0
    %3229 = vmatpush1.msra.mxu0 0.0
    %3230 = vmatprep.subr.mxu0 0.0
    %3231 = vmatpush1.msra.mxu0 0.0
    %3232 = vmatprep.subr.mxu0 0.0
    %3233 = vmatpush1.msra.mxu0 %v425
    %3234 = vmatprep.subr.mxu0 0.0
    %3235 = vmatpush1.msra.mxu0 %v424
    %3236 = vmatprep.subr.mxu0 0.0
    %3237 = vmatpush1.msra.mxu0 %v423
    %3238 = vmatprep.subr.mxu0 0.0
    %3239 = vmatpush1.msra.mxu0 %v422
    %3240 = vmatprep.subr.mxu0 0.0
    %3241 = vmatpush1.msra.mxu0 %v421
    %3242 = vmatprep.subr.mxu0 0.0
    %3243 = vmatpush1.msra.mxu0 %v420
    %3244 = vmatprep.subr.mxu0 0.0
    %3245 = vmatpush1.msra.mxu0 %v419
    %3246 = vmatprep.subr.mxu0 0.0
    %3247 = vmatpush1.msra.mxu0 %v418
    %3248 = vmatprep.subr.mxu0 0.0
    %3249 = vmatpush2.msra.mxu0 0.0
    %3250 = vmatprep.subr.mxu0 0.0
    %3251 = vmatpush2.msra.mxu0 0.0
    %3252 = vmatprep.subr.mxu0 0.0
    %3253 = vmatpush2.msra.mxu0 0.0
    %3254 = vmatprep.subr.mxu0 0.0
    %3255 = vmatpush2.msra.mxu0 0.0
    %3256 = vmatprep.subr.mxu0 0.0
    %3257 = vmatpush2.msra.mxu0 0.0
    %3258 = vmatprep.subr.mxu0 0.0
    %3259 = vmatpush2.msra.mxu0 0.0
    %3260 = vmatprep.subr.mxu0 0.0
    %3261 = vmatpush2.msra.mxu0 0.0
    %3262 = vmatprep.subr.mxu0 0.0
    %3263 = vmatpush2.msra.mxu0 0.0
    %3264 = vmatprep.subr.mxu0 0.0
    %3265 = vmatpush2.msra.mxu0 0.0
    %3266 = vmatprep.subr.mxu0 0.0
    %3267 = vmatpush2.msra.mxu0 0.0
    %3268 = vmatprep.subr.mxu0 0.0
    %3269 = vmatpush2.msra.mxu0 0.0
    %3270 = vmatprep.subr.mxu0 0.0
    %3271 = vmatpush2.msra.mxu0 0.0
    %3272 = vmatprep.subr.mxu0 0.0
    %3273 = vmatpush2.msra.mxu0 0.0
    %3274 = vmatprep.subr.mxu0 0.0
    %3275 = vmatpush2.msra.mxu0 0.0
    %3276 = vmatprep.subr.mxu0 0.0
    %3277 = vmatpush2.msra.mxu0 0.0
    %3278 = vmatprep.subr.mxu0 0.0
    %3279 = vmatpush2.msra.mxu0 0.0
    %3280 = vmatprep.mubr.f32.mxu0 0.0
    %3281 = vmatmul.mubr.f32.gmra.mxu0 %v3214
    %v3282 = vpop.f32.mrf.mxu0
    %v3283 = vadd.f32 %v443, %v3282
    %v3284 = vpop.f32.mrf.mxu0
    %3285 = vdwg.mxu0
    %s3286 = scalar_lea.vmem [#allocation8], 26
    %3287 = vst [vmem:[%s3286] sm:$0x3] %v3283
    %v3288 = vsel %vm631, %v3283, -inf
    %3289 = vmax.xlane.f32.xlu0 %v3288
    %v3290 = vpop.xlane.xlu0 %3289
    %vm3291 = vcmp.eq.f32.partialorder %v3283, %v3290
    %v3292 = vsel %vm3291, %v446, 128
    %v3293 = vsel %vm631, %v3292, 2147483647
    %v3294 = vand.u32 %v3293, 65535
    %v3295 = vshra.s32 %v3293, 16
    %v3296 = vcvt.s32.f32 %v3294
    %v3297 = vcvt.s32.f32 %v3295
    %3298 = vmin.xlane.f32.xlu0 %v3297
    %v3299 = vpop.xlane.xlu0 %3298
    %vm3300 = vcmp.eq.f32.partialorder %v3297, %v3299
    %v3301 = vsel %vm3300, %v3296, inf
    %3302 = vmin.xlane.f32.xlu0 %v3301
    %v3303 = vpop.xlane.xlu0 %3302
    %v3304 = vcvt.f32.s32 %v3303
    %v3305 = vcvt.f32.s32 %v3299
    %v3306 = vshll.u32 %v3305, 16
    %v3307 = vadd.s32 %v3306, %v3304
    %vm3308 = vcmp.eq.s32.totalorder %v446, %v3307
    %v3309 = vsel %vm3308, 1, 0
    %v3310 = vcvt.s32.f32 %v3309
    %3312 = vrot.lane.b32.xlu0 %v3310, 64
    %v3313 = vpop.permute.xlu0 %3312
    %v3315 = vsel %vm222, %v3212, %v3313
    %3316 = vmatprep.subr.mxu0 %v417
    %3317 = vmatpush1.msra.mxu0 %v416
    %3318 = vmatprep.subr.mxu0 %v415
    %3319 = vmatpush1.msra.mxu0 %v414
    %3320 = vmatprep.subr.mxu0 %v413
    %3321 = vmatpush1.msra.mxu0 %v412
    %3322 = vmatprep.subr.mxu0 %v411
    %3323 = vmatpush1.msra.mxu0 %v410
    %3324 = vmatprep.subr.mxu0 %v409
    %3325 = vmatpush1.msra.mxu0 %v408
    %3326 = vmatprep.subr.mxu0 %v407
    %3327 = vmatpush1.msra.mxu0 %v406
    %3328 = vmatprep.subr.mxu0 %v405
    %3329 = vmatpush1.msra.mxu0 %v404
    %3330 = vmatprep.subr.mxu0 %v403
    %3331 = vmatpush1.msra.mxu0 %v402
    %3332 = vmatprep.subr.mxu0 %v401
    %3333 = vmatpush1.msra.mxu0 %v400
    %3334 = vmatprep.subr.mxu0 %v399
    %3335 = vmatpush1.msra.mxu0 %v398
    %3336 = vmatprep.subr.mxu0 %v397
    %3337 = vmatpush1.msra.mxu0 %v396
    %3338 = vmatprep.subr.mxu0 %v395
    %3339 = vmatpush1.msra.mxu0 %v394
    %3340 = vmatprep.subr.mxu0 %v393
    %3341 = vmatpush1.msra.mxu0 %v392
    %3342 = vmatprep.subr.mxu0 %v391
    %3343 = vmatpush1.msra.mxu0 %v390
    %3344 = vmatprep.subr.mxu0 %v389
    %3345 = vmatpush1.msra.mxu0 %v388
    %3346 = vmatprep.subr.mxu0 %v387
    %3347 = vmatpush1.msra.mxu0 %v386
    %3348 = vmatprep.subr.mxu0 0.0
    %3349 = vmatpush2.msra.mxu0 0.0
    %3350 = vmatprep.subr.mxu0 0.0
    %3351 = vmatpush2.msra.mxu0 0.0
    %3352 = vmatprep.subr.mxu0 0.0
    %3353 = vmatpush2.msra.mxu0 0.0
    %3354 = vmatprep.subr.mxu0 0.0
    %3355 = vmatpush2.msra.mxu0 0.0
    %3356 = vmatprep.subr.mxu0 0.0
    %3357 = vmatpush2.msra.mxu0 0.0
    %3358 = vmatprep.subr.mxu0 0.0
    %3359 = vmatpush2.msra.mxu0 0.0
    %3360 = vmatprep.subr.mxu0 0.0
    %3361 = vmatpush2.msra.mxu0 0.0
    %3362 = vmatprep.subr.mxu0 0.0
    %3363 = vmatpush2.msra.mxu0 0.0
    %3364 = vmatprep.subr.mxu0 0.0
    %3365 = vmatpush2.msra.mxu0 0.0
    %3366 = vmatprep.subr.mxu0 0.0
    %3367 = vmatpush2.msra.mxu0 0.0
    %3368 = vmatprep.subr.mxu0 0.0
    %3369 = vmatpush2.msra.mxu0 0.0
    %3370 = vmatprep.subr.mxu0 0.0
    %3371 = vmatpush2.msra.mxu0 0.0
    %3372 = vmatprep.subr.mxu0 0.0
    %3373 = vmatpush2.msra.mxu0 0.0
    %3374 = vmatprep.subr.mxu0 0.0
    %3375 = vmatpush2.msra.mxu0 0.0
    %3376 = vmatprep.subr.mxu0 0.0
    %3377 = vmatpush2.msra.mxu0 0.0
    %3378 = vmatprep.subr.mxu0 0.0
    %3379 = vmatpush2.msra.mxu0 0.0
    %3380 = vmatprep.mubr.f32.mxu0 0.0
    %3381 = vmatmul.mubr.f32.gmra.mxu0 %v3315
    %v3382 = vpop.f32.mrf.mxu0
    %v3383 = vadd.f32 %v431, %v3382
    %v3384 = vpop.f32.mrf.mxu0
    %v3385 = vadd.f32 %v435, %v3384
    %3386 = vdwg.mxu0
    %v3387 = vxor.u32 %v3383, 2147483648
    %v3388 = vxor.u32 %v3385, 2147483648
    %v3389 = vmul.f32 %v3387, 1.442695
    %v3390 = vpow.pop %v3389
    %v3391 = vmul.f32 %v3388, 1.442695
    %v3392 = vpow.pop %v3391
    %v3393 = vadd.f32 %v3390, 1.0
    %v3394 = vadd.f32 %v3392, 1.0
    %v3395 = vrcp.pop %v3393
    %v3396 = vmul.f32 1.0, %v3395
    %v3397 = vrcp.pop %v3394
    %v3398 = vmul.f32 1.0, %v3397
    %v3399 = vtanh.pop %v3385
    %v3400 = vmul.f32 %v3396, %v3206
    %3402 = vrot.lane.b32.xlu0 %v3399, 64
    %v3403 = vpop.permute.xlu0 %3402
    %v3405 = vmul.f32 %v3396, %v3403
    %3407 = vrot.lane.b32.xlu0 %v3405, 64
    %v3408 = vpop.permute.xlu0 %3407
    %v3410 = vadd.f32 %v3400, %v3408
    %v3411 = vtanh.pop %v3410
    %3413 = vrot.lane.b32.xlu0 %v3411, 64
    %v3414 = vpop.permute.xlu0 %3413
    %v3416 = vmul.f32 %v3398, %v3414
    %v3418 = vsel %vm222, %v3416, 0
    %3420 = vmatprep.subr.mxu0 0.0
    %3421 = vmatpush1.msra.mxu0 0.0
    %3422 = vmatprep.subr.mxu0 0.0
    %3423 = vmatpush1.msra.mxu0 0.0
    %3424 = vmatprep.subr.mxu0 0.0
    %3425 = vmatpush1.msra.mxu0 0.0
    %3426 = vmatprep.subr.mxu0 0.0
    %3427 = vmatpush1.msra.mxu0 0.0
    %3428 = vmatprep.subr.mxu0 0.0
    %3429 = vmatpush1.msra.mxu0 0.0
    %3430 = vmatprep.subr.mxu0 0.0
    %3431 = vmatpush1.msra.mxu0 0.0
    %3432 = vmatprep.subr.mxu0 0.0
    %3433 = vmatpush1.msra.mxu0 0.0
    %3434 = vmatprep.subr.mxu0 0.0
    %3435 = vmatpush1.msra.mxu0 0.0
    %3436 = vmatprep.subr.mxu0 0.0
    %3437 = vmatpush1.msra.mxu0 %v425
    %3438 = vmatprep.subr.mxu0 0.0
    %3439 = vmatpush1.msra.mxu0 %v424
    %3440 = vmatprep.subr.mxu0 0.0
    %3441 = vmatpush1.msra.mxu0 %v423
    %3442 = vmatprep.subr.mxu0 0.0
    %3443 = vmatpush1.msra.mxu0 %v422
    %3444 = vmatprep.subr.mxu0 0.0
    %3445 = vmatpush1.msra.mxu0 %v421
    %3446 = vmatprep.subr.mxu0 0.0
    %3447 = vmatpush1.msra.mxu0 %v420
    %3448 = vmatprep.subr.mxu0 0.0
    %3449 = vmatpush1.msra.mxu0 %v419
    %3450 = vmatprep.subr.mxu0 0.0
    %3451 = vmatpush1.msra.mxu0 %v418
    %3452 = vmatprep.subr.mxu0 0.0
    %3453 = vmatpush2.msra.mxu0 0.0
    %3454 = vmatprep.subr.mxu0 0.0
    %3455 = vmatpush2.msra.mxu0 0.0
    %3456 = vmatprep.subr.mxu0 0.0
    %3457 = vmatpush2.msra.mxu0 0.0
    %3458 = vmatprep.subr.mxu0 0.0
    %3459 = vmatpush2.msra.mxu0 0.0
    %3460 = vmatprep.subr.mxu0 0.0
    %3461 = vmatpush2.msra.mxu0 0.0
    %3462 = vmatprep.subr.mxu0 0.0
    %3463 = vmatpush2.msra.mxu0 0.0
    %3464 = vmatprep.subr.mxu0 0.0
    %3465 = vmatpush2.msra.mxu0 0.0
    %3466 = vmatprep.subr.mxu0 0.0
    %3467 = vmatpush2.msra.mxu0 0.0
    %3468 = vmatprep.subr.mxu0 0.0
    %3469 = vmatpush2.msra.mxu0 0.0
    %3470 = vmatprep.subr.mxu0 0.0
    %3471 = vmatpush2.msra.mxu0 0.0
    %3472 = vmatprep.subr.mxu0 0.0
    %3473 = vmatpush2.msra.mxu0 0.0
    %3474 = vmatprep.subr.mxu0 0.0
    %3475 = vmatpush2.msra.mxu0 0.0
    %3476 = vmatprep.subr.mxu0 0.0
    %3477 = vmatpush2.msra.mxu0 0.0
    %3478 = vmatprep.subr.mxu0 0.0
    %3479 = vmatpush2.msra.mxu0 0.0
    %3480 = vmatprep.subr.mxu0 0.0
    %3481 = vmatpush2.msra.mxu0 0.0
    %3482 = vmatprep.subr.mxu0 0.0
    %3483 = vmatpush2.msra.mxu0 0.0
    %3484 = vmatprep.mubr.f32.mxu0 0.0
    %3485 = vmatmul.mubr.f32.gmra.mxu0 %v3418
    %v3486 = vpop.f32.mrf.mxu0
    %v3487 = vadd.f32 %v443, %v3486
    %v3488 = vpop.f32.mrf.mxu0
    %3489 = vdwg.mxu0
    %s3490 = scalar_lea.vmem [#allocation8], 28
    %3491 = vst [vmem:[%s3490] sm:$0x3] %v3487
    %v3492 = vsel %vm631, %v3487, -inf
    %3493 = vmax.xlane.f32.xlu0 %v3492
    %v3494 = vpop.xlane.xlu0 %3493
    %vm3495 = vcmp.eq.f32.partialorder %v3487, %v3494
    %v3496 = vsel %vm3495, %v446, 128
    %v3497 = vsel %vm631, %v3496, 2147483647
    %v3498 = vand.u32 %v3497, 65535
    %v3499 = vshra.s32 %v3497, 16
    %v3500 = vcvt.s32.f32 %v3498
    %v3501 = vcvt.s32.f32 %v3499
    %3502 = vmin.xlane.f32.xlu0 %v3501
    %v3503 = vpop.xlane.xlu0 %3502
    %vm3504 = vcmp.eq.f32.partialorder %v3501, %v3503
    %v3505 = vsel %vm3504, %v3500, inf
    %3506 = vmin.xlane.f32.xlu0 %v3505
    %v3507 = vpop.xlane.xlu0 %3506
    %v3508 = vcvt.f32.s32 %v3507
    %v3509 = vcvt.f32.s32 %v3503
    %v3510 = vshll.u32 %v3509, 16
    %v3511 = vadd.s32 %v3510, %v3508
    %vm3512 = vcmp.eq.s32.totalorder %v446, %v3511
    %v3513 = vsel %vm3512, 1, 0
    %v3514 = vcvt.s32.f32 %v3513
    %3516 = vrot.lane.b32.xlu0 %v3514, 64
    %v3517 = vpop.permute.xlu0 %3516
    %v3519 = vsel %vm222, %v3416, %v3517
    %3520 = vmatprep.subr.mxu0 %v417
    %3521 = vmatpush1.msra.mxu0 %v416
    %3522 = vmatprep.subr.mxu0 %v415
    %3523 = vmatpush1.msra.mxu0 %v414
    %3524 = vmatprep.subr.mxu0 %v413
    %3525 = vmatpush1.msra.mxu0 %v412
    %3526 = vmatprep.subr.mxu0 %v411
    %3527 = vmatpush1.msra.mxu0 %v410
    %3528 = vmatprep.subr.mxu0 %v409
    %3529 = vmatpush1.msra.mxu0 %v408
    %3530 = vmatprep.subr.mxu0 %v407
    %3531 = vmatpush1.msra.mxu0 %v406
    %3532 = vmatprep.subr.mxu0 %v405
    %3533 = vmatpush1.msra.mxu0 %v404
    %3534 = vmatprep.subr.mxu0 %v403
    %3535 = vmatpush1.msra.mxu0 %v402
    %3536 = vmatprep.subr.mxu0 %v401
    %3537 = vmatpush1.msra.mxu0 %v400
    %3538 = vmatprep.subr.mxu0 %v399
    %3539 = vmatpush1.msra.mxu0 %v398
    %3540 = vmatprep.subr.mxu0 %v397
    %3541 = vmatpush1.msra.mxu0 %v396
    %3542 = vmatprep.subr.mxu0 %v395
    %3543 = vmatpush1.msra.mxu0 %v394
    %3544 = vmatprep.subr.mxu0 %v393
    %3545 = vmatpush1.msra.mxu0 %v392
    %3546 = vmatprep.subr.mxu0 %v391
    %3547 = vmatpush1.msra.mxu0 %v390
    %3548 = vmatprep.subr.mxu0 %v389
    %3549 = vmatpush1.msra.mxu0 %v388
    %3550 = vmatprep.subr.mxu0 %v387
    %3551 = vmatpush1.msra.mxu0 %v386
    %3552 = vmatprep.subr.mxu0 0.0
    %3553 = vmatpush2.msra.mxu0 0.0
    %3554 = vmatprep.subr.mxu0 0.0
    %3555 = vmatpush2.msra.mxu0 0.0
    %3556 = vmatprep.subr.mxu0 0.0
    %3557 = vmatpush2.msra.mxu0 0.0
    %3558 = vmatprep.subr.mxu0 0.0
    %3559 = vmatpush2.msra.mxu0 0.0
    %3560 = vmatprep.subr.mxu0 0.0
    %3561 = vmatpush2.msra.mxu0 0.0
    %3562 = vmatprep.subr.mxu0 0.0
    %3563 = vmatpush2.msra.mxu0 0.0
    %3564 = vmatprep.subr.mxu0 0.0
    %3565 = vmatpush2.msra.mxu0 0.0
    %3566 = vmatprep.subr.mxu0 0.0
    %3567 = vmatpush2.msra.mxu0 0.0
    %3568 = vmatprep.subr.mxu0 0.0
    %3569 = vmatpush2.msra.mxu0 0.0
    %3570 = vmatprep.subr.mxu0 0.0
    %3571 = vmatpush2.msra.mxu0 0.0
    %3572 = vmatprep.subr.mxu0 0.0
    %3573 = vmatpush2.msra.mxu0 0.0
    %3574 = vmatprep.subr.mxu0 0.0
    %3575 = vmatpush2.msra.mxu0 0.0
    %3576 = vmatprep.subr.mxu0 0.0
    %3577 = vmatpush2.msra.mxu0 0.0
    %3578 = vmatprep.subr.mxu0 0.0
    %3579 = vmatpush2.msra.mxu0 0.0
    %3580 = vmatprep.subr.mxu0 0.0
    %3581 = vmatpush2.msra.mxu0 0.0
    %3582 = vmatprep.subr.mxu0 0.0
    %3583 = vmatpush2.msra.mxu0 0.0
    %3584 = vmatprep.mubr.f32.mxu0 0.0
    %3585 = vmatmul.mubr.f32.gmra.mxu0 %v3519
    %v3586 = vpop.f32.mrf.mxu0
    %v3587 = vadd.f32 %v431, %v3586
    %v3588 = vpop.f32.mrf.mxu0
    %v3589 = vadd.f32 %v435, %v3588
    %3590 = vdwg.mxu0
    %v3591 = vxor.u32 %v3587, 2147483648
    %v3592 = vxor.u32 %v3589, 2147483648
    %v3593 = vmul.f32 %v3591, 1.442695
    %v3594 = vpow.pop %v3593
    %v3595 = vmul.f32 %v3592, 1.442695
    %v3596 = vpow.pop %v3595
    %v3597 = vadd.f32 %v3594, 1.0
    %v3598 = vadd.f32 %v3596, 1.0
    %v3599 = vrcp.pop %v3597
    %v3600 = vmul.f32 1.0, %v3599
    %v3601 = vrcp.pop %v3598
    %v3602 = vmul.f32 1.0, %v3601
    %v3603 = vtanh.pop %v3589
    %v3604 = vmul.f32 %v3600, %v3410
    %3606 = vrot.lane.b32.xlu0 %v3603, 64
    %v3607 = vpop.permute.xlu0 %3606
    %v3609 = vmul.f32 %v3600, %v3607
    %3611 = vrot.lane.b32.xlu0 %v3609, 64
    %v3612 = vpop.permute.xlu0 %3611
    %v3614 = vadd.f32 %v3604, %v3612
    %v3615 = vtanh.pop %v3614
    %3617 = vrot.lane.b32.xlu0 %v3615, 64
    %v3618 = vpop.permute.xlu0 %3617
    %v3620 = vmul.f32 %v3602, %v3618
    %v3622 = vsel %vm222, %v3620, 0
    %3624 = vmatprep.subr.mxu0 0.0
    %3625 = vmatpush1.msra.mxu0 0.0
    %3626 = vmatprep.subr.mxu0 0.0
    %3627 = vmatpush1.msra.mxu0 0.0
    %3628 = vmatprep.subr.mxu0 0.0
    %3629 = vmatpush1.msra.mxu0 0.0
    %3630 = vmatprep.subr.mxu0 0.0
    %3631 = vmatpush1.msra.mxu0 0.0
    %3632 = vmatprep.subr.mxu0 0.0
    %3633 = vmatpush1.msra.mxu0 0.0
    %3634 = vmatprep.subr.mxu0 0.0
    %3635 = vmatpush1.msra.mxu0 0.0
    %3636 = vmatprep.subr.mxu0 0.0
    %3637 = vmatpush1.msra.mxu0 0.0
    %3638 = vmatprep.subr.mxu0 0.0
    %3639 = vmatpush1.msra.mxu0 0.0
    %3640 = vmatprep.subr.mxu0 0.0
    %3641 = vmatpush1.msra.mxu0 %v425
    %3642 = vmatprep.subr.mxu0 0.0
    %3643 = vmatpush1.msra.mxu0 %v424
    %3644 = vmatprep.subr.mxu0 0.0
    %3645 = vmatpush1.msra.mxu0 %v423
    %3646 = vmatprep.subr.mxu0 0.0
    %3647 = vmatpush1.msra.mxu0 %v422
    %3648 = vmatprep.subr.mxu0 0.0
    %3649 = vmatpush1.msra.mxu0 %v421
    %3650 = vmatprep.subr.mxu0 0.0
    %3651 = vmatpush1.msra.mxu0 %v420
    %3652 = vmatprep.subr.mxu0 0.0
    %3653 = vmatpush1.msra.mxu0 %v419
    %3654 = vmatprep.subr.mxu0 0.0
    %3655 = vmatpush1.msra.mxu0 %v418
    %3656 = vmatprep.subr.mxu0 0.0
    %3657 = vmatpush2.msra.mxu0 0.0
    %3658 = vmatprep.subr.mxu0 0.0
    %3659 = vmatpush2.msra.mxu0 0.0
    %3660 = vmatprep.subr.mxu0 0.0
    %3661 = vmatpush2.msra.mxu0 0.0
    %3662 = vmatprep.subr.mxu0 0.0
    %3663 = vmatpush2.msra.mxu0 0.0
    %3664 = vmatprep.subr.mxu0 0.0
    %3665 = vmatpush2.msra.mxu0 0.0
    %3666 = vmatprep.subr.mxu0 0.0
    %3667 = vmatpush2.msra.mxu0 0.0
    %3668 = vmatprep.subr.mxu0 0.0
    %3669 = vmatpush2.msra.mxu0 0.0
    %3670 = vmatprep.subr.mxu0 0.0
    %3671 = vmatpush2.msra.mxu0 0.0
    %3672 = vmatprep.subr.mxu0 0.0
    %3673 = vmatpush2.msra.mxu0 0.0
    %3674 = vmatprep.subr.mxu0 0.0
    %3675 = vmatpush2.msra.mxu0 0.0
    %3676 = vmatprep.subr.mxu0 0.0
    %3677 = vmatpush2.msra.mxu0 0.0
    %3678 = vmatprep.subr.mxu0 0.0
    %3679 = vmatpush2.msra.mxu0 0.0
    %3680 = vmatprep.subr.mxu0 0.0
    %3681 = vmatpush2.msra.mxu0 0.0
    %3682 = vmatprep.subr.mxu0 0.0
    %3683 = vmatpush2.msra.mxu0 0.0
    %3684 = vmatprep.subr.mxu0 0.0
    %3685 = vmatpush2.msra.mxu0 0.0
    %3686 = vmatprep.subr.mxu0 0.0
    %3687 = vmatpush2.msra.mxu0 0.0
    %3688 = vmatprep.mubr.f32.mxu0 0.0
    %3689 = vmatmul.mubr.f32.gmra.mxu0 %v3622
    %v3690 = vpop.f32.mrf.mxu0
    %v3691 = vadd.f32 %v443, %v3690
    %v3692 = vpop.f32.mrf.mxu0
    %3693 = vdwg.mxu0
    %s3694 = scalar_lea.vmem [#allocation8], 30
    %3695 = vst [vmem:[%s3694] sm:$0x3] %v3691
    %v3696 = vsel %vm631, %v3691, -inf
    %3697 = vmax.xlane.f32.xlu0 %v3696
    %v3698 = vpop.xlane.xlu0 %3697
    %vm3699 = vcmp.eq.f32.partialorder %v3691, %v3698
    %v3700 = vsel %vm3699, %v446, 128
    %v3701 = vsel %vm631, %v3700, 2147483647
    %v3702 = vand.u32 %v3701, 65535
    %v3703 = vshra.s32 %v3701, 16
    %v3704 = vcvt.s32.f32 %v3702
    %v3705 = vcvt.s32.f32 %v3703
    %3706 = vmin.xlane.f32.xlu0 %v3705
    %v3707 = vpop.xlane.xlu0 %3706
    %vm3708 = vcmp.eq.f32.partialorder %v3705, %v3707
    %v3709 = vsel %vm3708, %v3704, inf
    %3710 = vmin.xlane.f32.xlu0 %v3709
    %v3711 = vpop.xlane.xlu0 %3710
    %v3712 = vcvt.f32.s32 %v3711
    %v3713 = vcvt.f32.s32 %v3707
    %v3714 = vshll.u32 %v3713, 16
    %v3715 = vadd.s32 %v3714, %v3712
    %vm3716 = vcmp.eq.s32.totalorder %v446, %v3715
    %v3717 = vsel %vm3716, 1, 0
    %v3718 = vcvt.s32.f32 %v3717
    %3720 = vrot.lane.b32.xlu0 %v3718, 64
    %v3721 = vpop.permute.xlu0 %3720
    %v3723 = vsel %vm222, %v3620, %v3721
    %3724 = vmatprep.subr.mxu0 %v417
    %3725 = vmatpush1.msra.mxu0 %v416
    %3726 = vmatprep.subr.mxu0 %v415
    %3727 = vmatpush1.msra.mxu0 %v414
    %3728 = vmatprep.subr.mxu0 %v413
    %3729 = vmatpush1.msra.mxu0 %v412
    %3730 = vmatprep.subr.mxu0 %v411
    %3731 = vmatpush1.msra.mxu0 %v410
    %3732 = vmatprep.subr.mxu0 %v409
    %3733 = vmatpush1.msra.mxu0 %v408
    %3734 = vmatprep.subr.mxu0 %v407
    %3735 = vmatpush1.msra.mxu0 %v406
    %3736 = vmatprep.subr.mxu0 %v405
    %3737 = vmatpush1.msra.mxu0 %v404
    %3738 = vmatprep.subr.mxu0 %v403
    %3739 = vmatpush1.msra.mxu0 %v402
    %3740 = vmatprep.subr.mxu0 %v401
    %3741 = vmatpush1.msra.mxu0 %v400
    %3742 = vmatprep.subr.mxu0 %v399
    %3743 = vmatpush1.msra.mxu0 %v398
    %3744 = vmatprep.subr.mxu0 %v397
    %3745 = vmatpush1.msra.mxu0 %v396
    %3746 = vmatprep.subr.mxu0 %v395
    %3747 = vmatpush1.msra.mxu0 %v394
    %3748 = vmatprep.subr.mxu0 %v393
    %3749 = vmatpush1.msra.mxu0 %v392
    %3750 = vmatprep.subr.mxu0 %v391
    %3751 = vmatpush1.msra.mxu0 %v390
    %3752 = vmatprep.subr.mxu0 %v389
    %3753 = vmatpush1.msra.mxu0 %v388
    %3754 = vmatprep.subr.mxu0 %v387
    %3755 = vmatpush1.msra.mxu0 %v386
    %3756 = vmatprep.subr.mxu0 0.0
    %3757 = vmatpush2.msra.mxu0 0.0
    %3758 = vmatprep.subr.mxu0 0.0
    %3759 = vmatpush2.msra.mxu0 0.0
    %3760 = vmatprep.subr.mxu0 0.0
    %3761 = vmatpush2.msra.mxu0 0.0
    %3762 = vmatprep.subr.mxu0 0.0
    %3763 = vmatpush2.msra.mxu0 0.0
    %3764 = vmatprep.subr.mxu0 0.0
    %3765 = vmatpush2.msra.mxu0 0.0
    %3766 = vmatprep.subr.mxu0 0.0
    %3767 = vmatpush2.msra.mxu0 0.0
    %3768 = vmatprep.subr.mxu0 0.0
    %3769 = vmatpush2.msra.mxu0 0.0
    %3770 = vmatprep.subr.mxu0 0.0
    %3771 = vmatpush2.msra.mxu0 0.0
    %3772 = vmatprep.subr.mxu0 0.0
    %3773 = vmatpush2.msra.mxu0 0.0
    %3774 = vmatprep.subr.mxu0 0.0
    %3775 = vmatpush2.msra.mxu0 0.0
    %3776 = vmatprep.subr.mxu0 0.0
    %3777 = vmatpush2.msra.mxu0 0.0
    %3778 = vmatprep.subr.mxu0 0.0
    %3779 = vmatpush2.msra.mxu0 0.0
    %3780 = vmatprep.subr.mxu0 0.0
    %3781 = vmatpush2.msra.mxu0 0.0
    %3782 = vmatprep.subr.mxu0 0.0
    %3783 = vmatpush2.msra.mxu0 0.0
    %3784 = vmatprep.subr.mxu0 0.0
    %3785 = vmatpush2.msra.mxu0 0.0
    %3786 = vmatprep.subr.mxu0 0.0
    %3787 = vmatpush2.msra.mxu0 0.0
    %3788 = vmatprep.mubr.f32.mxu0 0.0
    %3789 = vmatmul.mubr.f32.gmra.mxu0 %v3723
    %v3790 = vpop.f32.mrf.mxu0
    %v3791 = vadd.f32 %v431, %v3790
    %v3792 = vpop.f32.mrf.mxu0
    %v3793 = vadd.f32 %v435, %v3792
    %3794 = vdwg.mxu0
    %v3795 = vxor.u32 %v3791, 2147483648
    %v3796 = vxor.u32 %v3793, 2147483648
    %v3797 = vmul.f32 %v3795, 1.442695
    %v3798 = vpow.pop %v3797
    %v3799 = vmul.f32 %v3796, 1.442695
    %v3800 = vpow.pop %v3799
    %v3801 = vadd.f32 %v3798, 1.0
    %v3802 = vadd.f32 %v3800, 1.0
    %v3803 = vrcp.pop %v3801
    %v3804 = vmul.f32 1.0, %v3803
    %v3805 = vrcp.pop %v3802
    %v3806 = vmul.f32 1.0, %v3805
    %v3807 = vtanh.pop %v3793
    %v3808 = vmul.f32 %v3804, %v3614
    %3810 = vrot.lane.b32.xlu0 %v3807, 64
    %v3811 = vpop.permute.xlu0 %3810
    %v3813 = vmul.f32 %v3804, %v3811
    %3815 = vrot.lane.b32.xlu0 %v3813, 64
    %v3816 = vpop.permute.xlu0 %3815
    %v3818 = vadd.f32 %v3808, %v3816
    %v3819 = vtanh.pop %v3818
    %3821 = vrot.lane.b32.xlu0 %v3819, 64
    %v3822 = vpop.permute.xlu0 %3821
    %v3824 = vmul.f32 %v3806, %v3822
    %v3826 = vsel %vm222, %v3824, 0
    %3828 = vmatprep.subr.mxu0 0.0
    %3829 = vmatpush1.msra.mxu0 0.0
    %3830 = vmatprep.subr.mxu0 0.0
    %3831 = vmatpush1.msra.mxu0 0.0
    %3832 = vmatprep.subr.mxu0 0.0
    %3833 = vmatpush1.msra.mxu0 0.0
    %3834 = vmatprep.subr.mxu0 0.0
    %3835 = vmatpush1.msra.mxu0 0.0
    %3836 = vmatprep.subr.mxu0 0.0
    %3837 = vmatpush1.msra.mxu0 0.0
    %3838 = vmatprep.subr.mxu0 0.0
    %3839 = vmatpush1.msra.mxu0 0.0
    %3840 = vmatprep.subr.mxu0 0.0
    %3841 = vmatpush1.msra.mxu0 0.0
    %3842 = vmatprep.subr.mxu0 0.0
    %3843 = vmatpush1.msra.mxu0 0.0
    %3844 = vmatprep.subr.mxu0 0.0
    %3845 = vmatpush1.msra.mxu0 %v425
    %3846 = vmatprep.subr.mxu0 0.0
    %3847 = vmatpush1.msra.mxu0 %v424
    %3848 = vmatprep.subr.mxu0 0.0
    %3849 = vmatpush1.msra.mxu0 %v423
    %3850 = vmatprep.subr.mxu0 0.0
    %3851 = vmatpush1.msra.mxu0 %v422
    %3852 = vmatprep.subr.mxu0 0.0
    %3853 = vmatpush1.msra.mxu0 %v421
    %3854 = vmatprep.subr.mxu0 0.0
    %3855 = vmatpush1.msra.mxu0 %v420
    %3856 = vmatprep.subr.mxu0 0.0
    %3857 = vmatpush1.msra.mxu0 %v419
    %3858 = vmatprep.subr.mxu0 0.0
    %3859 = vmatpush1.msra.mxu0 %v418
    %3860 = vmatprep.subr.mxu0 0.0
    %3861 = vmatpush2.msra.mxu0 0.0
    %3862 = vmatprep.subr.mxu0 0.0
    %3863 = vmatpush2.msra.mxu0 0.0
    %3864 = vmatprep.subr.mxu0 0.0
    %3865 = vmatpush2.msra.mxu0 0.0
    %3866 = vmatprep.subr.mxu0 0.0
    %3867 = vmatpush2.msra.mxu0 0.0
    %3868 = vmatprep.subr.mxu0 0.0
    %3869 = vmatpush2.msra.mxu0 0.0
    %3870 = vmatprep.subr.mxu0 0.0
    %3871 = vmatpush2.msra.mxu0 0.0
    %3872 = vmatprep.subr.mxu0 0.0
    %3873 = vmatpush2.msra.mxu0 0.0
    %3874 = vmatprep.subr.mxu0 0.0
    %3875 = vmatpush2.msra.mxu0 0.0
    %3876 = vmatprep.subr.mxu0 0.0
    %3877 = vmatpush2.msra.mxu0 0.0
    %3878 = vmatprep.subr.mxu0 0.0
    %3879 = vmatpush2.msra.mxu0 0.0
    %3880 = vmatprep.subr.mxu0 0.0
    %3881 = vmatpush2.msra.mxu0 0.0
    %3882 = vmatprep.subr.mxu0 0.0
    %3883 = vmatpush2.msra.mxu0 0.0
    %3884 = vmatprep.subr.mxu0 0.0
    %3885 = vmatpush2.msra.mxu0 0.0
    %3886 = vmatprep.subr.mxu0 0.0
    %3887 = vmatpush2.msra.mxu0 0.0
    %3888 = vmatprep.subr.mxu0 0.0
    %3889 = vmatpush2.msra.mxu0 0.0
    %3890 = vmatprep.subr.mxu0 0.0
    %3891 = vmatpush2.msra.mxu0 0.0
    %3892 = vmatprep.mubr.f32.mxu0 0.0
    %3893 = vmatmul.mubr.f32.gmra.mxu0 %v3826
    %v3894 = vpop.f32.mrf.mxu0
    %v3895 = vadd.f32 %v443, %v3894
    %v3896 = vpop.f32.mrf.mxu0
    %3897 = vdwg.mxu0
    %s3898 = scalar_lea.vmem [#allocation8], 32
    %3899 = vst [vmem:[%s3898] sm:$0x3] %v3895
    %v3900 = vsel %vm631, %v3895, -inf
    %3901 = vmax.xlane.f32.xlu0 %v3900
    %v3902 = vpop.xlane.xlu0 %3901
    %vm3903 = vcmp.eq.f32.partialorder %v3895, %v3902
    %v3904 = vsel %vm3903, %v446, 128
    %v3905 = vsel %vm631, %v3904, 2147483647
    %v3906 = vand.u32 %v3905, 65535
    %v3907 = vshra.s32 %v3905, 16
    %v3908 = vcvt.s32.f32 %v3906
    %v3909 = vcvt.s32.f32 %v3907
    %3910 = vmin.xlane.f32.xlu0 %v3909
    %v3911 = vpop.xlane.xlu0 %3910
    %vm3912 = vcmp.eq.f32.partialorder %v3909, %v3911
    %v3913 = vsel %vm3912, %v3908, inf
    %3914 = vmin.xlane.f32.xlu0 %v3913
    %v3915 = vpop.xlane.xlu0 %3914
    %v3916 = vcvt.f32.s32 %v3915
    %v3917 = vcvt.f32.s32 %v3911
    %v3918 = vshll.u32 %v3917, 16
    %v3919 = vadd.s32 %v3918, %v3916
    %vm3920 = vcmp.eq.s32.totalorder %v446, %v3919
    %v3921 = vsel %vm3920, 1, 0
    %v3922 = vcvt.s32.f32 %v3921
    %3924 = vrot.lane.b32.xlu0 %v3922, 64
    %v3925 = vpop.permute.xlu0 %3924
    %v3927 = vsel %vm222, %v3824, %v3925
    %3928 = vmatprep.subr.mxu0 %v417
    %3929 = vmatpush1.msra.mxu0 %v416
    %3930 = vmatprep.subr.mxu0 %v415
    %3931 = vmatpush1.msra.mxu0 %v414
    %3932 = vmatprep.subr.mxu0 %v413
    %3933 = vmatpush1.msra.mxu0 %v412
    %3934 = vmatprep.subr.mxu0 %v411
    %3935 = vmatpush1.msra.mxu0 %v410
    %3936 = vmatprep.subr.mxu0 %v409
    %3937 = vmatpush1.msra.mxu0 %v408
    %3938 = vmatprep.subr.mxu0 %v407
    %3939 = vmatpush1.msra.mxu0 %v406
    %3940 = vmatprep.subr.mxu0 %v405
    %3941 = vmatpush1.msra.mxu0 %v404
    %3942 = vmatprep.subr.mxu0 %v403
    %3943 = vmatpush1.msra.mxu0 %v402
    %3944 = vmatprep.subr.mxu0 %v401
    %3945 = vmatpush1.msra.mxu0 %v400
    %3946 = vmatprep.subr.mxu0 %v399
    %3947 = vmatpush1.msra.mxu0 %v398
    %3948 = vmatprep.subr.mxu0 %v397
    %3949 = vmatpush1.msra.mxu0 %v396
    %3950 = vmatprep.subr.mxu0 %v395
    %3951 = vmatpush1.msra.mxu0 %v394
    %3952 = vmatprep.subr.mxu0 %v393
    %3953 = vmatpush1.msra.mxu0 %v392
    %3954 = vmatprep.subr.mxu0 %v391
    %3955 = vmatpush1.msra.mxu0 %v390
    %3956 = vmatprep.subr.mxu0 %v389
    %3957 = vmatpush1.msra.mxu0 %v388
    %3958 = vmatprep.subr.mxu0 %v387
    %3959 = vmatpush1.msra.mxu0 %v386
    %3960 = vmatprep.subr.mxu0 0.0
    %3961 = vmatpush2.msra.mxu0 0.0
    %3962 = vmatprep.subr.mxu0 0.0
    %3963 = vmatpush2.msra.mxu0 0.0
    %3964 = vmatprep.subr.mxu0 0.0
    %3965 = vmatpush2.msra.mxu0 0.0
    %3966 = vmatprep.subr.mxu0 0.0
    %3967 = vmatpush2.msra.mxu0 0.0
    %3968 = vmatprep.subr.mxu0 0.0
    %3969 = vmatpush2.msra.mxu0 0.0
    %3970 = vmatprep.subr.mxu0 0.0
    %3971 = vmatpush2.msra.mxu0 0.0
    %3972 = vmatprep.subr.mxu0 0.0
    %3973 = vmatpush2.msra.mxu0 0.0
    %3974 = vmatprep.subr.mxu0 0.0
    %3975 = vmatpush2.msra.mxu0 0.0
    %3976 = vmatprep.subr.mxu0 0.0
    %3977 = vmatpush2.msra.mxu0 0.0
    %3978 = vmatprep.subr.mxu0 0.0
    %3979 = vmatpush2.msra.mxu0 0.0
    %3980 = vmatprep.subr.mxu0 0.0
    %3981 = vmatpush2.msra.mxu0 0.0
    %3982 = vmatprep.subr.mxu0 0.0
    %3983 = vmatpush2.msra.mxu0 0.0
    %3984 = vmatprep.subr.mxu0 0.0
    %3985 = vmatpush2.msra.mxu0 0.0
    %3986 = vmatprep.subr.mxu0 0.0
    %3987 = vmatpush2.msra.mxu0 0.0
    %3988 = vmatprep.subr.mxu0 0.0
    %3989 = vmatpush2.msra.mxu0 0.0
    %3990 = vmatprep.subr.mxu0 0.0
    %3991 = vmatpush2.msra.mxu0 0.0
    %3992 = vmatprep.mubr.f32.mxu0 0.0
    %3993 = vmatmul.mubr.f32.gmra.mxu0 %v3927
    %v3994 = vpop.f32.mrf.mxu0
    %v3995 = vadd.f32 %v431, %v3994
    %v3996 = vpop.f32.mrf.mxu0
    %v3997 = vadd.f32 %v435, %v3996
    %3998 = vdwg.mxu0
    %v3999 = vxor.u32 %v3995, 2147483648
    %v4000 = vxor.u32 %v3997, 2147483648
    %v4001 = vmul.f32 %v3999, 1.442695
    %v4002 = vpow.pop %v4001
    %v4003 = vmul.f32 %v4000, 1.442695
    %v4004 = vpow.pop %v4003
    %v4005 = vadd.f32 %v4002, 1.0
    %v4006 = vadd.f32 %v4004, 1.0
    %v4007 = vrcp.pop %v4005
    %v4008 = vmul.f32 1.0, %v4007
    %v4009 = vrcp.pop %v4006
    %v4010 = vmul.f32 1.0, %v4009
    %v4011 = vtanh.pop %v3997
    %v4012 = vmul.f32 %v4008, %v3818
    %4014 = vrot.lane.b32.xlu0 %v4011, 64
    %v4015 = vpop.permute.xlu0 %4014
    %v4017 = vmul.f32 %v4008, %v4015
    %4019 = vrot.lane.b32.xlu0 %v4017, 64
    %v4020 = vpop.permute.xlu0 %4019
    %v4022 = vadd.f32 %v4012, %v4020
    %v4023 = vtanh.pop %v4022
    %4025 = vrot.lane.b32.xlu0 %v4023, 64
    %v4026 = vpop.permute.xlu0 %4025
    %v4028 = vmul.f32 %v4010, %v4026
    %v4030 = vsel %vm222, %v4028, 0
    %4032 = vmatprep.subr.mxu0 0.0
    %4033 = vmatpush1.msra.mxu0 0.0
    %4034 = vmatprep.subr.mxu0 0.0
    %4035 = vmatpush1.msra.mxu0 0.0
    %4036 = vmatprep.subr.mxu0 0.0
    %4037 = vmatpush1.msra.mxu0 0.0
    %4038 = vmatprep.subr.mxu0 0.0
    %4039 = vmatpush1.msra.mxu0 0.0
    %4040 = vmatprep.subr.mxu0 0.0
    %4041 = vmatpush1.msra.mxu0 0.0
    %4042 = vmatprep.subr.mxu0 0.0
    %4043 = vmatpush1.msra.mxu0 0.0
    %4044 = vmatprep.subr.mxu0 0.0
    %4045 = vmatpush1.msra.mxu0 0.0
    %4046 = vmatprep.subr.mxu0 0.0
    %4047 = vmatpush1.msra.mxu0 0.0
    %4048 = vmatprep.subr.mxu0 0.0
    %4049 = vmatpush1.msra.mxu0 %v425
    %4050 = vmatprep.subr.mxu0 0.0
    %4051 = vmatpush1.msra.mxu0 %v424
    %4052 = vmatprep.subr.mxu0 0.0
    %4053 = vmatpush1.msra.mxu0 %v423
    %4054 = vmatprep.subr.mxu0 0.0
    %4055 = vmatpush1.msra.mxu0 %v422
    %4056 = vmatprep.subr.mxu0 0.0
    %4057 = vmatpush1.msra.mxu0 %v421
    %4058 = vmatprep.subr.mxu0 0.0
    %4059 = vmatpush1.msra.mxu0 %v420
    %4060 = vmatprep.subr.mxu0 0.0
    %4061 = vmatpush1.msra.mxu0 %v419
    %4062 = vmatprep.subr.mxu0 0.0
    %4063 = vmatpush1.msra.mxu0 %v418
    %4064 = vmatprep.subr.mxu0 0.0
    %4065 = vmatpush2.msra.mxu0 0.0
    %4066 = vmatprep.subr.mxu0 0.0
    %4067 = vmatpush2.msra.mxu0 0.0
    %4068 = vmatprep.subr.mxu0 0.0
    %4069 = vmatpush2.msra.mxu0 0.0
    %4070 = vmatprep.subr.mxu0 0.0
    %4071 = vmatpush2.msra.mxu0 0.0
    %4072 = vmatprep.subr.mxu0 0.0
    %4073 = vmatpush2.msra.mxu0 0.0
    %4074 = vmatprep.subr.mxu0 0.0
    %4075 = vmatpush2.msra.mxu0 0.0
    %4076 = vmatprep.subr.mxu0 0.0
    %4077 = vmatpush2.msra.mxu0 0.0
    %4078 = vmatprep.subr.mxu0 0.0
    %4079 = vmatpush2.msra.mxu0 0.0
    %4080 = vmatprep.subr.mxu0 0.0
    %4081 = vmatpush2.msra.mxu0 0.0
    %4082 = vmatprep.subr.mxu0 0.0
    %4083 = vmatpush2.msra.mxu0 0.0
    %4084 = vmatprep.subr.mxu0 0.0
    %4085 = vmatpush2.msra.mxu0 0.0
    %4086 = vmatprep.subr.mxu0 0.0
    %4087 = vmatpush2.msra.mxu0 0.0
    %4088 = vmatprep.subr.mxu0 0.0
    %4089 = vmatpush2.msra.mxu0 0.0
    %4090 = vmatprep.subr.mxu0 0.0
    %4091 = vmatpush2.msra.mxu0 0.0
    %4092 = vmatprep.subr.mxu0 0.0
    %4093 = vmatpush2.msra.mxu0 0.0
    %4094 = vmatprep.subr.mxu0 0.0
    %4095 = vmatpush2.msra.mxu0 0.0
    %4096 = vmatprep.mubr.f32.mxu0 0.0
    %4097 = vmatmul.mubr.f32.gmra.mxu0 %v4030
    %v4098 = vpop.f32.mrf.mxu0
    %v4099 = vadd.f32 %v443, %v4098
    %v4100 = vpop.f32.mrf.mxu0
    %4101 = vdwg.mxu0
    %s4102 = scalar_lea.vmem [#allocation8], 34
    %4103 = vst [vmem:[%s4102] sm:$0x3] %v4099
    %v4104 = vsel %vm631, %v4099, -inf
    %4105 = vmax.xlane.f32.xlu0 %v4104
    %v4106 = vpop.xlane.xlu0 %4105
    %vm4107 = vcmp.eq.f32.partialorder %v4099, %v4106
    %v4108 = vsel %vm4107, %v446, 128
    %v4109 = vsel %vm631, %v4108, 2147483647
    %v4110 = vand.u32 %v4109, 65535
    %v4111 = vshra.s32 %v4109, 16
    %v4112 = vcvt.s32.f32 %v4110
    %v4113 = vcvt.s32.f32 %v4111
    %4114 = vmin.xlane.f32.xlu0 %v4113
    %v4115 = vpop.xlane.xlu0 %4114
    %vm4116 = vcmp.eq.f32.partialorder %v4113, %v4115
    %v4117 = vsel %vm4116, %v4112, inf
    %4118 = vmin.xlane.f32.xlu0 %v4117
    %v4119 = vpop.xlane.xlu0 %4118
    %v4120 = vcvt.f32.s32 %v4119
    %v4121 = vcvt.f32.s32 %v4115
    %v4122 = vshll.u32 %v4121, 16
    %v4123 = vadd.s32 %v4122, %v4120
    %vm4124 = vcmp.eq.s32.totalorder %v446, %v4123
    %v4125 = vsel %vm4124, 1, 0
    %v4126 = vcvt.s32.f32 %v4125
    %4128 = vrot.lane.b32.xlu0 %v4126, 64
    %v4129 = vpop.permute.xlu0 %4128
    %v4131 = vsel %vm222, %v4028, %v4129
    %4132 = vmatprep.subr.mxu0 %v417
    %4133 = vmatpush1.msra.mxu0 %v416
    %4134 = vmatprep.subr.mxu0 %v415
    %4135 = vmatpush1.msra.mxu0 %v414
    %4136 = vmatprep.subr.mxu0 %v413
    %4137 = vmatpush1.msra.mxu0 %v412
    %4138 = vmatprep.subr.mxu0 %v411
    %4139 = vmatpush1.msra.mxu0 %v410
    %4140 = vmatprep.subr.mxu0 %v409
    %4141 = vmatpush1.msra.mxu0 %v408
    %4142 = vmatprep.subr.mxu0 %v407
    %4143 = vmatpush1.msra.mxu0 %v406
    %4144 = vmatprep.subr.mxu0 %v405
    %4145 = vmatpush1.msra.mxu0 %v404
    %4146 = vmatprep.subr.mxu0 %v403
    %4147 = vmatpush1.msra.mxu0 %v402
    %4148 = vmatprep.subr.mxu0 %v401
    %4149 = vmatpush1.msra.mxu0 %v400
    %4150 = vmatprep.subr.mxu0 %v399
    %4151 = vmatpush1.msra.mxu0 %v398
    %4152 = vmatprep.subr.mxu0 %v397
    %4153 = vmatpush1.msra.mxu0 %v396
    %4154 = vmatprep.subr.mxu0 %v395
    %4155 = vmatpush1.msra.mxu0 %v394
    %4156 = vmatprep.subr.mxu0 %v393
    %4157 = vmatpush1.msra.mxu0 %v392
    %4158 = vmatprep.subr.mxu0 %v391
    %4159 = vmatpush1.msra.mxu0 %v390
    %4160 = vmatprep.subr.mxu0 %v389
    %4161 = vmatpush1.msra.mxu0 %v388
    %4162 = vmatprep.subr.mxu0 %v387
    %4163 = vmatpush1.msra.mxu0 %v386
    %4164 = vmatprep.subr.mxu0 0.0
    %4165 = vmatpush2.msra.mxu0 0.0
    %4166 = vmatprep.subr.mxu0 0.0
    %4167 = vmatpush2.msra.mxu0 0.0
    %4168 = vmatprep.subr.mxu0 0.0
    %4169 = vmatpush2.msra.mxu0 0.0
    %4170 = vmatprep.subr.mxu0 0.0
    %4171 = vmatpush2.msra.mxu0 0.0
    %4172 = vmatprep.subr.mxu0 0.0
    %4173 = vmatpush2.msra.mxu0 0.0
    %4174 = vmatprep.subr.mxu0 0.0
    %4175 = vmatpush2.msra.mxu0 0.0
    %4176 = vmatprep.subr.mxu0 0.0
    %4177 = vmatpush2.msra.mxu0 0.0
    %4178 = vmatprep.subr.mxu0 0.0
    %4179 = vmatpush2.msra.mxu0 0.0
    %4180 = vmatprep.subr.mxu0 0.0
    %4181 = vmatpush2.msra.mxu0 0.0
    %4182 = vmatprep.subr.mxu0 0.0
    %4183 = vmatpush2.msra.mxu0 0.0
    %4184 = vmatprep.subr.mxu0 0.0
    %4185 = vmatpush2.msra.mxu0 0.0
    %4186 = vmatprep.subr.mxu0 0.0
    %4187 = vmatpush2.msra.mxu0 0.0
    %4188 = vmatprep.subr.mxu0 0.0
    %4189 = vmatpush2.msra.mxu0 0.0
    %4190 = vmatprep.subr.mxu0 0.0
    %4191 = vmatpush2.msra.mxu0 0.0
    %4192 = vmatprep.subr.mxu0 0.0
    %4193 = vmatpush2.msra.mxu0 0.0
    %4194 = vmatprep.subr.mxu0 0.0
    %4195 = vmatpush2.msra.mxu0 0.0
    %4196 = vmatprep.mubr.f32.mxu0 0.0
    %4197 = vmatmul.mubr.f32.gmra.mxu0 %v4131
    %v4198 = vpop.f32.mrf.mxu0
    %v4199 = vadd.f32 %v431, %v4198
    %v4200 = vpop.f32.mrf.mxu0
    %v4201 = vadd.f32 %v435, %v4200
    %4202 = vdwg.mxu0
    %v4203 = vxor.u32 %v4199, 2147483648
    %v4204 = vxor.u32 %v4201, 2147483648
    %v4205 = vmul.f32 %v4203, 1.442695
    %v4206 = vpow.pop %v4205
    %v4207 = vmul.f32 %v4204, 1.442695
    %v4208 = vpow.pop %v4207
    %v4209 = vadd.f32 %v4206, 1.0
    %v4210 = vadd.f32 %v4208, 1.0
    %v4211 = vrcp.pop %v4209
    %v4212 = vmul.f32 1.0, %v4211
    %v4213 = vrcp.pop %v4210
    %v4214 = vmul.f32 1.0, %v4213
    %v4215 = vtanh.pop %v4201
    %v4216 = vmul.f32 %v4212, %v4022
    %4218 = vrot.lane.b32.xlu0 %v4215, 64
    %v4219 = vpop.permute.xlu0 %4218
    %v4221 = vmul.f32 %v4212, %v4219
    %4223 = vrot.lane.b32.xlu0 %v4221, 64
    %v4224 = vpop.permute.xlu0 %4223
    %v4226 = vadd.f32 %v4216, %v4224
    %v4227 = vtanh.pop %v4226
    %4229 = vrot.lane.b32.xlu0 %v4227, 64
    %v4230 = vpop.permute.xlu0 %4229
    %v4232 = vmul.f32 %v4214, %v4230
    %v4234 = vsel %vm222, %v4232, 0
    %4236 = vmatprep.subr.mxu0 0.0
    %4237 = vmatpush1.msra.mxu0 0.0
    %4238 = vmatprep.subr.mxu0 0.0
    %4239 = vmatpush1.msra.mxu0 0.0
    %4240 = vmatprep.subr.mxu0 0.0
    %4241 = vmatpush1.msra.mxu0 0.0
    %4242 = vmatprep.subr.mxu0 0.0
    %4243 = vmatpush1.msra.mxu0 0.0
    %4244 = vmatprep.subr.mxu0 0.0
    %4245 = vmatpush1.msra.mxu0 0.0
    %4246 = vmatprep.subr.mxu0 0.0
    %4247 = vmatpush1.msra.mxu0 0.0
    %4248 = vmatprep.subr.mxu0 0.0
    %4249 = vmatpush1.msra.mxu0 0.0
    %4250 = vmatprep.subr.mxu0 0.0
    %4251 = vmatpush1.msra.mxu0 0.0
    %4252 = vmatprep.subr.mxu0 0.0
    %4253 = vmatpush1.msra.mxu0 %v425
    %4254 = vmatprep.subr.mxu0 0.0
    %4255 = vmatpush1.msra.mxu0 %v424
    %4256 = vmatprep.subr.mxu0 0.0
    %4257 = vmatpush1.msra.mxu0 %v423
    %4258 = vmatprep.subr.mxu0 0.0
    %4259 = vmatpush1.msra.mxu0 %v422
    %4260 = vmatprep.subr.mxu0 0.0
    %4261 = vmatpush1.msra.mxu0 %v421
    %4262 = vmatprep.subr.mxu0 0.0
    %4263 = vmatpush1.msra.mxu0 %v420
    %4264 = vmatprep.subr.mxu0 0.0
    %4265 = vmatpush1.msra.mxu0 %v419
    %4266 = vmatprep.subr.mxu0 0.0
    %4267 = vmatpush1.msra.mxu0 %v418
    %4268 = vmatprep.subr.mxu0 0.0
    %4269 = vmatpush2.msra.mxu0 0.0
    %4270 = vmatprep.subr.mxu0 0.0
    %4271 = vmatpush2.msra.mxu0 0.0
    %4272 = vmatprep.subr.mxu0 0.0
    %4273 = vmatpush2.msra.mxu0 0.0
    %4274 = vmatprep.subr.mxu0 0.0
    %4275 = vmatpush2.msra.mxu0 0.0
    %4276 = vmatprep.subr.mxu0 0.0
    %4277 = vmatpush2.msra.mxu0 0.0
    %4278 = vmatprep.subr.mxu0 0.0
    %4279 = vmatpush2.msra.mxu0 0.0
    %4280 = vmatprep.subr.mxu0 0.0
    %4281 = vmatpush2.msra.mxu0 0.0
    %4282 = vmatprep.subr.mxu0 0.0
    %4283 = vmatpush2.msra.mxu0 0.0
    %4284 = vmatprep.subr.mxu0 0.0
    %4285 = vmatpush2.msra.mxu0 0.0
    %4286 = vmatprep.subr.mxu0 0.0
    %4287 = vmatpush2.msra.mxu0 0.0
    %4288 = vmatprep.subr.mxu0 0.0
    %4289 = vmatpush2.msra.mxu0 0.0
    %4290 = vmatprep.subr.mxu0 0.0
    %4291 = vmatpush2.msra.mxu0 0.0
    %4292 = vmatprep.subr.mxu0 0.0
    %4293 = vmatpush2.msra.mxu0 0.0
    %4294 = vmatprep.subr.mxu0 0.0
    %4295 = vmatpush2.msra.mxu0 0.0
    %4296 = vmatprep.subr.mxu0 0.0
    %4297 = vmatpush2.msra.mxu0 0.0
    %4298 = vmatprep.subr.mxu0 0.0
    %4299 = vmatpush2.msra.mxu0 0.0
    %4300 = vmatprep.mubr.f32.mxu0 0.0
    %4301 = vmatmul.mubr.f32.gmra.mxu0 %v4234
    %v4302 = vpop.f32.mrf.mxu0
    %v4303 = vadd.f32 %v443, %v4302
    %v4304 = vpop.f32.mrf.mxu0
    %4305 = vdwg.mxu0
    %s4306 = scalar_lea.vmem [#allocation8], 36
    %4307 = vst [vmem:[%s4306] sm:$0x3] %v4303
    %v4308 = vsel %vm631, %v4303, -inf
    %4309 = vmax.xlane.f32.xlu0 %v4308
    %v4310 = vpop.xlane.xlu0 %4309
    %vm4311 = vcmp.eq.f32.partialorder %v4303, %v4310
    %v4312 = vsel %vm4311, %v446, 128
    %v4313 = vsel %vm631, %v4312, 2147483647
    %v4314 = vand.u32 %v4313, 65535
    %v4315 = vshra.s32 %v4313, 16
    %v4316 = vcvt.s32.f32 %v4314
    %v4317 = vcvt.s32.f32 %v4315
    %4318 = vmin.xlane.f32.xlu0 %v4317
    %v4319 = vpop.xlane.xlu0 %4318
    %vm4320 = vcmp.eq.f32.partialorder %v4317, %v4319
    %v4321 = vsel %vm4320, %v4316, inf
    %4322 = vmin.xlane.f32.xlu0 %v4321
    %v4323 = vpop.xlane.xlu0 %4322
    %v4324 = vcvt.f32.s32 %v4323
    %v4325 = vcvt.f32.s32 %v4319
    %v4326 = vshll.u32 %v4325, 16
    %v4327 = vadd.s32 %v4326, %v4324
    %vm4328 = vcmp.eq.s32.totalorder %v446, %v4327
    %v4329 = vsel %vm4328, 1, 0
    %v4330 = vcvt.s32.f32 %v4329
    %4332 = vrot.lane.b32.xlu0 %v4330, 64
    %v4333 = vpop.permute.xlu0 %4332
    %v4335 = vsel %vm222, %v4232, %v4333
    %4336 = vmatprep.subr.mxu0 %v417
    %4337 = vmatpush1.msra.mxu0 %v416
    %4338 = vmatprep.subr.mxu0 %v415
    %4339 = vmatpush1.msra.mxu0 %v414
    %4340 = vmatprep.subr.mxu0 %v413
    %4341 = vmatpush1.msra.mxu0 %v412
    %4342 = vmatprep.subr.mxu0 %v411
    %4343 = vmatpush1.msra.mxu0 %v410
    %4344 = vmatprep.subr.mxu0 %v409
    %4345 = vmatpush1.msra.mxu0 %v408
    %4346 = vmatprep.subr.mxu0 %v407
    %4347 = vmatpush1.msra.mxu0 %v406
    %4348 = vmatprep.subr.mxu0 %v405
    %4349 = vmatpush1.msra.mxu0 %v404
    %4350 = vmatprep.subr.mxu0 %v403
    %4351 = vmatpush1.msra.mxu0 %v402
    %4352 = vmatprep.subr.mxu0 %v401
    %4353 = vmatpush1.msra.mxu0 %v400
    %4354 = vmatprep.subr.mxu0 %v399
    %4355 = vmatpush1.msra.mxu0 %v398
    %4356 = vmatprep.subr.mxu0 %v397
    %4357 = vmatpush1.msra.mxu0 %v396
    %4358 = vmatprep.subr.mxu0 %v395
    %4359 = vmatpush1.msra.mxu0 %v394
    %4360 = vmatprep.subr.mxu0 %v393
    %4361 = vmatpush1.msra.mxu0 %v392
    %4362 = vmatprep.subr.mxu0 %v391
    %4363 = vmatpush1.msra.mxu0 %v390
    %4364 = vmatprep.subr.mxu0 %v389
    %4365 = vmatpush1.msra.mxu0 %v388
    %4366 = vmatprep.subr.mxu0 %v387
    %4367 = vmatpush1.msra.mxu0 %v386
    %4368 = vmatprep.subr.mxu0 0.0
    %4369 = vmatpush2.msra.mxu0 0.0
    %4370 = vmatprep.subr.mxu0 0.0
    %4371 = vmatpush2.msra.mxu0 0.0
    %4372 = vmatprep.subr.mxu0 0.0
    %4373 = vmatpush2.msra.mxu0 0.0
    %4374 = vmatprep.subr.mxu0 0.0
    %4375 = vmatpush2.msra.mxu0 0.0
    %4376 = vmatprep.subr.mxu0 0.0
    %4377 = vmatpush2.msra.mxu0 0.0
    %4378 = vmatprep.subr.mxu0 0.0
    %4379 = vmatpush2.msra.mxu0 0.0
    %4380 = vmatprep.subr.mxu0 0.0
    %4381 = vmatpush2.msra.mxu0 0.0
    %4382 = vmatprep.subr.mxu0 0.0
    %4383 = vmatpush2.msra.mxu0 0.0
    %4384 = vmatprep.subr.mxu0 0.0
    %4385 = vmatpush2.msra.mxu0 0.0
    %4386 = vmatprep.subr.mxu0 0.0
    %4387 = vmatpush2.msra.mxu0 0.0
    %4388 = vmatprep.subr.mxu0 0.0
    %4389 = vmatpush2.msra.mxu0 0.0
    %4390 = vmatprep.subr.mxu0 0.0
    %4391 = vmatpush2.msra.mxu0 0.0
    %4392 = vmatprep.subr.mxu0 0.0
    %4393 = vmatpush2.msra.mxu0 0.0
    %4394 = vmatprep.subr.mxu0 0.0
    %4395 = vmatpush2.msra.mxu0 0.0
    %4396 = vmatprep.subr.mxu0 0.0
    %4397 = vmatpush2.msra.mxu0 0.0
    %4398 = vmatprep.subr.mxu0 0.0
    %4399 = vmatpush2.msra.mxu0 0.0
    %4400 = vmatprep.mubr.f32.mxu0 0.0
    %4401 = vmatmul.mubr.f32.gmra.mxu0 %v4335
    %v4402 = vpop.f32.mrf.mxu0
    %v4403 = vadd.f32 %v431, %v4402
    %v4404 = vpop.f32.mrf.mxu0
    %v4405 = vadd.f32 %v435, %v4404
    %4406 = vdwg.mxu0
    %v4407 = vxor.u32 %v4403, 2147483648
    %v4408 = vxor.u32 %v4405, 2147483648
    %v4409 = vmul.f32 %v4407, 1.442695
    %v4410 = vpow.pop %v4409
    %v4411 = vmul.f32 %v4408, 1.442695
    %v4412 = vpow.pop %v4411
    %v4413 = vadd.f32 %v4410, 1.0
    %v4414 = vadd.f32 %v4412, 1.0
    %v4415 = vrcp.pop %v4413
    %v4416 = vmul.f32 1.0, %v4415
    %v4417 = vrcp.pop %v4414
    %v4418 = vmul.f32 1.0, %v4417
    %v4419 = vtanh.pop %v4405
    %v4420 = vmul.f32 %v4416, %v4226
    %4422 = vrot.lane.b32.xlu0 %v4419, 64
    %v4423 = vpop.permute.xlu0 %4422
    %v4425 = vmul.f32 %v4416, %v4423
    %4427 = vrot.lane.b32.xlu0 %v4425, 64
    %v4428 = vpop.permute.xlu0 %4427
    %v4430 = vadd.f32 %v4420, %v4428
    %v4431 = vtanh.pop %v4430
    %4433 = vrot.lane.b32.xlu0 %v4431, 64
    %v4434 = vpop.permute.xlu0 %4433
    %v4436 = vmul.f32 %v4418, %v4434
    %v4438 = vsel %vm222, %v4436, 0
    %4440 = vmatprep.subr.mxu0 0.0
    %4441 = vmatpush1.msra.mxu0 0.0
    %4442 = vmatprep.subr.mxu0 0.0
    %4443 = vmatpush1.msra.mxu0 0.0
    %4444 = vmatprep.subr.mxu0 0.0
    %4445 = vmatpush1.msra.mxu0 0.0
    %4446 = vmatprep.subr.mxu0 0.0
    %4447 = vmatpush1.msra.mxu0 0.0
    %4448 = vmatprep.subr.mxu0 0.0
    %4449 = vmatpush1.msra.mxu0 0.0
    %4450 = vmatprep.subr.mxu0 0.0
    %4451 = vmatpush1.msra.mxu0 0.0
    %4452 = vmatprep.subr.mxu0 0.0
    %4453 = vmatpush1.msra.mxu0 0.0
    %4454 = vmatprep.subr.mxu0 0.0
    %4455 = vmatpush1.msra.mxu0 0.0
    %4456 = vmatprep.subr.mxu0 0.0
    %4457 = vmatpush1.msra.mxu0 %v425
    %4458 = vmatprep.subr.mxu0 0.0
    %4459 = vmatpush1.msra.mxu0 %v424
    %4460 = vmatprep.subr.mxu0 0.0
    %4461 = vmatpush1.msra.mxu0 %v423
    %4462 = vmatprep.subr.mxu0 0.0
    %4463 = vmatpush1.msra.mxu0 %v422
    %4464 = vmatprep.subr.mxu0 0.0
    %4465 = vmatpush1.msra.mxu0 %v421
    %4466 = vmatprep.subr.mxu0 0.0
    %4467 = vmatpush1.msra.mxu0 %v420
    %4468 = vmatprep.subr.mxu0 0.0
    %4469 = vmatpush1.msra.mxu0 %v419
    %4470 = vmatprep.subr.mxu0 0.0
    %4471 = vmatpush1.msra.mxu0 %v418
    %4472 = vmatprep.subr.mxu0 0.0
    %4473 = vmatpush2.msra.mxu0 0.0
    %4474 = vmatprep.subr.mxu0 0.0
    %4475 = vmatpush2.msra.mxu0 0.0
    %4476 = vmatprep.subr.mxu0 0.0
    %4477 = vmatpush2.msra.mxu0 0.0
    %4478 = vmatprep.subr.mxu0 0.0
    %4479 = vmatpush2.msra.mxu0 0.0
    %4480 = vmatprep.subr.mxu0 0.0
    %4481 = vmatpush2.msra.mxu0 0.0
    %4482 = vmatprep.subr.mxu0 0.0
    %4483 = vmatpush2.msra.mxu0 0.0
    %4484 = vmatprep.subr.mxu0 0.0
    %4485 = vmatpush2.msra.mxu0 0.0
    %4486 = vmatprep.subr.mxu0 0.0
    %4487 = vmatpush2.msra.mxu0 0.0
    %4488 = vmatprep.subr.mxu0 0.0
    %4489 = vmatpush2.msra.mxu0 0.0
    %4490 = vmatprep.subr.mxu0 0.0
    %4491 = vmatpush2.msra.mxu0 0.0
    %4492 = vmatprep.subr.mxu0 0.0
    %4493 = vmatpush2.msra.mxu0 0.0
    %4494 = vmatprep.subr.mxu0 0.0
    %4495 = vmatpush2.msra.mxu0 0.0
    %4496 = vmatprep.subr.mxu0 0.0
    %4497 = vmatpush2.msra.mxu0 0.0
    %4498 = vmatprep.subr.mxu0 0.0
    %4499 = vmatpush2.msra.mxu0 0.0
    %4500 = vmatprep.subr.mxu0 0.0
    %4501 = vmatpush2.msra.mxu0 0.0
    %4502 = vmatprep.subr.mxu0 0.0
    %4503 = vmatpush2.msra.mxu0 0.0
    %4504 = vmatprep.mubr.f32.mxu0 0.0
    %4505 = vmatmul.mubr.f32.gmra.mxu0 %v4438
    %v4506 = vpop.f32.mrf.mxu0
    %v4507 = vadd.f32 %v443, %v4506
    %v4508 = vpop.f32.mrf.mxu0
    %4509 = vdwg.mxu0
    %s4510 = scalar_lea.vmem [#allocation8], 38
    %4511 = vst [vmem:[%s4510] sm:$0x3] %v4507
    %v4512 = vsel %vm631, %v4507, -inf
    %4513 = vmax.xlane.f32.xlu0 %v4512
    %v4514 = vpop.xlane.xlu0 %4513
    %vm4515 = vcmp.eq.f32.partialorder %v4507, %v4514
    %v4516 = vsel %vm4515, %v446, 128
    %v4517 = vsel %vm631, %v4516, 2147483647
    %v4518 = vand.u32 %v4517, 65535
    %v4519 = vshra.s32 %v4517, 16
    %v4520 = vcvt.s32.f32 %v4518
    %v4521 = vcvt.s32.f32 %v4519
    %4522 = vmin.xlane.f32.xlu0 %v4521
    %v4523 = vpop.xlane.xlu0 %4522
    %vm4524 = vcmp.eq.f32.partialorder %v4521, %v4523
    %v4525 = vsel %vm4524, %v4520, inf
    %4526 = vmin.xlane.f32.xlu0 %v4525
    %v4527 = vpop.xlane.xlu0 %4526
    %v4528 = vcvt.f32.s32 %v4527
    %v4529 = vcvt.f32.s32 %v4523
    %v4530 = vshll.u32 %v4529, 16
    %v4531 = vadd.s32 %v4530, %v4528
    %vm4532 = vcmp.eq.s32.totalorder %v446, %v4531
    %v4533 = vsel %vm4532, 1, 0
    %v4534 = vcvt.s32.f32 %v4533
    %4536 = vrot.lane.b32.xlu0 %v4534, 64
    %v4537 = vpop.permute.xlu0 %4536
    %v4539 = vsel %vm222, %v4436, %v4537
    %4540 = vmatprep.subr.mxu0 %v417
    %4541 = vmatpush1.msra.mxu0 %v416
    %4542 = vmatprep.subr.mxu0 %v415
    %4543 = vmatpush1.msra.mxu0 %v414
    %4544 = vmatprep.subr.mxu0 %v413
    %4545 = vmatpush1.msra.mxu0 %v412
    %4546 = vmatprep.subr.mxu0 %v411
    %4547 = vmatpush1.msra.mxu0 %v410
    %4548 = vmatprep.subr.mxu0 %v409
    %4549 = vmatpush1.msra.mxu0 %v408
    %4550 = vmatprep.subr.mxu0 %v407
    %4551 = vmatpush1.msra.mxu0 %v406
    %4552 = vmatprep.subr.mxu0 %v405
    %4553 = vmatpush1.msra.mxu0 %v404
    %4554 = vmatprep.subr.mxu0 %v403
    %4555 = vmatpush1.msra.mxu0 %v402
    %4556 = vmatprep.subr.mxu0 %v401
    %4557 = vmatpush1.msra.mxu0 %v400
    %4558 = vmatprep.subr.mxu0 %v399
    %4559 = vmatpush1.msra.mxu0 %v398
    %4560 = vmatprep.subr.mxu0 %v397
    %4561 = vmatpush1.msra.mxu0 %v396
    %4562 = vmatprep.subr.mxu0 %v395
    %4563 = vmatpush1.msra.mxu0 %v394
    %4564 = vmatprep.subr.mxu0 %v393
    %4565 = vmatpush1.msra.mxu0 %v392
    %4566 = vmatprep.subr.mxu0 %v391
    %4567 = vmatpush1.msra.mxu0 %v390
    %4568 = vmatprep.subr.mxu0 %v389
    %4569 = vmatpush1.msra.mxu0 %v388
    %4570 = vmatprep.subr.mxu0 %v387
    %4571 = vmatpush1.msra.mxu0 %v386
    %4572 = vmatprep.subr.mxu0 0.0
    %4573 = vmatpush2.msra.mxu0 0.0
    %4574 = vmatprep.subr.mxu0 0.0
    %4575 = vmatpush2.msra.mxu0 0.0
    %4576 = vmatprep.subr.mxu0 0.0
    %4577 = vmatpush2.msra.mxu0 0.0
    %4578 = vmatprep.subr.mxu0 0.0
    %4579 = vmatpush2.msra.mxu0 0.0
    %4580 = vmatprep.subr.mxu0 0.0
    %4581 = vmatpush2.msra.mxu0 0.0
    %4582 = vmatprep.subr.mxu0 0.0
    %4583 = vmatpush2.msra.mxu0 0.0
    %4584 = vmatprep.subr.mxu0 0.0
    %4585 = vmatpush2.msra.mxu0 0.0
    %4586 = vmatprep.subr.mxu0 0.0
    %4587 = vmatpush2.msra.mxu0 0.0
    %4588 = vmatprep.subr.mxu0 0.0
    %4589 = vmatpush2.msra.mxu0 0.0
    %4590 = vmatprep.subr.mxu0 0.0
    %4591 = vmatpush2.msra.mxu0 0.0
    %4592 = vmatprep.subr.mxu0 0.0
    %4593 = vmatpush2.msra.mxu0 0.0
    %4594 = vmatprep.subr.mxu0 0.0
    %4595 = vmatpush2.msra.mxu0 0.0
    %4596 = vmatprep.subr.mxu0 0.0
    %4597 = vmatpush2.msra.mxu0 0.0
    %4598 = vmatprep.subr.mxu0 0.0
    %4599 = vmatpush2.msra.mxu0 0.0
    %4600 = vmatprep.subr.mxu0 0.0
    %4601 = vmatpush2.msra.mxu0 0.0
    %4602 = vmatprep.subr.mxu0 0.0
    %4603 = vmatpush2.msra.mxu0 0.0
    %4604 = vmatprep.mubr.f32.mxu0 0.0
    %4605 = vmatmul.mubr.f32.gmra.mxu0 %v4539
    %v4606 = vpop.f32.mrf.mxu0
    %v4607 = vadd.f32 %v431, %v4606
    %v4608 = vpop.f32.mrf.mxu0
    %v4609 = vadd.f32 %v435, %v4608
    %4610 = vdwg.mxu0
    %v4611 = vxor.u32 %v4607, 2147483648
    %v4612 = vxor.u32 %v4609, 2147483648
    %v4613 = vmul.f32 %v4611, 1.442695
    %v4614 = vpow.pop %v4613
    %v4615 = vmul.f32 %v4612, 1.442695
    %v4616 = vpow.pop %v4615
    %v4617 = vadd.f32 %v4614, 1.0
    %v4618 = vadd.f32 %v4616, 1.0
    %v4619 = vrcp.pop %v4617
    %v4620 = vmul.f32 1.0, %v4619
    %v4621 = vrcp.pop %v4618
    %v4622 = vmul.f32 1.0, %v4621
    %v4623 = vtanh.pop %v4609
    %v4624 = vmul.f32 %v4620, %v4430
    %4626 = vrot.lane.b32.xlu0 %v4623, 64
    %v4627 = vpop.permute.xlu0 %4626
    %v4629 = vmul.f32 %v4620, %v4627
    %4631 = vrot.lane.b32.xlu0 %v4629, 64
    %v4632 = vpop.permute.xlu0 %4631
    %v4634 = vadd.f32 %v4624, %v4632
    %v4635 = vtanh.pop %v4634
    %4637 = vrot.lane.b32.xlu0 %v4635, 64
    %v4638 = vpop.permute.xlu0 %4637
    %v4640 = vmul.f32 %v4622, %v4638
    %v4642 = vsel %vm222, %v4640, 0
    %4644 = vmatprep.subr.mxu0 0.0
    %4645 = vmatpush1.msra.mxu0 0.0
    %4646 = vmatprep.subr.mxu0 0.0
    %4647 = vmatpush1.msra.mxu0 0.0
    %4648 = vmatprep.subr.mxu0 0.0
    %4649 = vmatpush1.msra.mxu0 0.0
    %4650 = vmatprep.subr.mxu0 0.0
    %4651 = vmatpush1.msra.mxu0 0.0
    %4652 = vmatprep.subr.mxu0 0.0
    %4653 = vmatpush1.msra.mxu0 0.0
    %4654 = vmatprep.subr.mxu0 0.0
    %4655 = vmatpush1.msra.mxu0 0.0
    %4656 = vmatprep.subr.mxu0 0.0
    %4657 = vmatpush1.msra.mxu0 0.0
    %4658 = vmatprep.subr.mxu0 0.0
    %4659 = vmatpush1.msra.mxu0 0.0
    %4660 = vmatprep.subr.mxu0 0.0
    %4661 = vmatpush1.msra.mxu0 %v425
    %4662 = vmatprep.subr.mxu0 0.0
    %4663 = vmatpush1.msra.mxu0 %v424
    %4664 = vmatprep.subr.mxu0 0.0
    %4665 = vmatpush1.msra.mxu0 %v423
    %4666 = vmatprep.subr.mxu0 0.0
    %4667 = vmatpush1.msra.mxu0 %v422
    %4668 = vmatprep.subr.mxu0 0.0
    %4669 = vmatpush1.msra.mxu0 %v421
    %4670 = vmatprep.subr.mxu0 0.0
    %4671 = vmatpush1.msra.mxu0 %v420
    %4672 = vmatprep.subr.mxu0 0.0
    %4673 = vmatpush1.msra.mxu0 %v419
    %4674 = vmatprep.subr.mxu0 0.0
    %4675 = vmatpush1.msra.mxu0 %v418
    %4676 = vmatprep.subr.mxu0 0.0
    %4677 = vmatpush2.msra.mxu0 0.0
    %4678 = vmatprep.subr.mxu0 0.0
    %4679 = vmatpush2.msra.mxu0 0.0
    %4680 = vmatprep.subr.mxu0 0.0
    %4681 = vmatpush2.msra.mxu0 0.0
    %4682 = vmatprep.subr.mxu0 0.0
    %4683 = vmatpush2.msra.mxu0 0.0
    %4684 = vmatprep.subr.mxu0 0.0
    %4685 = vmatpush2.msra.mxu0 0.0
    %4686 = vmatprep.subr.mxu0 0.0
    %4687 = vmatpush2.msra.mxu0 0.0
    %4688 = vmatprep.subr.mxu0 0.0
    %4689 = vmatpush2.msra.mxu0 0.0
    %4690 = vmatprep.subr.mxu0 0.0
    %4691 = vmatpush2.msra.mxu0 0.0
    %4692 = vmatprep.subr.mxu0 0.0
    %4693 = vmatpush2.msra.mxu0 0.0
    %4694 = vmatprep.subr.mxu0 0.0
    %4695 = vmatpush2.msra.mxu0 0.0
    %4696 = vmatprep.subr.mxu0 0.0
    %4697 = vmatpush2.msra.mxu0 0.0
    %4698 = vmatprep.subr.mxu0 0.0
    %4699 = vmatpush2.msra.mxu0 0.0
    %4700 = vmatprep.subr.mxu0 0.0
    %4701 = vmatpush2.msra.mxu0 0.0
    %4702 = vmatprep.subr.mxu0 0.0
    %4703 = vmatpush2.msra.mxu0 0.0
    %4704 = vmatprep.subr.mxu0 0.0
    %4705 = vmatpush2.msra.mxu0 0.0
    %4706 = vmatprep.subr.mxu0 0.0
    %4707 = vmatpush2.msra.mxu0 0.0
    %4708 = vmatprep.mubr.f32.mxu0 0.0
    %4709 = vmatmul.mubr.f32.gmra.mxu0 %v4642
    %v4710 = vpop.f32.mrf.mxu0
    %v4711 = vadd.f32 %v443, %v4710
    %v4712 = vpop.f32.mrf.mxu0
    %4713 = vdwg.mxu0
    %s4714 = scalar_lea.vmem [#allocation8], 40
    %4715 = vst [vmem:[%s4714] sm:$0x3] %v4711
    %v4716 = vsel %vm631, %v4711, -inf
    %4717 = vmax.xlane.f32.xlu0 %v4716
    %v4718 = vpop.xlane.xlu0 %4717
    %vm4719 = vcmp.eq.f32.partialorder %v4711, %v4718
    %v4720 = vsel %vm4719, %v446, 128
    %v4721 = vsel %vm631, %v4720, 2147483647
    %v4722 = vand.u32 %v4721, 65535
    %v4723 = vshra.s32 %v4721, 16
    %v4724 = vcvt.s32.f32 %v4722
    %v4725 = vcvt.s32.f32 %v4723
    %4726 = vmin.xlane.f32.xlu0 %v4725
    %v4727 = vpop.xlane.xlu0 %4726
    %vm4728 = vcmp.eq.f32.partialorder %v4725, %v4727
    %v4729 = vsel %vm4728, %v4724, inf
    %4730 = vmin.xlane.f32.xlu0 %v4729
    %v4731 = vpop.xlane.xlu0 %4730
    %v4732 = vcvt.f32.s32 %v4731
    %v4733 = vcvt.f32.s32 %v4727
    %v4734 = vshll.u32 %v4733, 16
    %v4735 = vadd.s32 %v4734, %v4732
    %vm4736 = vcmp.eq.s32.totalorder %v446, %v4735
    %v4737 = vsel %vm4736, 1, 0
    %v4738 = vcvt.s32.f32 %v4737
    %4740 = vrot.lane.b32.xlu0 %v4738, 64
    %v4741 = vpop.permute.xlu0 %4740
    %v4743 = vsel %vm222, %v4640, %v4741
    %4744 = vmatprep.subr.mxu0 %v417
    %4745 = vmatpush1.msra.mxu0 %v416
    %4746 = vmatprep.subr.mxu0 %v415
    %4747 = vmatpush1.msra.mxu0 %v414
    %4748 = vmatprep.subr.mxu0 %v413
    %4749 = vmatpush1.msra.mxu0 %v412
    %4750 = vmatprep.subr.mxu0 %v411
    %4751 = vmatpush1.msra.mxu0 %v410
    %4752 = vmatprep.subr.mxu0 %v409
    %4753 = vmatpush1.msra.mxu0 %v408
    %4754 = vmatprep.subr.mxu0 %v407
    %4755 = vmatpush1.msra.mxu0 %v406
    %4756 = vmatprep.subr.mxu0 %v405
    %4757 = vmatpush1.msra.mxu0 %v404
    %4758 = vmatprep.subr.mxu0 %v403
    %4759 = vmatpush1.msra.mxu0 %v402
    %4760 = vmatprep.subr.mxu0 %v401
    %4761 = vmatpush1.msra.mxu0 %v400
    %4762 = vmatprep.subr.mxu0 %v399
    %4763 = vmatpush1.msra.mxu0 %v398
    %4764 = vmatprep.subr.mxu0 %v397
    %4765 = vmatpush1.msra.mxu0 %v396
    %4766 = vmatprep.subr.mxu0 %v395
    %4767 = vmatpush1.msra.mxu0 %v394
    %4768 = vmatprep.subr.mxu0 %v393
    %4769 = vmatpush1.msra.mxu0 %v392
    %4770 = vmatprep.subr.mxu0 %v391
    %4771 = vmatpush1.msra.mxu0 %v390
    %4772 = vmatprep.subr.mxu0 %v389
    %4773 = vmatpush1.msra.mxu0 %v388
    %4774 = vmatprep.subr.mxu0 %v387
    %4775 = vmatpush1.msra.mxu0 %v386
    %4776 = vmatprep.subr.mxu0 0.0
    %4777 = vmatpush2.msra.mxu0 0.0
    %4778 = vmatprep.subr.mxu0 0.0
    %4779 = vmatpush2.msra.mxu0 0.0
    %4780 = vmatprep.subr.mxu0 0.0
    %4781 = vmatpush2.msra.mxu0 0.0
    %4782 = vmatprep.subr.mxu0 0.0
    %4783 = vmatpush2.msra.mxu0 0.0
    %4784 = vmatprep.subr.mxu0 0.0
    %4785 = vmatpush2.msra.mxu0 0.0
    %4786 = vmatprep.subr.mxu0 0.0
    %4787 = vmatpush2.msra.mxu0 0.0
    %4788 = vmatprep.subr.mxu0 0.0
    %4789 = vmatpush2.msra.mxu0 0.0
    %4790 = vmatprep.subr.mxu0 0.0
    %4791 = vmatpush2.msra.mxu0 0.0
    %4792 = vmatprep.subr.mxu0 0.0
    %4793 = vmatpush2.msra.mxu0 0.0
    %4794 = vmatprep.subr.mxu0 0.0
    %4795 = vmatpush2.msra.mxu0 0.0
    %4796 = vmatprep.subr.mxu0 0.0
    %4797 = vmatpush2.msra.mxu0 0.0
    %4798 = vmatprep.subr.mxu0 0.0
    %4799 = vmatpush2.msra.mxu0 0.0
    %4800 = vmatprep.subr.mxu0 0.0
    %4801 = vmatpush2.msra.mxu0 0.0
    %4802 = vmatprep.subr.mxu0 0.0
    %4803 = vmatpush2.msra.mxu0 0.0
    %4804 = vmatprep.subr.mxu0 0.0
    %4805 = vmatpush2.msra.mxu0 0.0
    %4806 = vmatprep.subr.mxu0 0.0
    %4807 = vmatpush2.msra.mxu0 0.0
    %4808 = vmatprep.mubr.f32.mxu0 0.0
    %4809 = vmatmul.mubr.f32.gmra.mxu0 %v4743
    %v4810 = vpop.f32.mrf.mxu0
    %v4811 = vadd.f32 %v431, %v4810
    %v4812 = vpop.f32.mrf.mxu0
    %v4813 = vadd.f32 %v435, %v4812
    %4814 = vdwg.mxu0
    %v4815 = vxor.u32 %v4811, 2147483648
    %v4816 = vxor.u32 %v4813, 2147483648
    %v4817 = vmul.f32 %v4815, 1.442695
    %v4818 = vpow.pop %v4817
    %v4819 = vmul.f32 %v4816, 1.442695
    %v4820 = vpow.pop %v4819
    %v4821 = vadd.f32 %v4818, 1.0
    %v4822 = vadd.f32 %v4820, 1.0
    %v4823 = vrcp.pop %v4821
    %v4824 = vmul.f32 1.0, %v4823
    %v4825 = vrcp.pop %v4822
    %v4826 = vmul.f32 1.0, %v4825
    %v4827 = vtanh.pop %v4813
    %v4828 = vmul.f32 %v4824, %v4634
    %4830 = vrot.lane.b32.xlu0 %v4827, 64
    %v4831 = vpop.permute.xlu0 %4830
    %v4833 = vmul.f32 %v4824, %v4831
    %4835 = vrot.lane.b32.xlu0 %v4833, 64
    %v4836 = vpop.permute.xlu0 %4835
    %v4838 = vadd.f32 %v4828, %v4836
    %v4839 = vtanh.pop %v4838
    %4841 = vrot.lane.b32.xlu0 %v4839, 64
    %v4842 = vpop.permute.xlu0 %4841
    %v4844 = vmul.f32 %v4826, %v4842
    %v4846 = vsel %vm222, %v4844, 0
    %4848 = vmatprep.subr.mxu0 0.0
    %4849 = vmatpush1.msra.mxu0 0.0
    %4850 = vmatprep.subr.mxu0 0.0
    %4851 = vmatpush1.msra.mxu0 0.0
    %4852 = vmatprep.subr.mxu0 0.0
    %4853 = vmatpush1.msra.mxu0 0.0
    %4854 = vmatprep.subr.mxu0 0.0
    %4855 = vmatpush1.msra.mxu0 0.0
    %4856 = vmatprep.subr.mxu0 0.0
    %4857 = vmatpush1.msra.mxu0 0.0
    %4858 = vmatprep.subr.mxu0 0.0
    %4859 = vmatpush1.msra.mxu0 0.0
    %4860 = vmatprep.subr.mxu0 0.0
    %4861 = vmatpush1.msra.mxu0 0.0
    %4862 = vmatprep.subr.mxu0 0.0
    %4863 = vmatpush1.msra.mxu0 0.0
    %4864 = vmatprep.subr.mxu0 0.0
    %4865 = vmatpush1.msra.mxu0 %v425
    %4866 = vmatprep.subr.mxu0 0.0
    %4867 = vmatpush1.msra.mxu0 %v424
    %4868 = vmatprep.subr.mxu0 0.0
    %4869 = vmatpush1.msra.mxu0 %v423
    %4870 = vmatprep.subr.mxu0 0.0
    %4871 = vmatpush1.msra.mxu0 %v422
    %4872 = vmatprep.subr.mxu0 0.0
    %4873 = vmatpush1.msra.mxu0 %v421
    %4874 = vmatprep.subr.mxu0 0.0
    %4875 = vmatpush1.msra.mxu0 %v420
    %4876 = vmatprep.subr.mxu0 0.0
    %4877 = vmatpush1.msra.mxu0 %v419
    %4878 = vmatprep.subr.mxu0 0.0
    %4879 = vmatpush1.msra.mxu0 %v418
    %4880 = vmatprep.subr.mxu0 0.0
    %4881 = vmatpush2.msra.mxu0 0.0
    %4882 = vmatprep.subr.mxu0 0.0
    %4883 = vmatpush2.msra.mxu0 0.0
    %4884 = vmatprep.subr.mxu0 0.0
    %4885 = vmatpush2.msra.mxu0 0.0
    %4886 = vmatprep.subr.mxu0 0.0
    %4887 = vmatpush2.msra.mxu0 0.0
    %4888 = vmatprep.subr.mxu0 0.0
    %4889 = vmatpush2.msra.mxu0 0.0
    %4890 = vmatprep.subr.mxu0 0.0
    %4891 = vmatpush2.msra.mxu0 0.0
    %4892 = vmatprep.subr.mxu0 0.0
    %4893 = vmatpush2.msra.mxu0 0.0
    %4894 = vmatprep.subr.mxu0 0.0
    %4895 = vmatpush2.msra.mxu0 0.0
    %4896 = vmatprep.subr.mxu0 0.0
    %4897 = vmatpush2.msra.mxu0 0.0
    %4898 = vmatprep.subr.mxu0 0.0
    %4899 = vmatpush2.msra.mxu0 0.0
    %4900 = vmatprep.subr.mxu0 0.0
    %4901 = vmatpush2.msra.mxu0 0.0
    %4902 = vmatprep.subr.mxu0 0.0
    %4903 = vmatpush2.msra.mxu0 0.0
    %4904 = vmatprep.subr.mxu0 0.0
    %4905 = vmatpush2.msra.mxu0 0.0
    %4906 = vmatprep.subr.mxu0 0.0
    %4907 = vmatpush2.msra.mxu0 0.0
    %4908 = vmatprep.subr.mxu0 0.0
    %4909 = vmatpush2.msra.mxu0 0.0
    %4910 = vmatprep.subr.mxu0 0.0
    %4911 = vmatpush2.msra.mxu0 0.0
    %4912 = vmatprep.mubr.f32.mxu0 0.0
    %4913 = vmatmul.mubr.f32.gmra.mxu0 %v4846
    %v4914 = vpop.f32.mrf.mxu0
    %v4915 = vadd.f32 %v443, %v4914
    %v4916 = vpop.f32.mrf.mxu0
    %4917 = vdwg.mxu0
    %s4918 = scalar_lea.vmem [#allocation8], 42
    %4919 = vst [vmem:[%s4918] sm:$0x3] %v4915
    %v4920 = vsel %vm631, %v4915, -inf
    %4921 = vmax.xlane.f32.xlu0 %v4920
    %v4922 = vpop.xlane.xlu0 %4921
    %vm4923 = vcmp.eq.f32.partialorder %v4915, %v4922
    %v4924 = vsel %vm4923, %v446, 128
    %v4925 = vsel %vm631, %v4924, 2147483647
    %v4926 = vand.u32 %v4925, 65535
    %v4927 = vshra.s32 %v4925, 16
    %v4928 = vcvt.s32.f32 %v4926
    %v4929 = vcvt.s32.f32 %v4927
    %4930 = vmin.xlane.f32.xlu0 %v4929
    %v4931 = vpop.xlane.xlu0 %4930
    %vm4932 = vcmp.eq.f32.partialorder %v4929, %v4931
    %v4933 = vsel %vm4932, %v4928, inf
    %4934 = vmin.xlane.f32.xlu0 %v4933
    %v4935 = vpop.xlane.xlu0 %4934
    %v4936 = vcvt.f32.s32 %v4935
    %v4937 = vcvt.f32.s32 %v4931
    %v4938 = vshll.u32 %v4937, 16
    %v4939 = vadd.s32 %v4938, %v4936
    %vm4940 = vcmp.eq.s32.totalorder %v446, %v4939
    %v4941 = vsel %vm4940, 1, 0
    %v4942 = vcvt.s32.f32 %v4941
    %4944 = vrot.lane.b32.xlu0 %v4942, 64
    %v4945 = vpop.permute.xlu0 %4944
    %v4947 = vsel %vm222, %v4844, %v4945
    %4948 = vmatprep.subr.mxu0 %v417
    %4949 = vmatpush1.msra.mxu0 %v416
    %4950 = vmatprep.subr.mxu0 %v415
    %4951 = vmatpush1.msra.mxu0 %v414
    %4952 = vmatprep.subr.mxu0 %v413
    %4953 = vmatpush1.msra.mxu0 %v412
    %4954 = vmatprep.subr.mxu0 %v411
    %4955 = vmatpush1.msra.mxu0 %v410
    %4956 = vmatprep.subr.mxu0 %v409
    %4957 = vmatpush1.msra.mxu0 %v408
    %4958 = vmatprep.subr.mxu0 %v407
    %4959 = vmatpush1.msra.mxu0 %v406
    %4960 = vmatprep.subr.mxu0 %v405
    %4961 = vmatpush1.msra.mxu0 %v404
    %4962 = vmatprep.subr.mxu0 %v403
    %4963 = vmatpush1.msra.mxu0 %v402
    %4964 = vmatprep.subr.mxu0 %v401
    %4965 = vmatpush1.msra.mxu0 %v400
    %4966 = vmatprep.subr.mxu0 %v399
    %4967 = vmatpush1.msra.mxu0 %v398
    %4968 = vmatprep.subr.mxu0 %v397
    %4969 = vmatpush1.msra.mxu0 %v396
    %4970 = vmatprep.subr.mxu0 %v395
    %4971 = vmatpush1.msra.mxu0 %v394
    %4972 = vmatprep.subr.mxu0 %v393
    %4973 = vmatpush1.msra.mxu0 %v392
    %4974 = vmatprep.subr.mxu0 %v391
    %4975 = vmatpush1.msra.mxu0 %v390
    %4976 = vmatprep.subr.mxu0 %v389
    %4977 = vmatpush1.msra.mxu0 %v388
    %4978 = vmatprep.subr.mxu0 %v387
    %4979 = vmatpush1.msra.mxu0 %v386
    %4980 = vmatprep.subr.mxu0 0.0
    %4981 = vmatpush2.msra.mxu0 0.0
    %4982 = vmatprep.subr.mxu0 0.0
    %4983 = vmatpush2.msra.mxu0 0.0
    %4984 = vmatprep.subr.mxu0 0.0
    %4985 = vmatpush2.msra.mxu0 0.0
    %4986 = vmatprep.subr.mxu0 0.0
    %4987 = vmatpush2.msra.mxu0 0.0
    %4988 = vmatprep.subr.mxu0 0.0
    %4989 = vmatpush2.msra.mxu0 0.0
    %4990 = vmatprep.subr.mxu0 0.0
    %4991 = vmatpush2.msra.mxu0 0.0
    %4992 = vmatprep.subr.mxu0 0.0
    %4993 = vmatpush2.msra.mxu0 0.0
    %4994 = vmatprep.subr.mxu0 0.0
    %4995 = vmatpush2.msra.mxu0 0.0
    %4996 = vmatprep.subr.mxu0 0.0
    %4997 = vmatpush2.msra.mxu0 0.0
    %4998 = vmatprep.subr.mxu0 0.0
    %4999 = vmatpush2.msra.mxu0 0.0
    %5000 = vmatprep.subr.mxu0 0.0
    %5001 = vmatpush2.msra.mxu0 0.0
    %5002 = vmatprep.subr.mxu0 0.0
    %5003 = vmatpush2.msra.mxu0 0.0
    %5004 = vmatprep.subr.mxu0 0.0
    %5005 = vmatpush2.msra.mxu0 0.0
    %5006 = vmatprep.subr.mxu0 0.0
    %5007 = vmatpush2.msra.mxu0 0.0
    %5008 = vmatprep.subr.mxu0 0.0
    %5009 = vmatpush2.msra.mxu0 0.0
    %5010 = vmatprep.subr.mxu0 0.0
    %5011 = vmatpush2.msra.mxu0 0.0
    %5012 = vmatprep.mubr.f32.mxu0 0.0
    %5013 = vmatmul.mubr.f32.gmra.mxu0 %v4947
    %v5014 = vpop.f32.mrf.mxu0
    %v5015 = vadd.f32 %v431, %v5014
    %v5016 = vpop.f32.mrf.mxu0
    %v5017 = vadd.f32 %v435, %v5016
    %5018 = vdwg.mxu0
    %v5019 = vxor.u32 %v5015, 2147483648
    %v5020 = vxor.u32 %v5017, 2147483648
    %v5021 = vmul.f32 %v5019, 1.442695
    %v5022 = vpow.pop %v5021
    %v5023 = vmul.f32 %v5020, 1.442695
    %v5024 = vpow.pop %v5023
    %v5025 = vadd.f32 %v5022, 1.0
    %v5026 = vadd.f32 %v5024, 1.0
    %v5027 = vrcp.pop %v5025
    %v5028 = vmul.f32 1.0, %v5027
    %v5029 = vrcp.pop %v5026
    %v5030 = vmul.f32 1.0, %v5029
    %v5031 = vtanh.pop %v5017
    %v5032 = vmul.f32 %v5028, %v4838
    %5034 = vrot.lane.b32.xlu0 %v5031, 64
    %v5035 = vpop.permute.xlu0 %5034
    %v5037 = vmul.f32 %v5028, %v5035
    %5039 = vrot.lane.b32.xlu0 %v5037, 64
    %v5040 = vpop.permute.xlu0 %5039
    %v5042 = vadd.f32 %v5032, %v5040
    %v5043 = vtanh.pop %v5042
    %5045 = vrot.lane.b32.xlu0 %v5043, 64
    %v5046 = vpop.permute.xlu0 %5045
    %v5048 = vmul.f32 %v5030, %v5046
    %v5050 = vsel %vm222, %v5048, 0
    %5052 = vmatprep.subr.mxu0 0.0
    %5053 = vmatpush1.msra.mxu0 0.0
    %5054 = vmatprep.subr.mxu0 0.0
    %5055 = vmatpush1.msra.mxu0 0.0
    %5056 = vmatprep.subr.mxu0 0.0
    %5057 = vmatpush1.msra.mxu0 0.0
    %5058 = vmatprep.subr.mxu0 0.0
    %5059 = vmatpush1.msra.mxu0 0.0
    %5060 = vmatprep.subr.mxu0 0.0
    %5061 = vmatpush1.msra.mxu0 0.0
    %5062 = vmatprep.subr.mxu0 0.0
    %5063 = vmatpush1.msra.mxu0 0.0
    %5064 = vmatprep.subr.mxu0 0.0
    %5065 = vmatpush1.msra.mxu0 0.0
    %5066 = vmatprep.subr.mxu0 0.0
    %5067 = vmatpush1.msra.mxu0 0.0
    %5068 = vmatprep.subr.mxu0 0.0
    %5069 = vmatpush1.msra.mxu0 %v425
    %5070 = vmatprep.subr.mxu0 0.0
    %5071 = vmatpush1.msra.mxu0 %v424
    %5072 = vmatprep.subr.mxu0 0.0
    %5073 = vmatpush1.msra.mxu0 %v423
    %5074 = vmatprep.subr.mxu0 0.0
    %5075 = vmatpush1.msra.mxu0 %v422
    %5076 = vmatprep.subr.mxu0 0.0
    %5077 = vmatpush1.msra.mxu0 %v421
    %5078 = vmatprep.subr.mxu0 0.0
    %5079 = vmatpush1.msra.mxu0 %v420
    %5080 = vmatprep.subr.mxu0 0.0
    %5081 = vmatpush1.msra.mxu0 %v419
    %5082 = vmatprep.subr.mxu0 0.0
    %5083 = vmatpush1.msra.mxu0 %v418
    %5084 = vmatprep.subr.mxu0 0.0
    %5085 = vmatpush2.msra.mxu0 0.0
    %5086 = vmatprep.subr.mxu0 0.0
    %5087 = vmatpush2.msra.mxu0 0.0
    %5088 = vmatprep.subr.mxu0 0.0
    %5089 = vmatpush2.msra.mxu0 0.0
    %5090 = vmatprep.subr.mxu0 0.0
    %5091 = vmatpush2.msra.mxu0 0.0
    %5092 = vmatprep.subr.mxu0 0.0
    %5093 = vmatpush2.msra.mxu0 0.0
    %5094 = vmatprep.subr.mxu0 0.0
    %5095 = vmatpush2.msra.mxu0 0.0
    %5096 = vmatprep.subr.mxu0 0.0
    %5097 = vmatpush2.msra.mxu0 0.0
    %5098 = vmatprep.subr.mxu0 0.0
    %5099 = vmatpush2.msra.mxu0 0.0
    %5100 = vmatprep.subr.mxu0 0.0
    %5101 = vmatpush2.msra.mxu0 0.0
    %5102 = vmatprep.subr.mxu0 0.0
    %5103 = vmatpush2.msra.mxu0 0.0
    %5104 = vmatprep.subr.mxu0 0.0
    %5105 = vmatpush2.msra.mxu0 0.0
    %5106 = vmatprep.subr.mxu0 0.0
    %5107 = vmatpush2.msra.mxu0 0.0
    %5108 = vmatprep.subr.mxu0 0.0
    %5109 = vmatpush2.msra.mxu0 0.0
    %5110 = vmatprep.subr.mxu0 0.0
    %5111 = vmatpush2.msra.mxu0 0.0
    %5112 = vmatprep.subr.mxu0 0.0
    %5113 = vmatpush2.msra.mxu0 0.0
    %5114 = vmatprep.subr.mxu0 0.0
    %5115 = vmatpush2.msra.mxu0 0.0
    %5116 = vmatprep.mubr.f32.mxu0 0.0
    %5117 = vmatmul.mubr.f32.gmra.mxu0 %v5050
    %v5118 = vpop.f32.mrf.mxu0
    %v5119 = vadd.f32 %v443, %v5118
    %v5120 = vpop.f32.mrf.mxu0
    %5121 = vdwg.mxu0
    %s5122 = scalar_lea.vmem [#allocation8], 44
    %5123 = vst [vmem:[%s5122] sm:$0x3] %v5119
    %v5124 = vsel %vm631, %v5119, -inf
    %5125 = vmax.xlane.f32.xlu0 %v5124
    %v5126 = vpop.xlane.xlu0 %5125
    %vm5127 = vcmp.eq.f32.partialorder %v5119, %v5126
    %v5128 = vsel %vm5127, %v446, 128
    %v5129 = vsel %vm631, %v5128, 2147483647
    %v5130 = vand.u32 %v5129, 65535
    %v5131 = vshra.s32 %v5129, 16
    %v5132 = vcvt.s32.f32 %v5130
    %v5133 = vcvt.s32.f32 %v5131
    %5134 = vmin.xlane.f32.xlu0 %v5133
    %v5135 = vpop.xlane.xlu0 %5134
    %vm5136 = vcmp.eq.f32.partialorder %v5133, %v5135
    %v5137 = vsel %vm5136, %v5132, inf
    %5138 = vmin.xlane.f32.xlu0 %v5137
    %v5139 = vpop.xlane.xlu0 %5138
    %v5140 = vcvt.f32.s32 %v5139
    %v5141 = vcvt.f32.s32 %v5135
    %v5142 = vshll.u32 %v5141, 16
    %v5143 = vadd.s32 %v5142, %v5140
    %vm5144 = vcmp.eq.s32.totalorder %v446, %v5143
    %v5145 = vsel %vm5144, 1, 0
    %v5146 = vcvt.s32.f32 %v5145
    %5148 = vrot.lane.b32.xlu0 %v5146, 64
    %v5149 = vpop.permute.xlu0 %5148
    %v5151 = vsel %vm222, %v5048, %v5149
    %5152 = vmatprep.subr.mxu0 %v417
    %5153 = vmatpush1.msra.mxu0 %v416
    %5154 = vmatprep.subr.mxu0 %v415
    %5155 = vmatpush1.msra.mxu0 %v414
    %5156 = vmatprep.subr.mxu0 %v413
    %5157 = vmatpush1.msra.mxu0 %v412
    %5158 = vmatprep.subr.mxu0 %v411
    %5159 = vmatpush1.msra.mxu0 %v410
    %5160 = vmatprep.subr.mxu0 %v409
    %5161 = vmatpush1.msra.mxu0 %v408
    %5162 = vmatprep.subr.mxu0 %v407
    %5163 = vmatpush1.msra.mxu0 %v406
    %5164 = vmatprep.subr.mxu0 %v405
    %5165 = vmatpush1.msra.mxu0 %v404
    %5166 = vmatprep.subr.mxu0 %v403
    %5167 = vmatpush1.msra.mxu0 %v402
    %5168 = vmatprep.subr.mxu0 %v401
    %5169 = vmatpush1.msra.mxu0 %v400
    %5170 = vmatprep.subr.mxu0 %v399
    %5171 = vmatpush1.msra.mxu0 %v398
    %5172 = vmatprep.subr.mxu0 %v397
    %5173 = vmatpush1.msra.mxu0 %v396
    %5174 = vmatprep.subr.mxu0 %v395
    %5175 = vmatpush1.msra.mxu0 %v394
    %5176 = vmatprep.subr.mxu0 %v393
    %5177 = vmatpush1.msra.mxu0 %v392
    %5178 = vmatprep.subr.mxu0 %v391
    %5179 = vmatpush1.msra.mxu0 %v390
    %5180 = vmatprep.subr.mxu0 %v389
    %5181 = vmatpush1.msra.mxu0 %v388
    %5182 = vmatprep.subr.mxu0 %v387
    %5183 = vmatpush1.msra.mxu0 %v386
    %5184 = vmatprep.subr.mxu0 0.0
    %5185 = vmatpush2.msra.mxu0 0.0
    %5186 = vmatprep.subr.mxu0 0.0
    %5187 = vmatpush2.msra.mxu0 0.0
    %5188 = vmatprep.subr.mxu0 0.0
    %5189 = vmatpush2.msra.mxu0 0.0
    %5190 = vmatprep.subr.mxu0 0.0
    %5191 = vmatpush2.msra.mxu0 0.0
    %5192 = vmatprep.subr.mxu0 0.0
    %5193 = vmatpush2.msra.mxu0 0.0
    %5194 = vmatprep.subr.mxu0 0.0
    %5195 = vmatpush2.msra.mxu0 0.0
    %5196 = vmatprep.subr.mxu0 0.0
    %5197 = vmatpush2.msra.mxu0 0.0
    %5198 = vmatprep.subr.mxu0 0.0
    %5199 = vmatpush2.msra.mxu0 0.0
    %5200 = vmatprep.subr.mxu0 0.0
    %5201 = vmatpush2.msra.mxu0 0.0
    %5202 = vmatprep.subr.mxu0 0.0
    %5203 = vmatpush2.msra.mxu0 0.0
    %5204 = vmatprep.subr.mxu0 0.0
    %5205 = vmatpush2.msra.mxu0 0.0
    %5206 = vmatprep.subr.mxu0 0.0
    %5207 = vmatpush2.msra.mxu0 0.0
    %5208 = vmatprep.subr.mxu0 0.0
    %5209 = vmatpush2.msra.mxu0 0.0
    %5210 = vmatprep.subr.mxu0 0.0
    %5211 = vmatpush2.msra.mxu0 0.0
    %5212 = vmatprep.subr.mxu0 0.0
    %5213 = vmatpush2.msra.mxu0 0.0
    %5214 = vmatprep.subr.mxu0 0.0
    %5215 = vmatpush2.msra.mxu0 0.0
    %5216 = vmatprep.mubr.f32.mxu0 0.0
    %5217 = vmatmul.mubr.f32.gmra.mxu0 %v5151
    %v5218 = vpop.f32.mrf.mxu0
    %v5219 = vadd.f32 %v431, %v5218
    %v5220 = vpop.f32.mrf.mxu0
    %v5221 = vadd.f32 %v435, %v5220
    %5222 = vdwg.mxu0
    %v5223 = vxor.u32 %v5219, 2147483648
    %v5224 = vxor.u32 %v5221, 2147483648
    %v5225 = vmul.f32 %v5223, 1.442695
    %v5226 = vpow.pop %v5225
    %v5227 = vmul.f32 %v5224, 1.442695
    %v5228 = vpow.pop %v5227
    %v5229 = vadd.f32 %v5226, 1.0
    %v5230 = vadd.f32 %v5228, 1.0
    %v5231 = vrcp.pop %v5229
    %v5232 = vmul.f32 1.0, %v5231
    %v5233 = vrcp.pop %v5230
    %v5234 = vmul.f32 1.0, %v5233
    %v5235 = vtanh.pop %v5221
    %v5236 = vmul.f32 %v5232, %v5042
    %5238 = vrot.lane.b32.xlu0 %v5235, 64
    %v5239 = vpop.permute.xlu0 %5238
    %v5241 = vmul.f32 %v5232, %v5239
    %5243 = vrot.lane.b32.xlu0 %v5241, 64
    %v5244 = vpop.permute.xlu0 %5243
    %v5246 = vadd.f32 %v5236, %v5244
    %v5247 = vtanh.pop %v5246
    %5249 = vrot.lane.b32.xlu0 %v5247, 64
    %v5250 = vpop.permute.xlu0 %5249
    %v5252 = vmul.f32 %v5234, %v5250
    %v5254 = vsel %vm222, %v5252, 0
    %5256 = vmatprep.subr.mxu0 0.0
    %5257 = vmatpush1.msra.mxu0 0.0
    %5258 = vmatprep.subr.mxu0 0.0
    %5259 = vmatpush1.msra.mxu0 0.0
    %5260 = vmatprep.subr.mxu0 0.0
    %5261 = vmatpush1.msra.mxu0 0.0
    %5262 = vmatprep.subr.mxu0 0.0
    %5263 = vmatpush1.msra.mxu0 0.0
    %5264 = vmatprep.subr.mxu0 0.0
    %5265 = vmatpush1.msra.mxu0 0.0
    %5266 = vmatprep.subr.mxu0 0.0
    %5267 = vmatpush1.msra.mxu0 0.0
    %5268 = vmatprep.subr.mxu0 0.0
    %5269 = vmatpush1.msra.mxu0 0.0
    %5270 = vmatprep.subr.mxu0 0.0
    %5271 = vmatpush1.msra.mxu0 0.0
    %5272 = vmatprep.subr.mxu0 0.0
    %5273 = vmatpush1.msra.mxu0 %v425
    %5274 = vmatprep.subr.mxu0 0.0
    %5275 = vmatpush1.msra.mxu0 %v424
    %5276 = vmatprep.subr.mxu0 0.0
    %5277 = vmatpush1.msra.mxu0 %v423
    %5278 = vmatprep.subr.mxu0 0.0
    %5279 = vmatpush1.msra.mxu0 %v422
    %5280 = vmatprep.subr.mxu0 0.0
    %5281 = vmatpush1.msra.mxu0 %v421
    %5282 = vmatprep.subr.mxu0 0.0
    %5283 = vmatpush1.msra.mxu0 %v420
    %5284 = vmatprep.subr.mxu0 0.0
    %5285 = vmatpush1.msra.mxu0 %v419
    %5286 = vmatprep.subr.mxu0 0.0
    %5287 = vmatpush1.msra.mxu0 %v418
    %5288 = vmatprep.subr.mxu0 0.0
    %5289 = vmatpush2.msra.mxu0 0.0
    %5290 = vmatprep.subr.mxu0 0.0
    %5291 = vmatpush2.msra.mxu0 0.0
    %5292 = vmatprep.subr.mxu0 0.0
    %5293 = vmatpush2.msra.mxu0 0.0
    %5294 = vmatprep.subr.mxu0 0.0
    %5295 = vmatpush2.msra.mxu0 0.0
    %5296 = vmatprep.subr.mxu0 0.0
    %5297 = vmatpush2.msra.mxu0 0.0
    %5298 = vmatprep.subr.mxu0 0.0
    %5299 = vmatpush2.msra.mxu0 0.0
    %5300 = vmatprep.subr.mxu0 0.0
    %5301 = vmatpush2.msra.mxu0 0.0
    %5302 = vmatprep.subr.mxu0 0.0
    %5303 = vmatpush2.msra.mxu0 0.0
    %5304 = vmatprep.subr.mxu0 0.0
    %5305 = vmatpush2.msra.mxu0 0.0
    %5306 = vmatprep.subr.mxu0 0.0
    %5307 = vmatpush2.msra.mxu0 0.0
    %5308 = vmatprep.subr.mxu0 0.0
    %5309 = vmatpush2.msra.mxu0 0.0
    %5310 = vmatprep.subr.mxu0 0.0
    %5311 = vmatpush2.msra.mxu0 0.0
    %5312 = vmatprep.subr.mxu0 0.0
    %5313 = vmatpush2.msra.mxu0 0.0
    %5314 = vmatprep.subr.mxu0 0.0
    %5315 = vmatpush2.msra.mxu0 0.0
    %5316 = vmatprep.subr.mxu0 0.0
    %5317 = vmatpush2.msra.mxu0 0.0
    %5318 = vmatprep.subr.mxu0 0.0
    %5319 = vmatpush2.msra.mxu0 0.0
    %5320 = vmatprep.mubr.f32.mxu0 0.0
    %5321 = vmatmul.mubr.f32.gmra.mxu0 %v5254
    %v5322 = vpop.f32.mrf.mxu0
    %v5323 = vadd.f32 %v443, %v5322
    %v5324 = vpop.f32.mrf.mxu0
    %5325 = vdwg.mxu0
    %s5326 = scalar_lea.vmem [#allocation8], 46
    %5327 = vst [vmem:[%s5326] sm:$0x3] %v5323
    %v5328 = vsel %vm631, %v5323, -inf
    %5329 = vmax.xlane.f32.xlu0 %v5328
    %v5330 = vpop.xlane.xlu0 %5329
    %vm5331 = vcmp.eq.f32.partialorder %v5323, %v5330
    %v5332 = vsel %vm5331, %v446, 128
    %v5333 = vsel %vm631, %v5332, 2147483647
    %v5334 = vand.u32 %v5333, 65535
    %v5335 = vshra.s32 %v5333, 16
    %v5336 = vcvt.s32.f32 %v5334
    %v5337 = vcvt.s32.f32 %v5335
    %5338 = vmin.xlane.f32.xlu0 %v5337
    %v5339 = vpop.xlane.xlu0 %5338
    %vm5340 = vcmp.eq.f32.partialorder %v5337, %v5339
    %v5341 = vsel %vm5340, %v5336, inf
    %5342 = vmin.xlane.f32.xlu0 %v5341
    %v5343 = vpop.xlane.xlu0 %5342
    %v5344 = vcvt.f32.s32 %v5343
    %v5345 = vcvt.f32.s32 %v5339
    %v5346 = vshll.u32 %v5345, 16
    %v5347 = vadd.s32 %v5346, %v5344
    %vm5348 = vcmp.eq.s32.totalorder %v446, %v5347
    %v5349 = vsel %vm5348, 1, 0
    %v5350 = vcvt.s32.f32 %v5349
    %5352 = vrot.lane.b32.xlu0 %v5350, 64
    %v5353 = vpop.permute.xlu0 %5352
    %v5355 = vsel %vm222, %v5252, %v5353
    %5356 = vmatprep.subr.mxu0 %v417
    %5357 = vmatpush1.msra.mxu0 %v416
    %5358 = vmatprep.subr.mxu0 %v415
    %5359 = vmatpush1.msra.mxu0 %v414
    %5360 = vmatprep.subr.mxu0 %v413
    %5361 = vmatpush1.msra.mxu0 %v412
    %5362 = vmatprep.subr.mxu0 %v411
    %5363 = vmatpush1.msra.mxu0 %v410
    %5364 = vmatprep.subr.mxu0 %v409
    %5365 = vmatpush1.msra.mxu0 %v408
    %5366 = vmatprep.subr.mxu0 %v407
    %5367 = vmatpush1.msra.mxu0 %v406
    %5368 = vmatprep.subr.mxu0 %v405
    %5369 = vmatpush1.msra.mxu0 %v404
    %5370 = vmatprep.subr.mxu0 %v403
    %5371 = vmatpush1.msra.mxu0 %v402
    %5372 = vmatprep.subr.mxu0 %v401
    %5373 = vmatpush1.msra.mxu0 %v400
    %5374 = vmatprep.subr.mxu0 %v399
    %5375 = vmatpush1.msra.mxu0 %v398
    %5376 = vmatprep.subr.mxu0 %v397
    %5377 = vmatpush1.msra.mxu0 %v396
    %5378 = vmatprep.subr.mxu0 %v395
    %5379 = vmatpush1.msra.mxu0 %v394
    %5380 = vmatprep.subr.mxu0 %v393
    %5381 = vmatpush1.msra.mxu0 %v392
    %5382 = vmatprep.subr.mxu0 %v391
    %5383 = vmatpush1.msra.mxu0 %v390
    %5384 = vmatprep.subr.mxu0 %v389
    %5385 = vmatpush1.msra.mxu0 %v388
    %5386 = vmatprep.subr.mxu0 %v387
    %5387 = vmatpush1.msra.mxu0 %v386
    %5388 = vmatprep.subr.mxu0 0.0
    %5389 = vmatpush2.msra.mxu0 0.0
    %5390 = vmatprep.subr.mxu0 0.0
    %5391 = vmatpush2.msra.mxu0 0.0
    %5392 = vmatprep.subr.mxu0 0.0
    %5393 = vmatpush2.msra.mxu0 0.0
    %5394 = vmatprep.subr.mxu0 0.0
    %5395 = vmatpush2.msra.mxu0 0.0
    %5396 = vmatprep.subr.mxu0 0.0
    %5397 = vmatpush2.msra.mxu0 0.0
    %5398 = vmatprep.subr.mxu0 0.0
    %5399 = vmatpush2.msra.mxu0 0.0
    %5400 = vmatprep.subr.mxu0 0.0
    %5401 = vmatpush2.msra.mxu0 0.0
    %5402 = vmatprep.subr.mxu0 0.0
    %5403 = vmatpush2.msra.mxu0 0.0
    %5404 = vmatprep.subr.mxu0 0.0
    %5405 = vmatpush2.msra.mxu0 0.0
    %5406 = vmatprep.subr.mxu0 0.0
    %5407 = vmatpush2.msra.mxu0 0.0
    %5408 = vmatprep.subr.mxu0 0.0
    %5409 = vmatpush2.msra.mxu0 0.0
    %5410 = vmatprep.subr.mxu0 0.0
    %5411 = vmatpush2.msra.mxu0 0.0
    %5412 = vmatprep.subr.mxu0 0.0
    %5413 = vmatpush2.msra.mxu0 0.0
    %5414 = vmatprep.subr.mxu0 0.0
    %5415 = vmatpush2.msra.mxu0 0.0
    %5416 = vmatprep.subr.mxu0 0.0
    %5417 = vmatpush2.msra.mxu0 0.0
    %5418 = vmatprep.subr.mxu0 0.0
    %5419 = vmatpush2.msra.mxu0 0.0
    %5420 = vmatprep.mubr.f32.mxu0 0.0
    %5421 = vmatmul.mubr.f32.gmra.mxu0 %v5355
    %v5422 = vpop.f32.mrf.mxu0
    %v5423 = vadd.f32 %v431, %v5422
    %v5424 = vpop.f32.mrf.mxu0
    %v5425 = vadd.f32 %v435, %v5424
    %5426 = vdwg.mxu0
    %v5427 = vxor.u32 %v5423, 2147483648
    %v5428 = vxor.u32 %v5425, 2147483648
    %v5429 = vmul.f32 %v5427, 1.442695
    %v5430 = vpow.pop %v5429
    %v5431 = vmul.f32 %v5428, 1.442695
    %v5432 = vpow.pop %v5431
    %v5433 = vadd.f32 %v5430, 1.0
    %v5434 = vadd.f32 %v5432, 1.0
    %v5435 = vrcp.pop %v5433
    %v5436 = vmul.f32 1.0, %v5435
    %v5437 = vrcp.pop %v5434
    %v5438 = vmul.f32 1.0, %v5437
    %v5439 = vtanh.pop %v5425
    %v5440 = vmul.f32 %v5436, %v5246
    %5442 = vrot.lane.b32.xlu0 %v5439, 64
    %v5443 = vpop.permute.xlu0 %5442
    %v5445 = vmul.f32 %v5436, %v5443
    %5447 = vrot.lane.b32.xlu0 %v5445, 64
    %v5448 = vpop.permute.xlu0 %5447
    %v5450 = vadd.f32 %v5440, %v5448
    %v5451 = vtanh.pop %v5450
    %5453 = vrot.lane.b32.xlu0 %v5451, 64
    %v5454 = vpop.permute.xlu0 %5453
    %v5456 = vmul.f32 %v5438, %v5454
    %v5458 = vsel %vm222, %v5456, 0
    %5460 = vmatprep.subr.mxu0 0.0
    %5461 = vmatpush1.msra.mxu0 0.0
    %5462 = vmatprep.subr.mxu0 0.0
    %5463 = vmatpush1.msra.mxu0 0.0
    %5464 = vmatprep.subr.mxu0 0.0
    %5465 = vmatpush1.msra.mxu0 0.0
    %5466 = vmatprep.subr.mxu0 0.0
    %5467 = vmatpush1.msra.mxu0 0.0
    %5468 = vmatprep.subr.mxu0 0.0
    %5469 = vmatpush1.msra.mxu0 0.0
    %5470 = vmatprep.subr.mxu0 0.0
    %5471 = vmatpush1.msra.mxu0 0.0
    %5472 = vmatprep.subr.mxu0 0.0
    %5473 = vmatpush1.msra.mxu0 0.0
    %5474 = vmatprep.subr.mxu0 0.0
    %5475 = vmatpush1.msra.mxu0 0.0
    %5476 = vmatprep.subr.mxu0 0.0
    %5477 = vmatpush1.msra.mxu0 %v425
    %5478 = vmatprep.subr.mxu0 0.0
    %5479 = vmatpush1.msra.mxu0 %v424
    %5480 = vmatprep.subr.mxu0 0.0
    %5481 = vmatpush1.msra.mxu0 %v423
    %5482 = vmatprep.subr.mxu0 0.0
    %5483 = vmatpush1.msra.mxu0 %v422
    %5484 = vmatprep.subr.mxu0 0.0
    %5485 = vmatpush1.msra.mxu0 %v421
    %5486 = vmatprep.subr.mxu0 0.0
    %5487 = vmatpush1.msra.mxu0 %v420
    %5488 = vmatprep.subr.mxu0 0.0
    %5489 = vmatpush1.msra.mxu0 %v419
    %5490 = vmatprep.subr.mxu0 0.0
    %5491 = vmatpush1.msra.mxu0 %v418
    %5492 = vmatprep.subr.mxu0 0.0
    %5493 = vmatpush2.msra.mxu0 0.0
    %5494 = vmatprep.subr.mxu0 0.0
    %5495 = vmatpush2.msra.mxu0 0.0
    %5496 = vmatprep.subr.mxu0 0.0
    %5497 = vmatpush2.msra.mxu0 0.0
    %5498 = vmatprep.subr.mxu0 0.0
    %5499 = vmatpush2.msra.mxu0 0.0
    %5500 = vmatprep.subr.mxu0 0.0
    %5501 = vmatpush2.msra.mxu0 0.0
    %5502 = vmatprep.subr.mxu0 0.0
    %5503 = vmatpush2.msra.mxu0 0.0
    %5504 = vmatprep.subr.mxu0 0.0
    %5505 = vmatpush2.msra.mxu0 0.0
    %5506 = vmatprep.subr.mxu0 0.0
    %5507 = vmatpush2.msra.mxu0 0.0
    %5508 = vmatprep.subr.mxu0 0.0
    %5509 = vmatpush2.msra.mxu0 0.0
    %5510 = vmatprep.subr.mxu0 0.0
    %5511 = vmatpush2.msra.mxu0 0.0
    %5512 = vmatprep.subr.mxu0 0.0
    %5513 = vmatpush2.msra.mxu0 0.0
    %5514 = vmatprep.subr.mxu0 0.0
    %5515 = vmatpush2.msra.mxu0 0.0
    %5516 = vmatprep.subr.mxu0 0.0
    %5517 = vmatpush2.msra.mxu0 0.0
    %5518 = vmatprep.subr.mxu0 0.0
    %5519 = vmatpush2.msra.mxu0 0.0
    %5520 = vmatprep.subr.mxu0 0.0
    %5521 = vmatpush2.msra.mxu0 0.0
    %5522 = vmatprep.subr.mxu0 0.0
    %5523 = vmatpush2.msra.mxu0 0.0
    %5524 = vmatprep.mubr.f32.mxu0 0.0
    %5525 = vmatmul.mubr.f32.gmra.mxu0 %v5458
    %v5526 = vpop.f32.mrf.mxu0
    %v5527 = vadd.f32 %v443, %v5526
    %v5528 = vpop.f32.mrf.mxu0
    %5529 = vdwg.mxu0
    %s5530 = scalar_lea.vmem [#allocation8], 48
    %5531 = vst [vmem:[%s5530] sm:$0x3] %v5527
    %v5532 = vsel %vm631, %v5527, -inf
    %5533 = vmax.xlane.f32.xlu0 %v5532
    %v5534 = vpop.xlane.xlu0 %5533
    %vm5535 = vcmp.eq.f32.partialorder %v5527, %v5534
    %v5536 = vsel %vm5535, %v446, 128
    %v5537 = vsel %vm631, %v5536, 2147483647
    %v5538 = vand.u32 %v5537, 65535
    %v5539 = vshra.s32 %v5537, 16
    %v5540 = vcvt.s32.f32 %v5538
    %v5541 = vcvt.s32.f32 %v5539
    %5542 = vmin.xlane.f32.xlu0 %v5541
    %v5543 = vpop.xlane.xlu0 %5542
    %vm5544 = vcmp.eq.f32.partialorder %v5541, %v5543
    %v5545 = vsel %vm5544, %v5540, inf
    %5546 = vmin.xlane.f32.xlu0 %v5545
    %v5547 = vpop.xlane.xlu0 %5546
    %v5548 = vcvt.f32.s32 %v5547
    %v5549 = vcvt.f32.s32 %v5543
    %v5550 = vshll.u32 %v5549, 16
    %v5551 = vadd.s32 %v5550, %v5548
    %vm5552 = vcmp.eq.s32.totalorder %v446, %v5551
    %v5553 = vsel %vm5552, 1, 0
    %v5554 = vcvt.s32.f32 %v5553
    %5556 = vrot.lane.b32.xlu0 %v5554, 64
    %v5557 = vpop.permute.xlu0 %5556
    %v5559 = vsel %vm222, %v5456, %v5557
    %5560 = vmatprep.subr.mxu0 %v417
    %5561 = vmatpush1.msra.mxu0 %v416
    %5562 = vmatprep.subr.mxu0 %v415
    %5563 = vmatpush1.msra.mxu0 %v414
    %5564 = vmatprep.subr.mxu0 %v413
    %5565 = vmatpush1.msra.mxu0 %v412
    %5566 = vmatprep.subr.mxu0 %v411
    %5567 = vmatpush1.msra.mxu0 %v410
    %5568 = vmatprep.subr.mxu0 %v409
    %5569 = vmatpush1.msra.mxu0 %v408
    %5570 = vmatprep.subr.mxu0 %v407
    %5571 = vmatpush1.msra.mxu0 %v406
    %5572 = vmatprep.subr.mxu0 %v405
    %5573 = vmatpush1.msra.mxu0 %v404
    %5574 = vmatprep.subr.mxu0 %v403
    %5575 = vmatpush1.msra.mxu0 %v402
    %5576 = vmatprep.subr.mxu0 %v401
    %5577 = vmatpush1.msra.mxu0 %v400
    %5578 = vmatprep.subr.mxu0 %v399
    %5579 = vmatpush1.msra.mxu0 %v398
    %5580 = vmatprep.subr.mxu0 %v397
    %5581 = vmatpush1.msra.mxu0 %v396
    %5582 = vmatprep.subr.mxu0 %v395
    %5583 = vmatpush1.msra.mxu0 %v394
    %5584 = vmatprep.subr.mxu0 %v393
    %5585 = vmatpush1.msra.mxu0 %v392
    %5586 = vmatprep.subr.mxu0 %v391
    %5587 = vmatpush1.msra.mxu0 %v390
    %5588 = vmatprep.subr.mxu0 %v389
    %5589 = vmatpush1.msra.mxu0 %v388
    %5590 = vmatprep.subr.mxu0 %v387
    %5591 = vmatpush1.msra.mxu0 %v386
    %5592 = vmatprep.subr.mxu0 0.0
    %5593 = vmatpush2.msra.mxu0 0.0
    %5594 = vmatprep.subr.mxu0 0.0
    %5595 = vmatpush2.msra.mxu0 0.0
    %5596 = vmatprep.subr.mxu0 0.0
    %5597 = vmatpush2.msra.mxu0 0.0
    %5598 = vmatprep.subr.mxu0 0.0
    %5599 = vmatpush2.msra.mxu0 0.0
    %5600 = vmatprep.subr.mxu0 0.0
    %5601 = vmatpush2.msra.mxu0 0.0
    %5602 = vmatprep.subr.mxu0 0.0
    %5603 = vmatpush2.msra.mxu0 0.0
    %5604 = vmatprep.subr.mxu0 0.0
    %5605 = vmatpush2.msra.mxu0 0.0
    %5606 = vmatprep.subr.mxu0 0.0
    %5607 = vmatpush2.msra.mxu0 0.0
    %5608 = vmatprep.subr.mxu0 0.0
    %5609 = vmatpush2.msra.mxu0 0.0
    %5610 = vmatprep.subr.mxu0 0.0
    %5611 = vmatpush2.msra.mxu0 0.0
    %5612 = vmatprep.subr.mxu0 0.0
    %5613 = vmatpush2.msra.mxu0 0.0
    %5614 = vmatprep.subr.mxu0 0.0
    %5615 = vmatpush2.msra.mxu0 0.0
    %5616 = vmatprep.subr.mxu0 0.0
    %5617 = vmatpush2.msra.mxu0 0.0
    %5618 = vmatprep.subr.mxu0 0.0
    %5619 = vmatpush2.msra.mxu0 0.0
    %5620 = vmatprep.subr.mxu0 0.0
    %5621 = vmatpush2.msra.mxu0 0.0
    %5622 = vmatprep.subr.mxu0 0.0
    %5623 = vmatpush2.msra.mxu0 0.0
    %5624 = vmatprep.mubr.f32.mxu0 0.0
    %5625 = vmatmul.mubr.f32.gmra.mxu0 %v5559
    %v5626 = vpop.f32.mrf.mxu0
    %v5627 = vadd.f32 %v431, %v5626
    %v5628 = vpop.f32.mrf.mxu0
    %v5629 = vadd.f32 %v435, %v5628
    %5630 = vdwg.mxu0
    %v5631 = vxor.u32 %v5627, 2147483648
    %v5632 = vxor.u32 %v5629, 2147483648
    %v5633 = vmul.f32 %v5631, 1.442695
    %v5634 = vpow.pop %v5633
    %v5635 = vmul.f32 %v5632, 1.442695
    %v5636 = vpow.pop %v5635
    %v5637 = vadd.f32 %v5634, 1.0
    %v5638 = vadd.f32 %v5636, 1.0
    %v5639 = vrcp.pop %v5637
    %v5640 = vmul.f32 1.0, %v5639
    %v5641 = vrcp.pop %v5638
    %v5642 = vmul.f32 1.0, %v5641
    %v5643 = vtanh.pop %v5629
    %v5644 = vmul.f32 %v5640, %v5450
    %5646 = vrot.lane.b32.xlu0 %v5643, 64
    %v5647 = vpop.permute.xlu0 %5646
    %v5649 = vmul.f32 %v5640, %v5647
    %5651 = vrot.lane.b32.xlu0 %v5649, 64
    %v5652 = vpop.permute.xlu0 %5651
    %v5654 = vadd.f32 %v5644, %v5652
    %v5655 = vtanh.pop %v5654
    %5657 = vrot.lane.b32.xlu0 %v5655, 64
    %v5658 = vpop.permute.xlu0 %5657
    %v5660 = vmul.f32 %v5642, %v5658
    %v5662 = vsel %vm222, %v5660, 0
    %5664 = vmatprep.subr.mxu0 0.0
    %5665 = vmatpush1.msra.mxu0 0.0
    %5666 = vmatprep.subr.mxu0 0.0
    %5667 = vmatpush1.msra.mxu0 0.0
    %5668 = vmatprep.subr.mxu0 0.0
    %5669 = vmatpush1.msra.mxu0 0.0
    %5670 = vmatprep.subr.mxu0 0.0
    %5671 = vmatpush1.msra.mxu0 0.0
    %5672 = vmatprep.subr.mxu0 0.0
    %5673 = vmatpush1.msra.mxu0 0.0
    %5674 = vmatprep.subr.mxu0 0.0
    %5675 = vmatpush1.msra.mxu0 0.0
    %5676 = vmatprep.subr.mxu0 0.0
    %5677 = vmatpush1.msra.mxu0 0.0
    %5678 = vmatprep.subr.mxu0 0.0
    %5679 = vmatpush1.msra.mxu0 0.0
    %5680 = vmatprep.subr.mxu0 0.0
    %5681 = vmatpush1.msra.mxu0 %v425
    %5682 = vmatprep.subr.mxu0 0.0
    %5683 = vmatpush1.msra.mxu0 %v424
    %5684 = vmatprep.subr.mxu0 0.0
    %5685 = vmatpush1.msra.mxu0 %v423
    %5686 = vmatprep.subr.mxu0 0.0
    %5687 = vmatpush1.msra.mxu0 %v422
    %5688 = vmatprep.subr.mxu0 0.0
    %5689 = vmatpush1.msra.mxu0 %v421
    %5690 = vmatprep.subr.mxu0 0.0
    %5691 = vmatpush1.msra.mxu0 %v420
    %5692 = vmatprep.subr.mxu0 0.0
    %5693 = vmatpush1.msra.mxu0 %v419
    %5694 = vmatprep.subr.mxu0 0.0
    %5695 = vmatpush1.msra.mxu0 %v418
    %5696 = vmatprep.subr.mxu0 0.0
    %5697 = vmatpush2.msra.mxu0 0.0
    %5698 = vmatprep.subr.mxu0 0.0
    %5699 = vmatpush2.msra.mxu0 0.0
    %5700 = vmatprep.subr.mxu0 0.0
    %5701 = vmatpush2.msra.mxu0 0.0
    %5702 = vmatprep.subr.mxu0 0.0
    %5703 = vmatpush2.msra.mxu0 0.0
    %5704 = vmatprep.subr.mxu0 0.0
    %5705 = vmatpush2.msra.mxu0 0.0
    %5706 = vmatprep.subr.mxu0 0.0
    %5707 = vmatpush2.msra.mxu0 0.0
    %5708 = vmatprep.subr.mxu0 0.0
    %5709 = vmatpush2.msra.mxu0 0.0
    %5710 = vmatprep.subr.mxu0 0.0
    %5711 = vmatpush2.msra.mxu0 0.0
    %5712 = vmatprep.subr.mxu0 0.0
    %5713 = vmatpush2.msra.mxu0 0.0
    %5714 = vmatprep.subr.mxu0 0.0
    %5715 = vmatpush2.msra.mxu0 0.0
    %5716 = vmatprep.subr.mxu0 0.0
    %5717 = vmatpush2.msra.mxu0 0.0
    %5718 = vmatprep.subr.mxu0 0.0
    %5719 = vmatpush2.msra.mxu0 0.0
    %5720 = vmatprep.subr.mxu0 0.0
    %5721 = vmatpush2.msra.mxu0 0.0
    %5722 = vmatprep.subr.mxu0 0.0
    %5723 = vmatpush2.msra.mxu0 0.0
    %5724 = vmatprep.subr.mxu0 0.0
    %5725 = vmatpush2.msra.mxu0 0.0
    %5726 = vmatprep.subr.mxu0 0.0
    %5727 = vmatpush2.msra.mxu0 0.0
    %5728 = vmatprep.mubr.f32.mxu0 0.0
    %5729 = vmatmul.mubr.f32.gmra.mxu0 %v5662
    %v5730 = vpop.f32.mrf.mxu0
    %v5731 = vadd.f32 %v443, %v5730
    %v5732 = vpop.f32.mrf.mxu0
    %5733 = vdwg.mxu0
    %s5734 = scalar_lea.vmem [#allocation8], 50
    %5735 = vst [vmem:[%s5734] sm:$0x3] %v5731
    %v5736 = vsel %vm631, %v5731, -inf
    %5737 = vmax.xlane.f32.xlu0 %v5736
    %v5738 = vpop.xlane.xlu0 %5737
    %vm5739 = vcmp.eq.f32.partialorder %v5731, %v5738
    %v5740 = vsel %vm5739, %v446, 128
    %v5741 = vsel %vm631, %v5740, 2147483647
    %v5742 = vand.u32 %v5741, 65535
    %v5743 = vshra.s32 %v5741, 16
    %v5744 = vcvt.s32.f32 %v5742
    %v5745 = vcvt.s32.f32 %v5743
    %5746 = vmin.xlane.f32.xlu0 %v5745
    %v5747 = vpop.xlane.xlu0 %5746
    %vm5748 = vcmp.eq.f32.partialorder %v5745, %v5747
    %v5749 = vsel %vm5748, %v5744, inf
    %5750 = vmin.xlane.f32.xlu0 %v5749
    %v5751 = vpop.xlane.xlu0 %5750
    %v5752 = vcvt.f32.s32 %v5751
    %v5753 = vcvt.f32.s32 %v5747
    %v5754 = vshll.u32 %v5753, 16
    %v5755 = vadd.s32 %v5754, %v5752
    %vm5756 = vcmp.eq.s32.totalorder %v446, %v5755
    %v5757 = vsel %vm5756, 1, 0
    %v5758 = vcvt.s32.f32 %v5757
    %5760 = vrot.lane.b32.xlu0 %v5758, 64
    %v5761 = vpop.permute.xlu0 %5760
    %v5763 = vsel %vm222, %v5660, %v5761
    %5764 = vmatprep.subr.mxu0 %v417
    %5765 = vmatpush1.msra.mxu0 %v416
    %5766 = vmatprep.subr.mxu0 %v415
    %5767 = vmatpush1.msra.mxu0 %v414
    %5768 = vmatprep.subr.mxu0 %v413
    %5769 = vmatpush1.msra.mxu0 %v412
    %5770 = vmatprep.subr.mxu0 %v411
    %5771 = vmatpush1.msra.mxu0 %v410
    %5772 = vmatprep.subr.mxu0 %v409
    %5773 = vmatpush1.msra.mxu0 %v408
    %5774 = vmatprep.subr.mxu0 %v407
    %5775 = vmatpush1.msra.mxu0 %v406
    %5776 = vmatprep.subr.mxu0 %v405
    %5777 = vmatpush1.msra.mxu0 %v404
    %5778 = vmatprep.subr.mxu0 %v403
    %5779 = vmatpush1.msra.mxu0 %v402
    %5780 = vmatprep.subr.mxu0 %v401
    %5781 = vmatpush1.msra.mxu0 %v400
    %5782 = vmatprep.subr.mxu0 %v399
    %5783 = vmatpush1.msra.mxu0 %v398
    %5784 = vmatprep.subr.mxu0 %v397
    %5785 = vmatpush1.msra.mxu0 %v396
    %5786 = vmatprep.subr.mxu0 %v395
    %5787 = vmatpush1.msra.mxu0 %v394
    %5788 = vmatprep.subr.mxu0 %v393
    %5789 = vmatpush1.msra.mxu0 %v392
    %5790 = vmatprep.subr.mxu0 %v391
    %5791 = vmatpush1.msra.mxu0 %v390
    %5792 = vmatprep.subr.mxu0 %v389
    %5793 = vmatpush1.msra.mxu0 %v388
    %5794 = vmatprep.subr.mxu0 %v387
    %5795 = vmatpush1.msra.mxu0 %v386
    %5796 = vmatprep.subr.mxu0 0.0
    %5797 = vmatpush2.msra.mxu0 0.0
    %5798 = vmatprep.subr.mxu0 0.0
    %5799 = vmatpush2.msra.mxu0 0.0
    %5800 = vmatprep.subr.mxu0 0.0
    %5801 = vmatpush2.msra.mxu0 0.0
    %5802 = vmatprep.subr.mxu0 0.0
    %5803 = vmatpush2.msra.mxu0 0.0
    %5804 = vmatprep.subr.mxu0 0.0
    %5805 = vmatpush2.msra.mxu0 0.0
    %5806 = vmatprep.subr.mxu0 0.0
    %5807 = vmatpush2.msra.mxu0 0.0
    %5808 = vmatprep.subr.mxu0 0.0
    %5809 = vmatpush2.msra.mxu0 0.0
    %5810 = vmatprep.subr.mxu0 0.0
    %5811 = vmatpush2.msra.mxu0 0.0
    %5812 = vmatprep.subr.mxu0 0.0
    %5813 = vmatpush2.msra.mxu0 0.0
    %5814 = vmatprep.subr.mxu0 0.0
    %5815 = vmatpush2.msra.mxu0 0.0
    %5816 = vmatprep.subr.mxu0 0.0
    %5817 = vmatpush2.msra.mxu0 0.0
    %5818 = vmatprep.subr.mxu0 0.0
    %5819 = vmatpush2.msra.mxu0 0.0
    %5820 = vmatprep.subr.mxu0 0.0
    %5821 = vmatpush2.msra.mxu0 0.0
    %5822 = vmatprep.subr.mxu0 0.0
    %5823 = vmatpush2.msra.mxu0 0.0
    %5824 = vmatprep.subr.mxu0 0.0
    %5825 = vmatpush2.msra.mxu0 0.0
    %5826 = vmatprep.subr.mxu0 0.0
    %5827 = vmatpush2.msra.mxu0 0.0
    %5828 = vmatprep.mubr.f32.mxu0 0.0
    %5829 = vmatmul.mubr.f32.gmra.mxu0 %v5763
    %v5830 = vpop.f32.mrf.mxu0
    %v5831 = vadd.f32 %v431, %v5830
    %v5832 = vpop.f32.mrf.mxu0
    %v5833 = vadd.f32 %v435, %v5832
    %5834 = vdwg.mxu0
    %v5835 = vxor.u32 %v5831, 2147483648
    %v5836 = vxor.u32 %v5833, 2147483648
    %v5837 = vmul.f32 %v5835, 1.442695
    %v5838 = vpow.pop %v5837
    %v5839 = vmul.f32 %v5836, 1.442695
    %v5840 = vpow.pop %v5839
    %v5841 = vadd.f32 %v5838, 1.0
    %v5842 = vadd.f32 %v5840, 1.0
    %v5843 = vrcp.pop %v5841
    %v5844 = vmul.f32 1.0, %v5843
    %v5845 = vrcp.pop %v5842
    %v5846 = vmul.f32 1.0, %v5845
    %v5847 = vtanh.pop %v5833
    %v5848 = vmul.f32 %v5844, %v5654
    %5850 = vrot.lane.b32.xlu0 %v5847, 64
    %v5851 = vpop.permute.xlu0 %5850
    %v5853 = vmul.f32 %v5844, %v5851
    %5855 = vrot.lane.b32.xlu0 %v5853, 64
    %v5856 = vpop.permute.xlu0 %5855
    %v5858 = vadd.f32 %v5848, %v5856
    %v5859 = vtanh.pop %v5858
    %5861 = vrot.lane.b32.xlu0 %v5859, 64
    %v5862 = vpop.permute.xlu0 %5861
    %v5864 = vmul.f32 %v5846, %v5862
    %v5866 = vsel %vm222, %v5864, 0
    %5868 = vmatprep.subr.mxu0 0.0
    %5869 = vmatpush1.msra.mxu0 0.0
    %5870 = vmatprep.subr.mxu0 0.0
    %5871 = vmatpush1.msra.mxu0 0.0
    %5872 = vmatprep.subr.mxu0 0.0
    %5873 = vmatpush1.msra.mxu0 0.0
    %5874 = vmatprep.subr.mxu0 0.0
    %5875 = vmatpush1.msra.mxu0 0.0
    %5876 = vmatprep.subr.mxu0 0.0
    %5877 = vmatpush1.msra.mxu0 0.0
    %5878 = vmatprep.subr.mxu0 0.0
    %5879 = vmatpush1.msra.mxu0 0.0
    %5880 = vmatprep.subr.mxu0 0.0
    %5881 = vmatpush1.msra.mxu0 0.0
    %5882 = vmatprep.subr.mxu0 0.0
    %5883 = vmatpush1.msra.mxu0 0.0
    %5884 = vmatprep.subr.mxu0 0.0
    %5885 = vmatpush1.msra.mxu0 %v425
    %5886 = vmatprep.subr.mxu0 0.0
    %5887 = vmatpush1.msra.mxu0 %v424
    %5888 = vmatprep.subr.mxu0 0.0
    %5889 = vmatpush1.msra.mxu0 %v423
    %5890 = vmatprep.subr.mxu0 0.0
    %5891 = vmatpush1.msra.mxu0 %v422
    %5892 = vmatprep.subr.mxu0 0.0
    %5893 = vmatpush1.msra.mxu0 %v421
    %5894 = vmatprep.subr.mxu0 0.0
    %5895 = vmatpush1.msra.mxu0 %v420
    %5896 = vmatprep.subr.mxu0 0.0
    %5897 = vmatpush1.msra.mxu0 %v419
    %5898 = vmatprep.subr.mxu0 0.0
    %5899 = vmatpush1.msra.mxu0 %v418
    %5900 = vmatprep.subr.mxu0 0.0
    %5901 = vmatpush2.msra.mxu0 0.0
    %5902 = vmatprep.subr.mxu0 0.0
    %5903 = vmatpush2.msra.mxu0 0.0
    %5904 = vmatprep.subr.mxu0 0.0
    %5905 = vmatpush2.msra.mxu0 0.0
    %5906 = vmatprep.subr.mxu0 0.0
    %5907 = vmatpush2.msra.mxu0 0.0
    %5908 = vmatprep.subr.mxu0 0.0
    %5909 = vmatpush2.msra.mxu0 0.0
    %5910 = vmatprep.subr.mxu0 0.0
    %5911 = vmatpush2.msra.mxu0 0.0
    %5912 = vmatprep.subr.mxu0 0.0
    %5913 = vmatpush2.msra.mxu0 0.0
    %5914 = vmatprep.subr.mxu0 0.0
    %5915 = vmatpush2.msra.mxu0 0.0
    %5916 = vmatprep.subr.mxu0 0.0
    %5917 = vmatpush2.msra.mxu0 0.0
    %5918 = vmatprep.subr.mxu0 0.0
    %5919 = vmatpush2.msra.mxu0 0.0
    %5920 = vmatprep.subr.mxu0 0.0
    %5921 = vmatpush2.msra.mxu0 0.0
    %5922 = vmatprep.subr.mxu0 0.0
    %5923 = vmatpush2.msra.mxu0 0.0
    %5924 = vmatprep.subr.mxu0 0.0
    %5925 = vmatpush2.msra.mxu0 0.0
    %5926 = vmatprep.subr.mxu0 0.0
    %5927 = vmatpush2.msra.mxu0 0.0
    %5928 = vmatprep.subr.mxu0 0.0
    %5929 = vmatpush2.msra.mxu0 0.0
    %5930 = vmatprep.subr.mxu0 0.0
    %5931 = vmatpush2.msra.mxu0 0.0
    %5932 = vmatprep.mubr.f32.mxu0 0.0
    %5933 = vmatmul.mubr.f32.gmra.mxu0 %v5866
    %v5934 = vpop.f32.mrf.mxu0
    %v5935 = vadd.f32 %v443, %v5934
    %v5936 = vpop.f32.mrf.mxu0
    %5937 = vdwg.mxu0
    %s5938 = scalar_lea.vmem [#allocation8], 52
    %5939 = vst [vmem:[%s5938] sm:$0x3] %v5935
    %v5940 = vsel %vm631, %v5935, -inf
    %5941 = vmax.xlane.f32.xlu0 %v5940
    %v5942 = vpop.xlane.xlu0 %5941
    %vm5943 = vcmp.eq.f32.partialorder %v5935, %v5942
    %v5944 = vsel %vm5943, %v446, 128
    %v5945 = vsel %vm631, %v5944, 2147483647
    %v5946 = vand.u32 %v5945, 65535
    %v5947 = vshra.s32 %v5945, 16
    %v5948 = vcvt.s32.f32 %v5946
    %v5949 = vcvt.s32.f32 %v5947
    %5950 = vmin.xlane.f32.xlu0 %v5949
    %v5951 = vpop.xlane.xlu0 %5950
    %vm5952 = vcmp.eq.f32.partialorder %v5949, %v5951
    %v5953 = vsel %vm5952, %v5948, inf
    %5954 = vmin.xlane.f32.xlu0 %v5953
    %v5955 = vpop.xlane.xlu0 %5954
    %v5956 = vcvt.f32.s32 %v5955
    %v5957 = vcvt.f32.s32 %v5951
    %v5958 = vshll.u32 %v5957, 16
    %v5959 = vadd.s32 %v5958, %v5956
    %vm5960 = vcmp.eq.s32.totalorder %v446, %v5959
    %v5961 = vsel %vm5960, 1, 0
    %v5962 = vcvt.s32.f32 %v5961
    %5964 = vrot.lane.b32.xlu0 %v5962, 64
    %v5965 = vpop.permute.xlu0 %5964
    %v5967 = vsel %vm222, %v5864, %v5965
    %5968 = vmatprep.subr.mxu0 %v417
    %5969 = vmatpush1.msra.mxu0 %v416
    %5970 = vmatprep.subr.mxu0 %v415
    %5971 = vmatpush1.msra.mxu0 %v414
    %5972 = vmatprep.subr.mxu0 %v413
    %5973 = vmatpush1.msra.mxu0 %v412
    %5974 = vmatprep.subr.mxu0 %v411
    %5975 = vmatpush1.msra.mxu0 %v410
    %5976 = vmatprep.subr.mxu0 %v409
    %5977 = vmatpush1.msra.mxu0 %v408
    %5978 = vmatprep.subr.mxu0 %v407
    %5979 = vmatpush1.msra.mxu0 %v406
    %5980 = vmatprep.subr.mxu0 %v405
    %5981 = vmatpush1.msra.mxu0 %v404
    %5982 = vmatprep.subr.mxu0 %v403
    %5983 = vmatpush1.msra.mxu0 %v402
    %5984 = vmatprep.subr.mxu0 %v401
    %5985 = vmatpush1.msra.mxu0 %v400
    %5986 = vmatprep.subr.mxu0 %v399
    %5987 = vmatpush1.msra.mxu0 %v398
    %5988 = vmatprep.subr.mxu0 %v397
    %5989 = vmatpush1.msra.mxu0 %v396
    %5990 = vmatprep.subr.mxu0 %v395
    %5991 = vmatpush1.msra.mxu0 %v394
    %5992 = vmatprep.subr.mxu0 %v393
    %5993 = vmatpush1.msra.mxu0 %v392
    %5994 = vmatprep.subr.mxu0 %v391
    %5995 = vmatpush1.msra.mxu0 %v390
    %5996 = vmatprep.subr.mxu0 %v389
    %5997 = vmatpush1.msra.mxu0 %v388
    %5998 = vmatprep.subr.mxu0 %v387
    %5999 = vmatpush1.msra.mxu0 %v386
    %6000 = vmatprep.subr.mxu0 0.0
    %6001 = vmatpush2.msra.mxu0 0.0
    %6002 = vmatprep.subr.mxu0 0.0
    %6003 = vmatpush2.msra.mxu0 0.0
    %6004 = vmatprep.subr.mxu0 0.0
    %6005 = vmatpush2.msra.mxu0 0.0
    %6006 = vmatprep.subr.mxu0 0.0
    %6007 = vmatpush2.msra.mxu0 0.0
    %6008 = vmatprep.subr.mxu0 0.0
    %6009 = vmatpush2.msra.mxu0 0.0
    %6010 = vmatprep.subr.mxu0 0.0
    %6011 = vmatpush2.msra.mxu0 0.0
    %6012 = vmatprep.subr.mxu0 0.0
    %6013 = vmatpush2.msra.mxu0 0.0
    %6014 = vmatprep.subr.mxu0 0.0
    %6015 = vmatpush2.msra.mxu0 0.0
    %6016 = vmatprep.subr.mxu0 0.0
    %6017 = vmatpush2.msra.mxu0 0.0
    %6018 = vmatprep.subr.mxu0 0.0
    %6019 = vmatpush2.msra.mxu0 0.0
    %6020 = vmatprep.subr.mxu0 0.0
    %6021 = vmatpush2.msra.mxu0 0.0
    %6022 = vmatprep.subr.mxu0 0.0
    %6023 = vmatpush2.msra.mxu0 0.0
    %6024 = vmatprep.subr.mxu0 0.0
    %6025 = vmatpush2.msra.mxu0 0.0
    %6026 = vmatprep.subr.mxu0 0.0
    %6027 = vmatpush2.msra.mxu0 0.0
    %6028 = vmatprep.subr.mxu0 0.0
    %6029 = vmatpush2.msra.mxu0 0.0
    %6030 = vmatprep.subr.mxu0 0.0
    %6031 = vmatpush2.msra.mxu0 0.0
    %6032 = vmatprep.mubr.f32.mxu0 0.0
    %6033 = vmatmul.mubr.f32.gmra.mxu0 %v5967
    %v6034 = vpop.f32.mrf.mxu0
    %v6035 = vadd.f32 %v431, %v6034
    %v6036 = vpop.f32.mrf.mxu0
    %v6037 = vadd.f32 %v435, %v6036
    %6038 = vdwg.mxu0
    %v6039 = vxor.u32 %v6035, 2147483648
    %v6040 = vxor.u32 %v6037, 2147483648
    %v6041 = vmul.f32 %v6039, 1.442695
    %v6042 = vpow.pop %v6041
    %v6043 = vmul.f32 %v6040, 1.442695
    %v6044 = vpow.pop %v6043
    %v6045 = vadd.f32 %v6042, 1.0
    %v6046 = vadd.f32 %v6044, 1.0
    %v6047 = vrcp.pop %v6045
    %v6048 = vmul.f32 1.0, %v6047
    %v6049 = vrcp.pop %v6046
    %v6050 = vmul.f32 1.0, %v6049
    %v6051 = vtanh.pop %v6037
    %v6052 = vmul.f32 %v6048, %v5858
    %6054 = vrot.lane.b32.xlu0 %v6051, 64
    %v6055 = vpop.permute.xlu0 %6054
    %v6057 = vmul.f32 %v6048, %v6055
    %6059 = vrot.lane.b32.xlu0 %v6057, 64
    %v6060 = vpop.permute.xlu0 %6059
    %v6062 = vadd.f32 %v6052, %v6060
    %v6063 = vtanh.pop %v6062
    %6065 = vrot.lane.b32.xlu0 %v6063, 64
    %v6066 = vpop.permute.xlu0 %6065
    %v6068 = vmul.f32 %v6050, %v6066
    %v6070 = vsel %vm222, %v6068, 0
    %6072 = vmatprep.subr.mxu0 0.0
    %6073 = vmatpush1.msra.mxu0 0.0
    %6074 = vmatprep.subr.mxu0 0.0
    %6075 = vmatpush1.msra.mxu0 0.0
    %6076 = vmatprep.subr.mxu0 0.0
    %6077 = vmatpush1.msra.mxu0 0.0
    %6078 = vmatprep.subr.mxu0 0.0
    %6079 = vmatpush1.msra.mxu0 0.0
    %6080 = vmatprep.subr.mxu0 0.0
    %6081 = vmatpush1.msra.mxu0 0.0
    %6082 = vmatprep.subr.mxu0 0.0
    %6083 = vmatpush1.msra.mxu0 0.0
    %6084 = vmatprep.subr.mxu0 0.0
    %6085 = vmatpush1.msra.mxu0 0.0
    %6086 = vmatprep.subr.mxu0 0.0
    %6087 = vmatpush1.msra.mxu0 0.0
    %6088 = vmatprep.subr.mxu0 0.0
    %6089 = vmatpush1.msra.mxu0 %v425
    %6090 = vmatprep.subr.mxu0 0.0
    %6091 = vmatpush1.msra.mxu0 %v424
    %6092 = vmatprep.subr.mxu0 0.0
    %6093 = vmatpush1.msra.mxu0 %v423
    %6094 = vmatprep.subr.mxu0 0.0
    %6095 = vmatpush1.msra.mxu0 %v422
    %6096 = vmatprep.subr.mxu0 0.0
    %6097 = vmatpush1.msra.mxu0 %v421
    %6098 = vmatprep.subr.mxu0 0.0
    %6099 = vmatpush1.msra.mxu0 %v420
    %6100 = vmatprep.subr.mxu0 0.0
    %6101 = vmatpush1.msra.mxu0 %v419
    %6102 = vmatprep.subr.mxu0 0.0
    %6103 = vmatpush1.msra.mxu0 %v418
    %6104 = vmatprep.subr.mxu0 0.0
    %6105 = vmatpush2.msra.mxu0 0.0
    %6106 = vmatprep.subr.mxu0 0.0
    %6107 = vmatpush2.msra.mxu0 0.0
    %6108 = vmatprep.subr.mxu0 0.0
    %6109 = vmatpush2.msra.mxu0 0.0
    %6110 = vmatprep.subr.mxu0 0.0
    %6111 = vmatpush2.msra.mxu0 0.0
    %6112 = vmatprep.subr.mxu0 0.0
    %6113 = vmatpush2.msra.mxu0 0.0
    %6114 = vmatprep.subr.mxu0 0.0
    %6115 = vmatpush2.msra.mxu0 0.0
    %6116 = vmatprep.subr.mxu0 0.0
    %6117 = vmatpush2.msra.mxu0 0.0
    %6118 = vmatprep.subr.mxu0 0.0
    %6119 = vmatpush2.msra.mxu0 0.0
    %6120 = vmatprep.subr.mxu0 0.0
    %6121 = vmatpush2.msra.mxu0 0.0
    %6122 = vmatprep.subr.mxu0 0.0
    %6123 = vmatpush2.msra.mxu0 0.0
    %6124 = vmatprep.subr.mxu0 0.0
    %6125 = vmatpush2.msra.mxu0 0.0
    %6126 = vmatprep.subr.mxu0 0.0
    %6127 = vmatpush2.msra.mxu0 0.0
    %6128 = vmatprep.subr.mxu0 0.0
    %6129 = vmatpush2.msra.mxu0 0.0
    %6130 = vmatprep.subr.mxu0 0.0
    %6131 = vmatpush2.msra.mxu0 0.0
    %6132 = vmatprep.subr.mxu0 0.0
    %6133 = vmatpush2.msra.mxu0 0.0
    %6134 = vmatprep.subr.mxu0 0.0
    %6135 = vmatpush2.msra.mxu0 0.0
    %6136 = vmatprep.mubr.f32.mxu0 0.0
    %6137 = vmatmul.mubr.f32.gmra.mxu0 %v6070
    %v6138 = vpop.f32.mrf.mxu0
    %v6139 = vadd.f32 %v443, %v6138
    %v6140 = vpop.f32.mrf.mxu0
    %6141 = vdwg.mxu0
    %s6142 = scalar_lea.vmem [#allocation8], 54
    %6143 = vst [vmem:[%s6142] sm:$0x3] %v6139
    %v6144 = vsel %vm631, %v6139, -inf
    %6145 = vmax.xlane.f32.xlu0 %v6144
    %v6146 = vpop.xlane.xlu0 %6145
    %vm6147 = vcmp.eq.f32.partialorder %v6139, %v6146
    %v6148 = vsel %vm6147, %v446, 128
    %v6149 = vsel %vm631, %v6148, 2147483647
    %v6150 = vand.u32 %v6149, 65535
    %v6151 = vshra.s32 %v6149, 16
    %v6152 = vcvt.s32.f32 %v6150
    %v6153 = vcvt.s32.f32 %v6151
    %6154 = vmin.xlane.f32.xlu0 %v6153
    %v6155 = vpop.xlane.xlu0 %6154
    %vm6156 = vcmp.eq.f32.partialorder %v6153, %v6155
    %v6157 = vsel %vm6156, %v6152, inf
    %6158 = vmin.xlane.f32.xlu0 %v6157
    %v6159 = vpop.xlane.xlu0 %6158
    %v6160 = vcvt.f32.s32 %v6159
    %v6161 = vcvt.f32.s32 %v6155
    %v6162 = vshll.u32 %v6161, 16
    %v6163 = vadd.s32 %v6162, %v6160
    %vm6164 = vcmp.eq.s32.totalorder %v446, %v6163
    %v6165 = vsel %vm6164, 1, 0
    %v6166 = vcvt.s32.f32 %v6165
    %6168 = vrot.lane.b32.xlu0 %v6166, 64
    %v6169 = vpop.permute.xlu0 %6168
    %v6171 = vsel %vm222, %v6068, %v6169
    %6172 = vmatprep.subr.mxu0 %v417
    %6173 = vmatpush1.msra.mxu0 %v416
    %6174 = vmatprep.subr.mxu0 %v415
    %6175 = vmatpush1.msra.mxu0 %v414
    %6176 = vmatprep.subr.mxu0 %v413
    %6177 = vmatpush1.msra.mxu0 %v412
    %6178 = vmatprep.subr.mxu0 %v411
    %6179 = vmatpush1.msra.mxu0 %v410
    %6180 = vmatprep.subr.mxu0 %v409
    %6181 = vmatpush1.msra.mxu0 %v408
    %6182 = vmatprep.subr.mxu0 %v407
    %6183 = vmatpush1.msra.mxu0 %v406
    %6184 = vmatprep.subr.mxu0 %v405
    %6185 = vmatpush1.msra.mxu0 %v404
    %6186 = vmatprep.subr.mxu0 %v403
    %6187 = vmatpush1.msra.mxu0 %v402
    %6188 = vmatprep.subr.mxu0 %v401
    %6189 = vmatpush1.msra.mxu0 %v400
    %6190 = vmatprep.subr.mxu0 %v399
    %6191 = vmatpush1.msra.mxu0 %v398
    %6192 = vmatprep.subr.mxu0 %v397
    %6193 = vmatpush1.msra.mxu0 %v396
    %6194 = vmatprep.subr.mxu0 %v395
    %6195 = vmatpush1.msra.mxu0 %v394
    %6196 = vmatprep.subr.mxu0 %v393
    %6197 = vmatpush1.msra.mxu0 %v392
    %6198 = vmatprep.subr.mxu0 %v391
    %6199 = vmatpush1.msra.mxu0 %v390
    %6200 = vmatprep.subr.mxu0 %v389
    %6201 = vmatpush1.msra.mxu0 %v388
    %6202 = vmatprep.subr.mxu0 %v387
    %6203 = vmatpush1.msra.mxu0 %v386
    %6204 = vmatprep.subr.mxu0 0.0
    %6205 = vmatpush2.msra.mxu0 0.0
    %6206 = vmatprep.subr.mxu0 0.0
    %6207 = vmatpush2.msra.mxu0 0.0
    %6208 = vmatprep.subr.mxu0 0.0
    %6209 = vmatpush2.msra.mxu0 0.0
    %6210 = vmatprep.subr.mxu0 0.0
    %6211 = vmatpush2.msra.mxu0 0.0
    %6212 = vmatprep.subr.mxu0 0.0
    %6213 = vmatpush2.msra.mxu0 0.0
    %6214 = vmatprep.subr.mxu0 0.0
    %6215 = vmatpush2.msra.mxu0 0.0
    %6216 = vmatprep.subr.mxu0 0.0
    %6217 = vmatpush2.msra.mxu0 0.0
    %6218 = vmatprep.subr.mxu0 0.0
    %6219 = vmatpush2.msra.mxu0 0.0
    %6220 = vmatprep.subr.mxu0 0.0
    %6221 = vmatpush2.msra.mxu0 0.0
    %6222 = vmatprep.subr.mxu0 0.0
    %6223 = vmatpush2.msra.mxu0 0.0
    %6224 = vmatprep.subr.mxu0 0.0
    %6225 = vmatpush2.msra.mxu0 0.0
    %6226 = vmatprep.subr.mxu0 0.0
    %6227 = vmatpush2.msra.mxu0 0.0
    %6228 = vmatprep.subr.mxu0 0.0
    %6229 = vmatpush2.msra.mxu0 0.0
    %6230 = vmatprep.subr.mxu0 0.0
    %6231 = vmatpush2.msra.mxu0 0.0
    %6232 = vmatprep.subr.mxu0 0.0
    %6233 = vmatpush2.msra.mxu0 0.0
    %6234 = vmatprep.subr.mxu0 0.0
    %6235 = vmatpush2.msra.mxu0 0.0
    %6236 = vmatprep.mubr.f32.mxu0 0.0
    %6237 = vmatmul.mubr.f32.gmra.mxu0 %v6171
    %v6238 = vpop.f32.mrf.mxu0
    %v6239 = vadd.f32 %v431, %v6238
    %v6240 = vpop.f32.mrf.mxu0
    %v6241 = vadd.f32 %v435, %v6240
    %6242 = vdwg.mxu0
    %v6243 = vxor.u32 %v6239, 2147483648
    %v6244 = vxor.u32 %v6241, 2147483648
    %v6245 = vmul.f32 %v6243, 1.442695
    %v6246 = vpow.pop %v6245
    %v6247 = vmul.f32 %v6244, 1.442695
    %v6248 = vpow.pop %v6247
    %v6249 = vadd.f32 %v6246, 1.0
    %v6250 = vadd.f32 %v6248, 1.0
    %v6251 = vrcp.pop %v6249
    %v6252 = vmul.f32 1.0, %v6251
    %v6253 = vrcp.pop %v6250
    %v6254 = vmul.f32 1.0, %v6253
    %v6255 = vtanh.pop %v6241
    %v6256 = vmul.f32 %v6252, %v6062
    %6258 = vrot.lane.b32.xlu0 %v6255, 64
    %v6259 = vpop.permute.xlu0 %6258
    %v6261 = vmul.f32 %v6252, %v6259
    %6263 = vrot.lane.b32.xlu0 %v6261, 64
    %v6264 = vpop.permute.xlu0 %6263
    %v6266 = vadd.f32 %v6256, %v6264
    %v6267 = vtanh.pop %v6266
    %6269 = vrot.lane.b32.xlu0 %v6267, 64
    %v6270 = vpop.permute.xlu0 %6269
    %v6272 = vmul.f32 %v6254, %v6270
    %v6274 = vsel %vm222, %v6272, 0
    %6276 = vmatprep.subr.mxu0 0.0
    %6277 = vmatpush1.msra.mxu0 0.0
    %6278 = vmatprep.subr.mxu0 0.0
    %6279 = vmatpush1.msra.mxu0 0.0
    %6280 = vmatprep.subr.mxu0 0.0
    %6281 = vmatpush1.msra.mxu0 0.0
    %6282 = vmatprep.subr.mxu0 0.0
    %6283 = vmatpush1.msra.mxu0 0.0
    %6284 = vmatprep.subr.mxu0 0.0
    %6285 = vmatpush1.msra.mxu0 0.0
    %6286 = vmatprep.subr.mxu0 0.0
    %6287 = vmatpush1.msra.mxu0 0.0
    %6288 = vmatprep.subr.mxu0 0.0
    %6289 = vmatpush1.msra.mxu0 0.0
    %6290 = vmatprep.subr.mxu0 0.0
    %6291 = vmatpush1.msra.mxu0 0.0
    %6292 = vmatprep.subr.mxu0 0.0
    %6293 = vmatpush1.msra.mxu0 %v425
    %6294 = vmatprep.subr.mxu0 0.0
    %6295 = vmatpush1.msra.mxu0 %v424
    %6296 = vmatprep.subr.mxu0 0.0
    %6297 = vmatpush1.msra.mxu0 %v423
    %6298 = vmatprep.subr.mxu0 0.0
    %6299 = vmatpush1.msra.mxu0 %v422
    %6300 = vmatprep.subr.mxu0 0.0
    %6301 = vmatpush1.msra.mxu0 %v421
    %6302 = vmatprep.subr.mxu0 0.0
    %6303 = vmatpush1.msra.mxu0 %v420
    %6304 = vmatprep.subr.mxu0 0.0
    %6305 = vmatpush1.msra.mxu0 %v419
    %6306 = vmatprep.subr.mxu0 0.0
    %6307 = vmatpush1.msra.mxu0 %v418
    %6308 = vmatprep.subr.mxu0 0.0
    %6309 = vmatpush2.msra.mxu0 0.0
    %6310 = vmatprep.subr.mxu0 0.0
    %6311 = vmatpush2.msra.mxu0 0.0
    %6312 = vmatprep.subr.mxu0 0.0
    %6313 = vmatpush2.msra.mxu0 0.0
    %6314 = vmatprep.subr.mxu0 0.0
    %6315 = vmatpush2.msra.mxu0 0.0
    %6316 = vmatprep.subr.mxu0 0.0
    %6317 = vmatpush2.msra.mxu0 0.0
    %6318 = vmatprep.subr.mxu0 0.0
    %6319 = vmatpush2.msra.mxu0 0.0
    %6320 = vmatprep.subr.mxu0 0.0
    %6321 = vmatpush2.msra.mxu0 0.0
    %6322 = vmatprep.subr.mxu0 0.0
    %6323 = vmatpush2.msra.mxu0 0.0
    %6324 = vmatprep.subr.mxu0 0.0
    %6325 = vmatpush2.msra.mxu0 0.0
    %6326 = vmatprep.subr.mxu0 0.0
    %6327 = vmatpush2.msra.mxu0 0.0
    %6328 = vmatprep.subr.mxu0 0.0
    %6329 = vmatpush2.msra.mxu0 0.0
    %6330 = vmatprep.subr.mxu0 0.0
    %6331 = vmatpush2.msra.mxu0 0.0
    %6332 = vmatprep.subr.mxu0 0.0
    %6333 = vmatpush2.msra.mxu0 0.0
    %6334 = vmatprep.subr.mxu0 0.0
    %6335 = vmatpush2.msra.mxu0 0.0
    %6336 = vmatprep.subr.mxu0 0.0
    %6337 = vmatpush2.msra.mxu0 0.0
    %6338 = vmatprep.subr.mxu0 0.0
    %6339 = vmatpush2.msra.mxu0 0.0
    %6340 = vmatprep.mubr.f32.mxu0 0.0
    %6341 = vmatmul.mubr.f32.gmra.mxu0 %v6274
    %v6342 = vpop.f32.mrf.mxu0
    %v6343 = vadd.f32 %v443, %v6342
    %v6344 = vpop.f32.mrf.mxu0
    %6345 = vdwg.mxu0
    %s6346 = scalar_lea.vmem [#allocation8], 56
    %6347 = vst [vmem:[%s6346] sm:$0x3] %v6343
    %v6348 = vsel %vm631, %v6343, -inf
    %6349 = vmax.xlane.f32.xlu0 %v6348
    %v6350 = vpop.xlane.xlu0 %6349
    %vm6351 = vcmp.eq.f32.partialorder %v6343, %v6350
    %v6352 = vsel %vm6351, %v446, 128
    %v6353 = vsel %vm631, %v6352, 2147483647
    %v6354 = vand.u32 %v6353, 65535
    %v6355 = vshra.s32 %v6353, 16
    %v6356 = vcvt.s32.f32 %v6354
    %v6357 = vcvt.s32.f32 %v6355
    %6358 = vmin.xlane.f32.xlu0 %v6357
    %v6359 = vpop.xlane.xlu0 %6358
    %vm6360 = vcmp.eq.f32.partialorder %v6357, %v6359
    %v6361 = vsel %vm6360, %v6356, inf
    %6362 = vmin.xlane.f32.xlu0 %v6361
    %v6363 = vpop.xlane.xlu0 %6362
    %v6364 = vcvt.f32.s32 %v6363
    %v6365 = vcvt.f32.s32 %v6359
    %v6366 = vshll.u32 %v6365, 16
    %v6367 = vadd.s32 %v6366, %v6364
    %vm6368 = vcmp.eq.s32.totalorder %v446, %v6367
    %v6369 = vsel %vm6368, 1, 0
    %v6370 = vcvt.s32.f32 %v6369
    %6372 = vrot.lane.b32.xlu0 %v6370, 64
    %v6373 = vpop.permute.xlu0 %6372
    %v6375 = vsel %vm222, %v6272, %v6373
    %6376 = vmatprep.subr.mxu0 %v417
    %6377 = vmatpush1.msra.mxu0 %v416
    %6378 = vmatprep.subr.mxu0 %v415
    %6379 = vmatpush1.msra.mxu0 %v414
    %6380 = vmatprep.subr.mxu0 %v413
    %6381 = vmatpush1.msra.mxu0 %v412
    %6382 = vmatprep.subr.mxu0 %v411
    %6383 = vmatpush1.msra.mxu0 %v410
    %6384 = vmatprep.subr.mxu0 %v409
    %6385 = vmatpush1.msra.mxu0 %v408
    %6386 = vmatprep.subr.mxu0 %v407
    %6387 = vmatpush1.msra.mxu0 %v406
    %6388 = vmatprep.subr.mxu0 %v405
    %6389 = vmatpush1.msra.mxu0 %v404
    %6390 = vmatprep.subr.mxu0 %v403
    %6391 = vmatpush1.msra.mxu0 %v402
    %6392 = vmatprep.subr.mxu0 %v401
    %6393 = vmatpush1.msra.mxu0 %v400
    %6394 = vmatprep.subr.mxu0 %v399
    %6395 = vmatpush1.msra.mxu0 %v398
    %6396 = vmatprep.subr.mxu0 %v397
    %6397 = vmatpush1.msra.mxu0 %v396
    %6398 = vmatprep.subr.mxu0 %v395
    %6399 = vmatpush1.msra.mxu0 %v394
    %6400 = vmatprep.subr.mxu0 %v393
    %6401 = vmatpush1.msra.mxu0 %v392
    %6402 = vmatprep.subr.mxu0 %v391
    %6403 = vmatpush1.msra.mxu0 %v390
    %6404 = vmatprep.subr.mxu0 %v389
    %6405 = vmatpush1.msra.mxu0 %v388
    %6406 = vmatprep.subr.mxu0 %v387
    %6407 = vmatpush1.msra.mxu0 %v386
    %6408 = vmatprep.subr.mxu0 0.0
    %6409 = vmatpush2.msra.mxu0 0.0
    %6410 = vmatprep.subr.mxu0 0.0
    %6411 = vmatpush2.msra.mxu0 0.0
    %6412 = vmatprep.subr.mxu0 0.0
    %6413 = vmatpush2.msra.mxu0 0.0
    %6414 = vmatprep.subr.mxu0 0.0
    %6415 = vmatpush2.msra.mxu0 0.0
    %6416 = vmatprep.subr.mxu0 0.0
    %6417 = vmatpush2.msra.mxu0 0.0
    %6418 = vmatprep.subr.mxu0 0.0
    %6419 = vmatpush2.msra.mxu0 0.0
    %6420 = vmatprep.subr.mxu0 0.0
    %6421 = vmatpush2.msra.mxu0 0.0
    %6422 = vmatprep.subr.mxu0 0.0
    %6423 = vmatpush2.msra.mxu0 0.0
    %6424 = vmatprep.subr.mxu0 0.0
    %6425 = vmatpush2.msra.mxu0 0.0
    %6426 = vmatprep.subr.mxu0 0.0
    %6427 = vmatpush2.msra.mxu0 0.0
    %6428 = vmatprep.subr.mxu0 0.0
    %6429 = vmatpush2.msra.mxu0 0.0
    %6430 = vmatprep.subr.mxu0 0.0
    %6431 = vmatpush2.msra.mxu0 0.0
    %6432 = vmatprep.subr.mxu0 0.0
    %6433 = vmatpush2.msra.mxu0 0.0
    %6434 = vmatprep.subr.mxu0 0.0
    %6435 = vmatpush2.msra.mxu0 0.0
    %6436 = vmatprep.subr.mxu0 0.0
    %6437 = vmatpush2.msra.mxu0 0.0
    %6438 = vmatprep.subr.mxu0 0.0
    %6439 = vmatpush2.msra.mxu0 0.0
    %6440 = vmatprep.mubr.f32.mxu0 0.0
    %6441 = vmatmul.mubr.f32.gmra.mxu0 %v6375
    %v6442 = vpop.f32.mrf.mxu0
    %v6443 = vadd.f32 %v431, %v6442
    %v6444 = vpop.f32.mrf.mxu0
    %v6445 = vadd.f32 %v435, %v6444
    %6446 = vdwg.mxu0
    %v6447 = vxor.u32 %v6443, 2147483648
    %v6448 = vxor.u32 %v6445, 2147483648
    %v6449 = vmul.f32 %v6447, 1.442695
    %v6450 = vpow.pop %v6449
    %v6451 = vmul.f32 %v6448, 1.442695
    %v6452 = vpow.pop %v6451
    %v6453 = vadd.f32 %v6450, 1.0
    %v6454 = vadd.f32 %v6452, 1.0
    %v6455 = vrcp.pop %v6453
    %v6456 = vmul.f32 1.0, %v6455
    %v6457 = vrcp.pop %v6454
    %v6458 = vmul.f32 1.0, %v6457
    %v6459 = vtanh.pop %v6445
    %v6460 = vmul.f32 %v6456, %v6266
    %6462 = vrot.lane.b32.xlu0 %v6459, 64
    %v6463 = vpop.permute.xlu0 %6462
    %v6465 = vmul.f32 %v6456, %v6463
    %6467 = vrot.lane.b32.xlu0 %v6465, 64
    %v6468 = vpop.permute.xlu0 %6467
    %v6470 = vadd.f32 %v6460, %v6468
    %v6471 = vtanh.pop %v6470
    %6473 = vrot.lane.b32.xlu0 %v6471, 64
    %v6474 = vpop.permute.xlu0 %6473
    %v6476 = vmul.f32 %v6458, %v6474
    %v6478 = vsel %vm222, %v6476, 0
    %6480 = vmatprep.subr.mxu0 0.0
    %6481 = vmatpush1.msra.mxu0 0.0
    %6482 = vmatprep.subr.mxu0 0.0
    %6483 = vmatpush1.msra.mxu0 0.0
    %6484 = vmatprep.subr.mxu0 0.0
    %6485 = vmatpush1.msra.mxu0 0.0
    %6486 = vmatprep.subr.mxu0 0.0
    %6487 = vmatpush1.msra.mxu0 0.0
    %6488 = vmatprep.subr.mxu0 0.0
    %6489 = vmatpush1.msra.mxu0 0.0
    %6490 = vmatprep.subr.mxu0 0.0
    %6491 = vmatpush1.msra.mxu0 0.0
    %6492 = vmatprep.subr.mxu0 0.0
    %6493 = vmatpush1.msra.mxu0 0.0
    %6494 = vmatprep.subr.mxu0 0.0
    %6495 = vmatpush1.msra.mxu0 0.0
    %6496 = vmatprep.subr.mxu0 0.0
    %6497 = vmatpush1.msra.mxu0 %v425
    %6498 = vmatprep.subr.mxu0 0.0
    %6499 = vmatpush1.msra.mxu0 %v424
    %6500 = vmatprep.subr.mxu0 0.0
    %6501 = vmatpush1.msra.mxu0 %v423
    %6502 = vmatprep.subr.mxu0 0.0
    %6503 = vmatpush1.msra.mxu0 %v422
    %6504 = vmatprep.subr.mxu0 0.0
    %6505 = vmatpush1.msra.mxu0 %v421
    %6506 = vmatprep.subr.mxu0 0.0
    %6507 = vmatpush1.msra.mxu0 %v420
    %6508 = vmatprep.subr.mxu0 0.0
    %6509 = vmatpush1.msra.mxu0 %v419
    %6510 = vmatprep.subr.mxu0 0.0
    %6511 = vmatpush1.msra.mxu0 %v418
    %6512 = vmatprep.subr.mxu0 0.0
    %6513 = vmatpush2.msra.mxu0 0.0
    %6514 = vmatprep.subr.mxu0 0.0
    %6515 = vmatpush2.msra.mxu0 0.0
    %6516 = vmatprep.subr.mxu0 0.0
    %6517 = vmatpush2.msra.mxu0 0.0
    %6518 = vmatprep.subr.mxu0 0.0
    %6519 = vmatpush2.msra.mxu0 0.0
    %6520 = vmatprep.subr.mxu0 0.0
    %6521 = vmatpush2.msra.mxu0 0.0
    %6522 = vmatprep.subr.mxu0 0.0
    %6523 = vmatpush2.msra.mxu0 0.0
    %6524 = vmatprep.subr.mxu0 0.0
    %6525 = vmatpush2.msra.mxu0 0.0
    %6526 = vmatprep.subr.mxu0 0.0
    %6527 = vmatpush2.msra.mxu0 0.0
    %6528 = vmatprep.subr.mxu0 0.0
    %6529 = vmatpush2.msra.mxu0 0.0
    %6530 = vmatprep.subr.mxu0 0.0
    %6531 = vmatpush2.msra.mxu0 0.0
    %6532 = vmatprep.subr.mxu0 0.0
    %6533 = vmatpush2.msra.mxu0 0.0
    %6534 = vmatprep.subr.mxu0 0.0
    %6535 = vmatpush2.msra.mxu0 0.0
    %6536 = vmatprep.subr.mxu0 0.0
    %6537 = vmatpush2.msra.mxu0 0.0
    %6538 = vmatprep.subr.mxu0 0.0
    %6539 = vmatpush2.msra.mxu0 0.0
    %6540 = vmatprep.subr.mxu0 0.0
    %6541 = vmatpush2.msra.mxu0 0.0
    %6542 = vmatprep.subr.mxu0 0.0
    %6543 = vmatpush2.msra.mxu0 0.0
    %6544 = vmatprep.mubr.f32.mxu0 0.0
    %6545 = vmatmul.mubr.f32.gmra.mxu0 %v6478
    %v6546 = vpop.f32.mrf.mxu0
    %v6547 = vadd.f32 %v443, %v6546
    %v6548 = vpop.f32.mrf.mxu0
    %6549 = vdwg.mxu0
    %s6550 = scalar_lea.vmem [#allocation8], 58
    %6551 = vst [vmem:[%s6550] sm:$0x3] %v6547
    // Predicated region
    $region62: #{tpu_custom_call.1} parent=1 // pred_check
      _
    $region63: #{tpu_custom_call.1} parent=1 // pred_check_branch
      %6553 = sbr.rel (0) target = $region65
    $region64: #{tpu_custom_call.1} parent=1 // pred_region
      %s6555 = ssub.s32 960, 960
      %6556 = vsyncadd [#allocation4], %s6555
      %s6557 = sshll.u32 [#allocation8], 4
      %s6558 = int_to_ptr.vmem [resolvable:$true] %s6557
      %6563 = dma.vmem_to_hbm [thread:$0]  %s6558, 960, %s12, [#allocation4], 32, 32, 2
    $region65: #{tpu_custom_call.1} parent=1 // pred_fallthru
      _
    // Predicated region
    $region66: #{tpu_custom_call.1} parent=1 // pred_check
      _
    $region67: #{tpu_custom_call.1} parent=1 // pred_check_branch
      %6565 = sbr.rel (0) target = $region69
    $region68: #{tpu_custom_call.1} parent=1 // pred_region
      %6566 = dma.done [#allocation4], 960
    $region69: #{tpu_custom_call.1} parent=1 // pred_fallthru
      _
    %6567 = vsyncpa [#allocation3], 1
    %6568 = vsyncpa [#allocation6], 1
    %6569 = vsyncpa [#allocation4], 1

</llo_original>
